<compile_context>
chip_gen: v6e
topology: v6e:2x2x1
jax: 0.10.0
libtpu: 0.0.40
codegen_flags: <defaults>
</compile_context>

<pallas_src>
import functools
import math

import jax
import jax.numpy as jnp
from jax.experimental import pallas as pl
from jax.experimental.pallas import tpu as pltpu

VMEM_SPEC = pl.BlockSpec(memory_space=pltpu.MemorySpace.VMEM)

_BLOCK_KEYS = ('wih', 'bih',
               'whh_rz_f', 'whh_n_f', 'bhh_rz_f', 'bhh_n_f',
               'whh_rz_b', 'whh_n_b', 'bhh_rz_b', 'bhh_n_b',
               'res_w_f', 'res_w_b', 'res_b')


def _mm(a, b):
    """MXU dot: bf16 operands (bf16-native MXU on v6e/v7x), f32 accumulation."""
    return jnp.dot(a.astype(jnp.bfloat16), b.astype(jnp.bfloat16),
                   preferred_element_type=jnp.float32)


def _gru_step(gi_rz, gi_n, h, w_rz, w_n, b_n, H):
    """One PyTorch GRU cell step.

    gi_rz : (N, 2H) hoisted x@W_i{r,z} + b_i{r,z} + b_h{r,z}
    gi_n  : (N, H)  hoisted x@W_in + b_in       (b_hn must stay inside r*(...))
    Only the two fused h@W dots + gate math remain on the serial chain.
    """
    rz = jax.nn.sigmoid(gi_rz + _mm(h, w_rz))                 # (N, 2H) f32
    r = rz[:, :H]
    z = rz[:, H:2 * H]
    n = jnp.tanh(gi_n + r * (_mm(h, w_n) + b_n))
    return n + z * (h - n)                                     # (1-z)*n + z*h


# ----------------------------- kernel -----------------------------------------

def _pipr_kernel(num_blocks, L, B, H, V, *refs):
    """Full PIPR forward for BOTH proteins folded into one batch of N = 2B rows.

    Row layout (time-major): row index = t*N + p*B + b  (t=time, p=protein, b=batch).
    refs = [tok, emb, proj_w, proj_b, <13 per block>...,
            cls_w1a, cls_w1b, cls_b1, cls_w2, cls_b2, out, of_scr, ob_scr]
    """
    N = 2 * B
    tok_ref, emb_ref, proj_w_ref, proj_b_ref = refs[:4]
    blk_refs = [refs[4 + 13 * i: 4 + 13 * (i + 1)] for i in range(num_blocks)]
    (w1a_ref, w1b_ref, b1_ref, w2_ref, b2_ref,
     out_ref, of_scr, ob_scr) = refs[4 + 13 * num_blocks:]

    # --- Embedding gather as a one-hot MXU matmul; padding_idx=0 handled by the
    #     zero row of the table (kept resident in VMEM).
    tok = tok_ref[...]                                               # (L*N, 1) i32
    vocab_iota = jax.lax.broadcasted_iota(jnp.int32, (L * N, V), 1)
    onehot = (tok == vocab_iota).astype(jnp.float32)                 # (L*N, V)
    x = _mm(onehot, emb_ref[...])                                    # (L*N, E) f32

    # --- Projection Conv1d(E, H, k=1): ONE (L*N, E) @ (E, H) dot.
    x = _mm(x, proj_w_ref[...]) + proj_b_ref[...]                    # (L*N, H) f32

    for (wih_ref, bih_ref,
         whh_rz_f_ref, whh_n_f_ref, bhh_rz_f_ref, bhh_n_f_ref,
         whh_rz_b_ref, whh_n_b_ref, bhh_rz_b_ref, bhh_n_b_ref,
         res_wf_ref, res_wb_ref, res_b_ref) in blk_refs:
        # Hoist loop-invariant weight / bias loads out of the recurrence.
        whh_rz_f = whh_rz_f_ref[...]
        whh_n_f = whh_n_f_ref[...]
        whh_rz_b = whh_rz_b_ref[...]
        whh_n_b = whh_n_b_ref[...]
        bhh_n_f = jnp.broadcast_to(bhh_n_f_ref[...], (N, H))         # hoisted bcast
        bhh_n_b = jnp.broadcast_to(bhh_n_b_ref[...], (N, H))

        # Hoisted input gates: ONE (L*N, H) @ (H, 6H) dot for both directions.
        # Fused column order: [fwd r,z | bwd r,z | fwd n | bwd n].
        gi = _mm(x, wih_ref[...]) + bih_ref[...]                     # (L*N, 6H)
        gi_rz_f = gi[:, 0:2 * H] + bhh_rz_f_ref[...]   # b_h{r,z} folded in here
        gi_rz_b = gi[:, 2 * H:4 * H] + bhh_rz_b_ref[...]
        gi_n_f = gi[:, 4 * H:5 * H]
        gi_n_b = gi[:, 5 * H:6 * H]

        # Interleaved forward/backward recurrences (independent chains) so the
        # MXU dot of one direction hides the EUP/VPU gate math of the other.
        h_f = jnp.zeros((N, H), jnp.float32)
        h_b = jnp.zeros((N, H), jnp.float32)
        for t in range(L):                    # fully unrolled; L small & static
            tb = L - 1 - t
            h_f = _gru_step(gi_rz_f[t * N:(t + 1) * N],
                            gi_n_f[t * N:(t + 1) * N],
                            h_f, whh_rz_f, whh_n_f, bhh_n_f, H)
            h_b = _gru_step(gi_rz_b[tb * N:(tb + 1) * N],
                            gi_n_b[tb * N:(tb + 1) * N],
                            h_b, whh_rz_b, whh_n_b, bhh_n_b, H)
            of_scr[t * N:(t + 1) * N, :] = h_f
            ob_scr[tb * N:(tb + 1) * N, :] = h_b

        # Fused residual head, batched over all timesteps:
        #   relu(conv(o) + project(o)) == relu(o @ (Wc+Wp)^T + (bc+bp)),
        # with the 2H input channels pre-split by GRU direction (no concat).
        x = jnp.maximum(
            _mm(of_scr[...], res_wf_ref[...]) + _mm(ob_scr[...], res_wb_ref[...])
            + res_b_ref[...], 0.0)                                   # (L*N, H)

    # --- AdaptiveMaxPool1d(1): running max over the sequence axis.
    pooled = x[0:N]
    for t in range(1, L):
        pooled = jnp.maximum(pooled, x[t * N:(t + 1) * N])           # (N, H)

    # --- Classifier epilogue (no separate pallas_call / HBM round trip):
    #     Linear(2H, H) on cat([h1, h2]) == h1 @ W1_top + h2 @ W1_bot.
    h1 = pooled[0:B]
    h2 = pooled[B:2 * B]
    hid = jnp.maximum(_mm(h1, w1a_ref[...]) + _mm(h2, w1b_ref[...])
                      + b1_ref[...], 0.0)
    out_ref[...] = (_mm(hid, w2_ref[...]) + b2_ref[...]).astype(out_ref.dtype)


# ----------------------------- wrapper -----------------------------------------

def pipr_forward(x1, x2, params):
    B, L = x1.shape
    N = 2 * B
    H = params['proj_w'].shape[1]
    V = params['embedding'].shape[0]
    num_blocks = len(params['blocks'])

    # Fold the siamese protein axis into batch, time-major:
    # row index = t*2B + p*B + b.  (Layout plumbing stays in the wrapper.)
    tok = jnp.stack([x1, x2], axis=0)                    # (2, B, L)
    tok = jnp.transpose(tok, (2, 0, 1))                  # (L, 2, B)
    tok = tok.reshape(L * N, 1).astype(jnp.int32)        # (L*2B, 1)

    args = [tok, params['embedding'], params['proj_w'], params['proj_b']]
    for blk in params['blocks']:
        args += [blk[k] for k in _BLOCK_KEYS]
    args += [params['cls_w1a'], params['cls_w1b'], params['cls_b1'],
             params['cls_w2'], params['cls_b2']]

    logits = pl.pallas_call(
        functools.partial(_pipr_kernel, num_blocks, L, B, H, V),
        out_shape=jax.ShapeDtypeStruct((B, 1), jnp.float32),
        in_specs=[VMEM_SPEC] * len(args),
        out_specs=VMEM_SPEC,
        scratch_shapes=[pltpu.VMEM((L * N, H), jnp.float32),   # fwd GRU outputs
                        pltpu.VMEM((L * N, H), jnp.float32)],  # bwd GRU outputs
    )(*args)
    return logits[:, 0]                                  # squeeze(-1)


# ----------------------------- params -------------------------------------------

def init_params(key, vocab_size, E, H, num_blocks):
    keys = iter(jax.random.split(key, 8 + 13 * num_blocks))

    def u(shape, fan_in, dtype=jnp.bfloat16):
        s = 1.0 / math.sqrt(fan_in)
        return jax.random.uniform(next(keys), shape, jnp.float32, -s, s).astype(dtype)

    emb = jax.random.normal(next(keys), (vocab_size, E), jnp.float32)
    emb = emb.at[0].set(0.0)                              # padding_idx=0

    params = {
        'embedding': emb.astype(jnp.bfloat16),
        'proj_w': u((E, H), E), 'proj_b': u((1, H), E, jnp.float32),
        # classifier Linear(2H, H) stored split: w1a multiplies h1, w1b multiplies h2
        'cls_w1a': u((H, H), 2 * H), 'cls_w1b': u((H, H), 2 * H),
        'cls_b1': u((1, H), 2 * H, jnp.float32),
        'cls_w2': u((H, 1), H), 'cls_b2': u((1, 1), H, jnp.float32),
        'blocks': [],
    }
    for _ in range(num_blocks):
        blk = {
            # fused input-gate weights (both directions), columns
            # [fwd r,z | bwd r,z | fwd n | bwd n]; pre-transposed for x @ W.
            'wih': u((H, 6 * H), H), 'bih': u((1, 6 * H), H, jnp.float32),
            # recurrent weights: r/z fused to (H, 2H), n separate (needs r*()).
            'whh_rz_f': u((H, 2 * H), H), 'whh_n_f': u((H, H), H),
            'bhh_rz_f': u((1, 2 * H), H, jnp.float32),
            'bhh_n_f': u((1, H), H, jnp.float32),
            'whh_rz_b': u((H, 2 * H), H), 'whh_n_b': u((H, H), H),
            'bhh_rz_b': u((1, 2 * H), H, jnp.float32),
            'bhh_n_b': u((1, H), H, jnp.float32),
            # residual head: (Wc + Wp)^T split into fwd/bwd halves of the 2H input.
            'res_w_f': u((H, H), 2 * H), 'res_w_b': u((H, H), 2 * H),
            'res_b': u((1, H), 2 * H, jnp.float32),
        }
        params['blocks'].append(blk)
    return params


# ----------------------------- main ---------------------------------------------

if __name__ == "__main__":
    VOCAB, E, H, NUM_BLOCKS = 20, 16, 32, 2
    # B chosen so that B and 2B are multiples of the 8-sublane f32 tile:
    # every in-kernel per-timestep / per-protein row slice is tile-aligned.
    B, L = 8, 8

    key = jax.random.PRNGKey(0)
    kp, k1, k2 = jax.random.split(key, 3)
    params = init_params(kp, VOCAB, E, H, NUM_BLOCKS)

    x1 = jax.random.randint(k1, (B, L), 0, VOCAB, dtype=jnp.int32)
    x2 = jax.random.randint(k2, (B, L), 0, VOCAB, dtype=jnp.int32)

    fwd = jax.jit(pipr_forward)
    out = fwd(x1, x2, params)
    jax.block_until_ready(out)
    assert out.shape == (B,)
    assert bool(jnp.all(jnp.isfinite(out)))
    print("KERNEL_OK")
</pallas_src>

<mosaic_0001>
module attributes {stable_mosaic.version = 11 : i64} {
  func.func @_pipr_kernel(%arg0: memref<128x1xi32, #tpu.memory_space<vmem>>, %arg1: memref<20x16xbf16, #tpu.memory_space<vmem>>, %arg2: memref<16x32xbf16, #tpu.memory_space<vmem>>, %arg3: memref<1x32xf32, #tpu.memory_space<vmem>>, %arg4: memref<32x192xbf16, #tpu.memory_space<vmem>>, %arg5: memref<1x192xf32, #tpu.memory_space<vmem>>, %arg6: memref<32x64xbf16, #tpu.memory_space<vmem>>, %arg7: memref<32x32xbf16, #tpu.memory_space<vmem>>, %arg8: memref<1x64xf32, #tpu.memory_space<vmem>>, %arg9: memref<1x32xf32, #tpu.memory_space<vmem>>, %arg10: memref<32x64xbf16, #tpu.memory_space<vmem>>, %arg11: memref<32x32xbf16, #tpu.memory_space<vmem>>, %arg12: memref<1x64xf32, #tpu.memory_space<vmem>>, %arg13: memref<1x32xf32, #tpu.memory_space<vmem>>, %arg14: memref<32x32xbf16, #tpu.memory_space<vmem>>, %arg15: memref<32x32xbf16, #tpu.memory_space<vmem>>, %arg16: memref<1x32xf32, #tpu.memory_space<vmem>>, %arg17: memref<32x192xbf16, #tpu.memory_space<vmem>>, %arg18: memref<1x192xf32, #tpu.memory_space<vmem>>, %arg19: memref<32x64xbf16, #tpu.memory_space<vmem>>, %arg20: memref<32x32xbf16, #tpu.memory_space<vmem>>, %arg21: memref<1x64xf32, #tpu.memory_space<vmem>>, %arg22: memref<1x32xf32, #tpu.memory_space<vmem>>, %arg23: memref<32x64xbf16, #tpu.memory_space<vmem>>, %arg24: memref<32x32xbf16, #tpu.memory_space<vmem>>, %arg25: memref<1x64xf32, #tpu.memory_space<vmem>>, %arg26: memref<1x32xf32, #tpu.memory_space<vmem>>, %arg27: memref<32x32xbf16, #tpu.memory_space<vmem>>, %arg28: memref<32x32xbf16, #tpu.memory_space<vmem>>, %arg29: memref<1x32xf32, #tpu.memory_space<vmem>>, %arg30: memref<32x32xbf16, #tpu.memory_space<vmem>>, %arg31: memref<32x32xbf16, #tpu.memory_space<vmem>>, %arg32: memref<1x32xf32, #tpu.memory_space<vmem>>, %arg33: memref<32x1xbf16, #tpu.memory_space<vmem>>, %arg34: memref<1x1xf32, #tpu.memory_space<vmem>>, %arg35: memref<8x1xf32, #tpu.memory_space<vmem>>, %arg36: memref<128x32xf32, #tpu.memory_space<vmem>>, %arg37: memref<128x32xf32, #tpu.memory_space<vmem>>) attributes {dimension_semantics = [], scalar_prefetch = 0 : i64, scratch_operands = 2 : i64, tpu.core_type = #tpu.core_type<tc>} {
    %c0 = arith.constant 0 : index
    %c0_0 = arith.constant 0 : index
    %0 = vector.load %arg0[%c0, %c0_0] : memref<128x1xi32, #tpu.memory_space<vmem>>, vector<128x1xi32>
    %1 = tpu.iota {dimensions = array<i32: 1>} : vector<128x20xi32>
    %2 = vector.broadcast %0 : vector<128x1xi32> to vector<128x20xi32>
    %3 = arith.cmpi eq, %2, %1 : vector<128x20xi32>
    %4 = arith.extui %3 : vector<128x20xi1> to vector<128x20xi32>
    %5 = arith.sitofp %4 : vector<128x20xi32> to vector<128x20xf32>
    %c0_1 = arith.constant 0 : index
    %c0_2 = arith.constant 0 : index
    %6 = vector.load %arg1[%c0_1, %c0_2] : memref<20x16xbf16, #tpu.memory_space<vmem>>, vector<20x16xbf16>
    %7 = arith.truncf %5 : vector<128x20xf32> to vector<128x20xbf16>
    %cst = arith.constant dense<0.000000e+00> : vector<128x16xf32>
    %8 = tpu.matmul %7, %6, %cst {dimension_numbers = #tpu.dot_dimension_numbers<[1], [0], [0], [1], [0, 0, 1, 1], [], []>} : vector<128x20xbf16>, vector<20x16xbf16>, vector<128x16xf32> -> vector<128x16xf32>
    %c0_3 = arith.constant 0 : index
    %c0_4 = arith.constant 0 : index
    %9 = vector.load %arg2[%c0_3, %c0_4] : memref<16x32xbf16, #tpu.memory_space<vmem>>, vector<16x32xbf16>
    %10 = arith.truncf %8 : vector<128x16xf32> to vector<128x16xbf16>
    %cst_5 = arith.constant dense<0.000000e+00> : vector<128x32xf32>
    %11 = tpu.matmul %10, %9, %cst_5 {dimension_numbers = #tpu.dot_dimension_numbers<[1], [0], [0], [1], [0, 0, 1, 1], [], []>} : vector<128x16xbf16>, vector<16x32xbf16>, vector<128x32xf32> -> vector<128x32xf32>
    %c0_6 = arith.constant 0 : index
    %c0_7 = arith.constant 0 : index
    %12 = vector.load %arg3[%c0_6, %c0_7] : memref<1x32xf32, #tpu.memory_space<vmem>>, vector<1x32xf32>
    %13 = vector.broadcast %12 : vector<1x32xf32> to vector<128x32xf32>
    %14 = arith.addf %11, %13 : vector<128x32xf32>
    %c0_8 = arith.constant 0 : index
    %c0_9 = arith.constant 0 : index
    %15 = vector.load %arg6[%c0_8, %c0_9] : memref<32x64xbf16, #tpu.memory_space<vmem>>, vector<32x64xbf16>
    %c0_10 = arith.constant 0 : index
    %c0_11 = arith.constant 0 : index
    %16 = vector.load %arg7[%c0_10, %c0_11] : memref<32x32xbf16, #tpu.memory_space<vmem>>, vector<32x32xbf16>
    %c0_12 = arith.constant 0 : index
    %c0_13 = arith.constant 0 : index
    %17 = vector.load %arg10[%c0_12, %c0_13] : memref<32x64xbf16, #tpu.memory_space<vmem>>, vector<32x64xbf16>
    %c0_14 = arith.constant 0 : index
    %c0_15 = arith.constant 0 : index
    %18 = vector.load %arg11[%c0_14, %c0_15] : memref<32x32xbf16, #tpu.memory_space<vmem>>, vector<32x32xbf16>
    %c0_16 = arith.constant 0 : index
    %c0_17 = arith.constant 0 : index
    %19 = vector.load %arg9[%c0_16, %c0_17] : memref<1x32xf32, #tpu.memory_space<vmem>>, vector<1x32xf32>
    %20 = vector.shape_cast %19 : vector<1x32xf32> to vector<1x32xf32>
    %21 = vector.broadcast %20 : vector<1x32xf32> to vector<16x32xf32>
    %c0_18 = arith.constant 0 : index
    %c0_19 = arith.constant 0 : index
    %22 = vector.load %arg13[%c0_18, %c0_19] : memref<1x32xf32, #tpu.memory_space<vmem>>, vector<1x32xf32>
    %23 = vector.shape_cast %22 : vector<1x32xf32> to vector<1x32xf32>
    %24 = vector.broadcast %23 : vector<1x32xf32> to vector<16x32xf32>
    %c0_20 = arith.constant 0 : index
    %c0_21 = arith.constant 0 : index
    %25 = vector.load %arg4[%c0_20, %c0_21] : memref<32x192xbf16, #tpu.memory_space<vmem>>, vector<32x192xbf16>
    %26 = arith.truncf %14 : vector<128x32xf32> to vector<128x32xbf16>
    %cst_22 = arith.constant dense<0.000000e+00> : vector<128x192xf32>
    %27 = tpu.matmul %26, %25, %cst_22 {dimension_numbers = #tpu.dot_dimension_numbers<[1], [0], [0], [1], [0, 0, 1, 1], [], []>} : vector<128x32xbf16>, vector<32x192xbf16>, vector<128x192xf32> -> vector<128x192xf32>
    %c0_23 = arith.constant 0 : index
    %c0_24 = arith.constant 0 : index
    %28 = vector.load %arg5[%c0_23, %c0_24] : memref<1x192xf32, #tpu.memory_space<vmem>>, vector<1x192xf32>
    %29 = vector.broadcast %28 : vector<1x192xf32> to vector<128x192xf32>
    %30 = arith.addf %27, %29 : vector<128x192xf32>
    %31 = vector.extract_strided_slice %30 {offsets = [0, 0], sizes = [128, 64], strides = [1, 1]} : vector<128x192xf32> to vector<128x64xf32>
    %c0_25 = arith.constant 0 : index
    %c0_26 = arith.constant 0 : index
    %32 = vector.load %arg8[%c0_25, %c0_26] : memref<1x64xf32, #tpu.memory_space<vmem>>, vector<1x64xf32>
    %33 = vector.broadcast %32 : vector<1x64xf32> to vector<128x64xf32>
    %34 = arith.addf %31, %33 : vector<128x64xf32>
    %35 = vector.extract_strided_slice %30 {offsets = [0, 64], sizes = [128, 64], strides = [1, 1]} : vector<128x192xf32> to vector<128x64xf32>
    %c0_27 = arith.constant 0 : index
    %c0_28 = arith.constant 0 : index
    %36 = vector.load %arg12[%c0_27, %c0_28] : memref<1x64xf32, #tpu.memory_space<vmem>>, vector<1x64xf32>
    %37 = vector.broadcast %36 : vector<1x64xf32> to vector<128x64xf32>
    %38 = arith.addf %35, %37 : vector<128x64xf32>
    %39 = vector.extract_strided_slice %30 {offsets = [0, 128], sizes = [128, 32], strides = [1, 1]} : vector<128x192xf32> to vector<128x32xf32>
    %40 = vector.extract_strided_slice %30 {offsets = [0, 160], sizes = [128, 32], strides = [1, 1]} : vector<128x192xf32> to vector<128x32xf32>
    %cst_29 = arith.constant 0.000000e+00 : f32
    %41 = vector.broadcast %cst_29 : f32 to vector<16x32xf32>
    %cst_30 = arith.constant 0.000000e+00 : f32
    %42 = vector.broadcast %cst_30 : f32 to vector<16x32xf32>
    %43 = vector.extract_strided_slice %34 {offsets = [0, 0], sizes = [16, 64], strides = [1, 1]} : vector<128x64xf32> to vector<16x64xf32>
    %44 = vector.extract_strided_slice %39 {offsets = [0, 0], sizes = [16, 32], strides = [1, 1]} : vector<128x32xf32> to vector<16x32xf32>
    %45 = arith.truncf %41 : vector<16x32xf32> to vector<16x32xbf16>
    %cst_31 = arith.constant dense<0.000000e+00> : vector<16x64xf32>
    %46 = tpu.matmul %45, %15, %cst_31 {dimension_numbers = #tpu.dot_dimension_numbers<[1], [0], [0], [1], [0, 0, 1, 1], [], []>} : vector<16x32xbf16>, vector<32x64xbf16>, vector<16x64xf32> -> vector<16x64xf32>
    %47 = arith.addf %43, %46 : vector<16x64xf32>
    %48 = arith.negf %47 : vector<16x64xf32>
    %49 = math.exp %48 : vector<16x64xf32>
    %cst_32 = arith.constant 1.000000e+00 : f32
    %50 = vector.broadcast %cst_32 : f32 to vector<16x64xf32>
    %51 = arith.addf %50, %49 : vector<16x64xf32>
    %52 = arith.divf %50, %51 : vector<16x64xf32>
    %53 = vector.extract_strided_slice %52 {offsets = [0, 0], sizes = [16, 32], strides = [1, 1]} : vector<16x64xf32> to vector<16x32xf32>
    %54 = vector.extract_strided_slice %52 {offsets = [0, 32], sizes = [16, 32], strides = [1, 1]} : vector<16x64xf32> to vector<16x32xf32>
    %55 = arith.truncf %41 : vector<16x32xf32> to vector<16x32xbf16>
    %cst_33 = arith.constant dense<0.000000e+00> : vector<16x32xf32>
    %56 = tpu.matmul %55, %16, %cst_33 {dimension_numbers = #tpu.dot_dimension_numbers<[1], [0], [0], [1], [0, 0, 1, 1], [], []>} : vector<16x32xbf16>, vector<32x32xbf16>, vector<16x32xf32> -> vector<16x32xf32>
    %57 = arith.addf %56, %21 : vector<16x32xf32>
    %58 = arith.mulf %53, %57 : vector<16x32xf32>
    %59 = arith.addf %44, %58 : vector<16x32xf32>
    %60 = math.tanh %59 : vector<16x32xf32>
    %61 = arith.subf %41, %60 : vector<16x32xf32>
    %62 = arith.mulf %54, %61 : vector<16x32xf32>
    %63 = arith.addf %60, %62 : vector<16x32xf32>
    %64 = vector.extract_strided_slice %38 {offsets = [112, 0], sizes = [16, 64], strides = [1, 1]} : vector<128x64xf32> to vector<16x64xf32>
    %65 = vector.extract_strided_slice %40 {offsets = [112, 0], sizes = [16, 32], strides = [1, 1]} : vector<128x32xf32> to vector<16x32xf32>
    %66 = arith.truncf %42 : vector<16x32xf32> to vector<16x32xbf16>
    %cst_34 = arith.constant dense<0.000000e+00> : vector<16x64xf32>
    %67 = tpu.matmul %66, %17, %cst_34 {dimension_numbers = #tpu.dot_dimension_numbers<[1], [0], [0], [1], [0, 0, 1, 1], [], []>} : vector<16x32xbf16>, vector<32x64xbf16>, vector<16x64xf32> -> vector<16x64xf32>
    %68 = arith.addf %64, %67 : vector<16x64xf32>
    %69 = arith.negf %68 : vector<16x64xf32>
    %70 = math.exp %69 : vector<16x64xf32>
    %cst_35 = arith.constant 1.000000e+00 : f32
    %71 = vector.broadcast %cst_35 : f32 to vector<16x64xf32>
    %72 = arith.addf %71, %70 : vector<16x64xf32>
    %73 = arith.divf %71, %72 : vector<16x64xf32>
    %74 = vector.extract_strided_slice %73 {offsets = [0, 0], sizes = [16, 32], strides = [1, 1]} : vector<16x64xf32> to vector<16x32xf32>
    %75 = vector.extract_strided_slice %73 {offsets = [0, 32], sizes = [16, 32], strides = [1, 1]} : vector<16x64xf32> to vector<16x32xf32>
    %76 = arith.truncf %42 : vector<16x32xf32> to vector<16x32xbf16>
    %cst_36 = arith.constant dense<0.000000e+00> : vector<16x32xf32>
    %77 = tpu.matmul %76, %18, %cst_36 {dimension_numbers = #tpu.dot_dimension_numbers<[1], [0], [0], [1], [0, 0, 1, 1], [], []>} : vector<16x32xbf16>, vector<32x32xbf16>, vector<16x32xf32> -> vector<16x32xf32>
    %78 = arith.addf %77, %24 : vector<16x32xf32>
    %79 = arith.mulf %74, %78 : vector<16x32xf32>
    %80 = arith.addf %65, %79 : vector<16x32xf32>
    %81 = math.tanh %80 : vector<16x32xf32>
    %82 = arith.subf %42, %81 : vector<16x32xf32>
    %83 = arith.mulf %75, %82 : vector<16x32xf32>
    %84 = arith.addf %81, %83 : vector<16x32xf32>
    %c0_37 = arith.constant 0 : index
    %c0_38 = arith.constant 0 : index
    %85 = vector.load %arg36[%c0_37, %c0_38] : memref<128x32xf32, #tpu.memory_space<vmem>>, vector<16x32xf32>
    tpu.vector_store %arg36[%c0_37, %c0_38], %63 {strides = array<i32>} : memref<128x32xf32, #tpu.memory_space<vmem>>, vector<16x32xf32>,
    %c112 = arith.constant 112 : index
    %c0_39 = arith.constant 0 : index
    %86 = vector.load %arg37[%c112, %c0_39] : memref<128x32xf32, #tpu.memory_space<vmem>>, vector<16x32xf32>
    tpu.vector_store %arg37[%c112, %c0_39], %84 {strides = array<i32>} : memref<128x32xf32, #tpu.memory_space<vmem>>, vector<16x32xf32>,
    %87 = vector.extract_strided_slice %34 {offsets = [16, 0], sizes = [16, 64], strides = [1, 1]} : vector<128x64xf32> to vector<16x64xf32>
    %88 = vector.extract_strided_slice %39 {offsets = [16, 0], sizes = [16, 32], strides = [1, 1]} : vector<128x32xf32> to vector<16x32xf32>
    %89 = arith.truncf %63 : vector<16x32xf32> to vector<16x32xbf16>
    %cst_40 = arith.constant dense<0.000000e+00> : vector<16x64xf32>
    %90 = tpu.matmul %89, %15, %cst_40 {dimension_numbers = #tpu.dot_dimension_numbers<[1], [0], [0], [1], [0, 0, 1, 1], [], []>} : vector<16x32xbf16>, vector<32x64xbf16>, vector<16x64xf32> -> vector<16x64xf32>
    %91 = arith.addf %87, %90 : vector<16x64xf32>
    %92 = arith.negf %91 : vector<16x64xf32>
    %93 = math.exp %92 : vector<16x64xf32>
    %cst_41 = arith.constant 1.000000e+00 : f32
    %94 = vector.broadcast %cst_41 : f32 to vector<16x64xf32>
    %95 = arith.addf %94, %93 : vector<16x64xf32>
    %96 = arith.divf %94, %95 : vector<16x64xf32>
    %97 = vector.extract_strided_slice %96 {offsets = [0, 0], sizes = [16, 32], strides = [1, 1]} : vector<16x64xf32> to vector<16x32xf32>
    %98 = vector.extract_strided_slice %96 {offsets = [0, 32], sizes = [16, 32], strides = [1, 1]} : vector<16x64xf32> to vector<16x32xf32>
    %99 = arith.truncf %63 : vector<16x32xf32> to vector<16x32xbf16>
    %cst_42 = arith.constant dense<0.000000e+00> : vector<16x32xf32>
    %100 = tpu.matmul %99, %16, %cst_42 {dimension_numbers = #tpu.dot_dimension_numbers<[1], [0], [0], [1], [0, 0, 1, 1], [], []>} : vector<16x32xbf16>, vector<32x32xbf16>, vector<16x32xf32> -> vector<16x32xf32>
    %101 = arith.addf %100, %21 : vector<16x32xf32>
    %102 = arith.mulf %97, %101 : vector<16x32xf32>
    %103 = arith.addf %88, %102 : vector<16x32xf32>
    %104 = math.tanh %103 : vector<16x32xf32>
    %105 = arith.subf %63, %104 : vector<16x32xf32>
    %106 = arith.mulf %98, %105 : vector<16x32xf32>
    %107 = arith.addf %104, %106 : vector<16x32xf32>
    %108 = vector.extract_strided_slice %38 {offsets = [96, 0], sizes = [16, 64], strides = [1, 1]} : vector<128x64xf32> to vector<16x64xf32>
    %109 = vector.extract_strided_slice %40 {offsets = [96, 0], sizes = [16, 32], strides = [1, 1]} : vector<128x32xf32> to vector<16x32xf32>
    %110 = arith.truncf %84 : vector<16x32xf32> to vector<16x32xbf16>
    %cst_43 = arith.constant dense<0.000000e+00> : vector<16x64xf32>
    %111 = tpu.matmul %110, %17, %cst_43 {dimension_numbers = #tpu.dot_dimension_numbers<[1], [0], [0], [1], [0, 0, 1, 1], [], []>} : vector<16x32xbf16>, vector<32x64xbf16>, vector<16x64xf32> -> vector<16x64xf32>
    %112 = arith.addf %108, %111 : vector<16x64xf32>
    %113 = arith.negf %112 : vector<16x64xf32>
    %114 = math.exp %113 : vector<16x64xf32>
    %cst_44 = arith.constant 1.000000e+00 : f32
    %115 = vector.broadcast %cst_44 : f32 to vector<16x64xf32>
    %116 = arith.addf %115, %114 : vector<16x64xf32>
    %117 = arith.divf %115, %116 : vector<16x64xf32>
    %118 = vector.extract_strided_slice %117 {offsets = [0, 0], sizes = [16, 32], strides = [1, 1]} : vector<16x64xf32> to vector<16x32xf32>
    %119 = vector.extract_strided_slice %117 {offsets = [0, 32], sizes = [16, 32], strides = [1, 1]} : vector<16x64xf32> to vector<16x32xf32>
    %120 = arith.truncf %84 : vector<16x32xf32> to vector<16x32xbf16>
    %cst_45 = arith.constant dense<0.000000e+00> : vector<16x32xf32>
    %121 = tpu.matmul %120, %18, %cst_45 {dimension_numbers = #tpu.dot_dimension_numbers<[1], [0], [0], [1], [0, 0, 1, 1], [], []>} : vector<16x32xbf16>, vector<32x32xbf16>, vector<16x32xf32> -> vector<16x32xf32>
    %122 = arith.addf %121, %24 : vector<16x32xf32>
    %123 = arith.mulf %118, %122 : vector<16x32xf32>
    %124 = arith.addf %109, %123 : vector<16x32xf32>
    %125 = math.tanh %124 : vector<16x32xf32>
    %126 = arith.subf %84, %125 : vector<16x32xf32>
    %127 = arith.mulf %119, %126 : vector<16x32xf32>
    %128 = arith.addf %125, %127 : vector<16x32xf32>
    %c16 = arith.constant 16 : index
    %c0_46 = arith.constant 0 : index
    %129 = vector.load %arg36[%c16, %c0_46] : memref<128x32xf32, #tpu.memory_space<vmem>>, vector<16x32xf32>
    tpu.vector_store %arg36[%c16, %c0_46], %107 {strides = array<i32>} : memref<128x32xf32, #tpu.memory_space<vmem>>, vector<16x32xf32>,
    %c96 = arith.constant 96 : index
    %c0_47 = arith.constant 0 : index
    %130 = vector.load %arg37[%c96, %c0_47] : memref<128x32xf32, #tpu.memory_space<vmem>>, vector<16x32xf32>
    tpu.vector_store %arg37[%c96, %c0_47], %128 {strides = array<i32>} : memref<128x32xf32, #tpu.memory_space<vmem>>, vector<16x32xf32>,
    %131 = vector.extract_strided_slice %34 {offsets = [32, 0], sizes = [16, 64], strides = [1, 1]} : vector<128x64xf32> to vector<16x64xf32>
    %132 = vector.extract_strided_slice %39 {offsets = [32, 0], sizes = [16, 32], strides = [1, 1]} : vector<128x32xf32> to vector<16x32xf32>
    %133 = arith.truncf %107 : vector<16x32xf32> to vector<16x32xbf16>
    %cst_48 = arith.constant dense<0.000000e+00> : vector<16x64xf32>
    %134 = tpu.matmul %133, %15, %cst_48 {dimension_numbers = #tpu.dot_dimension_numbers<[1], [0], [0], [1], [0, 0, 1, 1], [], []>} : vector<16x32xbf16>, vector<32x64xbf16>, vector<16x64xf32> -> vector<16x64xf32>
    %135 = arith.addf %131, %134 : vector<16x64xf32>
    %136 = arith.negf %135 : vector<16x64xf32>
    %137 = math.exp %136 : vector<16x64xf32>
    %cst_49 = arith.constant 1.000000e+00 : f32
    %138 = vector.broadcast %cst_49 : f32 to vector<16x64xf32>
    %139 = arith.addf %138, %137 : vector<16x64xf32>
    %140 = arith.divf %138, %139 : vector<16x64xf32>
    %141 = vector.extract_strided_slice %140 {offsets = [0, 0], sizes = [16, 32], strides = [1, 1]} : vector<16x64xf32> to vector<16x32xf32>
    %142 = vector.extract_strided_slice %140 {offsets = [0, 32], sizes = [16, 32], strides = [1, 1]} : vector<16x64xf32> to vector<16x32xf32>
    %143 = arith.truncf %107 : vector<16x32xf32> to vector<16x32xbf16>
    %cst_50 = arith.constant dense<0.000000e+00> : vector<16x32xf32>
    %144 = tpu.matmul %143, %16, %cst_50 {dimension_numbers = #tpu.dot_dimension_numbers<[1], [0], [0], [1], [0, 0, 1, 1], [], []>} : vector<16x32xbf16>, vector<32x32xbf16>, vector<16x32xf32> -> vector<16x32xf32>
    %145 = arith.addf %144, %21 : vector<16x32xf32>
    %146 = arith.mulf %141, %145 : vector<16x32xf32>
    %147 = arith.addf %132, %146 : vector<16x32xf32>
    %148 = math.tanh %147 : vector<16x32xf32>
    %149 = arith.subf %107, %148 : vector<16x32xf32>
    %150 = arith.mulf %142, %149 : vector<16x32xf32>
    %151 = arith.addf %148, %150 : vector<16x32xf32>
    %152 = vector.extract_strided_slice %38 {offsets = [80, 0], sizes = [16, 64], strides = [1, 1]} : vector<128x64xf32> to vector<16x64xf32>
    %153 = vector.extract_strided_slice %40 {offsets = [80, 0], sizes = [16, 32], strides = [1, 1]} : vector<128x32xf32> to vector<16x32xf32>
    %154 = arith.truncf %128 : vector<16x32xf32> to vector<16x32xbf16>
    %cst_51 = arith.constant dense<0.000000e+00> : vector<16x64xf32>
    %155 = tpu.matmul %154, %17, %cst_51 {dimension_numbers = #tpu.dot_dimension_numbers<[1], [0], [0], [1], [0, 0, 1, 1], [], []>} : vector<16x32xbf16>, vector<32x64xbf16>, vector<16x64xf32> -> vector<16x64xf32>
    %156 = arith.addf %152, %155 : vector<16x64xf32>
    %157 = arith.negf %156 : vector<16x64xf32>
    %158 = math.exp %157 : vector<16x64xf32>
    %cst_52 = arith.constant 1.000000e+00 : f32
    %159 = vector.broadcast %cst_52 : f32 to vector<16x64xf32>
    %160 = arith.addf %159, %158 : vector<16x64xf32>
    %161 = arith.divf %159, %160 : vector<16x64xf32>
    %162 = vector.extract_strided_slice %161 {offsets = [0, 0], sizes = [16, 32], strides = [1, 1]} : vector<16x64xf32> to vector<16x32xf32>
    %163 = vector.extract_strided_slice %161 {offsets = [0, 32], sizes = [16, 32], strides = [1, 1]} : vector<16x64xf32> to vector<16x32xf32>
    %164 = arith.truncf %128 : vector<16x32xf32> to vector<16x32xbf16>
    %cst_53 = arith.constant dense<0.000000e+00> : vector<16x32xf32>
    %165 = tpu.matmul %164, %18, %cst_53 {dimension_numbers = #tpu.dot_dimension_numbers<[1], [0], [0], [1], [0, 0, 1, 1], [], []>} : vector<16x32xbf16>, vector<32x32xbf16>, vector<16x32xf32> -> vector<16x32xf32>
    %166 = arith.addf %165, %24 : vector<16x32xf32>
    %167 = arith.mulf %162, %166 : vector<16x32xf32>
    %168 = arith.addf %153, %167 : vector<16x32xf32>
    %169 = math.tanh %168 : vector<16x32xf32>
    %170 = arith.subf %128, %169 : vector<16x32xf32>
    %171 = arith.mulf %163, %170 : vector<16x32xf32>
    %172 = arith.addf %169, %171 : vector<16x32xf32>
    %c32 = arith.constant 32 : index
    %c0_54 = arith.constant 0 : index
    %173 = vector.load %arg36[%c32, %c0_54] : memref<128x32xf32, #tpu.memory_space<vmem>>, vector<16x32xf32>
    tpu.vector_store %arg36[%c32, %c0_54], %151 {strides = array<i32>} : memref<128x32xf32, #tpu.memory_space<vmem>>, vector<16x32xf32>,
    %c80 = arith.constant 80 : index
    %c0_55 = arith.constant 0 : index
    %174 = vector.load %arg37[%c80, %c0_55] : memref<128x32xf32, #tpu.memory_space<vmem>>, vector<16x32xf32>
    tpu.vector_store %arg37[%c80, %c0_55], %172 {strides = array<i32>} : memref<128x32xf32, #tpu.memory_space<vmem>>, vector<16x32xf32>,
    %175 = vector.extract_strided_slice %34 {offsets = [48, 0], sizes = [16, 64], strides = [1, 1]} : vector<128x64xf32> to vector<16x64xf32>
    %176 = vector.extract_strided_slice %39 {offsets = [48, 0], sizes = [16, 32], strides = [1, 1]} : vector<128x32xf32> to vector<16x32xf32>
    %177 = arith.truncf %151 : vector<16x32xf32> to vector<16x32xbf16>
    %cst_56 = arith.constant dense<0.000000e+00> : vector<16x64xf32>
    %178 = tpu.matmul %177, %15, %cst_56 {dimension_numbers = #tpu.dot_dimension_numbers<[1], [0], [0], [1], [0, 0, 1, 1], [], []>} : vector<16x32xbf16>, vector<32x64xbf16>, vector<16x64xf32> -> vector<16x64xf32>
    %179 = arith.addf %175, %178 : vector<16x64xf32>
    %180 = arith.negf %179 : vector<16x64xf32>
    %181 = math.exp %180 : vector<16x64xf32>
    %cst_57 = arith.constant 1.000000e+00 : f32
    %182 = vector.broadcast %cst_57 : f32 to vector<16x64xf32>
    %183 = arith.addf %182, %181 : vector<16x64xf32>
    %184 = arith.divf %182, %183 : vector<16x64xf32>
    %185 = vector.extract_strided_slice %184 {offsets = [0, 0], sizes = [16, 32], strides = [1, 1]} : vector<16x64xf32> to vector<16x32xf32>
    %186 = vector.extract_strided_slice %184 {offsets = [0, 32], sizes = [16, 32], strides = [1, 1]} : vector<16x64xf32> to vector<16x32xf32>
    %187 = arith.truncf %151 : vector<16x32xf32> to vector<16x32xbf16>
    %cst_58 = arith.constant dense<0.000000e+00> : vector<16x32xf32>
    %188 = tpu.matmul %187, %16, %cst_58 {dimension_numbers = #tpu.dot_dimension_numbers<[1], [0], [0], [1], [0, 0, 1, 1], [], []>} : vector<16x32xbf16>, vector<32x32xbf16>, vector<16x32xf32> -> vector<16x32xf32>
    %189 = arith.addf %188, %21 : vector<16x32xf32>
    %190 = arith.mulf %185, %189 : vector<16x32xf32>
    %191 = arith.addf %176, %190 : vector<16x32xf32>
    %192 = math.tanh %191 : vector<16x32xf32>
    %193 = arith.subf %151, %192 : vector<16x32xf32>
    %194 = arith.mulf %186, %193 : vector<16x32xf32>
    %195 = arith.addf %192, %194 : vector<16x32xf32>
    %196 = vector.extract_strided_slice %38 {offsets = [64, 0], sizes = [16, 64], strides = [1, 1]} : vector<128x64xf32> to vector<16x64xf32>
    %197 = vector.extract_strided_slice %40 {offsets = [64, 0], sizes = [16, 32], strides = [1, 1]} : vector<128x32xf32> to vector<16x32xf32>
    %198 = arith.truncf %172 : vector<16x32xf32> to vector<16x32xbf16>
    %cst_59 = arith.constant dense<0.000000e+00> : vector<16x64xf32>
    %199 = tpu.matmul %198, %17, %cst_59 {dimension_numbers = #tpu.dot_dimension_numbers<[1], [0], [0], [1], [0, 0, 1, 1], [], []>} : vector<16x32xbf16>, vector<32x64xbf16>, vector<16x64xf32> -> vector<16x64xf32>
    %200 = arith.addf %196, %199 : vector<16x64xf32>
    %201 = arith.negf %200 : vector<16x64xf32>
    %202 = math.exp %201 : vector<16x64xf32>
    %cst_60 = arith.constant 1.000000e+00 : f32
    %203 = vector.broadcast %cst_60 : f32 to vector<16x64xf32>
    %204 = arith.addf %203, %202 : vector<16x64xf32>
    %205 = arith.divf %203, %204 : vector<16x64xf32>
    %206 = vector.extract_strided_slice %205 {offsets = [0, 0], sizes = [16, 32], strides = [1, 1]} : vector<16x64xf32> to vector<16x32xf32>
    %207 = vector.extract_strided_slice %205 {offsets = [0, 32], sizes = [16, 32], strides = [1, 1]} : vector<16x64xf32> to vector<16x32xf32>
    %208 = arith.truncf %172 : vector<16x32xf32> to vector<16x32xbf16>
    %cst_61 = arith.constant dense<0.000000e+00> : vector<16x32xf32>
    %209 = tpu.matmul %208, %18, %cst_61 {dimension_numbers = #tpu.dot_dimension_numbers<[1], [0], [0], [1], [0, 0, 1, 1], [], []>} : vector<16x32xbf16>, vector<32x32xbf16>, vector<16x32xf32> -> vector<16x32xf32>
    %210 = arith.addf %209, %24 : vector<16x32xf32>
    %211 = arith.mulf %206, %210 : vector<16x32xf32>
    %212 = arith.addf %197, %211 : vector<16x32xf32>
    %213 = math.tanh %212 : vector<16x32xf32>
    %214 = arith.subf %172, %213 : vector<16x32xf32>
    %215 = arith.mulf %207, %214 : vector<16x32xf32>
    %216 = arith.addf %213, %215 : vector<16x32xf32>
    %c48 = arith.constant 48 : index
    %c0_62 = arith.constant 0 : index
    %217 = vector.load %arg36[%c48, %c0_62] : memref<128x32xf32, #tpu.memory_space<vmem>>, vector<16x32xf32>
    tpu.vector_store %arg36[%c48, %c0_62], %195 {strides = array<i32>} : memref<128x32xf32, #tpu.memory_space<vmem>>, vector<16x32xf32>,
    %c64 = arith.constant 64 : index
    %c0_63 = arith.constant 0 : index
    %218 = vector.load %arg37[%c64, %c0_63] : memref<128x32xf32, #tpu.memory_space<vmem>>, vector<16x32xf32>
    tpu.vector_store %arg37[%c64, %c0_63], %216 {strides = array<i32>} : memref<128x32xf32, #tpu.memory_space<vmem>>, vector<16x32xf32>,
    %219 = vector.extract_strided_slice %34 {offsets = [64, 0], sizes = [16, 64], strides = [1, 1]} : vector<128x64xf32> to vector<16x64xf32>
    %220 = vector.extract_strided_slice %39 {offsets = [64, 0], sizes = [16, 32], strides = [1, 1]} : vector<128x32xf32> to vector<16x32xf32>
    %221 = arith.truncf %195 : vector<16x32xf32> to vector<16x32xbf16>
    %cst_64 = arith.constant dense<0.000000e+00> : vector<16x64xf32>
    %222 = tpu.matmul %221, %15, %cst_64 {dimension_numbers = #tpu.dot_dimension_numbers<[1], [0], [0], [1], [0, 0, 1, 1], [], []>} : vector<16x32xbf16>, vector<32x64xbf16>, vector<16x64xf32> -> vector<16x64xf32>
    %223 = arith.addf %219, %222 : vector<16x64xf32>
    %224 = arith.negf %223 : vector<16x64xf32>
    %225 = math.exp %224 : vector<16x64xf32>
    %cst_65 = arith.constant 1.000000e+00 : f32
    %226 = vector.broadcast %cst_65 : f32 to vector<16x64xf32>
    %227 = arith.addf %226, %225 : vector<16x64xf32>
    %228 = arith.divf %226, %227 : vector<16x64xf32>
    %229 = vector.extract_strided_slice %228 {offsets = [0, 0], sizes = [16, 32], strides = [1, 1]} : vector<16x64xf32> to vector<16x32xf32>
    %230 = vector.extract_strided_slice %228 {offsets = [0, 32], sizes = [16, 32], strides = [1, 1]} : vector<16x64xf32> to vector<16x32xf32>
    %231 = arith.truncf %195 : vector<16x32xf32> to vector<16x32xbf16>
    %cst_66 = arith.constant dense<0.000000e+00> : vector<16x32xf32>
    %232 = tpu.matmul %231, %16, %cst_66 {dimension_numbers = #tpu.dot_dimension_numbers<[1], [0], [0], [1], [0, 0, 1, 1], [], []>} : vector<16x32xbf16>, vector<32x32xbf16>, vector<16x32xf32> -> vector<16x32xf32>
    %233 = arith.addf %232, %21 : vector<16x32xf32>
    %234 = arith.mulf %229, %233 : vector<16x32xf32>
    %235 = arith.addf %220, %234 : vector<16x32xf32>
    %236 = math.tanh %235 : vector<16x32xf32>
    %237 = arith.subf %195, %236 : vector<16x32xf32>
    %238 = arith.mulf %230, %237 : vector<16x32xf32>
    %239 = arith.addf %236, %238 : vector<16x32xf32>
    %240 = vector.extract_strided_slice %38 {offsets = [48, 0], sizes = [16, 64], strides = [1, 1]} : vector<128x64xf32> to vector<16x64xf32>
    %241 = vector.extract_strided_slice %40 {offsets = [48, 0], sizes = [16, 32], strides = [1, 1]} : vector<128x32xf32> to vector<16x32xf32>
    %242 = arith.truncf %216 : vector<16x32xf32> to vector<16x32xbf16>
    %cst_67 = arith.constant dense<0.000000e+00> : vector<16x64xf32>
    %243 = tpu.matmul %242, %17, %cst_67 {dimension_numbers = #tpu.dot_dimension_numbers<[1], [0], [0], [1], [0, 0, 1, 1], [], []>} : vector<16x32xbf16>, vector<32x64xbf16>, vector<16x64xf32> -> vector<16x64xf32>
    %244 = arith.addf %240, %243 : vector<16x64xf32>
    %245 = arith.negf %244 : vector<16x64xf32>
    %246 = math.exp %245 : vector<16x64xf32>
    %cst_68 = arith.constant 1.000000e+00 : f32
    %247 = vector.broadcast %cst_68 : f32 to vector<16x64xf32>
    %248 = arith.addf %247, %246 : vector<16x64xf32>
    %249 = arith.divf %247, %248 : vector<16x64xf32>
    %250 = vector.extract_strided_slice %249 {offsets = [0, 0], sizes = [16, 32], strides = [1, 1]} : vector<16x64xf32> to vector<16x32xf32>
    %251 = vector.extract_strided_slice %249 {offsets = [0, 32], sizes = [16, 32], strides = [1, 1]} : vector<16x64xf32> to vector<16x32xf32>
    %252 = arith.truncf %216 : vector<16x32xf32> to vector<16x32xbf16>
    %cst_69 = arith.constant dense<0.000000e+00> : vector<16x32xf32>
    %253 = tpu.matmul %252, %18, %cst_69 {dimension_numbers = #tpu.dot_dimension_numbers<[1], [0], [0], [1], [0, 0, 1, 1], [], []>} : vector<16x32xbf16>, vector<32x32xbf16>, vector<16x32xf32> -> vector<16x32xf32>
    %254 = arith.addf %253, %24 : vector<16x32xf32>
    %255 = arith.mulf %250, %254 : vector<16x32xf32>
    %256 = arith.addf %241, %255 : vector<16x32xf32>
    %257 = math.tanh %256 : vector<16x32xf32>
    %258 = arith.subf %216, %257 : vector<16x32xf32>
    %259 = arith.mulf %251, %258 : vector<16x32xf32>
    %260 = arith.addf %257, %259 : vector<16x32xf32>
    %c64_70 = arith.constant 64 : index
    %c0_71 = arith.constant 0 : index
    %261 = vector.load %arg36[%c64_70, %c0_71] : memref<128x32xf32, #tpu.memory_space<vmem>>, vector<16x32xf32>
    tpu.vector_store %arg36[%c64_70, %c0_71], %239 {strides = array<i32>} : memref<128x32xf32, #tpu.memory_space<vmem>>, vector<16x32xf32>,
    %c48_72 = arith.constant 48 : index
    %c0_73 = arith.constant 0 : index
    %262 = vector.load %arg37[%c48_72, %c0_73] : memref<128x32xf32, #tpu.memory_space<vmem>>, vector<16x32xf32>
    tpu.vector_store %arg37[%c48_72, %c0_73], %260 {strides = array<i32>} : memref<128x32xf32, #tpu.memory_space<vmem>>, vector<16x32xf32>,
    %263 = vector.extract_strided_slice %34 {offsets = [80, 0], sizes = [16, 64], strides = [1, 1]} : vector<128x64xf32> to vector<16x64xf32>
    %264 = vector.extract_strided_slice %39 {offsets = [80, 0], sizes = [16, 32], strides = [1, 1]} : vector<128x32xf32> to vector<16x32xf32>
    %265 = arith.truncf %239 : vector<16x32xf32> to vector<16x32xbf16>
    %cst_74 = arith.constant dense<0.000000e+00> : vector<16x64xf32>
    %266 = tpu.matmul %265, %15, %cst_74 {dimension_numbers = #tpu.dot_dimension_numbers<[1], [0], [0], [1], [0, 0, 1, 1], [], []>} : vector<16x32xbf16>, vector<32x64xbf16>, vector<16x64xf32> -> vector<16x64xf32>
    %267 = arith.addf %263, %266 : vector<16x64xf32>
    %268 = arith.negf %267 : vector<16x64xf32>
    %269 = math.exp %268 : vector<16x64xf32>
    %cst_75 = arith.constant 1.000000e+00 : f32
    %270 = vector.broadcast %cst_75 : f32 to vector<16x64xf32>
    %271 = arith.addf %270, %269 : vector<16x64xf32>
    %272 = arith.divf %270, %271 : vector<16x64xf32>
    %273 = vector.extract_strided_slice %272 {offsets = [0, 0], sizes = [16, 32], strides = [1, 1]} : vector<16x64xf32> to vector<16x32xf32>
    %274 = vector.extract_strided_slice %272 {offsets = [0, 32], sizes = [16, 32], strides = [1, 1]} : vector<16x64xf32> to vector<16x32xf32>
    %275 = arith.truncf %239 : vector<16x32xf32> to vector<16x32xbf16>
    %cst_76 = arith.constant dense<0.000000e+00> : vector<16x32xf32>
    %276 = tpu.matmul %275, %16, %cst_76 {dimension_numbers = #tpu.dot_dimension_numbers<[1], [0], [0], [1], [0, 0, 1, 1], [], []>} : vector<16x32xbf16>, vector<32x32xbf16>, vector<16x32xf32> -> vector<16x32xf32>
    %277 = arith.addf %276, %21 : vector<16x32xf32>
    %278 = arith.mulf %273, %277 : vector<16x32xf32>
    %279 = arith.addf %264, %278 : vector<16x32xf32>
    %280 = math.tanh %279 : vector<16x32xf32>
    %281 = arith.subf %239, %280 : vector<16x32xf32>
    %282 = arith.mulf %274, %281 : vector<16x32xf32>
    %283 = arith.addf %280, %282 : vector<16x32xf32>
    %284 = vector.extract_strided_slice %38 {offsets = [32, 0], sizes = [16, 64], strides = [1, 1]} : vector<128x64xf32> to vector<16x64xf32>
    %285 = vector.extract_strided_slice %40 {offsets = [32, 0], sizes = [16, 32], strides = [1, 1]} : vector<128x32xf32> to vector<16x32xf32>
    %286 = arith.truncf %260 : vector<16x32xf32> to vector<16x32xbf16>
    %cst_77 = arith.constant dense<0.000000e+00> : vector<16x64xf32>
    %287 = tpu.matmul %286, %17, %cst_77 {dimension_numbers = #tpu.dot_dimension_numbers<[1], [0], [0], [1], [0, 0, 1, 1], [], []>} : vector<16x32xbf16>, vector<32x64xbf16>, vector<16x64xf32> -> vector<16x64xf32>
    %288 = arith.addf %284, %287 : vector<16x64xf32>
    %289 = arith.negf %288 : vector<16x64xf32>
    %290 = math.exp %289 : vector<16x64xf32>
    %cst_78 = arith.constant 1.000000e+00 : f32
    %291 = vector.broadcast %cst_78 : f32 to vector<16x64xf32>
    %292 = arith.addf %291, %290 : vector<16x64xf32>
    %293 = arith.divf %291, %292 : vector<16x64xf32>
    %294 = vector.extract_strided_slice %293 {offsets = [0, 0], sizes = [16, 32], strides = [1, 1]} : vector<16x64xf32> to vector<16x32xf32>
    %295 = vector.extract_strided_slice %293 {offsets = [0, 32], sizes = [16, 32], strides = [1, 1]} : vector<16x64xf32> to vector<16x32xf32>
    %296 = arith.truncf %260 : vector<16x32xf32> to vector<16x32xbf16>
    %cst_79 = arith.constant dense<0.000000e+00> : vector<16x32xf32>
    %297 = tpu.matmul %296, %18, %cst_79 {dimension_numbers = #tpu.dot_dimension_numbers<[1], [0], [0], [1], [0, 0, 1, 1], [], []>} : vector<16x32xbf16>, vector<32x32xbf16>, vector<16x32xf32> -> vector<16x32xf32>
    %298 = arith.addf %297, %24 : vector<16x32xf32>
    %299 = arith.mulf %294, %298 : vector<16x32xf32>
    %300 = arith.addf %285, %299 : vector<16x32xf32>
    %301 = math.tanh %300 : vector<16x32xf32>
    %302 = arith.subf %260, %301 : vector<16x32xf32>
    %303 = arith.mulf %295, %302 : vector<16x32xf32>
    %304 = arith.addf %301, %303 : vector<16x32xf32>
    %c80_80 = arith.constant 80 : index
    %c0_81 = arith.constant 0 : index
    %305 = vector.load %arg36[%c80_80, %c0_81] : memref<128x32xf32, #tpu.memory_space<vmem>>, vector<16x32xf32>
    tpu.vector_store %arg36[%c80_80, %c0_81], %283 {strides = array<i32>} : memref<128x32xf32, #tpu.memory_space<vmem>>, vector<16x32xf32>,
    %c32_82 = arith.constant 32 : index
    %c0_83 = arith.constant 0 : index
    %306 = vector.load %arg37[%c32_82, %c0_83] : memref<128x32xf32, #tpu.memory_space<vmem>>, vector<16x32xf32>
    tpu.vector_store %arg37[%c32_82, %c0_83], %304 {strides = array<i32>} : memref<128x32xf32, #tpu.memory_space<vmem>>, vector<16x32xf32>,
    %307 = vector.extract_strided_slice %34 {offsets = [96, 0], sizes = [16, 64], strides = [1, 1]} : vector<128x64xf32> to vector<16x64xf32>
    %308 = vector.extract_strided_slice %39 {offsets = [96, 0], sizes = [16, 32], strides = [1, 1]} : vector<128x32xf32> to vector<16x32xf32>
    %309 = arith.truncf %283 : vector<16x32xf32> to vector<16x32xbf16>
    %cst_84 = arith.constant dense<0.000000e+00> : vector<16x64xf32>
    %310 = tpu.matmul %309, %15, %cst_84 {dimension_numbers = #tpu.dot_dimension_numbers<[1], [0], [0], [1], [0, 0, 1, 1], [], []>} : vector<16x32xbf16>, vector<32x64xbf16>, vector<16x64xf32> -> vector<16x64xf32>
    %311 = arith.addf %307, %310 : vector<16x64xf32>
    %312 = arith.negf %311 : vector<16x64xf32>
    %313 = math.exp %312 : vector<16x64xf32>
    %cst_85 = arith.constant 1.000000e+00 : f32
    %314 = vector.broadcast %cst_85 : f32 to vector<16x64xf32>
    %315 = arith.addf %314, %313 : vector<16x64xf32>
    %316 = arith.divf %314, %315 : vector<16x64xf32>
    %317 = vector.extract_strided_slice %316 {offsets = [0, 0], sizes = [16, 32], strides = [1, 1]} : vector<16x64xf32> to vector<16x32xf32>
    %318 = vector.extract_strided_slice %316 {offsets = [0, 32], sizes = [16, 32], strides = [1, 1]} : vector<16x64xf32> to vector<16x32xf32>
    %319 = arith.truncf %283 : vector<16x32xf32> to vector<16x32xbf16>
    %cst_86 = arith.constant dense<0.000000e+00> : vector<16x32xf32>
    %320 = tpu.matmul %319, %16, %cst_86 {dimension_numbers = #tpu.dot_dimension_numbers<[1], [0], [0], [1], [0, 0, 1, 1], [], []>} : vector<16x32xbf16>, vector<32x32xbf16>, vector<16x32xf32> -> vector<16x32xf32>
    %321 = arith.addf %320, %21 : vector<16x32xf32>
    %322 = arith.mulf %317, %321 : vector<16x32xf32>
    %323 = arith.addf %308, %322 : vector<16x32xf32>
    %324 = math.tanh %323 : vector<16x32xf32>
    %325 = arith.subf %283, %324 : vector<16x32xf32>
    %326 = arith.mulf %318, %325 : vector<16x32xf32>
    %327 = arith.addf %324, %326 : vector<16x32xf32>
    %328 = vector.extract_strided_slice %38 {offsets = [16, 0], sizes = [16, 64], strides = [1, 1]} : vector<128x64xf32> to vector<16x64xf32>
    %329 = vector.extract_strided_slice %40 {offsets = [16, 0], sizes = [16, 32], strides = [1, 1]} : vector<128x32xf32> to vector<16x32xf32>
    %330 = arith.truncf %304 : vector<16x32xf32> to vector<16x32xbf16>
    %cst_87 = arith.constant dense<0.000000e+00> : vector<16x64xf32>
    %331 = tpu.matmul %330, %17, %cst_87 {dimension_numbers = #tpu.dot_dimension_numbers<[1], [0], [0], [1], [0, 0, 1, 1], [], []>} : vector<16x32xbf16>, vector<32x64xbf16>, vector<16x64xf32> -> vector<16x64xf32>
    %332 = arith.addf %328, %331 : vector<16x64xf32>
    %333 = arith.negf %332 : vector<16x64xf32>
    %334 = math.exp %333 : vector<16x64xf32>
    %cst_88 = arith.constant 1.000000e+00 : f32
    %335 = vector.broadcast %cst_88 : f32 to vector<16x64xf32>
    %336 = arith.addf %335, %334 : vector<16x64xf32>
    %337 = arith.divf %335, %336 : vector<16x64xf32>
    %338 = vector.extract_strided_slice %337 {offsets = [0, 0], sizes = [16, 32], strides = [1, 1]} : vector<16x64xf32> to vector<16x32xf32>
    %339 = vector.extract_strided_slice %337 {offsets = [0, 32], sizes = [16, 32], strides = [1, 1]} : vector<16x64xf32> to vector<16x32xf32>
    %340 = arith.truncf %304 : vector<16x32xf32> to vector<16x32xbf16>
    %cst_89 = arith.constant dense<0.000000e+00> : vector<16x32xf32>
    %341 = tpu.matmul %340, %18, %cst_89 {dimension_numbers = #tpu.dot_dimension_numbers<[1], [0], [0], [1], [0, 0, 1, 1], [], []>} : vector<16x32xbf16>, vector<32x32xbf16>, vector<16x32xf32> -> vector<16x32xf32>
    %342 = arith.addf %341, %24 : vector<16x32xf32>
    %343 = arith.mulf %338, %342 : vector<16x32xf32>
    %344 = arith.addf %329, %343 : vector<16x32xf32>
    %345 = math.tanh %344 : vector<16x32xf32>
    %346 = arith.subf %304, %345 : vector<16x32xf32>
    %347 = arith.mulf %339, %346 : vector<16x32xf32>
    %348 = arith.addf %345, %347 : vector<16x32xf32>
    %c96_90 = arith.constant 96 : index
    %c0_91 = arith.constant 0 : index
    %349 = vector.load %arg36[%c96_90, %c0_91] : memref<128x32xf32, #tpu.memory_space<vmem>>, vector<16x32xf32>
    tpu.vector_store %arg36[%c96_90, %c0_91], %327 {strides = array<i32>} : memref<128x32xf32, #tpu.memory_space<vmem>>, vector<16x32xf32>,
    %c16_92 = arith.constant 16 : index
    %c0_93 = arith.constant 0 : index
    %350 = vector.load %arg37[%c16_92, %c0_93] : memref<128x32xf32, #tpu.memory_space<vmem>>, vector<16x32xf32>
    tpu.vector_store %arg37[%c16_92, %c0_93], %348 {strides = array<i32>} : memref<128x32xf32, #tpu.memory_space<vmem>>, vector<16x32xf32>,
    %351 = vector.extract_strided_slice %34 {offsets = [112, 0], sizes = [16, 64], strides = [1, 1]} : vector<128x64xf32> to vector<16x64xf32>
    %352 = vector.extract_strided_slice %39 {offsets = [112, 0], sizes = [16, 32], strides = [1, 1]} : vector<128x32xf32> to vector<16x32xf32>
    %353 = arith.truncf %327 : vector<16x32xf32> to vector<16x32xbf16>
    %cst_94 = arith.constant dense<0.000000e+00> : vector<16x64xf32>
    %354 = tpu.matmul %353, %15, %cst_94 {dimension_numbers = #tpu.dot_dimension_numbers<[1], [0], [0], [1], [0, 0, 1, 1], [], []>} : vector<16x32xbf16>, vector<32x64xbf16>, vector<16x64xf32> -> vector<16x64xf32>
    %355 = arith.addf %351, %354 : vector<16x64xf32>
    %356 = arith.negf %355 : vector<16x64xf32>
    %357 = math.exp %356 : vector<16x64xf32>
    %cst_95 = arith.constant 1.000000e+00 : f32
    %358 = vector.broadcast %cst_95 : f32 to vector<16x64xf32>
    %359 = arith.addf %358, %357 : vector<16x64xf32>
    %360 = arith.divf %358, %359 : vector<16x64xf32>
    %361 = vector.extract_strided_slice %360 {offsets = [0, 0], sizes = [16, 32], strides = [1, 1]} : vector<16x64xf32> to vector<16x32xf32>
    %362 = vector.extract_strided_slice %360 {offsets = [0, 32], sizes = [16, 32], strides = [1, 1]} : vector<16x64xf32> to vector<16x32xf32>
    %363 = arith.truncf %327 : vector<16x32xf32> to vector<16x32xbf16>
    %cst_96 = arith.constant dense<0.000000e+00> : vector<16x32xf32>
    %364 = tpu.matmul %363, %16, %cst_96 {dimension_numbers = #tpu.dot_dimension_numbers<[1], [0], [0], [1], [0, 0, 1, 1], [], []>} : vector<16x32xbf16>, vector<32x32xbf16>, vector<16x32xf32> -> vector<16x32xf32>
    %365 = arith.addf %364, %21 : vector<16x32xf32>
    %366 = arith.mulf %361, %365 : vector<16x32xf32>
    %367 = arith.addf %352, %366 : vector<16x32xf32>
    %368 = math.tanh %367 : vector<16x32xf32>
    %369 = arith.subf %327, %368 : vector<16x32xf32>
    %370 = arith.mulf %362, %369 : vector<16x32xf32>
    %371 = arith.addf %368, %370 : vector<16x32xf32>
    %372 = vector.extract_strided_slice %38 {offsets = [0, 0], sizes = [16, 64], strides = [1, 1]} : vector<128x64xf32> to vector<16x64xf32>
    %373 = vector.extract_strided_slice %40 {offsets = [0, 0], sizes = [16, 32], strides = [1, 1]} : vector<128x32xf32> to vector<16x32xf32>
    %374 = arith.truncf %348 : vector<16x32xf32> to vector<16x32xbf16>
    %cst_97 = arith.constant dense<0.000000e+00> : vector<16x64xf32>
    %375 = tpu.matmul %374, %17, %cst_97 {dimension_numbers = #tpu.dot_dimension_numbers<[1], [0], [0], [1], [0, 0, 1, 1], [], []>} : vector<16x32xbf16>, vector<32x64xbf16>, vector<16x64xf32> -> vector<16x64xf32>
    %376 = arith.addf %372, %375 : vector<16x64xf32>
    %377 = arith.negf %376 : vector<16x64xf32>
    %378 = math.exp %377 : vector<16x64xf32>
    %cst_98 = arith.constant 1.000000e+00 : f32
    %379 = vector.broadcast %cst_98 : f32 to vector<16x64xf32>
    %380 = arith.addf %379, %378 : vector<16x64xf32>
    %381 = arith.divf %379, %380 : vector<16x64xf32>
    %382 = vector.extract_strided_slice %381 {offsets = [0, 0], sizes = [16, 32], strides = [1, 1]} : vector<16x64xf32> to vector<16x32xf32>
    %383 = vector.extract_strided_slice %381 {offsets = [0, 32], sizes = [16, 32], strides = [1, 1]} : vector<16x64xf32> to vector<16x32xf32>
    %384 = arith.truncf %348 : vector<16x32xf32> to vector<16x32xbf16>
    %cst_99 = arith.constant dense<0.000000e+00> : vector<16x32xf32>
    %385 = tpu.matmul %384, %18, %cst_99 {dimension_numbers = #tpu.dot_dimension_numbers<[1], [0], [0], [1], [0, 0, 1, 1], [], []>} : vector<16x32xbf16>, vector<32x32xbf16>, vector<16x32xf32> -> vector<16x32xf32>
    %386 = arith.addf %385, %24 : vector<16x32xf32>
    %387 = arith.mulf %382, %386 : vector<16x32xf32>
    %388 = arith.addf %373, %387 : vector<16x32xf32>
    %389 = math.tanh %388 : vector<16x32xf32>
    %390 = arith.subf %348, %389 : vector<16x32xf32>
    %391 = arith.mulf %383, %390 : vector<16x32xf32>
    %392 = arith.addf %389, %391 : vector<16x32xf32>
    %c112_100 = arith.constant 112 : index
    %c0_101 = arith.constant 0 : index
    %393 = vector.load %arg36[%c112_100, %c0_101] : memref<128x32xf32, #tpu.memory_space<vmem>>, vector<16x32xf32>
    tpu.vector_store %arg36[%c112_100, %c0_101], %371 {strides = array<i32>} : memref<128x32xf32, #tpu.memory_space<vmem>>, vector<16x32xf32>,
    %c0_102 = arith.constant 0 : index
    %c0_103 = arith.constant 0 : index
    %394 = vector.load %arg37[%c0_102, %c0_103] : memref<128x32xf32, #tpu.memory_space<vmem>>, vector<16x32xf32>
    tpu.vector_store %arg37[%c0_102, %c0_103], %392 {strides = array<i32>} : memref<128x32xf32, #tpu.memory_space<vmem>>, vector<16x32xf32>,
    %c0_104 = arith.constant 0 : index
    %c0_105 = arith.constant 0 : index
    %395 = vector.load %arg36[%c0_104, %c0_105] : memref<128x32xf32, #tpu.memory_space<vmem>>, vector<128x32xf32>
    %c0_106 = arith.constant 0 : index
    %c0_107 = arith.constant 0 : index
    %396 = vector.load %arg14[%c0_106, %c0_107] : memref<32x32xbf16, #tpu.memory_space<vmem>>, vector<32x32xbf16>
    %397 = arith.truncf %395 : vector<128x32xf32> to vector<128x32xbf16>
    %cst_108 = arith.constant dense<0.000000e+00> : vector<128x32xf32>
    %398 = tpu.matmul %397, %396, %cst_108 {dimension_numbers = #tpu.dot_dimension_numbers<[1], [0], [0], [1], [0, 0, 1, 1], [], []>} : vector<128x32xbf16>, vector<32x32xbf16>, vector<128x32xf32> -> vector<128x32xf32>
    %c0_109 = arith.constant 0 : index
    %c0_110 = arith.constant 0 : index
    %399 = vector.load %arg37[%c0_109, %c0_110] : memref<128x32xf32, #tpu.memory_space<vmem>>, vector<128x32xf32>
    %c0_111 = arith.constant 0 : index
    %c0_112 = arith.constant 0 : index
    %400 = vector.load %arg15[%c0_111, %c0_112] : memref<32x32xbf16, #tpu.memory_space<vmem>>, vector<32x32xbf16>
    %401 = arith.truncf %399 : vector<128x32xf32> to vector<128x32xbf16>
    %cst_113 = arith.constant dense<0.000000e+00> : vector<128x32xf32>
    %402 = tpu.matmul %401, %400, %cst_113 {dimension_numbers = #tpu.dot_dimension_numbers<[1], [0], [0], [1], [0, 0, 1, 1], [], []>} : vector<128x32xbf16>, vector<32x32xbf16>, vector<128x32xf32> -> vector<128x32xf32>
    %403 = arith.addf %398, %402 : vector<128x32xf32>
    %c0_114 = arith.constant 0 : index
    %c0_115 = arith.constant 0 : index
    %404 = vector.load %arg16[%c0_114, %c0_115] : memref<1x32xf32, #tpu.memory_space<vmem>>, vector<1x32xf32>
    %405 = vector.broadcast %404 : vector<1x32xf32> to vector<128x32xf32>
    %406 = arith.addf %403, %405 : vector<128x32xf32>
    %cst_116 = arith.constant 0.000000e+00 : f32
    %407 = vector.broadcast %cst_116 : f32 to vector<128x32xf32>
    %408 = arith.maximumf %406, %407 : vector<128x32xf32>
    %c0_117 = arith.constant 0 : index
    %c0_118 = arith.constant 0 : index
    %409 = vector.load %arg19[%c0_117, %c0_118] : memref<32x64xbf16, #tpu.memory_space<vmem>>, vector<32x64xbf16>
    %c0_119 = arith.constant 0 : index
    %c0_120 = arith.constant 0 : index
    %410 = vector.load %arg20[%c0_119, %c0_120] : memref<32x32xbf16, #tpu.memory_space<vmem>>, vector<32x32xbf16>
    %c0_121 = arith.constant 0 : index
    %c0_122 = arith.constant 0 : index
    %411 = vector.load %arg23[%c0_121, %c0_122] : memref<32x64xbf16, #tpu.memory_space<vmem>>, vector<32x64xbf16>
    %c0_123 = arith.constant 0 : index
    %c0_124 = arith.constant 0 : index
    %412 = vector.load %arg24[%c0_123, %c0_124] : memref<32x32xbf16, #tpu.memory_space<vmem>>, vector<32x32xbf16>
    %c0_125 = arith.constant 0 : index
    %c0_126 = arith.constant 0 : index
    %413 = vector.load %arg22[%c0_125, %c0_126] : memref<1x32xf32, #tpu.memory_space<vmem>>, vector<1x32xf32>
    %414 = vector.shape_cast %413 : vector<1x32xf32> to vector<1x32xf32>
    %415 = vector.broadcast %414 : vector<1x32xf32> to vector<16x32xf32>
    %c0_127 = arith.constant 0 : index
    %c0_128 = arith.constant 0 : index
    %416 = vector.load %arg26[%c0_127, %c0_128] : memref<1x32xf32, #tpu.memory_space<vmem>>, vector<1x32xf32>
    %417 = vector.shape_cast %416 : vector<1x32xf32> to vector<1x32xf32>
    %418 = vector.broadcast %417 : vector<1x32xf32> to vector<16x32xf32>
    %c0_129 = arith.constant 0 : index
    %c0_130 = arith.constant 0 : index
    %419 = vector.load %arg17[%c0_129, %c0_130] : memref<32x192xbf16, #tpu.memory_space<vmem>>, vector<32x192xbf16>
    %420 = arith.truncf %408 : vector<128x32xf32> to vector<128x32xbf16>
    %cst_131 = arith.constant dense<0.000000e+00> : vector<128x192xf32>
    %421 = tpu.matmul %420, %419, %cst_131 {dimension_numbers = #tpu.dot_dimension_numbers<[1], [0], [0], [1], [0, 0, 1, 1], [], []>} : vector<128x32xbf16>, vector<32x192xbf16>, vector<128x192xf32> -> vector<128x192xf32>
    %c0_132 = arith.constant 0 : index
    %c0_133 = arith.constant 0 : index
    %422 = vector.load %arg18[%c0_132, %c0_133] : memref<1x192xf32, #tpu.memory_space<vmem>>, vector<1x192xf32>
    %423 = vector.broadcast %422 : vector<1x192xf32> to vector<128x192xf32>
    %424 = arith.addf %421, %423 : vector<128x192xf32>
    %425 = vector.extract_strided_slice %424 {offsets = [0, 0], sizes = [128, 64], strides = [1, 1]} : vector<128x192xf32> to vector<128x64xf32>
    %c0_134 = arith.constant 0 : index
    %c0_135 = arith.constant 0 : index
    %426 = vector.load %arg21[%c0_134, %c0_135] : memref<1x64xf32, #tpu.memory_space<vmem>>, vector<1x64xf32>
    %427 = vector.broadcast %426 : vector<1x64xf32> to vector<128x64xf32>
    %428 = arith.addf %425, %427 : vector<128x64xf32>
    %429 = vector.extract_strided_slice %424 {offsets = [0, 64], sizes = [128, 64], strides = [1, 1]} : vector<128x192xf32> to vector<128x64xf32>
    %c0_136 = arith.constant 0 : index
    %c0_137 = arith.constant 0 : index
    %430 = vector.load %arg25[%c0_136, %c0_137] : memref<1x64xf32, #tpu.memory_space<vmem>>, vector<1x64xf32>
    %431 = vector.broadcast %430 : vector<1x64xf32> to vector<128x64xf32>
    %432 = arith.addf %429, %431 : vector<128x64xf32>
    %433 = vector.extract_strided_slice %424 {offsets = [0, 128], sizes = [128, 32], strides = [1, 1]} : vector<128x192xf32> to vector<128x32xf32>
    %434 = vector.extract_strided_slice %424 {offsets = [0, 160], sizes = [128, 32], strides = [1, 1]} : vector<128x192xf32> to vector<128x32xf32>
    %cst_138 = arith.constant 0.000000e+00 : f32
    %435 = vector.broadcast %cst_138 : f32 to vector<16x32xf32>
    %cst_139 = arith.constant 0.000000e+00 : f32
    %436 = vector.broadcast %cst_139 : f32 to vector<16x32xf32>
    %437 = vector.extract_strided_slice %428 {offsets = [0, 0], sizes = [16, 64], strides = [1, 1]} : vector<128x64xf32> to vector<16x64xf32>
    %438 = vector.extract_strided_slice %433 {offsets = [0, 0], sizes = [16, 32], strides = [1, 1]} : vector<128x32xf32> to vector<16x32xf32>
    %439 = arith.truncf %435 : vector<16x32xf32> to vector<16x32xbf16>
    %cst_140 = arith.constant dense<0.000000e+00> : vector<16x64xf32>
    %440 = tpu.matmul %439, %409, %cst_140 {dimension_numbers = #tpu.dot_dimension_numbers<[1], [0], [0], [1], [0, 0, 1, 1], [], []>} : vector<16x32xbf16>, vector<32x64xbf16>, vector<16x64xf32> -> vector<16x64xf32>
    %441 = arith.addf %437, %440 : vector<16x64xf32>
    %442 = arith.negf %441 : vector<16x64xf32>
    %443 = math.exp %442 : vector<16x64xf32>
    %cst_141 = arith.constant 1.000000e+00 : f32
    %444 = vector.broadcast %cst_141 : f32 to vector<16x64xf32>
    %445 = arith.addf %444, %443 : vector<16x64xf32>
    %446 = arith.divf %444, %445 : vector<16x64xf32>
    %447 = vector.extract_strided_slice %446 {offsets = [0, 0], sizes = [16, 32], strides = [1, 1]} : vector<16x64xf32> to vector<16x32xf32>
    %448 = vector.extract_strided_slice %446 {offsets = [0, 32], sizes = [16, 32], strides = [1, 1]} : vector<16x64xf32> to vector<16x32xf32>
    %449 = arith.truncf %435 : vector<16x32xf32> to vector<16x32xbf16>
    %cst_142 = arith.constant dense<0.000000e+00> : vector<16x32xf32>
    %450 = tpu.matmul %449, %410, %cst_142 {dimension_numbers = #tpu.dot_dimension_numbers<[1], [0], [0], [1], [0, 0, 1, 1], [], []>} : vector<16x32xbf16>, vector<32x32xbf16>, vector<16x32xf32> -> vector<16x32xf32>
    %451 = arith.addf %450, %415 : vector<16x32xf32>
    %452 = arith.mulf %447, %451 : vector<16x32xf32>
    %453 = arith.addf %438, %452 : vector<16x32xf32>
    %454 = math.tanh %453 : vector<16x32xf32>
    %455 = arith.subf %435, %454 : vector<16x32xf32>
    %456 = arith.mulf %448, %455 : vector<16x32xf32>
    %457 = arith.addf %454, %456 : vector<16x32xf32>
    %458 = vector.extract_strided_slice %432 {offsets = [112, 0], sizes = [16, 64], strides = [1, 1]} : vector<128x64xf32> to vector<16x64xf32>
    %459 = vector.extract_strided_slice %434 {offsets = [112, 0], sizes = [16, 32], strides = [1, 1]} : vector<128x32xf32> to vector<16x32xf32>
    %460 = arith.truncf %436 : vector<16x32xf32> to vector<16x32xbf16>
    %cst_143 = arith.constant dense<0.000000e+00> : vector<16x64xf32>
    %461 = tpu.matmul %460, %411, %cst_143 {dimension_numbers = #tpu.dot_dimension_numbers<[1], [0], [0], [1], [0, 0, 1, 1], [], []>} : vector<16x32xbf16>, vector<32x64xbf16>, vector<16x64xf32> -> vector<16x64xf32>
    %462 = arith.addf %458, %461 : vector<16x64xf32>
    %463 = arith.negf %462 : vector<16x64xf32>
    %464 = math.exp %463 : vector<16x64xf32>
    %cst_144 = arith.constant 1.000000e+00 : f32
    %465 = vector.broadcast %cst_144 : f32 to vector<16x64xf32>
    %466 = arith.addf %465, %464 : vector<16x64xf32>
    %467 = arith.divf %465, %466 : vector<16x64xf32>
    %468 = vector.extract_strided_slice %467 {offsets = [0, 0], sizes = [16, 32], strides = [1, 1]} : vector<16x64xf32> to vector<16x32xf32>
    %469 = vector.extract_strided_slice %467 {offsets = [0, 32], sizes = [16, 32], strides = [1, 1]} : vector<16x64xf32> to vector<16x32xf32>
    %470 = arith.truncf %436 : vector<16x32xf32> to vector<16x32xbf16>
    %cst_145 = arith.constant dense<0.000000e+00> : vector<16x32xf32>
    %471 = tpu.matmul %470, %412, %cst_145 {dimension_numbers = #tpu.dot_dimension_numbers<[1], [0], [0], [1], [0, 0, 1, 1], [], []>} : vector<16x32xbf16>, vector<32x32xbf16>, vector<16x32xf32> -> vector<16x32xf32>
    %472 = arith.addf %471, %418 : vector<16x32xf32>
    %473 = arith.mulf %468, %472 : vector<16x32xf32>
    %474 = arith.addf %459, %473 : vector<16x32xf32>
    %475 = math.tanh %474 : vector<16x32xf32>
    %476 = arith.subf %436, %475 : vector<16x32xf32>
    %477 = arith.mulf %469, %476 : vector<16x32xf32>
    %478 = arith.addf %475, %477 : vector<16x32xf32>
    %c0_146 = arith.constant 0 : index
    %c0_147 = arith.constant 0 : index
    %479 = vector.load %arg36[%c0_146, %c0_147] : memref<128x32xf32, #tpu.memory_space<vmem>>, vector<16x32xf32>
    tpu.vector_store %arg36[%c0_146, %c0_147], %457 {strides = array<i32>} : memref<128x32xf32, #tpu.memory_space<vmem>>, vector<16x32xf32>,
    %c112_148 = arith.constant 112 : index
    %c0_149 = arith.constant 0 : index
    %480 = vector.load %arg37[%c112_148, %c0_149] : memref<128x32xf32, #tpu.memory_space<vmem>>, vector<16x32xf32>
    tpu.vector_store %arg37[%c112_148, %c0_149], %478 {strides = array<i32>} : memref<128x32xf32, #tpu.memory_space<vmem>>, vector<16x32xf32>,
    %481 = vector.extract_strided_slice %428 {offsets = [16, 0], sizes = [16, 64], strides = [1, 1]} : vector<128x64xf32> to vector<16x64xf32>
    %482 = vector.extract_strided_slice %433 {offsets = [16, 0], sizes = [16, 32], strides = [1, 1]} : vector<128x32xf32> to vector<16x32xf32>
    %483 = arith.truncf %457 : vector<16x32xf32> to vector<16x32xbf16>
    %cst_150 = arith.constant dense<0.000000e+00> : vector<16x64xf32>
    %484 = tpu.matmul %483, %409, %cst_150 {dimension_numbers = #tpu.dot_dimension_numbers<[1], [0], [0], [1], [0, 0, 1, 1], [], []>} : vector<16x32xbf16>, vector<32x64xbf16>, vector<16x64xf32> -> vector<16x64xf32>
    %485 = arith.addf %481, %484 : vector<16x64xf32>
    %486 = arith.negf %485 : vector<16x64xf32>
    %487 = math.exp %486 : vector<16x64xf32>
    %cst_151 = arith.constant 1.000000e+00 : f32
    %488 = vector.broadcast %cst_151 : f32 to vector<16x64xf32>
    %489 = arith.addf %488, %487 : vector<16x64xf32>
    %490 = arith.divf %488, %489 : vector<16x64xf32>
    %491 = vector.extract_strided_slice %490 {offsets = [0, 0], sizes = [16, 32], strides = [1, 1]} : vector<16x64xf32> to vector<16x32xf32>
    %492 = vector.extract_strided_slice %490 {offsets = [0, 32], sizes = [16, 32], strides = [1, 1]} : vector<16x64xf32> to vector<16x32xf32>
    %493 = arith.truncf %457 : vector<16x32xf32> to vector<16x32xbf16>
    %cst_152 = arith.constant dense<0.000000e+00> : vector<16x32xf32>
    %494 = tpu.matmul %493, %410, %cst_152 {dimension_numbers = #tpu.dot_dimension_numbers<[1], [0], [0], [1], [0, 0, 1, 1], [], []>} : vector<16x32xbf16>, vector<32x32xbf16>, vector<16x32xf32> -> vector<16x32xf32>
    %495 = arith.addf %494, %415 : vector<16x32xf32>
    %496 = arith.mulf %491, %495 : vector<16x32xf32>
    %497 = arith.addf %482, %496 : vector<16x32xf32>
    %498 = math.tanh %497 : vector<16x32xf32>
    %499 = arith.subf %457, %498 : vector<16x32xf32>
    %500 = arith.mulf %492, %499 : vector<16x32xf32>
    %501 = arith.addf %498, %500 : vector<16x32xf32>
    %502 = vector.extract_strided_slice %432 {offsets = [96, 0], sizes = [16, 64], strides = [1, 1]} : vector<128x64xf32> to vector<16x64xf32>
    %503 = vector.extract_strided_slice %434 {offsets = [96, 0], sizes = [16, 32], strides = [1, 1]} : vector<128x32xf32> to vector<16x32xf32>
    %504 = arith.truncf %478 : vector<16x32xf32> to vector<16x32xbf16>
    %cst_153 = arith.constant dense<0.000000e+00> : vector<16x64xf32>
    %505 = tpu.matmul %504, %411, %cst_153 {dimension_numbers = #tpu.dot_dimension_numbers<[1], [0], [0], [1], [0, 0, 1, 1], [], []>} : vector<16x32xbf16>, vector<32x64xbf16>, vector<16x64xf32> -> vector<16x64xf32>
    %506 = arith.addf %502, %505 : vector<16x64xf32>
    %507 = arith.negf %506 : vector<16x64xf32>
    %508 = math.exp %507 : vector<16x64xf32>
    %cst_154 = arith.constant 1.000000e+00 : f32
    %509 = vector.broadcast %cst_154 : f32 to vector<16x64xf32>
    %510 = arith.addf %509, %508 : vector<16x64xf32>
    %511 = arith.divf %509, %510 : vector<16x64xf32>
    %512 = vector.extract_strided_slice %511 {offsets = [0, 0], sizes = [16, 32], strides = [1, 1]} : vector<16x64xf32> to vector<16x32xf32>
    %513 = vector.extract_strided_slice %511 {offsets = [0, 32], sizes = [16, 32], strides = [1, 1]} : vector<16x64xf32> to vector<16x32xf32>
    %514 = arith.truncf %478 : vector<16x32xf32> to vector<16x32xbf16>
    %cst_155 = arith.constant dense<0.000000e+00> : vector<16x32xf32>
    %515 = tpu.matmul %514, %412, %cst_155 {dimension_numbers = #tpu.dot_dimension_numbers<[1], [0], [0], [1], [0, 0, 1, 1], [], []>} : vector<16x32xbf16>, vector<32x32xbf16>, vector<16x32xf32> -> vector<16x32xf32>
    %516 = arith.addf %515, %418 : vector<16x32xf32>
    %517 = arith.mulf %512, %516 : vector<16x32xf32>
    %518 = arith.addf %503, %517 : vector<16x32xf32>
    %519 = math.tanh %518 : vector<16x32xf32>
    %520 = arith.subf %478, %519 : vector<16x32xf32>
    %521 = arith.mulf %513, %520 : vector<16x32xf32>
    %522 = arith.addf %519, %521 : vector<16x32xf32>
    %c16_156 = arith.constant 16 : index
    %c0_157 = arith.constant 0 : index
    %523 = vector.load %arg36[%c16_156, %c0_157] : memref<128x32xf32, #tpu.memory_space<vmem>>, vector<16x32xf32>
    tpu.vector_store %arg36[%c16_156, %c0_157], %501 {strides = array<i32>} : memref<128x32xf32, #tpu.memory_space<vmem>>, vector<16x32xf32>,
    %c96_158 = arith.constant 96 : index
    %c0_159 = arith.constant 0 : index
    %524 = vector.load %arg37[%c96_158, %c0_159] : memref<128x32xf32, #tpu.memory_space<vmem>>, vector<16x32xf32>
    tpu.vector_store %arg37[%c96_158, %c0_159], %522 {strides = array<i32>} : memref<128x32xf32, #tpu.memory_space<vmem>>, vector<16x32xf32>,
    %525 = vector.extract_strided_slice %428 {offsets = [32, 0], sizes = [16, 64], strides = [1, 1]} : vector<128x64xf32> to vector<16x64xf32>
    %526 = vector.extract_strided_slice %433 {offsets = [32, 0], sizes = [16, 32], strides = [1, 1]} : vector<128x32xf32> to vector<16x32xf32>
    %527 = arith.truncf %501 : vector<16x32xf32> to vector<16x32xbf16>
    %cst_160 = arith.constant dense<0.000000e+00> : vector<16x64xf32>
    %528 = tpu.matmul %527, %409, %cst_160 {dimension_numbers = #tpu.dot_dimension_numbers<[1], [0], [0], [1], [0, 0, 1, 1], [], []>} : vector<16x32xbf16>, vector<32x64xbf16>, vector<16x64xf32> -> vector<16x64xf32>
    %529 = arith.addf %525, %528 : vector<16x64xf32>
    %530 = arith.negf %529 : vector<16x64xf32>
    %531 = math.exp %530 : vector<16x64xf32>
    %cst_161 = arith.constant 1.000000e+00 : f32
    %532 = vector.broadcast %cst_161 : f32 to vector<16x64xf32>
    %533 = arith.addf %532, %531 : vector<16x64xf32>
    %534 = arith.divf %532, %533 : vector<16x64xf32>
    %535 = vector.extract_strided_slice %534 {offsets = [0, 0], sizes = [16, 32], strides = [1, 1]} : vector<16x64xf32> to vector<16x32xf32>
    %536 = vector.extract_strided_slice %534 {offsets = [0, 32], sizes = [16, 32], strides = [1, 1]} : vector<16x64xf32> to vector<16x32xf32>
    %537 = arith.truncf %501 : vector<16x32xf32> to vector<16x32xbf16>
    %cst_162 = arith.constant dense<0.000000e+00> : vector<16x32xf32>
    %538 = tpu.matmul %537, %410, %cst_162 {dimension_numbers = #tpu.dot_dimension_numbers<[1], [0], [0], [1], [0, 0, 1, 1], [], []>} : vector<16x32xbf16>, vector<32x32xbf16>, vector<16x32xf32> -> vector<16x32xf32>
    %539 = arith.addf %538, %415 : vector<16x32xf32>
    %540 = arith.mulf %535, %539 : vector<16x32xf32>
    %541 = arith.addf %526, %540 : vector<16x32xf32>
    %542 = math.tanh %541 : vector<16x32xf32>
    %543 = arith.subf %501, %542 : vector<16x32xf32>
    %544 = arith.mulf %536, %543 : vector<16x32xf32>
    %545 = arith.addf %542, %544 : vector<16x32xf32>
    %546 = vector.extract_strided_slice %432 {offsets = [80, 0], sizes = [16, 64], strides = [1, 1]} : vector<128x64xf32> to vector<16x64xf32>
    %547 = vector.extract_strided_slice %434 {offsets = [80, 0], sizes = [16, 32], strides = [1, 1]} : vector<128x32xf32> to vector<16x32xf32>
    %548 = arith.truncf %522 : vector<16x32xf32> to vector<16x32xbf16>
    %cst_163 = arith.constant dense<0.000000e+00> : vector<16x64xf32>
    %549 = tpu.matmul %548, %411, %cst_163 {dimension_numbers = #tpu.dot_dimension_numbers<[1], [0], [0], [1], [0, 0, 1, 1], [], []>} : vector<16x32xbf16>, vector<32x64xbf16>, vector<16x64xf32> -> vector<16x64xf32>
    %550 = arith.addf %546, %549 : vector<16x64xf32>
    %551 = arith.negf %550 : vector<16x64xf32>
    %552 = math.exp %551 : vector<16x64xf32>
    %cst_164 = arith.constant 1.000000e+00 : f32
    %553 = vector.broadcast %cst_164 : f32 to vector<16x64xf32>
    %554 = arith.addf %553, %552 : vector<16x64xf32>
    %555 = arith.divf %553, %554 : vector<16x64xf32>
    %556 = vector.extract_strided_slice %555 {offsets = [0, 0], sizes = [16, 32], strides = [1, 1]} : vector<16x64xf32> to vector<16x32xf32>
    %557 = vector.extract_strided_slice %555 {offsets = [0, 32], sizes = [16, 32], strides = [1, 1]} : vector<16x64xf32> to vector<16x32xf32>
    %558 = arith.truncf %522 : vector<16x32xf32> to vector<16x32xbf16>
    %cst_165 = arith.constant dense<0.000000e+00> : vector<16x32xf32>
    %559 = tpu.matmul %558, %412, %cst_165 {dimension_numbers = #tpu.dot_dimension_numbers<[1], [0], [0], [1], [0, 0, 1, 1], [], []>} : vector<16x32xbf16>, vector<32x32xbf16>, vector<16x32xf32> -> vector<16x32xf32>
    %560 = arith.addf %559, %418 : vector<16x32xf32>
    %561 = arith.mulf %556, %560 : vector<16x32xf32>
    %562 = arith.addf %547, %561 : vector<16x32xf32>
    %563 = math.tanh %562 : vector<16x32xf32>
    %564 = arith.subf %522, %563 : vector<16x32xf32>
    %565 = arith.mulf %557, %564 : vector<16x32xf32>
    %566 = arith.addf %563, %565 : vector<16x32xf32>
    %c32_166 = arith.constant 32 : index
    %c0_167 = arith.constant 0 : index
    %567 = vector.load %arg36[%c32_166, %c0_167] : memref<128x32xf32, #tpu.memory_space<vmem>>, vector<16x32xf32>
    tpu.vector_store %arg36[%c32_166, %c0_167], %545 {strides = array<i32>} : memref<128x32xf32, #tpu.memory_space<vmem>>, vector<16x32xf32>,
    %c80_168 = arith.constant 80 : index
    %c0_169 = arith.constant 0 : index
    %568 = vector.load %arg37[%c80_168, %c0_169] : memref<128x32xf32, #tpu.memory_space<vmem>>, vector<16x32xf32>
    tpu.vector_store %arg37[%c80_168, %c0_169], %566 {strides = array<i32>} : memref<128x32xf32, #tpu.memory_space<vmem>>, vector<16x32xf32>,
    %569 = vector.extract_strided_slice %428 {offsets = [48, 0], sizes = [16, 64], strides = [1, 1]} : vector<128x64xf32> to vector<16x64xf32>
    %570 = vector.extract_strided_slice %433 {offsets = [48, 0], sizes = [16, 32], strides = [1, 1]} : vector<128x32xf32> to vector<16x32xf32>
    %571 = arith.truncf %545 : vector<16x32xf32> to vector<16x32xbf16>
    %cst_170 = arith.constant dense<0.000000e+00> : vector<16x64xf32>
    %572 = tpu.matmul %571, %409, %cst_170 {dimension_numbers = #tpu.dot_dimension_numbers<[1], [0], [0], [1], [0, 0, 1, 1], [], []>} : vector<16x32xbf16>, vector<32x64xbf16>, vector<16x64xf32> -> vector<16x64xf32>
    %573 = arith.addf %569, %572 : vector<16x64xf32>
    %574 = arith.negf %573 : vector<16x64xf32>
    %575 = math.exp %574 : vector<16x64xf32>
    %cst_171 = arith.constant 1.000000e+00 : f32
    %576 = vector.broadcast %cst_171 : f32 to vector<16x64xf32>
    %577 = arith.addf %576, %575 : vector<16x64xf32>
    %578 = arith.divf %576, %577 : vector<16x64xf32>
    %579 = vector.extract_strided_slice %578 {offsets = [0, 0], sizes = [16, 32], strides = [1, 1]} : vector<16x64xf32> to vector<16x32xf32>
    %580 = vector.extract_strided_slice %578 {offsets = [0, 32], sizes = [16, 32], strides = [1, 1]} : vector<16x64xf32> to vector<16x32xf32>
    %581 = arith.truncf %545 : vector<16x32xf32> to vector<16x32xbf16>
    %cst_172 = arith.constant dense<0.000000e+00> : vector<16x32xf32>
    %582 = tpu.matmul %581, %410, %cst_172 {dimension_numbers = #tpu.dot_dimension_numbers<[1], [0], [0], [1], [0, 0, 1, 1], [], []>} : vector<16x32xbf16>, vector<32x32xbf16>, vector<16x32xf32> -> vector<16x32xf32>
    %583 = arith.addf %582, %415 : vector<16x32xf32>
    %584 = arith.mulf %579, %583 : vector<16x32xf32>
    %585 = arith.addf %570, %584 : vector<16x32xf32>
    %586 = math.tanh %585 : vector<16x32xf32>
    %587 = arith.subf %545, %586 : vector<16x32xf32>
    %588 = arith.mulf %580, %587 : vector<16x32xf32>
    %589 = arith.addf %586, %588 : vector<16x32xf32>
    %590 = vector.extract_strided_slice %432 {offsets = [64, 0], sizes = [16, 64], strides = [1, 1]} : vector<128x64xf32> to vector<16x64xf32>
    %591 = vector.extract_strided_slice %434 {offsets = [64, 0], sizes = [16, 32], strides = [1, 1]} : vector<128x32xf32> to vector<16x32xf32>
    %592 = arith.truncf %566 : vector<16x32xf32> to vector<16x32xbf16>
    %cst_173 = arith.constant dense<0.000000e+00> : vector<16x64xf32>
    %593 = tpu.matmul %592, %411, %cst_173 {dimension_numbers = #tpu.dot_dimension_numbers<[1], [0], [0], [1], [0, 0, 1, 1], [], []>} : vector<16x32xbf16>, vector<32x64xbf16>, vector<16x64xf32> -> vector<16x64xf32>
    %594 = arith.addf %590, %593 : vector<16x64xf32>
    %595 = arith.negf %594 : vector<16x64xf32>
    %596 = math.exp %595 : vector<16x64xf32>
    %cst_174 = arith.constant 1.000000e+00 : f32
    %597 = vector.broadcast %cst_174 : f32 to vector<16x64xf32>
    %598 = arith.addf %597, %596 : vector<16x64xf32>
    %599 = arith.divf %597, %598 : vector<16x64xf32>
    %600 = vector.extract_strided_slice %599 {offsets = [0, 0], sizes = [16, 32], strides = [1, 1]} : vector<16x64xf32> to vector<16x32xf32>
    %601 = vector.extract_strided_slice %599 {offsets = [0, 32], sizes = [16, 32], strides = [1, 1]} : vector<16x64xf32> to vector<16x32xf32>
    %602 = arith.truncf %566 : vector<16x32xf32> to vector<16x32xbf16>
    %cst_175 = arith.constant dense<0.000000e+00> : vector<16x32xf32>
    %603 = tpu.matmul %602, %412, %cst_175 {dimension_numbers = #tpu.dot_dimension_numbers<[1], [0], [0], [1], [0, 0, 1, 1], [], []>} : vector<16x32xbf16>, vector<32x32xbf16>, vector<16x32xf32> -> vector<16x32xf32>
    %604 = arith.addf %603, %418 : vector<16x32xf32>
    %605 = arith.mulf %600, %604 : vector<16x32xf32>
    %606 = arith.addf %591, %605 : vector<16x32xf32>
    %607 = math.tanh %606 : vector<16x32xf32>
    %608 = arith.subf %566, %607 : vector<16x32xf32>
    %609 = arith.mulf %601, %608 : vector<16x32xf32>
    %610 = arith.addf %607, %609 : vector<16x32xf32>
    %c48_176 = arith.constant 48 : index
    %c0_177 = arith.constant 0 : index
    %611 = vector.load %arg36[%c48_176, %c0_177] : memref<128x32xf32, #tpu.memory_space<vmem>>, vector<16x32xf32>
    tpu.vector_store %arg36[%c48_176, %c0_177], %589 {strides = array<i32>} : memref<128x32xf32, #tpu.memory_space<vmem>>, vector<16x32xf32>,
    %c64_178 = arith.constant 64 : index
    %c0_179 = arith.constant 0 : index
    %612 = vector.load %arg37[%c64_178, %c0_179] : memref<128x32xf32, #tpu.memory_space<vmem>>, vector<16x32xf32>
    tpu.vector_store %arg37[%c64_178, %c0_179], %610 {strides = array<i32>} : memref<128x32xf32, #tpu.memory_space<vmem>>, vector<16x32xf32>,
    %613 = vector.extract_strided_slice %428 {offsets = [64, 0], sizes = [16, 64], strides = [1, 1]} : vector<128x64xf32> to vector<16x64xf32>
    %614 = vector.extract_strided_slice %433 {offsets = [64, 0], sizes = [16, 32], strides = [1, 1]} : vector<128x32xf32> to vector<16x32xf32>
    %615 = arith.truncf %589 : vector<16x32xf32> to vector<16x32xbf16>
    %cst_180 = arith.constant dense<0.000000e+00> : vector<16x64xf32>
    %616 = tpu.matmul %615, %409, %cst_180 {dimension_numbers = #tpu.dot_dimension_numbers<[1], [0], [0], [1], [0, 0, 1, 1], [], []>} : vector<16x32xbf16>, vector<32x64xbf16>, vector<16x64xf32> -> vector<16x64xf32>
    %617 = arith.addf %613, %616 : vector<16x64xf32>
    %618 = arith.negf %617 : vector<16x64xf32>
    %619 = math.exp %618 : vector<16x64xf32>
    %cst_181 = arith.constant 1.000000e+00 : f32
    %620 = vector.broadcast %cst_181 : f32 to vector<16x64xf32>
    %621 = arith.addf %620, %619 : vector<16x64xf32>
    %622 = arith.divf %620, %621 : vector<16x64xf32>
    %623 = vector.extract_strided_slice %622 {offsets = [0, 0], sizes = [16, 32], strides = [1, 1]} : vector<16x64xf32> to vector<16x32xf32>
    %624 = vector.extract_strided_slice %622 {offsets = [0, 32], sizes = [16, 32], strides = [1, 1]} : vector<16x64xf32> to vector<16x32xf32>
    %625 = arith.truncf %589 : vector<16x32xf32> to vector<16x32xbf16>
    %cst_182 = arith.constant dense<0.000000e+00> : vector<16x32xf32>
    %626 = tpu.matmul %625, %410, %cst_182 {dimension_numbers = #tpu.dot_dimension_numbers<[1], [0], [0], [1], [0, 0, 1, 1], [], []>} : vector<16x32xbf16>, vector<32x32xbf16>, vector<16x32xf32> -> vector<16x32xf32>
    %627 = arith.addf %626, %415 : vector<16x32xf32>
    %628 = arith.mulf %623, %627 : vector<16x32xf32>
    %629 = arith.addf %614, %628 : vector<16x32xf32>
    %630 = math.tanh %629 : vector<16x32xf32>
    %631 = arith.subf %589, %630 : vector<16x32xf32>
    %632 = arith.mulf %624, %631 : vector<16x32xf32>
    %633 = arith.addf %630, %632 : vector<16x32xf32>
    %634 = vector.extract_strided_slice %432 {offsets = [48, 0], sizes = [16, 64], strides = [1, 1]} : vector<128x64xf32> to vector<16x64xf32>
    %635 = vector.extract_strided_slice %434 {offsets = [48, 0], sizes = [16, 32], strides = [1, 1]} : vector<128x32xf32> to vector<16x32xf32>
    %636 = arith.truncf %610 : vector<16x32xf32> to vector<16x32xbf16>
    %cst_183 = arith.constant dense<0.000000e+00> : vector<16x64xf32>
    %637 = tpu.matmul %636, %411, %cst_183 {dimension_numbers = #tpu.dot_dimension_numbers<[1], [0], [0], [1], [0, 0, 1, 1], [], []>} : vector<16x32xbf16>, vector<32x64xbf16>, vector<16x64xf32> -> vector<16x64xf32>
    %638 = arith.addf %634, %637 : vector<16x64xf32>
    %639 = arith.negf %638 : vector<16x64xf32>
    %640 = math.exp %639 : vector<16x64xf32>
    %cst_184 = arith.constant 1.000000e+00 : f32
    %641 = vector.broadcast %cst_184 : f32 to vector<16x64xf32>
    %642 = arith.addf %641, %640 : vector<16x64xf32>
    %643 = arith.divf %641, %642 : vector<16x64xf32>
    %644 = vector.extract_strided_slice %643 {offsets = [0, 0], sizes = [16, 32], strides = [1, 1]} : vector<16x64xf32> to vector<16x32xf32>
    %645 = vector.extract_strided_slice %643 {offsets = [0, 32], sizes = [16, 32], strides = [1, 1]} : vector<16x64xf32> to vector<16x32xf32>
    %646 = arith.truncf %610 : vector<16x32xf32> to vector<16x32xbf16>
    %cst_185 = arith.constant dense<0.000000e+00> : vector<16x32xf32>
    %647 = tpu.matmul %646, %412, %cst_185 {dimension_numbers = #tpu.dot_dimension_numbers<[1], [0], [0], [1], [0, 0, 1, 1], [], []>} : vector<16x32xbf16>, vector<32x32xbf16>, vector<16x32xf32> -> vector<16x32xf32>
    %648 = arith.addf %647, %418 : vector<16x32xf32>
    %649 = arith.mulf %644, %648 : vector<16x32xf32>
    %650 = arith.addf %635, %649 : vector<16x32xf32>
    %651 = math.tanh %650 : vector<16x32xf32>
    %652 = arith.subf %610, %651 : vector<16x32xf32>
    %653 = arith.mulf %645, %652 : vector<16x32xf32>
    %654 = arith.addf %651, %653 : vector<16x32xf32>
    %c64_186 = arith.constant 64 : index
    %c0_187 = arith.constant 0 : index
    %655 = vector.load %arg36[%c64_186, %c0_187] : memref<128x32xf32, #tpu.memory_space<vmem>>, vector<16x32xf32>
    tpu.vector_store %arg36[%c64_186, %c0_187], %633 {strides = array<i32>} : memref<128x32xf32, #tpu.memory_space<vmem>>, vector<16x32xf32>,
    %c48_188 = arith.constant 48 : index
    %c0_189 = arith.constant 0 : index
    %656 = vector.load %arg37[%c48_188, %c0_189] : memref<128x32xf32, #tpu.memory_space<vmem>>, vector<16x32xf32>
    tpu.vector_store %arg37[%c48_188, %c0_189], %654 {strides = array<i32>} : memref<128x32xf32, #tpu.memory_space<vmem>>, vector<16x32xf32>,
    %657 = vector.extract_strided_slice %428 {offsets = [80, 0], sizes = [16, 64], strides = [1, 1]} : vector<128x64xf32> to vector<16x64xf32>
    %658 = vector.extract_strided_slice %433 {offsets = [80, 0], sizes = [16, 32], strides = [1, 1]} : vector<128x32xf32> to vector<16x32xf32>
    %659 = arith.truncf %633 : vector<16x32xf32> to vector<16x32xbf16>
    %cst_190 = arith.constant dense<0.000000e+00> : vector<16x64xf32>
    %660 = tpu.matmul %659, %409, %cst_190 {dimension_numbers = #tpu.dot_dimension_numbers<[1], [0], [0], [1], [0, 0, 1, 1], [], []>} : vector<16x32xbf16>, vector<32x64xbf16>, vector<16x64xf32> -> vector<16x64xf32>
    %661 = arith.addf %657, %660 : vector<16x64xf32>
    %662 = arith.negf %661 : vector<16x64xf32>
    %663 = math.exp %662 : vector<16x64xf32>
    %cst_191 = arith.constant 1.000000e+00 : f32
    %664 = vector.broadcast %cst_191 : f32 to vector<16x64xf32>
    %665 = arith.addf %664, %663 : vector<16x64xf32>
    %666 = arith.divf %664, %665 : vector<16x64xf32>
    %667 = vector.extract_strided_slice %666 {offsets = [0, 0], sizes = [16, 32], strides = [1, 1]} : vector<16x64xf32> to vector<16x32xf32>
    %668 = vector.extract_strided_slice %666 {offsets = [0, 32], sizes = [16, 32], strides = [1, 1]} : vector<16x64xf32> to vector<16x32xf32>
    %669 = arith.truncf %633 : vector<16x32xf32> to vector<16x32xbf16>
    %cst_192 = arith.constant dense<0.000000e+00> : vector<16x32xf32>
    %670 = tpu.matmul %669, %410, %cst_192 {dimension_numbers = #tpu.dot_dimension_numbers<[1], [0], [0], [1], [0, 0, 1, 1], [], []>} : vector<16x32xbf16>, vector<32x32xbf16>, vector<16x32xf32> -> vector<16x32xf32>
    %671 = arith.addf %670, %415 : vector<16x32xf32>
    %672 = arith.mulf %667, %671 : vector<16x32xf32>
    %673 = arith.addf %658, %672 : vector<16x32xf32>
    %674 = math.tanh %673 : vector<16x32xf32>
    %675 = arith.subf %633, %674 : vector<16x32xf32>
    %676 = arith.mulf %668, %675 : vector<16x32xf32>
    %677 = arith.addf %674, %676 : vector<16x32xf32>
    %678 = vector.extract_strided_slice %432 {offsets = [32, 0], sizes = [16, 64], strides = [1, 1]} : vector<128x64xf32> to vector<16x64xf32>
    %679 = vector.extract_strided_slice %434 {offsets = [32, 0], sizes = [16, 32], strides = [1, 1]} : vector<128x32xf32> to vector<16x32xf32>
    %680 = arith.truncf %654 : vector<16x32xf32> to vector<16x32xbf16>
    %cst_193 = arith.constant dense<0.000000e+00> : vector<16x64xf32>
    %681 = tpu.matmul %680, %411, %cst_193 {dimension_numbers = #tpu.dot_dimension_numbers<[1], [0], [0], [1], [0, 0, 1, 1], [], []>} : vector<16x32xbf16>, vector<32x64xbf16>, vector<16x64xf32> -> vector<16x64xf32>
    %682 = arith.addf %678, %681 : vector<16x64xf32>
    %683 = arith.negf %682 : vector<16x64xf32>
    %684 = math.exp %683 : vector<16x64xf32>
    %cst_194 = arith.constant 1.000000e+00 : f32
    %685 = vector.broadcast %cst_194 : f32 to vector<16x64xf32>
    %686 = arith.addf %685, %684 : vector<16x64xf32>
    %687 = arith.divf %685, %686 : vector<16x64xf32>
    %688 = vector.extract_strided_slice %687 {offsets = [0, 0], sizes = [16, 32], strides = [1, 1]} : vector<16x64xf32> to vector<16x32xf32>
    %689 = vector.extract_strided_slice %687 {offsets = [0, 32], sizes = [16, 32], strides = [1, 1]} : vector<16x64xf32> to vector<16x32xf32>
    %690 = arith.truncf %654 : vector<16x32xf32> to vector<16x32xbf16>
    %cst_195 = arith.constant dense<0.000000e+00> : vector<16x32xf32>
    %691 = tpu.matmul %690, %412, %cst_195 {dimension_numbers = #tpu.dot_dimension_numbers<[1], [0], [0], [1], [0, 0, 1, 1], [], []>} : vector<16x32xbf16>, vector<32x32xbf16>, vector<16x32xf32> -> vector<16x32xf32>
    %692 = arith.addf %691, %418 : vector<16x32xf32>
    %693 = arith.mulf %688, %692 : vector<16x32xf32>
    %694 = arith.addf %679, %693 : vector<16x32xf32>
    %695 = math.tanh %694 : vector<16x32xf32>
    %696 = arith.subf %654, %695 : vector<16x32xf32>
    %697 = arith.mulf %689, %696 : vector<16x32xf32>
    %698 = arith.addf %695, %697 : vector<16x32xf32>
    %c80_196 = arith.constant 80 : index
    %c0_197 = arith.constant 0 : index
    %699 = vector.load %arg36[%c80_196, %c0_197] : memref<128x32xf32, #tpu.memory_space<vmem>>, vector<16x32xf32>
    tpu.vector_store %arg36[%c80_196, %c0_197], %677 {strides = array<i32>} : memref<128x32xf32, #tpu.memory_space<vmem>>, vector<16x32xf32>,
    %c32_198 = arith.constant 32 : index
    %c0_199 = arith.constant 0 : index
    %700 = vector.load %arg37[%c32_198, %c0_199] : memref<128x32xf32, #tpu.memory_space<vmem>>, vector<16x32xf32>
    tpu.vector_store %arg37[%c32_198, %c0_199], %698 {strides = array<i32>} : memref<128x32xf32, #tpu.memory_space<vmem>>, vector<16x32xf32>,
    %701 = vector.extract_strided_slice %428 {offsets = [96, 0], sizes = [16, 64], strides = [1, 1]} : vector<128x64xf32> to vector<16x64xf32>
    %702 = vector.extract_strided_slice %433 {offsets = [96, 0], sizes = [16, 32], strides = [1, 1]} : vector<128x32xf32> to vector<16x32xf32>
    %703 = arith.truncf %677 : vector<16x32xf32> to vector<16x32xbf16>
    %cst_200 = arith.constant dense<0.000000e+00> : vector<16x64xf32>
    %704 = tpu.matmul %703, %409, %cst_200 {dimension_numbers = #tpu.dot_dimension_numbers<[1], [0], [0], [1], [0, 0, 1, 1], [], []>} : vector<16x32xbf16>, vector<32x64xbf16>, vector<16x64xf32> -> vector<16x64xf32>
    %705 = arith.addf %701, %704 : vector<16x64xf32>
    %706 = arith.negf %705 : vector<16x64xf32>
    %707 = math.exp %706 : vector<16x64xf32>
    %cst_201 = arith.constant 1.000000e+00 : f32
    %708 = vector.broadcast %cst_201 : f32 to vector<16x64xf32>
    %709 = arith.addf %708, %707 : vector<16x64xf32>
    %710 = arith.divf %708, %709 : vector<16x64xf32>
    %711 = vector.extract_strided_slice %710 {offsets = [0, 0], sizes = [16, 32], strides = [1, 1]} : vector<16x64xf32> to vector<16x32xf32>
    %712 = vector.extract_strided_slice %710 {offsets = [0, 32], sizes = [16, 32], strides = [1, 1]} : vector<16x64xf32> to vector<16x32xf32>
    %713 = arith.truncf %677 : vector<16x32xf32> to vector<16x32xbf16>
    %cst_202 = arith.constant dense<0.000000e+00> : vector<16x32xf32>
    %714 = tpu.matmul %713, %410, %cst_202 {dimension_numbers = #tpu.dot_dimension_numbers<[1], [0], [0], [1], [0, 0, 1, 1], [], []>} : vector<16x32xbf16>, vector<32x32xbf16>, vector<16x32xf32> -> vector<16x32xf32>
    %715 = arith.addf %714, %415 : vector<16x32xf32>
    %716 = arith.mulf %711, %715 : vector<16x32xf32>
    %717 = arith.addf %702, %716 : vector<16x32xf32>
    %718 = math.tanh %717 : vector<16x32xf32>
    %719 = arith.subf %677, %718 : vector<16x32xf32>
    %720 = arith.mulf %712, %719 : vector<16x32xf32>
    %721 = arith.addf %718, %720 : vector<16x32xf32>
    %722 = vector.extract_strided_slice %432 {offsets = [16, 0], sizes = [16, 64], strides = [1, 1]} : vector<128x64xf32> to vector<16x64xf32>
    %723 = vector.extract_strided_slice %434 {offsets = [16, 0], sizes = [16, 32], strides = [1, 1]} : vector<128x32xf32> to vector<16x32xf32>
    %724 = arith.truncf %698 : vector<16x32xf32> to vector<16x32xbf16>
    %cst_203 = arith.constant dense<0.000000e+00> : vector<16x64xf32>
    %725 = tpu.matmul %724, %411, %cst_203 {dimension_numbers = #tpu.dot_dimension_numbers<[1], [0], [0], [1], [0, 0, 1, 1], [], []>} : vector<16x32xbf16>, vector<32x64xbf16>, vector<16x64xf32> -> vector<16x64xf32>
    %726 = arith.addf %722, %725 : vector<16x64xf32>
    %727 = arith.negf %726 : vector<16x64xf32>
    %728 = math.exp %727 : vector<16x64xf32>
    %cst_204 = arith.constant 1.000000e+00 : f32
    %729 = vector.broadcast %cst_204 : f32 to vector<16x64xf32>
    %730 = arith.addf %729, %728 : vector<16x64xf32>
    %731 = arith.divf %729, %730 : vector<16x64xf32>
    %732 = vector.extract_strided_slice %731 {offsets = [0, 0], sizes = [16, 32], strides = [1, 1]} : vector<16x64xf32> to vector<16x32xf32>
    %733 = vector.extract_strided_slice %731 {offsets = [0, 32], sizes = [16, 32], strides = [1, 1]} : vector<16x64xf32> to vector<16x32xf32>
    %734 = arith.truncf %698 : vector<16x32xf32> to vector<16x32xbf16>
    %cst_205 = arith.constant dense<0.000000e+00> : vector<16x32xf32>
    %735 = tpu.matmul %734, %412, %cst_205 {dimension_numbers = #tpu.dot_dimension_numbers<[1], [0], [0], [1], [0, 0, 1, 1], [], []>} : vector<16x32xbf16>, vector<32x32xbf16>, vector<16x32xf32> -> vector<16x32xf32>
    %736 = arith.addf %735, %418 : vector<16x32xf32>
    %737 = arith.mulf %732, %736 : vector<16x32xf32>
    %738 = arith.addf %723, %737 : vector<16x32xf32>
    %739 = math.tanh %738 : vector<16x32xf32>
    %740 = arith.subf %698, %739 : vector<16x32xf32>
    %741 = arith.mulf %733, %740 : vector<16x32xf32>
    %742 = arith.addf %739, %741 : vector<16x32xf32>
    %c96_206 = arith.constant 96 : index
    %c0_207 = arith.constant 0 : index
    %743 = vector.load %arg36[%c96_206, %c0_207] : memref<128x32xf32, #tpu.memory_space<vmem>>, vector<16x32xf32>
    tpu.vector_store %arg36[%c96_206, %c0_207], %721 {strides = array<i32>} : memref<128x32xf32, #tpu.memory_space<vmem>>, vector<16x32xf32>,
    %c16_208 = arith.constant 16 : index
    %c0_209 = arith.constant 0 : index
    %744 = vector.load %arg37[%c16_208, %c0_209] : memref<128x32xf32, #tpu.memory_space<vmem>>, vector<16x32xf32>
    tpu.vector_store %arg37[%c16_208, %c0_209], %742 {strides = array<i32>} : memref<128x32xf32, #tpu.memory_space<vmem>>, vector<16x32xf32>,
    %745 = vector.extract_strided_slice %428 {offsets = [112, 0], sizes = [16, 64], strides = [1, 1]} : vector<128x64xf32> to vector<16x64xf32>
    %746 = vector.extract_strided_slice %433 {offsets = [112, 0], sizes = [16, 32], strides = [1, 1]} : vector<128x32xf32> to vector<16x32xf32>
    %747 = arith.truncf %721 : vector<16x32xf32> to vector<16x32xbf16>
    %cst_210 = arith.constant dense<0.000000e+00> : vector<16x64xf32>
    %748 = tpu.matmul %747, %409, %cst_210 {dimension_numbers = #tpu.dot_dimension_numbers<[1], [0], [0], [1], [0, 0, 1, 1], [], []>} : vector<16x32xbf16>, vector<32x64xbf16>, vector<16x64xf32> -> vector<16x64xf32>
    %749 = arith.addf %745, %748 : vector<16x64xf32>
    %750 = arith.negf %749 : vector<16x64xf32>
    %751 = math.exp %750 : vector<16x64xf32>
    %cst_211 = arith.constant 1.000000e+00 : f32
    %752 = vector.broadcast %cst_211 : f32 to vector<16x64xf32>
    %753 = arith.addf %752, %751 : vector<16x64xf32>
    %754 = arith.divf %752, %753 : vector<16x64xf32>
    %755 = vector.extract_strided_slice %754 {offsets = [0, 0], sizes = [16, 32], strides = [1, 1]} : vector<16x64xf32> to vector<16x32xf32>
    %756 = vector.extract_strided_slice %754 {offsets = [0, 32], sizes = [16, 32], strides = [1, 1]} : vector<16x64xf32> to vector<16x32xf32>
    %757 = arith.truncf %721 : vector<16x32xf32> to vector<16x32xbf16>
    %cst_212 = arith.constant dense<0.000000e+00> : vector<16x32xf32>
    %758 = tpu.matmul %757, %410, %cst_212 {dimension_numbers = #tpu.dot_dimension_numbers<[1], [0], [0], [1], [0, 0, 1, 1], [], []>} : vector<16x32xbf16>, vector<32x32xbf16>, vector<16x32xf32> -> vector<16x32xf32>
    %759 = arith.addf %758, %415 : vector<16x32xf32>
    %760 = arith.mulf %755, %759 : vector<16x32xf32>
    %761 = arith.addf %746, %760 : vector<16x32xf32>
    %762 = math.tanh %761 : vector<16x32xf32>
    %763 = arith.subf %721, %762 : vector<16x32xf32>
    %764 = arith.mulf %756, %763 : vector<16x32xf32>
    %765 = arith.addf %762, %764 : vector<16x32xf32>
    %766 = vector.extract_strided_slice %432 {offsets = [0, 0], sizes = [16, 64], strides = [1, 1]} : vector<128x64xf32> to vector<16x64xf32>
    %767 = vector.extract_strided_slice %434 {offsets = [0, 0], sizes = [16, 32], strides = [1, 1]} : vector<128x32xf32> to vector<16x32xf32>
    %768 = arith.truncf %742 : vector<16x32xf32> to vector<16x32xbf16>
    %cst_213 = arith.constant dense<0.000000e+00> : vector<16x64xf32>
    %769 = tpu.matmul %768, %411, %cst_213 {dimension_numbers = #tpu.dot_dimension_numbers<[1], [0], [0], [1], [0, 0, 1, 1], [], []>} : vector<16x32xbf16>, vector<32x64xbf16>, vector<16x64xf32> -> vector<16x64xf32>
    %770 = arith.addf %766, %769 : vector<16x64xf32>
    %771 = arith.negf %770 : vector<16x64xf32>
    %772 = math.exp %771 : vector<16x64xf32>
    %cst_214 = arith.constant 1.000000e+00 : f32
    %773 = vector.broadcast %cst_214 : f32 to vector<16x64xf32>
    %774 = arith.addf %773, %772 : vector<16x64xf32>
    %775 = arith.divf %773, %774 : vector<16x64xf32>
    %776 = vector.extract_strided_slice %775 {offsets = [0, 0], sizes = [16, 32], strides = [1, 1]} : vector<16x64xf32> to vector<16x32xf32>
    %777 = vector.extract_strided_slice %775 {offsets = [0, 32], sizes = [16, 32], strides = [1, 1]} : vector<16x64xf32> to vector<16x32xf32>
    %778 = arith.truncf %742 : vector<16x32xf32> to vector<16x32xbf16>
    %cst_215 = arith.constant dense<0.000000e+00> : vector<16x32xf32>
    %779 = tpu.matmul %778, %412, %cst_215 {dimension_numbers = #tpu.dot_dimension_numbers<[1], [0], [0], [1], [0, 0, 1, 1], [], []>} : vector<16x32xbf16>, vector<32x32xbf16>, vector<16x32xf32> -> vector<16x32xf32>
    %780 = arith.addf %779, %418 : vector<16x32xf32>
    %781 = arith.mulf %776, %780 : vector<16x32xf32>
    %782 = arith.addf %767, %781 : vector<16x32xf32>
    %783 = math.tanh %782 : vector<16x32xf32>
    %784 = arith.subf %742, %783 : vector<16x32xf32>
    %785 = arith.mulf %777, %784 : vector<16x32xf32>
    %786 = arith.addf %783, %785 : vector<16x32xf32>
    %c112_216 = arith.constant 112 : index
    %c0_217 = arith.constant 0 : index
    %787 = vector.load %arg36[%c112_216, %c0_217] : memref<128x32xf32, #tpu.memory_space<vmem>>, vector<16x32xf32>
    tpu.vector_store %arg36[%c112_216, %c0_217], %765 {strides = array<i32>} : memref<128x32xf32, #tpu.memory_space<vmem>>, vector<16x32xf32>,
    %c0_218 = arith.constant 0 : index
    %c0_219 = arith.constant 0 : index
    %788 = vector.load %arg37[%c0_218, %c0_219] : memref<128x32xf32, #tpu.memory_space<vmem>>, vector<16x32xf32>
    tpu.vector_store %arg37[%c0_218, %c0_219], %786 {strides = array<i32>} : memref<128x32xf32, #tpu.memory_space<vmem>>, vector<16x32xf32>,
    %c0_220 = arith.constant 0 : index
    %c0_221 = arith.constant 0 : index
    %789 = vector.load %arg36[%c0_220, %c0_221] : memref<128x32xf32, #tpu.memory_space<vmem>>, vector<128x32xf32>
    %c0_222 = arith.constant 0 : index
    %c0_223 = arith.constant 0 : index
    %790 = vector.load %arg27[%c0_222, %c0_223] : memref<32x32xbf16, #tpu.memory_space<vmem>>, vector<32x32xbf16>
    %791 = arith.truncf %789 : vector<128x32xf32> to vector<128x32xbf16>
    %cst_224 = arith.constant dense<0.000000e+00> : vector<128x32xf32>
    %792 = tpu.matmul %791, %790, %cst_224 {dimension_numbers = #tpu.dot_dimension_numbers<[1], [0], [0], [1], [0, 0, 1, 1], [], []>} : vector<128x32xbf16>, vector<32x32xbf16>, vector<128x32xf32> -> vector<128x32xf32>
    %c0_225 = arith.constant 0 : index
    %c0_226 = arith.constant 0 : index
    %793 = vector.load %arg37[%c0_225, %c0_226] : memref<128x32xf32, #tpu.memory_space<vmem>>, vector<128x32xf32>
    %c0_227 = arith.constant 0 : index
    %c0_228 = arith.constant 0 : index
    %794 = vector.load %arg28[%c0_227, %c0_228] : memref<32x32xbf16, #tpu.memory_space<vmem>>, vector<32x32xbf16>
    %795 = arith.truncf %793 : vector<128x32xf32> to vector<128x32xbf16>
    %cst_229 = arith.constant dense<0.000000e+00> : vector<128x32xf32>
    %796 = tpu.matmul %795, %794, %cst_229 {dimension_numbers = #tpu.dot_dimension_numbers<[1], [0], [0], [1], [0, 0, 1, 1], [], []>} : vector<128x32xbf16>, vector<32x32xbf16>, vector<128x32xf32> -> vector<128x32xf32>
    %797 = arith.addf %792, %796 : vector<128x32xf32>
    %c0_230 = arith.constant 0 : index
    %c0_231 = arith.constant 0 : index
    %798 = vector.load %arg29[%c0_230, %c0_231] : memref<1x32xf32, #tpu.memory_space<vmem>>, vector<1x32xf32>
    %799 = vector.broadcast %798 : vector<1x32xf32> to vector<128x32xf32>
    %800 = arith.addf %797, %799 : vector<128x32xf32>
    %cst_232 = arith.constant 0.000000e+00 : f32
    %801 = vector.broadcast %cst_232 : f32 to vector<128x32xf32>
    %802 = arith.maximumf %800, %801 : vector<128x32xf32>
    %803 = vector.extract_strided_slice %802 {offsets = [0, 0], sizes = [16, 32], strides = [1, 1]} : vector<128x32xf32> to vector<16x32xf32>
    %804 = vector.extract_strided_slice %802 {offsets = [16, 0], sizes = [16, 32], strides = [1, 1]} : vector<128x32xf32> to vector<16x32xf32>
    %805 = arith.maximumf %803, %804 : vector<16x32xf32>
    %806 = vector.extract_strided_slice %802 {offsets = [32, 0], sizes = [16, 32], strides = [1, 1]} : vector<128x32xf32> to vector<16x32xf32>
    %807 = arith.maximumf %805, %806 : vector<16x32xf32>
    %808 = vector.extract_strided_slice %802 {offsets = [48, 0], sizes = [16, 32], strides = [1, 1]} : vector<128x32xf32> to vector<16x32xf32>
    %809 = arith.maximumf %807, %808 : vector<16x32xf32>
    %810 = vector.extract_strided_slice %802 {offsets = [64, 0], sizes = [16, 32], strides = [1, 1]} : vector<128x32xf32> to vector<16x32xf32>
    %811 = arith.maximumf %809, %810 : vector<16x32xf32>
    %812 = vector.extract_strided_slice %802 {offsets = [80, 0], sizes = [16, 32], strides = [1, 1]} : vector<128x32xf32> to vector<16x32xf32>
    %813 = arith.maximumf %811, %812 : vector<16x32xf32>
    %814 = vector.extract_strided_slice %802 {offsets = [96, 0], sizes = [16, 32], strides = [1, 1]} : vector<128x32xf32> to vector<16x32xf32>
    %815 = arith.maximumf %813, %814 : vector<16x32xf32>
    %816 = vector.extract_strided_slice %802 {offsets = [112, 0], sizes = [16, 32], strides = [1, 1]} : vector<128x32xf32> to vector<16x32xf32>
    %817 = arith.maximumf %815, %816 : vector<16x32xf32>
    %818 = vector.extract_strided_slice %817 {offsets = [0, 0], sizes = [8, 32], strides = [1, 1]} : vector<16x32xf32> to vector<8x32xf32>
    %819 = vector.extract_strided_slice %817 {offsets = [8, 0], sizes = [8, 32], strides = [1, 1]} : vector<16x32xf32> to vector<8x32xf32>
    %c0_233 = arith.constant 0 : index
    %c0_234 = arith.constant 0 : index
    %820 = vector.load %arg30[%c0_233, %c0_234] : memref<32x32xbf16, #tpu.memory_space<vmem>>, vector<32x32xbf16>
    %821 = arith.truncf %818 : vector<8x32xf32> to vector<8x32xbf16>
    %cst_235 = arith.constant dense<0.000000e+00> : vector<8x32xf32>
    %822 = tpu.matmul %821, %820, %cst_235 {dimension_numbers = #tpu.dot_dimension_numbers<[1], [0], [0], [1], [0, 0, 1, 1], [], []>} : vector<8x32xbf16>, vector<32x32xbf16>, vector<8x32xf32> -> vector<8x32xf32>
    %c0_236 = arith.constant 0 : index
    %c0_237 = arith.constant 0 : index
    %823 = vector.load %arg31[%c0_236, %c0_237] : memref<32x32xbf16, #tpu.memory_space<vmem>>, vector<32x32xbf16>
    %824 = arith.truncf %819 : vector<8x32xf32> to vector<8x32xbf16>
    %cst_238 = arith.constant dense<0.000000e+00> : vector<8x32xf32>
    %825 = tpu.matmul %824, %823, %cst_238 {dimension_numbers = #tpu.dot_dimension_numbers<[1], [0], [0], [1], [0, 0, 1, 1], [], []>} : vector<8x32xbf16>, vector<32x32xbf16>, vector<8x32xf32> -> vector<8x32xf32>
    %826 = arith.addf %822, %825 : vector<8x32xf32>
    %c0_239 = arith.constant 0 : index
    %c0_240 = arith.constant 0 : index
    %827 = vector.load %arg32[%c0_239, %c0_240] : memref<1x32xf32, #tpu.memory_space<vmem>>, vector<1x32xf32>
    %828 = vector.broadcast %827 : vector<1x32xf32> to vector<8x32xf32>
    %829 = arith.addf %826, %828 : vector<8x32xf32>
    %cst_241 = arith.constant 0.000000e+00 : f32
    %830 = vector.broadcast %cst_241 : f32 to vector<8x32xf32>
    %831 = arith.maximumf %829, %830 : vector<8x32xf32>
    %c0_242 = arith.constant 0 : index
    %c0_243 = arith.constant 0 : index
    %832 = vector.load %arg33[%c0_242, %c0_243] : memref<32x1xbf16, #tpu.memory_space<vmem>>, vector<32x1xbf16>
    %833 = arith.truncf %831 : vector<8x32xf32> to vector<8x32xbf16>
    %cst_244 = arith.constant dense<0.000000e+00> : vector<8x1xf32>
    %834 = tpu.matmul %833, %832, %cst_244 {dimension_numbers = #tpu.dot_dimension_numbers<[1], [0], [0], [1], [0, 0, 1, 1], [], []>} : vector<8x32xbf16>, vector<32x1xbf16>, vector<8x1xf32> -> vector<8x1xf32>
    %c0_245 = arith.constant 0 : index
    %c0_246 = arith.constant 0 : index
    %835 = vector.load %arg34[%c0_245, %c0_246] : memref<1x1xf32, #tpu.memory_space<vmem>>, vector<1x1xf32>
    %836 = vector.broadcast %835 : vector<1x1xf32> to vector<8x1xf32>
    %837 = arith.addf %834, %836 : vector<8x1xf32>
    %c0_247 = arith.constant 0 : index
    %c0_248 = arith.constant 0 : index
    %838 = vector.load %arg35[%c0_247, %c0_248] : memref<8x1xf32, #tpu.memory_space<vmem>>, vector<8x1xf32>
    tpu.vector_store %arg35[%c0_247, %c0_248], %837 {strides = array<i32>} : memref<8x1xf32, #tpu.memory_space<vmem>>, vector<8x1xf32>,
    return
  }
}

</mosaic_0001>

<llo_original>
// kernel: pipr_forward.1
$region0: #{pipr_forward.1}
  #allocation0 [shape = 'u32[]', space=smem, size = 0x4, offset = 0x4, fixed_abs, tag = 'smem constant byte address 0x4 - core index']
  #allocation1 [shape = 'u32[144,128]{1,0:T(1,128)}', space=vmem, size = 0x12000, scoped, tag = 'internal scratch']
  #allocation2 [shape = 'f32[128,32]{1,0:T(8,128)}', space=vmem, size = 0x10000, scoped, tag = 'scratch operand']
  #allocation3 [shape = 'f32[128,32]{1,0:T(8,128)}', space=vmem, size = 0x10000, scoped, tag = 'scratch operand']
  #allocation4 [shape = 'f32[1,1]{1,0:T(1,128)S(1)}', space=vmem, size = 0x200, scoped, tag = 'scoped memory for pipr_forward.1']
  %s0 = inlined_call_operand.smem [shape: u32[36], index: -1, kind: input, shape index: {}]
  %s1 = sld [smem:[%s0]]
  %s2 = scalar_lea.smem %s0, 1
  %s3 = sld [smem:[%s2]]
  %s4 = scalar_lea.smem %s0, 2
  %s5 = sld [smem:[%s4]]
  %s6 = scalar_lea.smem %s0, 3
  %s7 = sld [smem:[%s6]]
  %s8 = scalar_lea.smem %s0, 4
  %s9 = sld [smem:[%s8]]
  %s10 = scalar_lea.smem %s0, 5
  %s11 = sld [smem:[%s10]]
  %s12 = scalar_lea.smem %s0, 6
  %s13 = sld [smem:[%s12]]
  %s14 = scalar_lea.smem %s0, 7
  %s15 = sld [smem:[%s14]]
  %s16 = scalar_lea.smem %s0, 8
  %s17 = sld [smem:[%s16]]
  %s18 = scalar_lea.smem %s0, 9
  %s19 = sld [smem:[%s18]]
  %s20 = scalar_lea.smem %s0, 10
  %s21 = sld [smem:[%s20]]
  %s22 = scalar_lea.smem %s0, 11
  %s23 = sld [smem:[%s22]]
  %s24 = scalar_lea.smem %s0, 12
  %s25 = sld [smem:[%s24]]
  %s26 = scalar_lea.smem %s0, 13
  %s27 = sld [smem:[%s26]]
  %s28 = scalar_lea.smem %s0, 14
  %s29 = sld [smem:[%s28]]
  %s30 = scalar_lea.smem %s0, 15
  %s31 = sld [smem:[%s30]]
  %s32 = scalar_lea.smem %s0, 16
  %s33 = sld [smem:[%s32]]
  %s34 = scalar_lea.smem %s0, 17
  %s35 = sld [smem:[%s34]]
  %s36 = scalar_lea.smem %s0, 18
  %s37 = sld [smem:[%s36]]
  %s38 = scalar_lea.smem %s0, 19
  %s39 = sld [smem:[%s38]]
  %s40 = scalar_lea.smem %s0, 20
  %s41 = sld [smem:[%s40]]
  %s42 = scalar_lea.smem %s0, 21
  %s43 = sld [smem:[%s42]]
  %s44 = scalar_lea.smem %s0, 22
  %s45 = sld [smem:[%s44]]
  %s46 = scalar_lea.smem %s0, 23
  %s47 = sld [smem:[%s46]]
  %s48 = scalar_lea.smem %s0, 24
  %s49 = sld [smem:[%s48]]
  %s50 = scalar_lea.smem %s0, 25
  %s51 = sld [smem:[%s50]]
  %s52 = scalar_lea.smem %s0, 26
  %s53 = sld [smem:[%s52]]
  %s54 = scalar_lea.smem %s0, 27
  %s55 = sld [smem:[%s54]]
  %s56 = scalar_lea.smem %s0, 28
  %s57 = sld [smem:[%s56]]
  %s58 = scalar_lea.smem %s0, 29
  %s59 = sld [smem:[%s58]]
  %s60 = scalar_lea.smem %s0, 30
  %s61 = sld [smem:[%s60]]
  %s62 = scalar_lea.smem %s0, 31
  %s63 = sld [smem:[%s62]]
  %s64 = scalar_lea.smem %s0, 32
  %s65 = sld [smem:[%s64]]
  %s66 = scalar_lea.smem %s0, 33
  %s67 = sld [smem:[%s66]]
  %s68 = scalar_lea.smem %s0, 34
  %s69 = sld [smem:[%s68]]
  %s70 = scalar_lea.smem %s0, 35
  %s71 = sld [smem:[%s70]]
  %s72 = sld [smem:[#allocation0]]
  $region194: #{pipr_forward.1} parent=0
    _
  %s74 = ssub.s32 1, %s72
  %s75 = scalar_select 0, %s74, %s72
  %v76 = vstv %s69
  %77 = vst [vmem:[#allocation4] sm:$0x1] %v76
  $region1: #{pipr_forward.1} parent=0
    #allocation5 [shape = 'u8[4096]{0}', space=vmem, size = 0x1000, scoped, tag = 'input window, operand 2, single buffered']
    #allocation6 [shape = 's32[1]{0}', space=sflag, size = 0x4, scoped, tag = 'scoped memory for pipr_forward.1']
    #allocation7 [shape = 'u8[512]{0}', space=vmem, size = 0x400, scoped, tag = 'input window, operand 3, single buffered']
    #allocation8 [shape = 's32[1]{0}', space=sflag, size = 0x4, scoped, tag = 'scoped memory for pipr_forward.1']
    #allocation9 [shape = 'u8[1024]{0}', space=vmem, size = 0x400, scoped, tag = 'input window, operand 18, single buffered']
    #allocation10 [shape = 'u8[512]{0}', space=vmem, size = 0x400, scoped, tag = 'input window, operand 21, single buffered']
    #allocation11 [shape = 's32[1]{0}', space=sflag, size = 0x4, scoped, tag = 'scoped memory for pipr_forward.1']
    #allocation12 [shape = 'u8[512]{0}', space=vmem, size = 0x400, scoped, tag = 'input window, operand 22, single buffered']
    #allocation13 [shape = 'u8[512]{0}', space=vmem, size = 0x400, scoped, tag = 'input window, operand 25, single buffered']
    #allocation14 [shape = 's32[1]{0}', space=sflag, size = 0x4, scoped, tag = 'scoped memory for pipr_forward.1']
    #allocation15 [shape = 'u8[512]{0}', space=vmem, size = 0x400, scoped, tag = 'input window, operand 26, single buffered']
    #allocation16 [shape = 'u8[512]{0}', space=vmem, size = 0x400, scoped, tag = 'input window, operand 29, single buffered']
    #allocation17 [shape = 's32[1]{0}', space=sflag, size = 0x4, scoped, tag = 'scoped memory for pipr_forward.1']
    #allocation18 [shape = 'u8[8192]{0}', space=vmem, size = 0x2000, scoped, tag = 'input window, operand 30, single buffered']
    #allocation19 [shape = 'u8[8192]{0}', space=vmem, size = 0x2000, scoped, tag = 'input window, operand 31, single buffered']
    #allocation20 [shape = 's32[1]{0}', space=sflag, size = 0x4, scoped, tag = 'scoped memory for pipr_forward.1']
    #allocation21 [shape = 'u8[512]{0}', space=vmem, size = 0x400, scoped, tag = 'input window, operand 32, single buffered']
    %78 = vsyncpa [#allocation6], 0
    %79 = vsyncpa [#allocation8], 0
    %80 = vsyncpa [#allocation11], 0
    %81 = vsyncpa [#allocation14], 0
    %82 = vsyncpa [#allocation17], 0
    %83 = vsyncpa [#allocation20], 0
    // Predicated region
    $region2: #{pipr_forward.1} parent=1 // pred_check
      _
    $region3: #{pipr_forward.1} parent=1 // pred_check_branch
      %85 = sbr.rel (0) target = $region5
    $region4: #{pipr_forward.1} parent=1 // pred_region
      _
    $region5: #{pipr_forward.1} parent=1 // pred_fallthru
      _
    // Predicated region
    $region6: #{pipr_forward.1} parent=1 // pred_check
      _
    $region7: #{pipr_forward.1} parent=1 // pred_check_branch
      %87 = sbr.rel (0) target = $region9
    $region8: #{pipr_forward.1} parent=1 // pred_region
      _
    $region9: #{pipr_forward.1} parent=1 // pred_fallthru
      _
    // Predicated region
    $region10: #{pipr_forward.1} parent=1 // pred_check
      _
    $region11: #{pipr_forward.1} parent=1 // pred_check_branch
      %89 = sbr.rel (0) target = $region13
    $region12: #{pipr_forward.1} parent=1 // pred_region
      %s91 = ssub.s32 128, 128
      %92 = vsyncadd [#allocation6], %s91
      %s93 = sshll.u32 [#allocation5], 4
      %s94 = int_to_ptr.vmem [resolvable:$true] %s93
      %99 = dma.hbm_to_vmem [thread:$0]  %s5, 128, %s94, [#allocation6], 64, 64, 4
    $region13: #{pipr_forward.1} parent=1 // pred_fallthru
      _
    // Predicated region
    $region14: #{pipr_forward.1} parent=1 // pred_check
      _
    $region15: #{pipr_forward.1} parent=1 // pred_check_branch
      %101 = sbr.rel (0) target = $region17
    $region16: #{pipr_forward.1} parent=1 // pred_region
      %s103 = ssub.s32 16, 16
      %104 = vsyncadd [#allocation8], %s103
      %s106 = sshll.u32 [#allocation7], 4
      %s107 = int_to_ptr.vmem [resolvable:$true] %s106
      %109 = dma.hbm_to_vmem [thread:$0]  %s7, 16, %s107, [#allocation8]
    $region17: #{pipr_forward.1} parent=1 // pred_fallthru
      _
    // Predicated region
    $region18: #{pipr_forward.1} parent=1 // pred_check
      _
    $region19: #{pipr_forward.1} parent=1 // pred_check_branch
      %111 = sbr.rel (0) target = $region21
    $region20: #{pipr_forward.1} parent=1 // pred_region
      _
    $region21: #{pipr_forward.1} parent=1 // pred_fallthru
      _
    // Predicated region
    $region22: #{pipr_forward.1} parent=1 // pred_check
      _
    $region23: #{pipr_forward.1} parent=1 // pred_check_branch
      %113 = sbr.rel (0) target = $region25
    $region24: #{pipr_forward.1} parent=1 // pred_region
      _
    $region25: #{pipr_forward.1} parent=1 // pred_fallthru
      _
    // Predicated region
    $region26: #{pipr_forward.1} parent=1 // pred_check
      _
    $region27: #{pipr_forward.1} parent=1 // pred_check_branch
      %115 = sbr.rel (0) target = $region29
    $region28: #{pipr_forward.1} parent=1 // pred_region
      _
    $region29: #{pipr_forward.1} parent=1 // pred_fallthru
      _
    // Predicated region
    $region30: #{pipr_forward.1} parent=1 // pred_check
      _
    $region31: #{pipr_forward.1} parent=1 // pred_check_branch
      %117 = sbr.rel (0) target = $region33
    $region32: #{pipr_forward.1} parent=1 // pred_region
      _
    $region33: #{pipr_forward.1} parent=1 // pred_fallthru
      _
    // Predicated region
    $region34: #{pipr_forward.1} parent=1 // pred_check
      _
    $region35: #{pipr_forward.1} parent=1 // pred_check_branch
      %119 = sbr.rel (0) target = $region37
    $region36: #{pipr_forward.1} parent=1 // pred_region
      _
    $region37: #{pipr_forward.1} parent=1 // pred_fallthru
      _
    // Predicated region
    $region38: #{pipr_forward.1} parent=1 // pred_check
      _
    $region39: #{pipr_forward.1} parent=1 // pred_check_branch
      %121 = sbr.rel (0) target = $region41
    $region40: #{pipr_forward.1} parent=1 // pred_region
      _
    $region41: #{pipr_forward.1} parent=1 // pred_fallthru
      _
    // Predicated region
    $region42: #{pipr_forward.1} parent=1 // pred_check
      _
    $region43: #{pipr_forward.1} parent=1 // pred_check_branch
      %123 = sbr.rel (0) target = $region45
    $region44: #{pipr_forward.1} parent=1 // pred_region
      _
    $region45: #{pipr_forward.1} parent=1 // pred_fallthru
      _
    // Predicated region
    $region46: #{pipr_forward.1} parent=1 // pred_check
      _
    $region47: #{pipr_forward.1} parent=1 // pred_check_branch
      %125 = sbr.rel (0) target = $region49
    $region48: #{pipr_forward.1} parent=1 // pred_region
      _
    $region49: #{pipr_forward.1} parent=1 // pred_fallthru
      _
    // Predicated region
    $region50: #{pipr_forward.1} parent=1 // pred_check
      _
    $region51: #{pipr_forward.1} parent=1 // pred_check_branch
      %127 = sbr.rel (0) target = $region53
    $region52: #{pipr_forward.1} parent=1 // pred_region
      _
    $region53: #{pipr_forward.1} parent=1 // pred_fallthru
      _
    // Predicated region
    $region54: #{pipr_forward.1} parent=1 // pred_check
      _
    $region55: #{pipr_forward.1} parent=1 // pred_check_branch
      %129 = sbr.rel (0) target = $region57
    $region56: #{pipr_forward.1} parent=1 // pred_region
      _
    $region57: #{pipr_forward.1} parent=1 // pred_fallthru
      _
    // Predicated region
    $region58: #{pipr_forward.1} parent=1 // pred_check
      _
    $region59: #{pipr_forward.1} parent=1 // pred_check_branch
      %131 = sbr.rel (0) target = $region61
    $region60: #{pipr_forward.1} parent=1 // pred_region
      _
    $region61: #{pipr_forward.1} parent=1 // pred_fallthru
      _
    // Predicated region
    $region62: #{pipr_forward.1} parent=1 // pred_check
      _
    $region63: #{pipr_forward.1} parent=1 // pred_check_branch
      %133 = sbr.rel (0) target = $region65
    $region64: #{pipr_forward.1} parent=1 // pred_region
      _
    $region65: #{pipr_forward.1} parent=1 // pred_fallthru
      _
    // Predicated region
    $region66: #{pipr_forward.1} parent=1 // pred_check
      _
    $region67: #{pipr_forward.1} parent=1 // pred_check_branch
      %135 = sbr.rel (0) target = $region69
    $region68: #{pipr_forward.1} parent=1 // pred_region
      _
    $region69: #{pipr_forward.1} parent=1 // pred_fallthru
      _
    // Predicated region
    $region70: #{pipr_forward.1} parent=1 // pred_check
      _
    $region71: #{pipr_forward.1} parent=1 // pred_check_branch
      %137 = sbr.rel (0) target = $region73
    $region72: #{pipr_forward.1} parent=1 // pred_region
      _
    $region73: #{pipr_forward.1} parent=1 // pred_fallthru
      _
    // Predicated region
    $region74: #{pipr_forward.1} parent=1 // pred_check
      _
    $region75: #{pipr_forward.1} parent=1 // pred_check_branch
      %139 = sbr.rel (0) target = $region77
    $region76: #{pipr_forward.1} parent=1 // pred_region
      %s141 = ssub.s32 32, 32
      %142 = vsyncadd [#allocation8], %s141
      %s144 = sshll.u32 [#allocation9], 4
      %s145 = int_to_ptr.vmem [resolvable:$true] %s144
      %147 = dma.hbm_to_vmem [thread:$0]  %s37, 32, %s145, [#allocation8]
    $region77: #{pipr_forward.1} parent=1 // pred_fallthru
      _
    // Predicated region
    $region78: #{pipr_forward.1} parent=1 // pred_check
      _
    $region79: #{pipr_forward.1} parent=1 // pred_check_branch
      %149 = sbr.rel (0) target = $region81
    $region80: #{pipr_forward.1} parent=1 // pred_region
      _
    $region81: #{pipr_forward.1} parent=1 // pred_fallthru
      _
    // Predicated region
    $region82: #{pipr_forward.1} parent=1 // pred_check
      _
    $region83: #{pipr_forward.1} parent=1 // pred_check_branch
      %151 = sbr.rel (0) target = $region85
    $region84: #{pipr_forward.1} parent=1 // pred_region
      _
    $region85: #{pipr_forward.1} parent=1 // pred_fallthru
      _
    // Predicated region
    $region86: #{pipr_forward.1} parent=1 // pred_check
      _
    $region87: #{pipr_forward.1} parent=1 // pred_check_branch
      %153 = sbr.rel (0) target = $region89
    $region88: #{pipr_forward.1} parent=1 // pred_region
      %s155 = ssub.s32 16, 16
      %156 = vsyncadd [#allocation11], %s155
      %s158 = sshll.u32 [#allocation10], 4
      %s159 = int_to_ptr.vmem [resolvable:$true] %s158
      %161 = dma.hbm_to_vmem [thread:$0]  %s43, 16, %s159, [#allocation11]
    $region89: #{pipr_forward.1} parent=1 // pred_fallthru
      _
    // Predicated region
    $region90: #{pipr_forward.1} parent=1 // pred_check
      _
    $region91: #{pipr_forward.1} parent=1 // pred_check_branch
      %163 = sbr.rel (0) target = $region93
    $region92: #{pipr_forward.1} parent=1 // pred_region
      %s165 = ssub.s32 16, 16
      %166 = vsyncadd [#allocation11], %s165
      %s168 = sshll.u32 [#allocation12], 4
      %s169 = int_to_ptr.vmem [resolvable:$true] %s168
      %171 = dma.hbm_to_vmem [thread:$0]  %s45, 16, %s169, [#allocation11]
    $region93: #{pipr_forward.1} parent=1 // pred_fallthru
      _
    // Predicated region
    $region94: #{pipr_forward.1} parent=1 // pred_check
      _
    $region95: #{pipr_forward.1} parent=1 // pred_check_branch
      %173 = sbr.rel (0) target = $region97
    $region96: #{pipr_forward.1} parent=1 // pred_region
      _
    $region97: #{pipr_forward.1} parent=1 // pred_fallthru
      _
    // Predicated region
    $region98: #{pipr_forward.1} parent=1 // pred_check
      _
    $region99: #{pipr_forward.1} parent=1 // pred_check_branch
      %175 = sbr.rel (0) target = $region101
    $region100: #{pipr_forward.1} parent=1 // pred_region
      _
    $region101: #{pipr_forward.1} parent=1 // pred_fallthru
      _
    // Predicated region
    $region102: #{pipr_forward.1} parent=1 // pred_check
      _
    $region103: #{pipr_forward.1} parent=1 // pred_check_branch
      %177 = sbr.rel (0) target = $region105
    $region104: #{pipr_forward.1} parent=1 // pred_region
      %s179 = ssub.s32 16, 16
      %180 = vsyncadd [#allocation14], %s179
      %s182 = sshll.u32 [#allocation13], 4
      %s183 = int_to_ptr.vmem [resolvable:$true] %s182
      %185 = dma.hbm_to_vmem [thread:$0]  %s51, 16, %s183, [#allocation14]
    $region105: #{pipr_forward.1} parent=1 // pred_fallthru
      _
    // Predicated region
    $region106: #{pipr_forward.1} parent=1 // pred_check
      _
    $region107: #{pipr_forward.1} parent=1 // pred_check_branch
      %187 = sbr.rel (0) target = $region109
    $region108: #{pipr_forward.1} parent=1 // pred_region
      %s189 = ssub.s32 16, 16
      %190 = vsyncadd [#allocation14], %s189
      %s192 = sshll.u32 [#allocation15], 4
      %s193 = int_to_ptr.vmem [resolvable:$true] %s192
      %195 = dma.hbm_to_vmem [thread:$0]  %s53, 16, %s193, [#allocation14]
    $region109: #{pipr_forward.1} parent=1 // pred_fallthru
      _
    // Predicated region
    $region110: #{pipr_forward.1} parent=1 // pred_check
      _
    $region111: #{pipr_forward.1} parent=1 // pred_check_branch
      %197 = sbr.rel (0) target = $region113
    $region112: #{pipr_forward.1} parent=1 // pred_region
      _
    $region113: #{pipr_forward.1} parent=1 // pred_fallthru
      _
    // Predicated region
    $region114: #{pipr_forward.1} parent=1 // pred_check
      _
    $region115: #{pipr_forward.1} parent=1 // pred_check_branch
      %199 = sbr.rel (0) target = $region117
    $region116: #{pipr_forward.1} parent=1 // pred_region
      _
    $region117: #{pipr_forward.1} parent=1 // pred_fallthru
      _
    // Predicated region
    $region118: #{pipr_forward.1} parent=1 // pred_check
      _
    $region119: #{pipr_forward.1} parent=1 // pred_check_branch
      %201 = sbr.rel (0) target = $region121
    $region120: #{pipr_forward.1} parent=1 // pred_region
      %s203 = ssub.s32 16, 16
      %204 = vsyncadd [#allocation17], %s203
      %s206 = sshll.u32 [#allocation16], 4
      %s207 = int_to_ptr.vmem [resolvable:$true] %s206
      %209 = dma.hbm_to_vmem [thread:$0]  %s59, 16, %s207, [#allocation17]
    $region121: #{pipr_forward.1} parent=1 // pred_fallthru
      _
    // Predicated region
    $region122: #{pipr_forward.1} parent=1 // pred_check
      _
    $region123: #{pipr_forward.1} parent=1 // pred_check_branch
      %211 = sbr.rel (0) target = $region125
    $region124: #{pipr_forward.1} parent=1 // pred_region
      %s213 = ssub.s32 256, 256
      %214 = vsyncadd [#allocation17], %s213
      %s215 = sshll.u32 [#allocation18], 4
      %s216 = int_to_ptr.vmem [resolvable:$true] %s215
      %221 = dma.hbm_to_vmem [thread:$0]  %s61, 256, %s216, [#allocation17], 64, 64, 4
    $region125: #{pipr_forward.1} parent=1 // pred_fallthru
      _
    // Predicated region
    $region126: #{pipr_forward.1} parent=1 // pred_check
      _
    $region127: #{pipr_forward.1} parent=1 // pred_check_branch
      %223 = sbr.rel (0) target = $region129
    $region128: #{pipr_forward.1} parent=1 // pred_region
      %s225 = ssub.s32 256, 256
      %226 = vsyncadd [#allocation20], %s225
      %s227 = sshll.u32 [#allocation19], 4
      %s228 = int_to_ptr.vmem [resolvable:$true] %s227
      %233 = dma.hbm_to_vmem [thread:$0]  %s63, 256, %s228, [#allocation20], 64, 64, 4
    $region129: #{pipr_forward.1} parent=1 // pred_fallthru
      _
    // Predicated region
    $region130: #{pipr_forward.1} parent=1 // pred_check
      _
    $region131: #{pipr_forward.1} parent=1 // pred_check_branch
      %235 = sbr.rel (0) target = $region133
    $region132: #{pipr_forward.1} parent=1 // pred_region
      %s237 = ssub.s32 16, 16
      %238 = vsyncadd [#allocation20], %s237
      %s240 = sshll.u32 [#allocation21], 4
      %s241 = int_to_ptr.vmem [resolvable:$true] %s240
      %243 = dma.hbm_to_vmem [thread:$0]  %s65, 16, %s241, [#allocation20]
    $region133: #{pipr_forward.1} parent=1 // pred_fallthru
      _
    // Predicated region
    $region134: #{pipr_forward.1} parent=1 // pred_check
      _
    $region135: #{pipr_forward.1} parent=1 // pred_check_branch
      %245 = sbr.rel (0) target = $region137
    $region136: #{pipr_forward.1} parent=1 // pred_region
      _
    $region137: #{pipr_forward.1} parent=1 // pred_fallthru
      _
    // Predicated region
    $region138: #{pipr_forward.1} parent=1 // pred_check
      _
    $region139: #{pipr_forward.1} parent=1 // pred_check_branch
      %247 = sbr.rel (0) target = $region141
    $region140: #{pipr_forward.1} parent=1 // pred_region
      _
    $region141: #{pipr_forward.1} parent=1 // pred_fallthru
      _
    // Predicated region
    $region142: #{pipr_forward.1} parent=1 // pred_check
      _
    $region143: #{pipr_forward.1} parent=1 // pred_check_branch
      %249 = sbr.rel (0) target = $region145
    $region144: #{pipr_forward.1} parent=1 // pred_region
      %250 = dma.done [#allocation6], 128
    $region145: #{pipr_forward.1} parent=1 // pred_fallthru
      _
    // Predicated region
    $region146: #{pipr_forward.1} parent=1 // pred_check
      _
    $region147: #{pipr_forward.1} parent=1 // pred_check_branch
      %252 = sbr.rel (0) target = $region149
    $region148: #{pipr_forward.1} parent=1 // pred_region
      %253 = dma.done [#allocation8], 16
    $region149: #{pipr_forward.1} parent=1 // pred_fallthru
      _
    // Predicated region
    $region150: #{pipr_forward.1} parent=1 // pred_check
      _
    $region151: #{pipr_forward.1} parent=1 // pred_check_branch
      %255 = sbr.rel (0) target = $region153
    $region152: #{pipr_forward.1} parent=1 // pred_region
      %256 = dma.done [#allocation8], 32
    $region153: #{pipr_forward.1} parent=1 // pred_fallthru
      _
    // Predicated region
    $region154: #{pipr_forward.1} parent=1 // pred_check
      _
    $region155: #{pipr_forward.1} parent=1 // pred_check_branch
      %258 = sbr.rel (0) target = $region157
    $region156: #{pipr_forward.1} parent=1 // pred_region
      %259 = dma.done [#allocation11], 16
    $region157: #{pipr_forward.1} parent=1 // pred_fallthru
      _
    // Predicated region
    $region158: #{pipr_forward.1} parent=1 // pred_check
      _
    $region159: #{pipr_forward.1} parent=1 // pred_check_branch
      %261 = sbr.rel (0) target = $region161
    $region160: #{pipr_forward.1} parent=1 // pred_region
      %262 = dma.done [#allocation11], 16
    $region161: #{pipr_forward.1} parent=1 // pred_fallthru
      _
    // Predicated region
    $region162: #{pipr_forward.1} parent=1 // pred_check
      _
    $region163: #{pipr_forward.1} parent=1 // pred_check_branch
      %264 = sbr.rel (0) target = $region165
    $region164: #{pipr_forward.1} parent=1 // pred_region
      %265 = dma.done [#allocation14], 16
    $region165: #{pipr_forward.1} parent=1 // pred_fallthru
      _
    // Predicated region
    $region166: #{pipr_forward.1} parent=1 // pred_check
      _
    $region167: #{pipr_forward.1} parent=1 // pred_check_branch
      %267 = sbr.rel (0) target = $region169
    $region168: #{pipr_forward.1} parent=1 // pred_region
      %268 = dma.done [#allocation14], 16
    $region169: #{pipr_forward.1} parent=1 // pred_fallthru
      _
    // Predicated region
    $region170: #{pipr_forward.1} parent=1 // pred_check
      _
    $region171: #{pipr_forward.1} parent=1 // pred_check_branch
      %270 = sbr.rel (0) target = $region173
    $region172: #{pipr_forward.1} parent=1 // pred_region
      %271 = dma.done [#allocation17], 16
    $region173: #{pipr_forward.1} parent=1 // pred_fallthru
      _
    // Predicated region
    $region174: #{pipr_forward.1} parent=1 // pred_check
      _
    $region175: #{pipr_forward.1} parent=1 // pred_check_branch
      %273 = sbr.rel (0) target = $region177
    $region176: #{pipr_forward.1} parent=1 // pred_region
      %274 = dma.done [#allocation17], 256
    $region177: #{pipr_forward.1} parent=1 // pred_fallthru
      _
    // Predicated region
    $region178: #{pipr_forward.1} parent=1 // pred_check
      _
    $region179: #{pipr_forward.1} parent=1 // pred_check_branch
      %276 = sbr.rel (0) target = $region181
    $region180: #{pipr_forward.1} parent=1 // pred_region
      %277 = dma.done [#allocation20], 256
    $region181: #{pipr_forward.1} parent=1 // pred_fallthru
      _
    // Predicated region
    $region182: #{pipr_forward.1} parent=1 // pred_check
      _
    $region183: #{pipr_forward.1} parent=1 // pred_check_branch
      %279 = sbr.rel (0) target = $region185
    $region184: #{pipr_forward.1} parent=1 // pred_region
      %280 = dma.done [#allocation20], 16
    $region185: #{pipr_forward.1} parent=1 // pred_fallthru
      _
    %v282 = vld [vmem:[%s1] sm:$0xff]
    %v283 = vld [vmem:[%s1 + $0x8] sm:$0xff]
    %v284 = vld [vmem:[%s1 + $0x10] sm:$0xff]
    %v285 = vld [vmem:[%s1 + $0x18] sm:$0xff]
    %v286 = vld [vmem:[%s1 + $0x20] sm:$0xff]
    %v287 = vld [vmem:[%s1 + $0x28] sm:$0xff]
    %v288 = vld [vmem:[%s1 + $0x30] sm:$0xff]
    %v289 = vld [vmem:[%s1 + $0x38] sm:$0xff]
    %v290 = vld [vmem:[%s1 + $0x40] sm:$0xff]
    %v291 = vld [vmem:[%s1 + $0x48] sm:$0xff]
    %v292 = vld [vmem:[%s1 + $0x50] sm:$0xff]
    %v293 = vld [vmem:[%s1 + $0x58] sm:$0xff]
    %v294 = vld [vmem:[%s1 + $0x60] sm:$0xff]
    %v295 = vld [vmem:[%s1 + $0x68] sm:$0xff]
    %v296 = vld [vmem:[%s1 + $0x70] sm:$0xff]
    %v297 = vld [vmem:[%s1 + $0x78] sm:$0xff]
    %v298 = vlaneseq
    %v299 = vand.u32 %v298, 127
    %300 = vset.pattern.permute.xlu0 0
    %301 = vperm.xlu0 %300, %v282
    %v302 = vpop.permute.xlu0 %301
    %303 = vset.pattern.permute.xlu0 0
    %304 = vperm.xlu0 %303, %v283
    %v305 = vpop.permute.xlu0 %304
    %306 = vset.pattern.permute.xlu0 0
    %307 = vperm.xlu0 %306, %v284
    %v308 = vpop.permute.xlu0 %307
    %309 = vset.pattern.permute.xlu0 0
    %310 = vperm.xlu0 %309, %v285
    %v311 = vpop.permute.xlu0 %310
    %312 = vset.pattern.permute.xlu0 0
    %313 = vperm.xlu0 %312, %v286
    %v314 = vpop.permute.xlu0 %313
    %315 = vset.pattern.permute.xlu0 0
    %316 = vperm.xlu0 %315, %v287
    %v317 = vpop.permute.xlu0 %316
    %318 = vset.pattern.permute.xlu0 0
    %319 = vperm.xlu0 %318, %v288
    %v320 = vpop.permute.xlu0 %319
    %321 = vset.pattern.permute.xlu0 0
    %322 = vperm.xlu0 %321, %v289
    %v323 = vpop.permute.xlu0 %322
    %324 = vset.pattern.permute.xlu0 0
    %325 = vperm.xlu0 %324, %v290
    %v326 = vpop.permute.xlu0 %325
    %327 = vset.pattern.permute.xlu0 0
    %328 = vperm.xlu0 %327, %v291
    %v329 = vpop.permute.xlu0 %328
    %330 = vset.pattern.permute.xlu0 0
    %331 = vperm.xlu0 %330, %v292
    %v332 = vpop.permute.xlu0 %331
    %333 = vset.pattern.permute.xlu0 0
    %334 = vperm.xlu0 %333, %v293
    %v335 = vpop.permute.xlu0 %334
    %336 = vset.pattern.permute.xlu0 0
    %337 = vperm.xlu0 %336, %v294
    %v338 = vpop.permute.xlu0 %337
    %339 = vset.pattern.permute.xlu0 0
    %340 = vperm.xlu0 %339, %v295
    %v341 = vpop.permute.xlu0 %340
    %342 = vset.pattern.permute.xlu0 0
    %343 = vperm.xlu0 %342, %v296
    %v344 = vpop.permute.xlu0 %343
    %345 = vset.pattern.permute.xlu0 0
    %346 = vperm.xlu0 %345, %v297
    %v347 = vpop.permute.xlu0 %346
    %vm348 = vcmp.eq.s32.totalorder %v302, %v299
    %vm349 = vcmp.eq.s32.totalorder %v305, %v299
    %vm350 = vcmp.eq.s32.totalorder %v308, %v299
    %vm351 = vcmp.eq.s32.totalorder %v311, %v299
    %vm352 = vcmp.eq.s32.totalorder %v314, %v299
    %vm353 = vcmp.eq.s32.totalorder %v317, %v299
    %vm354 = vcmp.eq.s32.totalorder %v320, %v299
    %vm355 = vcmp.eq.s32.totalorder %v323, %v299
    %vm356 = vcmp.eq.s32.totalorder %v326, %v299
    %vm357 = vcmp.eq.s32.totalorder %v329, %v299
    %vm358 = vcmp.eq.s32.totalorder %v332, %v299
    %vm359 = vcmp.eq.s32.totalorder %v335, %v299
    %vm360 = vcmp.eq.s32.totalorder %v338, %v299
    %vm361 = vcmp.eq.s32.totalorder %v341, %v299
    %vm362 = vcmp.eq.s32.totalorder %v344, %v299
    %vm363 = vcmp.eq.s32.totalorder %v347, %v299
    %v364 = vld [vmem:[%s3] sm:$0xf]
    %v365 = vld [vmem:[%s3 + $0x4] sm:$0xf]
    %v366 = vld [vmem:[%s3 + $0x8] sm:$0x3]
    %v367 = vsel %vm348, 1, 0
    %v368 = vsel %vm349, 1, 0
    %v369 = vsel %vm350, 1, 0
    %v370 = vsel %vm351, 1, 0
    %v371 = vsel %vm352, 1, 0
    %v372 = vsel %vm353, 1, 0
    %v373 = vsel %vm354, 1, 0
    %v374 = vsel %vm355, 1, 0
    %v375 = vsel %vm356, 1, 0
    %v376 = vsel %vm357, 1, 0
    %v377 = vsel %vm358, 1, 0
    %v378 = vsel %vm359, 1, 0
    %v379 = vsel %vm360, 1, 0
    %v380 = vsel %vm361, 1, 0
    %v381 = vsel %vm362, 1, 0
    %v382 = vsel %vm363, 1, 0
    %v383 = vcvt.s32.f32 %v367
    %v384 = vcvt.s32.f32 %v368
    %v385 = vcvt.s32.f32 %v369
    %v386 = vcvt.s32.f32 %v370
    %v387 = vcvt.s32.f32 %v371
    %v388 = vcvt.s32.f32 %v372
    %v389 = vcvt.s32.f32 %v373
    %v390 = vcvt.s32.f32 %v374
    %v391 = vcvt.s32.f32 %v375
    %v392 = vcvt.s32.f32 %v376
    %v393 = vcvt.s32.f32 %v377
    %v394 = vcvt.s32.f32 %v378
    %v395 = vcvt.s32.f32 %v379
    %v396 = vcvt.s32.f32 %v380
    %v397 = vcvt.s32.f32 %v381
    %v398 = vcvt.s32.f32 %v382
    %v399 = vpack.c.bf16 %v384, %v383
    %v400 = vpack.c.bf16 %v386, %v385
    %v401 = vpack.c.bf16 %v388, %v387
    %v402 = vpack.c.bf16 %v390, %v389
    %v403 = vpack.c.bf16 %v392, %v391
    %v404 = vpack.c.bf16 %v394, %v393
    %v405 = vpack.c.bf16 %v396, %v395
    %v406 = vpack.c.bf16 %v398, %v397
    %v410 = vunpack.c.l.b16 %v364
    %v411 = vunpack.c.l.b16 %v365
    %v412 = vunpack.c.l.b16 %v366
    %v413 = vpack.c.b16 %v411, %v410
    %v414 = vpack.c.b16 %v412, %v412
    %vm416 = vcmask 162816
    %v418 = vsel %vm416, %v399, 0
    %v421 = vsel %vm416, %v400, 0
    %v424 = vsel %vm416, %v401, 0
    %v427 = vsel %vm416, %v402, 0
    %v430 = vsel %vm416, %v403, 0
    %v433 = vsel %vm416, %v404, 0
    %v436 = vsel %vm416, %v405, 0
    %v439 = vsel %vm416, %v406, 0
    %vm441 = vcmask 1041408
    %v443 = vsel %vm441, %v414, 0
    %445 = vmatprep.subr.bf16.mxu0 0
    %446 = vmatpush1.bf16.msra.mxu0 0
    %447 = vmatprep.subr.bf16.mxu0 0
    %448 = vmatpush1.bf16.msra.mxu0 0
    %449 = vmatprep.subr.bf16.mxu0 0
    %450 = vmatpush1.bf16.msra.mxu0 0
    %451 = vmatprep.subr.bf16.mxu0 0
    %452 = vmatpush1.bf16.msra.mxu0 0
    %453 = vmatprep.subr.bf16.mxu0 0
    %454 = vmatpush1.bf16.msra.mxu0 0
    %455 = vmatprep.subr.bf16.mxu0 0
    %456 = vmatpush1.bf16.msra.mxu0 0
    %457 = vmatprep.subr.bf16.mxu0 0
    %458 = vmatpush1.bf16.msra.mxu0 %v443
    %459 = vmatprep.subr.bf16.mxu0 0
    %460 = vmatpush1.bf16.msra.mxu0 %v413
    %461 = vmatprep.subr.bf16.mxu0 0
    %462 = vmatpush2.bf16.msra.mxu0 0
    %463 = vmatprep.subr.bf16.mxu0 0
    %464 = vmatpush2.bf16.msra.mxu0 0
    %465 = vmatprep.subr.bf16.mxu0 0
    %466 = vmatpush2.bf16.msra.mxu0 0
    %467 = vmatprep.subr.bf16.mxu0 0
    %468 = vmatpush2.bf16.msra.mxu0 0
    %469 = vmatprep.subr.bf16.mxu0 0
    %470 = vmatpush2.bf16.msra.mxu0 0
    %471 = vmatprep.subr.bf16.mxu0 0
    %472 = vmatpush2.bf16.msra.mxu0 0
    %473 = vmatprep.subr.bf16.mxu0 0
    %474 = vmatpush2.bf16.msra.mxu0 0
    %475 = vmatprep.subr.bf16.mxu0 0
    %476 = vmatpush2.bf16.msra.mxu0 0
    %477 = vmatprep.mubr.bf16.mxu0 0
    %478 = vmatmul.mubr.bf16.gmra.mxu0 %v418
    %v479 = vpop.f32.mrf.mxu0
    %v480 = vadd.f32 0.0, %v479
    %v481 = vpop.f32.mrf.mxu0
    %v482 = vpop.f32.mrf.mxu0
    %v483 = vadd.f32 0.0, %v482
    %v484 = vpop.f32.mrf.mxu0
    %485 = vmatprep.mubr.bf16.mxu0 0
    %486 = vmatmul.mubr.bf16.gmra.mxu0 %v421
    %v487 = vpop.f32.mrf.mxu0
    %v488 = vadd.f32 0.0, %v487
    %v489 = vpop.f32.mrf.mxu0
    %v490 = vpop.f32.mrf.mxu0
    %v491 = vadd.f32 0.0, %v490
    %v492 = vpop.f32.mrf.mxu0
    %493 = vmatprep.mubr.bf16.mxu0 0
    %494 = vmatmul.mubr.bf16.gmra.mxu0 %v424
    %v495 = vpop.f32.mrf.mxu0
    %v496 = vadd.f32 0.0, %v495
    %v497 = vpop.f32.mrf.mxu0
    %v498 = vpop.f32.mrf.mxu0
    %v499 = vadd.f32 0.0, %v498
    %v500 = vpop.f32.mrf.mxu0
    %501 = vmatprep.mubr.bf16.mxu0 0
    %502 = vmatmul.mubr.bf16.gmra.mxu0 %v427
    %v503 = vpop.f32.mrf.mxu0
    %v504 = vadd.f32 0.0, %v503
    %v505 = vpop.f32.mrf.mxu0
    %v506 = vpop.f32.mrf.mxu0
    %v507 = vadd.f32 0.0, %v506
    %v508 = vpop.f32.mrf.mxu0
    %509 = vmatprep.mubr.bf16.mxu0 0
    %510 = vmatmul.mubr.bf16.gmra.mxu0 %v430
    %v511 = vpop.f32.mrf.mxu0
    %v512 = vadd.f32 0.0, %v511
    %v513 = vpop.f32.mrf.mxu0
    %v514 = vpop.f32.mrf.mxu0
    %v515 = vadd.f32 0.0, %v514
    %v516 = vpop.f32.mrf.mxu0
    %517 = vmatprep.mubr.bf16.mxu0 0
    %518 = vmatmul.mubr.bf16.gmra.mxu0 %v433
    %v519 = vpop.f32.mrf.mxu0
    %v520 = vadd.f32 0.0, %v519
    %v521 = vpop.f32.mrf.mxu0
    %v522 = vpop.f32.mrf.mxu0
    %v523 = vadd.f32 0.0, %v522
    %v524 = vpop.f32.mrf.mxu0
    %525 = vmatprep.mubr.bf16.mxu0 0
    %526 = vmatmul.mubr.bf16.gmra.mxu0 %v436
    %v527 = vpop.f32.mrf.mxu0
    %v528 = vadd.f32 0.0, %v527
    %v529 = vpop.f32.mrf.mxu0
    %v530 = vpop.f32.mrf.mxu0
    %v531 = vadd.f32 0.0, %v530
    %v532 = vpop.f32.mrf.mxu0
    %533 = vmatprep.mubr.bf16.mxu0 0
    %534 = vmatmul.mubr.bf16.gmra.mxu0 %v439
    %v535 = vpop.f32.mrf.mxu0
    %v536 = vadd.f32 0.0, %v535
    %v537 = vpop.f32.mrf.mxu0
    %v538 = vpop.f32.mrf.mxu0
    %v539 = vadd.f32 0.0, %v538
    %v540 = vpop.f32.mrf.mxu0
    %541 = vdwg.mxu0
    %v542 = vld [vmem:[#allocation5] sm:$0xf]
    %v543 = vld [vmem:[#allocation5 + $0x4] sm:$0xf]
    %v544 = vpack.c.bf16 %v483, %v480
    %v545 = vpack.c.bf16 %v491, %v488
    %v546 = vpack.c.bf16 %v499, %v496
    %v547 = vpack.c.bf16 %v507, %v504
    %v548 = vpack.c.bf16 %v515, %v512
    %v549 = vpack.c.bf16 %v523, %v520
    %v550 = vpack.c.bf16 %v531, %v528
    %v551 = vpack.c.bf16 %v539, %v536
    %v552 = vld [vmem:[#allocation7] sm:$0x1]
    %v554 = vlaneseq
    %v555 = vshrl.u32 %v554, 7
    %v556 = vsub.s32 0, %v555
    %v557 = vrot.slane %v552, %v556
    %v561 = vunpack.c.l.b16 %v542
    %v562 = vunpack.c.l.b16 %v543
    %v563 = vpack.c.b16 %v562, %v561
    %vm565 = vcmask 130048
    %v567 = vsel %vm565, %v544, 0
    %v570 = vsel %vm565, %v545, 0
    %v573 = vsel %vm565, %v546, 0
    %v576 = vsel %vm565, %v547, 0
    %v579 = vsel %vm565, %v548, 0
    %v582 = vsel %vm565, %v549, 0
    %v585 = vsel %vm565, %v550, 0
    %v588 = vsel %vm565, %v551, 0
    %590 = vmatprep.subr.bf16.mxu0 0
    %591 = vmatpush1.bf16.msra.mxu0 0
    %592 = vmatprep.subr.bf16.mxu0 0
    %593 = vmatpush1.bf16.msra.mxu0 0
    %594 = vmatprep.subr.bf16.mxu0 0
    %595 = vmatpush1.bf16.msra.mxu0 0
    %596 = vmatprep.subr.bf16.mxu0 0
    %597 = vmatpush1.bf16.msra.mxu0 0
    %598 = vmatprep.subr.bf16.mxu0 0
    %599 = vmatpush1.bf16.msra.mxu0 0
    %600 = vmatprep.subr.bf16.mxu0 0
    %601 = vmatpush1.bf16.msra.mxu0 0
    %602 = vmatprep.subr.bf16.mxu0 0
    %603 = vmatpush1.bf16.msra.mxu0 0
    %604 = vmatprep.subr.bf16.mxu0 0
    %605 = vmatpush1.bf16.msra.mxu0 %v563
    %606 = vmatprep.subr.bf16.mxu0 0
    %607 = vmatpush2.bf16.msra.mxu0 0
    %608 = vmatprep.subr.bf16.mxu0 0
    %609 = vmatpush2.bf16.msra.mxu0 0
    %610 = vmatprep.subr.bf16.mxu0 0
    %611 = vmatpush2.bf16.msra.mxu0 0
    %612 = vmatprep.subr.bf16.mxu0 0
    %613 = vmatpush2.bf16.msra.mxu0 0
    %614 = vmatprep.subr.bf16.mxu0 0
    %615 = vmatpush2.bf16.msra.mxu0 0
    %616 = vmatprep.subr.bf16.mxu0 0
    %617 = vmatpush2.bf16.msra.mxu0 0
    %618 = vmatprep.subr.bf16.mxu0 0
    %619 = vmatpush2.bf16.msra.mxu0 0
    %620 = vmatprep.subr.bf16.mxu0 0
    %621 = vmatpush2.bf16.msra.mxu0 0
    %622 = vmatprep.mubr.bf16.mxu0 0
    %623 = vmatmul.mubr.bf16.gmra.mxu0 %v567
    %v624 = vpop.f32.mrf.mxu0
    %v625 = vadd.f32 %v557, %v624
    %v626 = vpop.f32.mrf.mxu0
    %v627 = vpop.f32.mrf.mxu0
    %v628 = vadd.f32 %v557, %v627
    %v629 = vpop.f32.mrf.mxu0
    %630 = vmatprep.mubr.bf16.mxu0 0
    %631 = vmatmul.mubr.bf16.gmra.mxu0 %v570
    %v632 = vpop.f32.mrf.mxu0
    %v633 = vadd.f32 %v557, %v632
    %v634 = vpop.f32.mrf.mxu0
    %v635 = vpop.f32.mrf.mxu0
    %v636 = vadd.f32 %v557, %v635
    %v637 = vpop.f32.mrf.mxu0
    %638 = vmatprep.mubr.bf16.mxu0 0
    %639 = vmatmul.mubr.bf16.gmra.mxu0 %v573
    %v640 = vpop.f32.mrf.mxu0
    %v641 = vadd.f32 %v557, %v640
    %v642 = vpop.f32.mrf.mxu0
    %v643 = vpop.f32.mrf.mxu0
    %v644 = vadd.f32 %v557, %v643
    %v645 = vpop.f32.mrf.mxu0
    %646 = vmatprep.mubr.bf16.mxu0 0
    %647 = vmatmul.mubr.bf16.gmra.mxu0 %v576
    %v648 = vpop.f32.mrf.mxu0
    %v649 = vadd.f32 %v557, %v648
    %v650 = vpop.f32.mrf.mxu0
    %v651 = vpop.f32.mrf.mxu0
    %v652 = vadd.f32 %v557, %v651
    %v653 = vpop.f32.mrf.mxu0
    %654 = vmatprep.mubr.bf16.mxu0 0
    %655 = vmatmul.mubr.bf16.gmra.mxu0 %v579
    %v656 = vpop.f32.mrf.mxu0
    %v657 = vadd.f32 %v557, %v656
    %v658 = vpop.f32.mrf.mxu0
    %v659 = vpop.f32.mrf.mxu0
    %v660 = vadd.f32 %v557, %v659
    %v661 = vpop.f32.mrf.mxu0
    %662 = vmatprep.mubr.bf16.mxu0 0
    %663 = vmatmul.mubr.bf16.gmra.mxu0 %v582
    %v664 = vpop.f32.mrf.mxu0
    %v665 = vadd.f32 %v557, %v664
    %v666 = vpop.f32.mrf.mxu0
    %v667 = vpop.f32.mrf.mxu0
    %v668 = vadd.f32 %v557, %v667
    %v669 = vpop.f32.mrf.mxu0
    %670 = vmatprep.mubr.bf16.mxu0 0
    %671 = vmatmul.mubr.bf16.gmra.mxu0 %v585
    %v672 = vpop.f32.mrf.mxu0
    %v673 = vadd.f32 %v557, %v672
    %v674 = vpop.f32.mrf.mxu0
    %v675 = vpop.f32.mrf.mxu0
    %v676 = vadd.f32 %v557, %v675
    %v677 = vpop.f32.mrf.mxu0
    %678 = vmatprep.mubr.bf16.mxu0 0
    %679 = vmatmul.mubr.bf16.gmra.mxu0 %v588
    %v680 = vpop.f32.mrf.mxu0
    %v681 = vadd.f32 %v557, %v680
    %v682 = vpop.f32.mrf.mxu0
    %v683 = vpop.f32.mrf.mxu0
    %v684 = vadd.f32 %v557, %v683
    %v685 = vpop.f32.mrf.mxu0
    %686 = vdwg.mxu0
    %v687 = vld [vmem:[%s13] sm:$0xf]
    %v688 = vld [vmem:[%s13 + $0x4] sm:$0xf]
    %v689 = vld [vmem:[%s13 + $0x8] sm:$0xf]
    %v690 = vld [vmem:[%s13 + $0xc] sm:$0xf]
    %v691 = vld [vmem:[%s15] sm:$0xf]
    %v692 = vld [vmem:[%s15 + $0x4] sm:$0xf]
    %v693 = vld [vmem:[%s15 + $0x8] sm:$0xf]
    %v694 = vld [vmem:[%s15 + $0xc] sm:$0xf]
    %v695 = vld [vmem:[%s21] sm:$0xf]
    %v696 = vld [vmem:[%s21 + $0x4] sm:$0xf]
    %v697 = vld [vmem:[%s21 + $0x8] sm:$0xf]
    %v698 = vld [vmem:[%s21 + $0xc] sm:$0xf]
    %v699 = vld [vmem:[%s23] sm:$0xf]
    %v700 = vld [vmem:[%s23 + $0x4] sm:$0xf]
    %v701 = vld [vmem:[%s23 + $0x8] sm:$0xf]
    %v702 = vld [vmem:[%s23 + $0xc] sm:$0xf]
    %v703 = vld [vmem:[%s19] sm:$0x1]
    %v705 = vlaneseq
    %v706 = vshrl.u32 %v705, 7
    %v707 = vsub.s32 0, %v706
    %v708 = vrot.slane %v703, %v707
    %v710 = vld [vmem:[%s27] sm:$0x1]
    %v712 = vlaneseq
    %v713 = vshrl.u32 %v712, 7
    %v714 = vsub.s32 0, %v713
    %v715 = vrot.slane %v710, %v714
    %v717 = vld [vmem:[%s9] sm:$0xff]
    %v718 = vld [vmem:[%s9 + $0x8] sm:$0xff]
    %v719 = vld [vmem:[%s9 + $0x10] sm:$0xff]
    %v720 = vld [vmem:[%s9 + $0x18] sm:$0xff]
    %v721 = vpack.c.bf16 %v628, %v625
    %v722 = vpack.c.bf16 %v636, %v633
    %v723 = vpack.c.bf16 %v644, %v641
    %v724 = vpack.c.bf16 %v652, %v649
    %v725 = vpack.c.bf16 %v660, %v657
    %v726 = vpack.c.bf16 %v668, %v665
    %v727 = vpack.c.bf16 %v676, %v673
    %v728 = vpack.c.bf16 %v684, %v681
    %v729 = vld [vmem:[%s11] sm:$0x3]
    %v731 = vlaneseq
    %v732 = vshrl.u32 %v731, 7
    %v733 = vsub.s32 0, %v732
    %v734 = vrot.slane %v729, %v733
    %v735 = vlaneseq
    %v736 = vshrl.u32 %v735, 7
    %v737 = vsub.s32 1, %v736
    %v738 = vrot.slane %v729, %v737
    %v745 = vunpack.c.l.b16 %v717
    %v746 = vunpack.c.h.b16 %v717
    %v747 = vunpack.c.l.b16 %v718
    %v748 = vunpack.c.h.b16 %v718
    %v749 = vunpack.c.l.b16 %v719
    %v750 = vunpack.c.h.b16 %v719
    %v751 = vunpack.c.l.b16 %v720
    %v752 = vunpack.c.h.b16 %v720
    %v753 = vpack.c.b16 %v747, %v745
    %v754 = vpack.c.b16 %v748, %v746
    %v755 = vpack.c.b16 %v751, %v749
    %v756 = vpack.c.b16 %v752, %v750
    %vm761 = vcmask 261120
    %v763 = vsel %vm761, %v721, 0
    %v766 = vsel %vm761, %v722, 0
    %v769 = vsel %vm761, %v723, 0
    %v772 = vsel %vm761, %v724, 0
    %v775 = vsel %vm761, %v725, 0
    %v778 = vsel %vm761, %v726, 0
    %v781 = vsel %vm761, %v727, 0
    %v784 = vsel %vm761, %v728, 0
    %786 = vmatprep.subr.bf16.mxu0 0
    %787 = vmatpush1.bf16.msra.mxu0 0
    %788 = vmatprep.subr.bf16.mxu0 0
    %789 = vmatpush1.bf16.msra.mxu0 0
    %790 = vmatprep.subr.bf16.mxu0 0
    %791 = vmatpush1.bf16.msra.mxu0 0
    %792 = vmatprep.subr.bf16.mxu0 0
    %793 = vmatpush1.bf16.msra.mxu0 0
    %794 = vmatprep.subr.bf16.mxu0 0
    %795 = vmatpush1.bf16.msra.mxu0 0
    %796 = vmatprep.subr.bf16.mxu0 0
    %797 = vmatpush1.bf16.msra.mxu0 0
    %798 = vmatprep.subr.bf16.mxu0 %v756
    %799 = vmatpush1.bf16.msra.mxu0 %v755
    %800 = vmatprep.subr.bf16.mxu0 %v754
    %801 = vmatpush1.bf16.msra.mxu0 %v753
    %802 = vmatprep.subr.bf16.mxu0 0
    %803 = vmatpush2.bf16.msra.mxu0 0
    %804 = vmatprep.subr.bf16.mxu0 0
    %805 = vmatpush2.bf16.msra.mxu0 0
    %806 = vmatprep.subr.bf16.mxu0 0
    %807 = vmatpush2.bf16.msra.mxu0 0
    %808 = vmatprep.subr.bf16.mxu0 0
    %809 = vmatpush2.bf16.msra.mxu0 0
    %810 = vmatprep.subr.bf16.mxu0 0
    %811 = vmatpush2.bf16.msra.mxu0 0
    %812 = vmatprep.subr.bf16.mxu0 0
    %813 = vmatpush2.bf16.msra.mxu0 0
    %814 = vmatprep.subr.bf16.mxu0 0
    %815 = vmatpush2.bf16.msra.mxu0 0
    %816 = vmatprep.subr.bf16.mxu0 0
    %817 = vmatpush2.bf16.msra.mxu0 0
    %818 = vmatprep.mubr.bf16.mxu0 0
    %819 = vmatmul.mubr.bf16.gmra.mxu0 %v763
    %v820 = vpop.f32.mrf.mxu0
    %v821 = vadd.f32 %v734, %v820
    %v822 = vpop.f32.mrf.mxu0
    %v823 = vadd.f32 %v738, %v822
    %v824 = vpop.f32.mrf.mxu0
    %v825 = vadd.f32 %v734, %v824
    %v826 = vpop.f32.mrf.mxu0
    %v827 = vadd.f32 %v738, %v826
    %828 = vmatprep.mubr.bf16.mxu0 0
    %829 = vmatmul.mubr.bf16.gmra.mxu0 %v766
    %v830 = vpop.f32.mrf.mxu0
    %v831 = vadd.f32 %v734, %v830
    %v832 = vpop.f32.mrf.mxu0
    %v833 = vadd.f32 %v738, %v832
    %v834 = vpop.f32.mrf.mxu0
    %v835 = vadd.f32 %v734, %v834
    %v836 = vpop.f32.mrf.mxu0
    %v837 = vadd.f32 %v738, %v836
    %838 = vmatprep.mubr.bf16.mxu0 0
    %839 = vmatmul.mubr.bf16.gmra.mxu0 %v769
    %v840 = vpop.f32.mrf.mxu0
    %v841 = vadd.f32 %v734, %v840
    %v842 = vpop.f32.mrf.mxu0
    %v843 = vadd.f32 %v738, %v842
    %v844 = vpop.f32.mrf.mxu0
    %v845 = vadd.f32 %v734, %v844
    %v846 = vpop.f32.mrf.mxu0
    %v847 = vadd.f32 %v738, %v846
    %848 = vmatprep.mubr.bf16.mxu0 0
    %849 = vmatmul.mubr.bf16.gmra.mxu0 %v772
    %v850 = vpop.f32.mrf.mxu0
    %v851 = vadd.f32 %v734, %v850
    %v852 = vpop.f32.mrf.mxu0
    %v853 = vadd.f32 %v738, %v852
    %v854 = vpop.f32.mrf.mxu0
    %v855 = vadd.f32 %v734, %v854
    %v856 = vpop.f32.mrf.mxu0
    %v857 = vadd.f32 %v738, %v856
    %858 = vmatprep.mubr.bf16.mxu0 0
    %859 = vmatmul.mubr.bf16.gmra.mxu0 %v775
    %v860 = vpop.f32.mrf.mxu0
    %v861 = vadd.f32 %v734, %v860
    %v862 = vpop.f32.mrf.mxu0
    %v863 = vadd.f32 %v738, %v862
    %v864 = vpop.f32.mrf.mxu0
    %v865 = vadd.f32 %v734, %v864
    %v866 = vpop.f32.mrf.mxu0
    %v867 = vadd.f32 %v738, %v866
    %868 = vmatprep.mubr.bf16.mxu0 0
    %869 = vmatmul.mubr.bf16.gmra.mxu0 %v778
    %v870 = vpop.f32.mrf.mxu0
    %v871 = vadd.f32 %v734, %v870
    %v872 = vpop.f32.mrf.mxu0
    %v873 = vadd.f32 %v738, %v872
    %v874 = vpop.f32.mrf.mxu0
    %v875 = vadd.f32 %v734, %v874
    %v876 = vpop.f32.mrf.mxu0
    %v877 = vadd.f32 %v738, %v876
    %878 = vmatprep.mubr.bf16.mxu0 0
    %879 = vmatmul.mubr.bf16.gmra.mxu0 %v781
    %v880 = vpop.f32.mrf.mxu0
    %v881 = vadd.f32 %v734, %v880
    %v882 = vpop.f32.mrf.mxu0
    %v883 = vadd.f32 %v738, %v882
    %v884 = vpop.f32.mrf.mxu0
    %v885 = vadd.f32 %v734, %v884
    %v886 = vpop.f32.mrf.mxu0
    %v887 = vadd.f32 %v738, %v886
    %888 = vmatprep.mubr.bf16.mxu0 0
    %889 = vmatmul.mubr.bf16.gmra.mxu0 %v784
    %v890 = vpop.f32.mrf.mxu0
    %v891 = vadd.f32 %v734, %v890
    %v892 = vpop.f32.mrf.mxu0
    %v893 = vadd.f32 %v738, %v892
    %v894 = vpop.f32.mrf.mxu0
    %v895 = vadd.f32 %v734, %v894
    %v896 = vpop.f32.mrf.mxu0
    %v897 = vadd.f32 %v738, %v896
    %898 = vdwg.mxu0
    %v899 = vld [vmem:[%s17] sm:$0x1]
    %v901 = vlaneseq
    %v902 = vshrl.u32 %v901, 7
    %v903 = vsub.s32 0, %v902
    %v904 = vrot.slane %v899, %v903
    %v906 = vadd.f32 %v821, %v904
    %v907 = vadd.f32 %v825, %v904
    %v908 = vadd.f32 %v831, %v904
    %v909 = vadd.f32 %v835, %v904
    %v910 = vadd.f32 %v841, %v904
    %v911 = vadd.f32 %v845, %v904
    %v912 = vadd.f32 %v851, %v904
    %v913 = vadd.f32 %v855, %v904
    %v914 = vadd.f32 %v861, %v904
    %v915 = vadd.f32 %v865, %v904
    %v916 = vadd.f32 %v871, %v904
    %v917 = vadd.f32 %v875, %v904
    %v918 = vadd.f32 %v881, %v904
    %v919 = vadd.f32 %v885, %v904
    %v920 = vadd.f32 %v891, %v904
    %v921 = vadd.f32 %v895, %v904
    %v922 = vld [vmem:[%s25] sm:$0x1]
    %v924 = vlaneseq
    %v925 = vshrl.u32 %v924, 7
    %v926 = vsub.s32 0, %v925
    %v927 = vrot.slane %v922, %v926
    %928 = vrot.lane.b32.xlu0 %v927, 64
    %v929 = vpop.permute.xlu0 %928
    %v931 = vadd.f32 %v821, %v929
    %v932 = vadd.f32 %v825, %v929
    %v933 = vadd.f32 %v831, %v929
    %v934 = vadd.f32 %v835, %v929
    %v935 = vadd.f32 %v841, %v929
    %v936 = vadd.f32 %v845, %v929
    %v937 = vadd.f32 %v851, %v929
    %v938 = vadd.f32 %v855, %v929
    %v939 = vadd.f32 %v861, %v929
    %v940 = vadd.f32 %v865, %v929
    %v941 = vadd.f32 %v871, %v929
    %v942 = vadd.f32 %v875, %v929
    %v943 = vadd.f32 %v881, %v929
    %v944 = vadd.f32 %v885, %v929
    %v945 = vadd.f32 %v891, %v929
    %v946 = vadd.f32 %v895, %v929
    %v951 = vunpack.c.l.b16 %v687
    %v952 = vunpack.c.l.b16 %v688
    %v953 = vunpack.c.l.b16 %v689
    %v954 = vunpack.c.l.b16 %v690
    %v955 = vpack.c.b16 %v952, %v951
    %v956 = vpack.c.b16 %v954, %v953
    %v960 = vsel %vm761, 0, 0
    %962 = vmatprep.subr.bf16.mxu0 0
    %963 = vmatpush1.bf16.msra.mxu0 0
    %964 = vmatprep.subr.bf16.mxu0 0
    %965 = vmatpush1.bf16.msra.mxu0 0
    %966 = vmatprep.subr.bf16.mxu0 0
    %967 = vmatpush1.bf16.msra.mxu0 0
    %968 = vmatprep.subr.bf16.mxu0 0
    %969 = vmatpush1.bf16.msra.mxu0 0
    %970 = vmatprep.subr.bf16.mxu0 0
    %971 = vmatpush1.bf16.msra.mxu0 0
    %972 = vmatprep.subr.bf16.mxu0 0
    %973 = vmatpush1.bf16.msra.mxu0 0
    %974 = vmatprep.subr.bf16.mxu0 0
    %975 = vmatpush1.bf16.msra.mxu0 %v956
    %976 = vmatprep.subr.bf16.mxu0 0
    %977 = vmatpush1.bf16.msra.mxu0 %v955
    %978 = vmatprep.subr.bf16.mxu0 0
    %979 = vmatpush2.bf16.msra.mxu0 0
    %980 = vmatprep.subr.bf16.mxu0 0
    %981 = vmatpush2.bf16.msra.mxu0 0
    %982 = vmatprep.subr.bf16.mxu0 0
    %983 = vmatpush2.bf16.msra.mxu0 0
    %984 = vmatprep.subr.bf16.mxu0 0
    %985 = vmatpush2.bf16.msra.mxu0 0
    %986 = vmatprep.subr.bf16.mxu0 0
    %987 = vmatpush2.bf16.msra.mxu0 0
    %988 = vmatprep.subr.bf16.mxu0 0
    %989 = vmatpush2.bf16.msra.mxu0 0
    %990 = vmatprep.subr.bf16.mxu0 0
    %991 = vmatpush2.bf16.msra.mxu0 0
    %992 = vmatprep.subr.bf16.mxu0 0
    %993 = vmatpush2.bf16.msra.mxu0 0
    %994 = vmatprep.mubr.bf16.mxu0 0
    %995 = vmatmul.mubr.bf16.gmra.mxu0 %v960
    %v996 = vpop.f32.mrf.mxu0
    %v997 = vadd.f32 0.0, %v996
    %v998 = vpop.f32.mrf.mxu0
    %v999 = vpop.f32.mrf.mxu0
    %v1000 = vadd.f32 0.0, %v999
    %v1001 = vpop.f32.mrf.mxu0
    %1002 = vdwg.mxu0
    %v1003 = vadd.f32 %v906, %v997
    %v1004 = vadd.f32 %v907, %v1000
    %v1005 = vxor.u32 %v1003, 2147483648
    %v1006 = vxor.u32 %v1004, 2147483648
    %v1007 = vmul.f32 %v1005, 1.442695
    %v1008 = vpow.pop %v1007
    %v1009 = vmul.f32 %v1006, 1.442695
    %v1010 = vpow.pop %v1009
    %v1011 = vadd.f32 %v1008, 1.0
    %v1012 = vadd.f32 %v1010, 1.0
    %v1013 = vrcp.pop %v1011
    %v1014 = vmul.f32 1.0, %v1013
    %v1015 = vrcp.pop %v1012
    %v1016 = vmul.f32 1.0, %v1015
    %v1021 = vunpack.c.l.b16 %v691
    %v1022 = vunpack.c.l.b16 %v692
    %v1023 = vunpack.c.l.b16 %v693
    %v1024 = vunpack.c.l.b16 %v694
    %v1025 = vpack.c.b16 %v1022, %v1021
    %v1026 = vpack.c.b16 %v1024, %v1023
    %1029 = vmatprep.subr.bf16.mxu0 0
    %1030 = vmatpush1.bf16.msra.mxu0 0
    %1031 = vmatprep.subr.bf16.mxu0 0
    %1032 = vmatpush1.bf16.msra.mxu0 0
    %1033 = vmatprep.subr.bf16.mxu0 0
    %1034 = vmatpush1.bf16.msra.mxu0 0
    %1035 = vmatprep.subr.bf16.mxu0 0
    %1036 = vmatpush1.bf16.msra.mxu0 0
    %1037 = vmatprep.subr.bf16.mxu0 0
    %1038 = vmatpush1.bf16.msra.mxu0 0
    %1039 = vmatprep.subr.bf16.mxu0 0
    %1040 = vmatpush1.bf16.msra.mxu0 0
    %1041 = vmatprep.subr.bf16.mxu0 0
    %1042 = vmatpush1.bf16.msra.mxu0 %v1026
    %1043 = vmatprep.subr.bf16.mxu0 0
    %1044 = vmatpush1.bf16.msra.mxu0 %v1025
    %1045 = vmatprep.subr.bf16.mxu0 0
    %1046 = vmatpush2.bf16.msra.mxu0 0
    %1047 = vmatprep.subr.bf16.mxu0 0
    %1048 = vmatpush2.bf16.msra.mxu0 0
    %1049 = vmatprep.subr.bf16.mxu0 0
    %1050 = vmatpush2.bf16.msra.mxu0 0
    %1051 = vmatprep.subr.bf16.mxu0 0
    %1052 = vmatpush2.bf16.msra.mxu0 0
    %1053 = vmatprep.subr.bf16.mxu0 0
    %1054 = vmatpush2.bf16.msra.mxu0 0
    %1055 = vmatprep.subr.bf16.mxu0 0
    %1056 = vmatpush2.bf16.msra.mxu0 0
    %1057 = vmatprep.subr.bf16.mxu0 0
    %1058 = vmatpush2.bf16.msra.mxu0 0
    %1059 = vmatprep.subr.bf16.mxu0 0
    %1060 = vmatpush2.bf16.msra.mxu0 0
    %1061 = vmatprep.mubr.bf16.mxu0 0
    %1062 = vmatmul.mubr.bf16.gmra.mxu0 %v960
    %v1063 = vpop.f32.mrf.mxu0
    %v1064 = vadd.f32 %v708, %v1063
    %v1065 = vpop.f32.mrf.mxu0
    %v1066 = vpop.f32.mrf.mxu0
    %v1067 = vadd.f32 %v708, %v1066
    %v1068 = vpop.f32.mrf.mxu0
    %1069 = vdwg.mxu0
    %v1070 = vmul.f32 %v1014, %v1064
    %v1071 = vmul.f32 %v1016, %v1067
    %v1072 = vadd.f32 %v823, %v1070
    %v1073 = vadd.f32 %v827, %v1071
    %v1074 = vtanh.pop %v1072
    %v1075 = vtanh.pop %v1073
    %v1076 = vsub.f32 0.0, %v1074
    %v1077 = vsub.f32 0.0, %v1075
    %1080 = vrot.lane.b32.xlu0 %v1076, 32
    %v1081 = vpop.permute.xlu0 %1080
    %1082 = vrot.lane.b32.xlu0 %v1077, 32
    %v1083 = vpop.permute.xlu0 %1082
    %v1086 = vmul.f32 %v1014, %v1081
    %v1087 = vmul.f32 %v1016, %v1083
    %1090 = vrot.lane.b32.xlu0 %v1086, 96
    %v1091 = vpop.permute.xlu0 %1090
    %1092 = vrot.lane.b32.xlu0 %v1087, 96
    %v1093 = vpop.permute.xlu0 %1092
    %v1096 = vadd.f32 %v1074, %v1091
    %v1097 = vadd.f32 %v1075, %v1093
    %v1102 = vunpack.c.l.b16 %v695
    %v1103 = vunpack.c.l.b16 %v696
    %v1104 = vunpack.c.l.b16 %v697
    %v1105 = vunpack.c.l.b16 %v698
    %v1106 = vpack.c.b16 %v1103, %v1102
    %v1107 = vpack.c.b16 %v1105, %v1104
    %1110 = vmatprep.subr.bf16.mxu0 0
    %1111 = vmatpush1.bf16.msra.mxu0 0
    %1112 = vmatprep.subr.bf16.mxu0 0
    %1113 = vmatpush1.bf16.msra.mxu0 0
    %1114 = vmatprep.subr.bf16.mxu0 0
    %1115 = vmatpush1.bf16.msra.mxu0 0
    %1116 = vmatprep.subr.bf16.mxu0 0
    %1117 = vmatpush1.bf16.msra.mxu0 0
    %1118 = vmatprep.subr.bf16.mxu0 0
    %1119 = vmatpush1.bf16.msra.mxu0 0
    %1120 = vmatprep.subr.bf16.mxu0 0
    %1121 = vmatpush1.bf16.msra.mxu0 0
    %1122 = vmatprep.subr.bf16.mxu0 0
    %1123 = vmatpush1.bf16.msra.mxu0 %v1107
    %1124 = vmatprep.subr.bf16.mxu0 0
    %1125 = vmatpush1.bf16.msra.mxu0 %v1106
    %1126 = vmatprep.subr.bf16.mxu0 0
    %1127 = vmatpush2.bf16.msra.mxu0 0
    %1128 = vmatprep.subr.bf16.mxu0 0
    %1129 = vmatpush2.bf16.msra.mxu0 0
    %1130 = vmatprep.subr.bf16.mxu0 0
    %1131 = vmatpush2.bf16.msra.mxu0 0
    %1132 = vmatprep.subr.bf16.mxu0 0
    %1133 = vmatpush2.bf16.msra.mxu0 0
    %1134 = vmatprep.subr.bf16.mxu0 0
    %1135 = vmatpush2.bf16.msra.mxu0 0
    %1136 = vmatprep.subr.bf16.mxu0 0
    %1137 = vmatpush2.bf16.msra.mxu0 0
    %1138 = vmatprep.subr.bf16.mxu0 0
    %1139 = vmatpush2.bf16.msra.mxu0 0
    %1140 = vmatprep.subr.bf16.mxu0 0
    %1141 = vmatpush2.bf16.msra.mxu0 0
    %1142 = vmatprep.mubr.bf16.mxu0 0
    %1143 = vmatmul.mubr.bf16.gmra.mxu0 %v960
    %v1144 = vpop.f32.mrf.mxu0
    %v1145 = vadd.f32 0.0, %v1144
    %v1146 = vpop.f32.mrf.mxu0
    %v1147 = vpop.f32.mrf.mxu0
    %v1148 = vadd.f32 0.0, %v1147
    %v1149 = vpop.f32.mrf.mxu0
    %1150 = vdwg.mxu0
    %1153 = vrot.lane.b32.xlu0 %v1145, 64
    %v1154 = vpop.permute.xlu0 %1153
    %1155 = vrot.lane.b32.xlu0 %v1148, 64
    %v1156 = vpop.permute.xlu0 %1155
    %v1159 = vadd.f32 %v945, %v1154
    %v1160 = vadd.f32 %v946, %v1156
    %v1161 = vxor.u32 %v1159, 2147483648
    %v1162 = vxor.u32 %v1160, 2147483648
    %v1163 = vmul.f32 %v1161, 1.442695
    %v1164 = vpow.pop %v1163
    %v1165 = vmul.f32 %v1162, 1.442695
    %v1166 = vpow.pop %v1165
    %v1167 = vadd.f32 %v1164, 1.0
    %v1168 = vadd.f32 %v1166, 1.0
    %v1169 = vrcp.pop %v1167
    %v1170 = vmul.f32 1.0, %v1169
    %v1171 = vrcp.pop %v1168
    %v1172 = vmul.f32 1.0, %v1171
    %v1177 = vunpack.c.l.b16 %v699
    %v1178 = vunpack.c.l.b16 %v700
    %v1179 = vunpack.c.l.b16 %v701
    %v1180 = vunpack.c.l.b16 %v702
    %v1181 = vpack.c.b16 %v1178, %v1177
    %v1182 = vpack.c.b16 %v1180, %v1179
    %1185 = vmatprep.subr.bf16.mxu0 0
    %1186 = vmatpush1.bf16.msra.mxu0 0
    %1187 = vmatprep.subr.bf16.mxu0 0
    %1188 = vmatpush1.bf16.msra.mxu0 0
    %1189 = vmatprep.subr.bf16.mxu0 0
    %1190 = vmatpush1.bf16.msra.mxu0 0
    %1191 = vmatprep.subr.bf16.mxu0 0
    %1192 = vmatpush1.bf16.msra.mxu0 0
    %1193 = vmatprep.subr.bf16.mxu0 0
    %1194 = vmatpush1.bf16.msra.mxu0 0
    %1195 = vmatprep.subr.bf16.mxu0 0
    %1196 = vmatpush1.bf16.msra.mxu0 0
    %1197 = vmatprep.subr.bf16.mxu0 0
    %1198 = vmatpush1.bf16.msra.mxu0 %v1182
    %1199 = vmatprep.subr.bf16.mxu0 0
    %1200 = vmatpush1.bf16.msra.mxu0 %v1181
    %1201 = vmatprep.subr.bf16.mxu0 0
    %1202 = vmatpush2.bf16.msra.mxu0 0
    %1203 = vmatprep.subr.bf16.mxu0 0
    %1204 = vmatpush2.bf16.msra.mxu0 0
    %1205 = vmatprep.subr.bf16.mxu0 0
    %1206 = vmatpush2.bf16.msra.mxu0 0
    %1207 = vmatprep.subr.bf16.mxu0 0
    %1208 = vmatpush2.bf16.msra.mxu0 0
    %1209 = vmatprep.subr.bf16.mxu0 0
    %1210 = vmatpush2.bf16.msra.mxu0 0
    %1211 = vmatprep.subr.bf16.mxu0 0
    %1212 = vmatpush2.bf16.msra.mxu0 0
    %1213 = vmatprep.subr.bf16.mxu0 0
    %1214 = vmatpush2.bf16.msra.mxu0 0
    %1215 = vmatprep.subr.bf16.mxu0 0
    %1216 = vmatpush2.bf16.msra.mxu0 0
    %1217 = vmatprep.mubr.bf16.mxu0 0
    %1218 = vmatmul.mubr.bf16.gmra.mxu0 %v960
    %v1219 = vpop.f32.mrf.mxu0
    %v1220 = vadd.f32 %v715, %v1219
    %v1221 = vpop.f32.mrf.mxu0
    %v1222 = vpop.f32.mrf.mxu0
    %v1223 = vadd.f32 %v715, %v1222
    %v1224 = vpop.f32.mrf.mxu0
    %1225 = vdwg.mxu0
    %1228 = vrot.lane.b32.xlu0 %v1220, 64
    %v1229 = vpop.permute.xlu0 %1228
    %1230 = vrot.lane.b32.xlu0 %v1223, 64
    %v1231 = vpop.permute.xlu0 %1230
    %v1234 = vmul.f32 %v1170, %v1229
    %v1235 = vmul.f32 %v1172, %v1231
    %1238 = vrot.lane.b32.xlu0 %v1234, 96
    %v1239 = vpop.permute.xlu0 %1238
    %1240 = vrot.lane.b32.xlu0 %v1235, 96
    %v1241 = vpop.permute.xlu0 %1240
    %v1244 = vadd.f32 %v893, %v1239
    %v1245 = vadd.f32 %v897, %v1241
    %v1246 = vtanh.pop %v1244
    %v1247 = vtanh.pop %v1245
    %v1248 = vsub.f32 0.0, %v1246
    %v1249 = vsub.f32 0.0, %v1247
    %1252 = vrot.lane.b32.xlu0 %v1248, 64
    %v1253 = vpop.permute.xlu0 %1252
    %1254 = vrot.lane.b32.xlu0 %v1249, 64
    %v1255 = vpop.permute.xlu0 %1254
    %v1258 = vmul.f32 %v1170, %v1253
    %v1259 = vmul.f32 %v1172, %v1255
    %1262 = vrot.lane.b32.xlu0 %v1258, 64
    %v1263 = vpop.permute.xlu0 %1262
    %1264 = vrot.lane.b32.xlu0 %v1259, 64
    %v1265 = vpop.permute.xlu0 %1264
    %v1268 = vadd.f32 %v1246, %v1263
    %v1269 = vadd.f32 %v1247, %v1265
    %1270 = vst.msk [vmem:[#allocation2] sm:$0xff] %vm761, %v1096
    %1271 = vst.msk [vmem:[#allocation2 + $0x8] sm:$0xff] %vm761, %v1097
    %1274 = vrot.lane.b32.xlu0 %v1268, 96
    %v1275 = vpop.permute.xlu0 %1274
    %1276 = vrot.lane.b32.xlu0 %v1269, 96
    %v1277 = vpop.permute.xlu0 %1276
    %1280 = vst.msk [vmem:[#allocation3 + $0x70] sm:$0xff] %vm761, %v1275
    %1281 = vst.msk [vmem:[#allocation3 + $0x78] sm:$0xff] %vm761, %v1277
    %v1282 = vpack.c.bf16 %v1097, %v1096
    %v1284 = vsel %vm761, %v1282, 0
    %1286 = vmatprep.subr.bf16.mxu0 0
    %1287 = vmatpush1.bf16.msra.mxu0 0
    %1288 = vmatprep.subr.bf16.mxu0 0
    %1289 = vmatpush1.bf16.msra.mxu0 0
    %1290 = vmatprep.subr.bf16.mxu0 0
    %1291 = vmatpush1.bf16.msra.mxu0 0
    %1292 = vmatprep.subr.bf16.mxu0 0
    %1293 = vmatpush1.bf16.msra.mxu0 0
    %1294 = vmatprep.subr.bf16.mxu0 0
    %1295 = vmatpush1.bf16.msra.mxu0 0
    %1296 = vmatprep.subr.bf16.mxu0 0
    %1297 = vmatpush1.bf16.msra.mxu0 0
    %1298 = vmatprep.subr.bf16.mxu0 0
    %1299 = vmatpush1.bf16.msra.mxu0 %v956
    %1300 = vmatprep.subr.bf16.mxu0 0
    %1301 = vmatpush1.bf16.msra.mxu0 %v955
    %1302 = vmatprep.subr.bf16.mxu0 0
    %1303 = vmatpush2.bf16.msra.mxu0 0
    %1304 = vmatprep.subr.bf16.mxu0 0
    %1305 = vmatpush2.bf16.msra.mxu0 0
    %1306 = vmatprep.subr.bf16.mxu0 0
    %1307 = vmatpush2.bf16.msra.mxu0 0
    %1308 = vmatprep.subr.bf16.mxu0 0
    %1309 = vmatpush2.bf16.msra.mxu0 0
    %1310 = vmatprep.subr.bf16.mxu0 0
    %1311 = vmatpush2.bf16.msra.mxu0 0
    %1312 = vmatprep.subr.bf16.mxu0 0
    %1313 = vmatpush2.bf16.msra.mxu0 0
    %1314 = vmatprep.subr.bf16.mxu0 0
    %1315 = vmatpush2.bf16.msra.mxu0 0
    %1316 = vmatprep.subr.bf16.mxu0 0
    %1317 = vmatpush2.bf16.msra.mxu0 0
    %1318 = vmatprep.mubr.bf16.mxu0 0
    %1319 = vmatmul.mubr.bf16.gmra.mxu0 %v1284
    %v1320 = vpop.f32.mrf.mxu0
    %v1321 = vadd.f32 0.0, %v1320
    %v1322 = vpop.f32.mrf.mxu0
    %v1323 = vpop.f32.mrf.mxu0
    %v1324 = vadd.f32 0.0, %v1323
    %v1325 = vpop.f32.mrf.mxu0
    %1326 = vdwg.mxu0
    %v1327 = vadd.f32 %v908, %v1321
    %v1328 = vadd.f32 %v909, %v1324
    %v1329 = vxor.u32 %v1327, 2147483648
    %v1330 = vxor.u32 %v1328, 2147483648
    %v1331 = vmul.f32 %v1329, 1.442695
    %v1332 = vpow.pop %v1331
    %v1333 = vmul.f32 %v1330, 1.442695
    %v1334 = vpow.pop %v1333
    %v1335 = vadd.f32 %v1332, 1.0
    %v1336 = vadd.f32 %v1334, 1.0
    %v1337 = vrcp.pop %v1335
    %v1338 = vmul.f32 1.0, %v1337
    %v1339 = vrcp.pop %v1336
    %v1340 = vmul.f32 1.0, %v1339
    %1341 = vmatprep.subr.bf16.mxu0 0
    %1342 = vmatpush1.bf16.msra.mxu0 0
    %1343 = vmatprep.subr.bf16.mxu0 0
    %1344 = vmatpush1.bf16.msra.mxu0 0
    %1345 = vmatprep.subr.bf16.mxu0 0
    %1346 = vmatpush1.bf16.msra.mxu0 0
    %1347 = vmatprep.subr.bf16.mxu0 0
    %1348 = vmatpush1.bf16.msra.mxu0 0
    %1349 = vmatprep.subr.bf16.mxu0 0
    %1350 = vmatpush1.bf16.msra.mxu0 0
    %1351 = vmatprep.subr.bf16.mxu0 0
    %1352 = vmatpush1.bf16.msra.mxu0 0
    %1353 = vmatprep.subr.bf16.mxu0 0
    %1354 = vmatpush1.bf16.msra.mxu0 %v1026
    %1355 = vmatprep.subr.bf16.mxu0 0
    %1356 = vmatpush1.bf16.msra.mxu0 %v1025
    %1357 = vmatprep.subr.bf16.mxu0 0
    %1358 = vmatpush2.bf16.msra.mxu0 0
    %1359 = vmatprep.subr.bf16.mxu0 0
    %1360 = vmatpush2.bf16.msra.mxu0 0
    %1361 = vmatprep.subr.bf16.mxu0 0
    %1362 = vmatpush2.bf16.msra.mxu0 0
    %1363 = vmatprep.subr.bf16.mxu0 0
    %1364 = vmatpush2.bf16.msra.mxu0 0
    %1365 = vmatprep.subr.bf16.mxu0 0
    %1366 = vmatpush2.bf16.msra.mxu0 0
    %1367 = vmatprep.subr.bf16.mxu0 0
    %1368 = vmatpush2.bf16.msra.mxu0 0
    %1369 = vmatprep.subr.bf16.mxu0 0
    %1370 = vmatpush2.bf16.msra.mxu0 0
    %1371 = vmatprep.subr.bf16.mxu0 0
    %1372 = vmatpush2.bf16.msra.mxu0 0
    %1373 = vmatprep.mubr.bf16.mxu0 0
    %1374 = vmatmul.mubr.bf16.gmra.mxu0 %v1284
    %v1375 = vpop.f32.mrf.mxu0
    %v1376 = vadd.f32 %v708, %v1375
    %v1377 = vpop.f32.mrf.mxu0
    %v1378 = vpop.f32.mrf.mxu0
    %v1379 = vadd.f32 %v708, %v1378
    %v1380 = vpop.f32.mrf.mxu0
    %1381 = vdwg.mxu0
    %v1382 = vmul.f32 %v1338, %v1376
    %v1383 = vmul.f32 %v1340, %v1379
    %v1384 = vadd.f32 %v833, %v1382
    %v1385 = vadd.f32 %v837, %v1383
    %v1386 = vtanh.pop %v1384
    %v1387 = vtanh.pop %v1385
    %v1388 = vsub.f32 %v1096, %v1386
    %v1389 = vsub.f32 %v1097, %v1387
    %1392 = vrot.lane.b32.xlu0 %v1388, 32
    %v1393 = vpop.permute.xlu0 %1392
    %1394 = vrot.lane.b32.xlu0 %v1389, 32
    %v1395 = vpop.permute.xlu0 %1394
    %v1398 = vmul.f32 %v1338, %v1393
    %v1399 = vmul.f32 %v1340, %v1395
    %1402 = vrot.lane.b32.xlu0 %v1398, 96
    %v1403 = vpop.permute.xlu0 %1402
    %1404 = vrot.lane.b32.xlu0 %v1399, 96
    %v1405 = vpop.permute.xlu0 %1404
    %v1408 = vadd.f32 %v1386, %v1403
    %v1409 = vadd.f32 %v1387, %v1405
    %v1410 = vpack.c.bf16 %v1269, %v1268
    %1412 = vrot.lane.b32.xlu0 %v1410, 96
    %v1413 = vpop.permute.xlu0 %1412
    %v1415 = vsel %vm761, %v1413, 0
    %1417 = vmatprep.subr.bf16.mxu0 0
    %1418 = vmatpush1.bf16.msra.mxu0 0
    %1419 = vmatprep.subr.bf16.mxu0 0
    %1420 = vmatpush1.bf16.msra.mxu0 0
    %1421 = vmatprep.subr.bf16.mxu0 0
    %1422 = vmatpush1.bf16.msra.mxu0 0
    %1423 = vmatprep.subr.bf16.mxu0 0
    %1424 = vmatpush1.bf16.msra.mxu0 0
    %1425 = vmatprep.subr.bf16.mxu0 0
    %1426 = vmatpush1.bf16.msra.mxu0 0
    %1427 = vmatprep.subr.bf16.mxu0 0
    %1428 = vmatpush1.bf16.msra.mxu0 0
    %1429 = vmatprep.subr.bf16.mxu0 0
    %1430 = vmatpush1.bf16.msra.mxu0 %v1107
    %1431 = vmatprep.subr.bf16.mxu0 0
    %1432 = vmatpush1.bf16.msra.mxu0 %v1106
    %1433 = vmatprep.subr.bf16.mxu0 0
    %1434 = vmatpush2.bf16.msra.mxu0 0
    %1435 = vmatprep.subr.bf16.mxu0 0
    %1436 = vmatpush2.bf16.msra.mxu0 0
    %1437 = vmatprep.subr.bf16.mxu0 0
    %1438 = vmatpush2.bf16.msra.mxu0 0
    %1439 = vmatprep.subr.bf16.mxu0 0
    %1440 = vmatpush2.bf16.msra.mxu0 0
    %1441 = vmatprep.subr.bf16.mxu0 0
    %1442 = vmatpush2.bf16.msra.mxu0 0
    %1443 = vmatprep.subr.bf16.mxu0 0
    %1444 = vmatpush2.bf16.msra.mxu0 0
    %1445 = vmatprep.subr.bf16.mxu0 0
    %1446 = vmatpush2.bf16.msra.mxu0 0
    %1447 = vmatprep.subr.bf16.mxu0 0
    %1448 = vmatpush2.bf16.msra.mxu0 0
    %1449 = vmatprep.mubr.bf16.mxu0 0
    %1450 = vmatmul.mubr.bf16.gmra.mxu0 %v1415
    %v1451 = vpop.f32.mrf.mxu0
    %v1452 = vadd.f32 0.0, %v1451
    %v1453 = vpop.f32.mrf.mxu0
    %v1454 = vpop.f32.mrf.mxu0
    %v1455 = vadd.f32 0.0, %v1454
    %v1456 = vpop.f32.mrf.mxu0
    %1457 = vdwg.mxu0
    %1460 = vrot.lane.b32.xlu0 %v1452, 64
    %v1461 = vpop.permute.xlu0 %1460
    %1462 = vrot.lane.b32.xlu0 %v1455, 64
    %v1463 = vpop.permute.xlu0 %1462
    %v1466 = vadd.f32 %v943, %v1461
    %v1467 = vadd.f32 %v944, %v1463
    %v1468 = vxor.u32 %v1466, 2147483648
    %v1469 = vxor.u32 %v1467, 2147483648
    %v1470 = vmul.f32 %v1468, 1.442695
    %v1471 = vpow.pop %v1470
    %v1472 = vmul.f32 %v1469, 1.442695
    %v1473 = vpow.pop %v1472
    %v1474 = vadd.f32 %v1471, 1.0
    %v1475 = vadd.f32 %v1473, 1.0
    %v1476 = vrcp.pop %v1474
    %v1477 = vmul.f32 1.0, %v1476
    %v1478 = vrcp.pop %v1475
    %v1479 = vmul.f32 1.0, %v1478
    %1480 = vmatprep.subr.bf16.mxu0 0
    %1481 = vmatpush1.bf16.msra.mxu0 0
    %1482 = vmatprep.subr.bf16.mxu0 0
    %1483 = vmatpush1.bf16.msra.mxu0 0
    %1484 = vmatprep.subr.bf16.mxu0 0
    %1485 = vmatpush1.bf16.msra.mxu0 0
    %1486 = vmatprep.subr.bf16.mxu0 0
    %1487 = vmatpush1.bf16.msra.mxu0 0
    %1488 = vmatprep.subr.bf16.mxu0 0
    %1489 = vmatpush1.bf16.msra.mxu0 0
    %1490 = vmatprep.subr.bf16.mxu0 0
    %1491 = vmatpush1.bf16.msra.mxu0 0
    %1492 = vmatprep.subr.bf16.mxu0 0
    %1493 = vmatpush1.bf16.msra.mxu0 %v1182
    %1494 = vmatprep.subr.bf16.mxu0 0
    %1495 = vmatpush1.bf16.msra.mxu0 %v1181
    %1496 = vmatprep.subr.bf16.mxu0 0
    %1497 = vmatpush2.bf16.msra.mxu0 0
    %1498 = vmatprep.subr.bf16.mxu0 0
    %1499 = vmatpush2.bf16.msra.mxu0 0
    %1500 = vmatprep.subr.bf16.mxu0 0
    %1501 = vmatpush2.bf16.msra.mxu0 0
    %1502 = vmatprep.subr.bf16.mxu0 0
    %1503 = vmatpush2.bf16.msra.mxu0 0
    %1504 = vmatprep.subr.bf16.mxu0 0
    %1505 = vmatpush2.bf16.msra.mxu0 0
    %1506 = vmatprep.subr.bf16.mxu0 0
    %1507 = vmatpush2.bf16.msra.mxu0 0
    %1508 = vmatprep.subr.bf16.mxu0 0
    %1509 = vmatpush2.bf16.msra.mxu0 0
    %1510 = vmatprep.subr.bf16.mxu0 0
    %1511 = vmatpush2.bf16.msra.mxu0 0
    %1512 = vmatprep.mubr.bf16.mxu0 0
    %1513 = vmatmul.mubr.bf16.gmra.mxu0 %v1415
    %v1514 = vpop.f32.mrf.mxu0
    %v1515 = vadd.f32 %v715, %v1514
    %v1516 = vpop.f32.mrf.mxu0
    %v1517 = vpop.f32.mrf.mxu0
    %v1518 = vadd.f32 %v715, %v1517
    %v1519 = vpop.f32.mrf.mxu0
    %1520 = vdwg.mxu0
    %1523 = vrot.lane.b32.xlu0 %v1515, 64
    %v1524 = vpop.permute.xlu0 %1523
    %1525 = vrot.lane.b32.xlu0 %v1518, 64
    %v1526 = vpop.permute.xlu0 %1525
    %v1529 = vmul.f32 %v1477, %v1524
    %v1530 = vmul.f32 %v1479, %v1526
    %1533 = vrot.lane.b32.xlu0 %v1529, 96
    %v1534 = vpop.permute.xlu0 %1533
    %1535 = vrot.lane.b32.xlu0 %v1530, 96
    %v1536 = vpop.permute.xlu0 %1535
    %v1539 = vadd.f32 %v883, %v1534
    %v1540 = vadd.f32 %v887, %v1536
    %v1541 = vtanh.pop %v1539
    %v1542 = vtanh.pop %v1540
    %v1543 = vsub.f32 %v1268, %v1541
    %v1544 = vsub.f32 %v1269, %v1542
    %1547 = vrot.lane.b32.xlu0 %v1543, 64
    %v1548 = vpop.permute.xlu0 %1547
    %1549 = vrot.lane.b32.xlu0 %v1544, 64
    %v1550 = vpop.permute.xlu0 %1549
    %v1553 = vmul.f32 %v1477, %v1548
    %v1554 = vmul.f32 %v1479, %v1550
    %1557 = vrot.lane.b32.xlu0 %v1553, 64
    %v1558 = vpop.permute.xlu0 %1557
    %1559 = vrot.lane.b32.xlu0 %v1554, 64
    %v1560 = vpop.permute.xlu0 %1559
    %v1563 = vadd.f32 %v1541, %v1558
    %v1564 = vadd.f32 %v1542, %v1560
    %1565 = vst.msk [vmem:[#allocation2 + $0x10] sm:$0xff] %vm761, %v1408
    %1566 = vst.msk [vmem:[#allocation2 + $0x18] sm:$0xff] %vm761, %v1409
    %1569 = vrot.lane.b32.xlu0 %v1563, 96
    %v1570 = vpop.permute.xlu0 %1569
    %1571 = vrot.lane.b32.xlu0 %v1564, 96
    %v1572 = vpop.permute.xlu0 %1571
    %1575 = vst.msk [vmem:[#allocation3 + $0x60] sm:$0xff] %vm761, %v1570
    %1576 = vst.msk [vmem:[#allocation3 + $0x68] sm:$0xff] %vm761, %v1572
    %v1577 = vpack.c.bf16 %v1409, %v1408
    %v1579 = vsel %vm761, %v1577, 0
    %1581 = vmatprep.subr.bf16.mxu0 0
    %1582 = vmatpush1.bf16.msra.mxu0 0
    %1583 = vmatprep.subr.bf16.mxu0 0
    %1584 = vmatpush1.bf16.msra.mxu0 0
    %1585 = vmatprep.subr.bf16.mxu0 0
    %1586 = vmatpush1.bf16.msra.mxu0 0
    %1587 = vmatprep.subr.bf16.mxu0 0
    %1588 = vmatpush1.bf16.msra.mxu0 0
    %1589 = vmatprep.subr.bf16.mxu0 0
    %1590 = vmatpush1.bf16.msra.mxu0 0
    %1591 = vmatprep.subr.bf16.mxu0 0
    %1592 = vmatpush1.bf16.msra.mxu0 0
    %1593 = vmatprep.subr.bf16.mxu0 0
    %1594 = vmatpush1.bf16.msra.mxu0 %v956
    %1595 = vmatprep.subr.bf16.mxu0 0
    %1596 = vmatpush1.bf16.msra.mxu0 %v955
    %1597 = vmatprep.subr.bf16.mxu0 0
    %1598 = vmatpush2.bf16.msra.mxu0 0
    %1599 = vmatprep.subr.bf16.mxu0 0
    %1600 = vmatpush2.bf16.msra.mxu0 0
    %1601 = vmatprep.subr.bf16.mxu0 0
    %1602 = vmatpush2.bf16.msra.mxu0 0
    %1603 = vmatprep.subr.bf16.mxu0 0
    %1604 = vmatpush2.bf16.msra.mxu0 0
    %1605 = vmatprep.subr.bf16.mxu0 0
    %1606 = vmatpush2.bf16.msra.mxu0 0
    %1607 = vmatprep.subr.bf16.mxu0 0
    %1608 = vmatpush2.bf16.msra.mxu0 0
    %1609 = vmatprep.subr.bf16.mxu0 0
    %1610 = vmatpush2.bf16.msra.mxu0 0
    %1611 = vmatprep.subr.bf16.mxu0 0
    %1612 = vmatpush2.bf16.msra.mxu0 0
    %1613 = vmatprep.mubr.bf16.mxu0 0
    %1614 = vmatmul.mubr.bf16.gmra.mxu0 %v1579
    %v1615 = vpop.f32.mrf.mxu0
    %v1616 = vadd.f32 0.0, %v1615
    %v1617 = vpop.f32.mrf.mxu0
    %v1618 = vpop.f32.mrf.mxu0
    %v1619 = vadd.f32 0.0, %v1618
    %v1620 = vpop.f32.mrf.mxu0
    %1621 = vdwg.mxu0
    %v1622 = vadd.f32 %v910, %v1616
    %v1623 = vadd.f32 %v911, %v1619
    %v1624 = vxor.u32 %v1622, 2147483648
    %v1625 = vxor.u32 %v1623, 2147483648
    %v1626 = vmul.f32 %v1624, 1.442695
    %v1627 = vpow.pop %v1626
    %v1628 = vmul.f32 %v1625, 1.442695
    %v1629 = vpow.pop %v1628
    %v1630 = vadd.f32 %v1627, 1.0
    %v1631 = vadd.f32 %v1629, 1.0
    %v1632 = vrcp.pop %v1630
    %v1633 = vmul.f32 1.0, %v1632
    %v1634 = vrcp.pop %v1631
    %v1635 = vmul.f32 1.0, %v1634
    %1636 = vmatprep.subr.bf16.mxu0 0
    %1637 = vmatpush1.bf16.msra.mxu0 0
    %1638 = vmatprep.subr.bf16.mxu0 0
    %1639 = vmatpush1.bf16.msra.mxu0 0
    %1640 = vmatprep.subr.bf16.mxu0 0
    %1641 = vmatpush1.bf16.msra.mxu0 0
    %1642 = vmatprep.subr.bf16.mxu0 0
    %1643 = vmatpush1.bf16.msra.mxu0 0
    %1644 = vmatprep.subr.bf16.mxu0 0
    %1645 = vmatpush1.bf16.msra.mxu0 0
    %1646 = vmatprep.subr.bf16.mxu0 0
    %1647 = vmatpush1.bf16.msra.mxu0 0
    %1648 = vmatprep.subr.bf16.mxu0 0
    %1649 = vmatpush1.bf16.msra.mxu0 %v1026
    %1650 = vmatprep.subr.bf16.mxu0 0
    %1651 = vmatpush1.bf16.msra.mxu0 %v1025
    %1652 = vmatprep.subr.bf16.mxu0 0
    %1653 = vmatpush2.bf16.msra.mxu0 0
    %1654 = vmatprep.subr.bf16.mxu0 0
    %1655 = vmatpush2.bf16.msra.mxu0 0
    %1656 = vmatprep.subr.bf16.mxu0 0
    %1657 = vmatpush2.bf16.msra.mxu0 0
    %1658 = vmatprep.subr.bf16.mxu0 0
    %1659 = vmatpush2.bf16.msra.mxu0 0
    %1660 = vmatprep.subr.bf16.mxu0 0
    %1661 = vmatpush2.bf16.msra.mxu0 0
    %1662 = vmatprep.subr.bf16.mxu0 0
    %1663 = vmatpush2.bf16.msra.mxu0 0
    %1664 = vmatprep.subr.bf16.mxu0 0
    %1665 = vmatpush2.bf16.msra.mxu0 0
    %1666 = vmatprep.subr.bf16.mxu0 0
    %1667 = vmatpush2.bf16.msra.mxu0 0
    %1668 = vmatprep.mubr.bf16.mxu0 0
    %1669 = vmatmul.mubr.bf16.gmra.mxu0 %v1579
    %v1670 = vpop.f32.mrf.mxu0
    %v1671 = vadd.f32 %v708, %v1670
    %v1672 = vpop.f32.mrf.mxu0
    %v1673 = vpop.f32.mrf.mxu0
    %v1674 = vadd.f32 %v708, %v1673
    %v1675 = vpop.f32.mrf.mxu0
    %1676 = vdwg.mxu0
    %v1677 = vmul.f32 %v1633, %v1671
    %v1678 = vmul.f32 %v1635, %v1674
    %v1679 = vadd.f32 %v843, %v1677
    %v1680 = vadd.f32 %v847, %v1678
    %v1681 = vtanh.pop %v1679
    %v1682 = vtanh.pop %v1680
    %v1683 = vsub.f32 %v1408, %v1681
    %v1684 = vsub.f32 %v1409, %v1682
    %1687 = vrot.lane.b32.xlu0 %v1683, 32
    %v1688 = vpop.permute.xlu0 %1687
    %1689 = vrot.lane.b32.xlu0 %v1684, 32
    %v1690 = vpop.permute.xlu0 %1689
    %v1693 = vmul.f32 %v1633, %v1688
    %v1694 = vmul.f32 %v1635, %v1690
    %1697 = vrot.lane.b32.xlu0 %v1693, 96
    %v1698 = vpop.permute.xlu0 %1697
    %1699 = vrot.lane.b32.xlu0 %v1694, 96
    %v1700 = vpop.permute.xlu0 %1699
    %v1703 = vadd.f32 %v1681, %v1698
    %v1704 = vadd.f32 %v1682, %v1700
    %v1705 = vpack.c.bf16 %v1564, %v1563
    %1707 = vrot.lane.b32.xlu0 %v1705, 96
    %v1708 = vpop.permute.xlu0 %1707
    %v1710 = vsel %vm761, %v1708, 0
    %1712 = vmatprep.subr.bf16.mxu0 0
    %1713 = vmatpush1.bf16.msra.mxu0 0
    %1714 = vmatprep.subr.bf16.mxu0 0
    %1715 = vmatpush1.bf16.msra.mxu0 0
    %1716 = vmatprep.subr.bf16.mxu0 0
    %1717 = vmatpush1.bf16.msra.mxu0 0
    %1718 = vmatprep.subr.bf16.mxu0 0
    %1719 = vmatpush1.bf16.msra.mxu0 0
    %1720 = vmatprep.subr.bf16.mxu0 0
    %1721 = vmatpush1.bf16.msra.mxu0 0
    %1722 = vmatprep.subr.bf16.mxu0 0
    %1723 = vmatpush1.bf16.msra.mxu0 0
    %1724 = vmatprep.subr.bf16.mxu0 0
    %1725 = vmatpush1.bf16.msra.mxu0 %v1107
    %1726 = vmatprep.subr.bf16.mxu0 0
    %1727 = vmatpush1.bf16.msra.mxu0 %v1106
    %1728 = vmatprep.subr.bf16.mxu0 0
    %1729 = vmatpush2.bf16.msra.mxu0 0
    %1730 = vmatprep.subr.bf16.mxu0 0
    %1731 = vmatpush2.bf16.msra.mxu0 0
    %1732 = vmatprep.subr.bf16.mxu0 0
    %1733 = vmatpush2.bf16.msra.mxu0 0
    %1734 = vmatprep.subr.bf16.mxu0 0
    %1735 = vmatpush2.bf16.msra.mxu0 0
    %1736 = vmatprep.subr.bf16.mxu0 0
    %1737 = vmatpush2.bf16.msra.mxu0 0
    %1738 = vmatprep.subr.bf16.mxu0 0
    %1739 = vmatpush2.bf16.msra.mxu0 0
    %1740 = vmatprep.subr.bf16.mxu0 0
    %1741 = vmatpush2.bf16.msra.mxu0 0
    %1742 = vmatprep.subr.bf16.mxu0 0
    %1743 = vmatpush2.bf16.msra.mxu0 0
    %1744 = vmatprep.mubr.bf16.mxu0 0
    %1745 = vmatmul.mubr.bf16.gmra.mxu0 %v1710
    %v1746 = vpop.f32.mrf.mxu0
    %v1747 = vadd.f32 0.0, %v1746
    %v1748 = vpop.f32.mrf.mxu0
    %v1749 = vpop.f32.mrf.mxu0
    %v1750 = vadd.f32 0.0, %v1749
    %v1751 = vpop.f32.mrf.mxu0
    %1752 = vdwg.mxu0
    %1755 = vrot.lane.b32.xlu0 %v1747, 64
    %v1756 = vpop.permute.xlu0 %1755
    %1757 = vrot.lane.b32.xlu0 %v1750, 64
    %v1758 = vpop.permute.xlu0 %1757
    %v1761 = vadd.f32 %v941, %v1756
    %v1762 = vadd.f32 %v942, %v1758
    %v1763 = vxor.u32 %v1761, 2147483648
    %v1764 = vxor.u32 %v1762, 2147483648
    %v1765 = vmul.f32 %v1763, 1.442695
    %v1766 = vpow.pop %v1765
    %v1767 = vmul.f32 %v1764, 1.442695
    %v1768 = vpow.pop %v1767
    %v1769 = vadd.f32 %v1766, 1.0
    %v1770 = vadd.f32 %v1768, 1.0
    %v1771 = vrcp.pop %v1769
    %v1772 = vmul.f32 1.0, %v1771
    %v1773 = vrcp.pop %v1770
    %v1774 = vmul.f32 1.0, %v1773
    %1775 = vmatprep.subr.bf16.mxu0 0
    %1776 = vmatpush1.bf16.msra.mxu0 0
    %1777 = vmatprep.subr.bf16.mxu0 0
    %1778 = vmatpush1.bf16.msra.mxu0 0
    %1779 = vmatprep.subr.bf16.mxu0 0
    %1780 = vmatpush1.bf16.msra.mxu0 0
    %1781 = vmatprep.subr.bf16.mxu0 0
    %1782 = vmatpush1.bf16.msra.mxu0 0
    %1783 = vmatprep.subr.bf16.mxu0 0
    %1784 = vmatpush1.bf16.msra.mxu0 0
    %1785 = vmatprep.subr.bf16.mxu0 0
    %1786 = vmatpush1.bf16.msra.mxu0 0
    %1787 = vmatprep.subr.bf16.mxu0 0
    %1788 = vmatpush1.bf16.msra.mxu0 %v1182
    %1789 = vmatprep.subr.bf16.mxu0 0
    %1790 = vmatpush1.bf16.msra.mxu0 %v1181
    %1791 = vmatprep.subr.bf16.mxu0 0
    %1792 = vmatpush2.bf16.msra.mxu0 0
    %1793 = vmatprep.subr.bf16.mxu0 0
    %1794 = vmatpush2.bf16.msra.mxu0 0
    %1795 = vmatprep.subr.bf16.mxu0 0
    %1796 = vmatpush2.bf16.msra.mxu0 0
    %1797 = vmatprep.subr.bf16.mxu0 0
    %1798 = vmatpush2.bf16.msra.mxu0 0
    %1799 = vmatprep.subr.bf16.mxu0 0
    %1800 = vmatpush2.bf16.msra.mxu0 0
    %1801 = vmatprep.subr.bf16.mxu0 0
    %1802 = vmatpush2.bf16.msra.mxu0 0
    %1803 = vmatprep.subr.bf16.mxu0 0
    %1804 = vmatpush2.bf16.msra.mxu0 0
    %1805 = vmatprep.subr.bf16.mxu0 0
    %1806 = vmatpush2.bf16.msra.mxu0 0
    %1807 = vmatprep.mubr.bf16.mxu0 0
    %1808 = vmatmul.mubr.bf16.gmra.mxu0 %v1710
    %v1809 = vpop.f32.mrf.mxu0
    %v1810 = vadd.f32 %v715, %v1809
    %v1811 = vpop.f32.mrf.mxu0
    %v1812 = vpop.f32.mrf.mxu0
    %v1813 = vadd.f32 %v715, %v1812
    %v1814 = vpop.f32.mrf.mxu0
    %1815 = vdwg.mxu0
    %1818 = vrot.lane.b32.xlu0 %v1810, 64
    %v1819 = vpop.permute.xlu0 %1818
    %1820 = vrot.lane.b32.xlu0 %v1813, 64
    %v1821 = vpop.permute.xlu0 %1820
    %v1824 = vmul.f32 %v1772, %v1819
    %v1825 = vmul.f32 %v1774, %v1821
    %1828 = vrot.lane.b32.xlu0 %v1824, 96
    %v1829 = vpop.permute.xlu0 %1828
    %1830 = vrot.lane.b32.xlu0 %v1825, 96
    %v1831 = vpop.permute.xlu0 %1830
    %v1834 = vadd.f32 %v873, %v1829
    %v1835 = vadd.f32 %v877, %v1831
    %v1836 = vtanh.pop %v1834
    %v1837 = vtanh.pop %v1835
    %v1838 = vsub.f32 %v1563, %v1836
    %v1839 = vsub.f32 %v1564, %v1837
    %1842 = vrot.lane.b32.xlu0 %v1838, 64
    %v1843 = vpop.permute.xlu0 %1842
    %1844 = vrot.lane.b32.xlu0 %v1839, 64
    %v1845 = vpop.permute.xlu0 %1844
    %v1848 = vmul.f32 %v1772, %v1843
    %v1849 = vmul.f32 %v1774, %v1845
    %1852 = vrot.lane.b32.xlu0 %v1848, 64
    %v1853 = vpop.permute.xlu0 %1852
    %1854 = vrot.lane.b32.xlu0 %v1849, 64
    %v1855 = vpop.permute.xlu0 %1854
    %v1858 = vadd.f32 %v1836, %v1853
    %v1859 = vadd.f32 %v1837, %v1855
    %1860 = vst.msk [vmem:[#allocation2 + $0x20] sm:$0xff] %vm761, %v1703
    %1861 = vst.msk [vmem:[#allocation2 + $0x28] sm:$0xff] %vm761, %v1704
    %1864 = vrot.lane.b32.xlu0 %v1858, 96
    %v1865 = vpop.permute.xlu0 %1864
    %1866 = vrot.lane.b32.xlu0 %v1859, 96
    %v1867 = vpop.permute.xlu0 %1866
    %1870 = vst.msk [vmem:[#allocation3 + $0x50] sm:$0xff] %vm761, %v1865
    %1871 = vst.msk [vmem:[#allocation3 + $0x58] sm:$0xff] %vm761, %v1867
    %v1872 = vpack.c.bf16 %v1704, %v1703
    %v1874 = vsel %vm761, %v1872, 0
    %1876 = vmatprep.subr.bf16.mxu0 0
    %1877 = vmatpush1.bf16.msra.mxu0 0
    %1878 = vmatprep.subr.bf16.mxu0 0
    %1879 = vmatpush1.bf16.msra.mxu0 0
    %1880 = vmatprep.subr.bf16.mxu0 0
    %1881 = vmatpush1.bf16.msra.mxu0 0
    %1882 = vmatprep.subr.bf16.mxu0 0
    %1883 = vmatpush1.bf16.msra.mxu0 0
    %1884 = vmatprep.subr.bf16.mxu0 0
    %1885 = vmatpush1.bf16.msra.mxu0 0
    %1886 = vmatprep.subr.bf16.mxu0 0
    %1887 = vmatpush1.bf16.msra.mxu0 0
    %1888 = vmatprep.subr.bf16.mxu0 0
    %1889 = vmatpush1.bf16.msra.mxu0 %v956
    %1890 = vmatprep.subr.bf16.mxu0 0
    %1891 = vmatpush1.bf16.msra.mxu0 %v955
    %1892 = vmatprep.subr.bf16.mxu0 0
    %1893 = vmatpush2.bf16.msra.mxu0 0
    %1894 = vmatprep.subr.bf16.mxu0 0
    %1895 = vmatpush2.bf16.msra.mxu0 0
    %1896 = vmatprep.subr.bf16.mxu0 0
    %1897 = vmatpush2.bf16.msra.mxu0 0
    %1898 = vmatprep.subr.bf16.mxu0 0
    %1899 = vmatpush2.bf16.msra.mxu0 0
    %1900 = vmatprep.subr.bf16.mxu0 0
    %1901 = vmatpush2.bf16.msra.mxu0 0
    %1902 = vmatprep.subr.bf16.mxu0 0
    %1903 = vmatpush2.bf16.msra.mxu0 0
    %1904 = vmatprep.subr.bf16.mxu0 0
    %1905 = vmatpush2.bf16.msra.mxu0 0
    %1906 = vmatprep.subr.bf16.mxu0 0
    %1907 = vmatpush2.bf16.msra.mxu0 0
    %1908 = vmatprep.mubr.bf16.mxu0 0
    %1909 = vmatmul.mubr.bf16.gmra.mxu0 %v1874
    %v1910 = vpop.f32.mrf.mxu0
    %v1911 = vadd.f32 0.0, %v1910
    %v1912 = vpop.f32.mrf.mxu0
    %v1913 = vpop.f32.mrf.mxu0
    %v1914 = vadd.f32 0.0, %v1913
    %v1915 = vpop.f32.mrf.mxu0
    %1916 = vdwg.mxu0
    %v1917 = vadd.f32 %v912, %v1911
    %v1918 = vadd.f32 %v913, %v1914
    %v1919 = vxor.u32 %v1917, 2147483648
    %v1920 = vxor.u32 %v1918, 2147483648
    %v1921 = vmul.f32 %v1919, 1.442695
    %v1922 = vpow.pop %v1921
    %v1923 = vmul.f32 %v1920, 1.442695
    %v1924 = vpow.pop %v1923
    %v1925 = vadd.f32 %v1922, 1.0
    %v1926 = vadd.f32 %v1924, 1.0
    %v1927 = vrcp.pop %v1925
    %v1928 = vmul.f32 1.0, %v1927
    %v1929 = vrcp.pop %v1926
    %v1930 = vmul.f32 1.0, %v1929
    %1931 = vmatprep.subr.bf16.mxu0 0
    %1932 = vmatpush1.bf16.msra.mxu0 0
    %1933 = vmatprep.subr.bf16.mxu0 0
    %1934 = vmatpush1.bf16.msra.mxu0 0
    %1935 = vmatprep.subr.bf16.mxu0 0
    %1936 = vmatpush1.bf16.msra.mxu0 0
    %1937 = vmatprep.subr.bf16.mxu0 0
    %1938 = vmatpush1.bf16.msra.mxu0 0
    %1939 = vmatprep.subr.bf16.mxu0 0
    %1940 = vmatpush1.bf16.msra.mxu0 0
    %1941 = vmatprep.subr.bf16.mxu0 0
    %1942 = vmatpush1.bf16.msra.mxu0 0
    %1943 = vmatprep.subr.bf16.mxu0 0
    %1944 = vmatpush1.bf16.msra.mxu0 %v1026
    %1945 = vmatprep.subr.bf16.mxu0 0
    %1946 = vmatpush1.bf16.msra.mxu0 %v1025
    %1947 = vmatprep.subr.bf16.mxu0 0
    %1948 = vmatpush2.bf16.msra.mxu0 0
    %1949 = vmatprep.subr.bf16.mxu0 0
    %1950 = vmatpush2.bf16.msra.mxu0 0
    %1951 = vmatprep.subr.bf16.mxu0 0
    %1952 = vmatpush2.bf16.msra.mxu0 0
    %1953 = vmatprep.subr.bf16.mxu0 0
    %1954 = vmatpush2.bf16.msra.mxu0 0
    %1955 = vmatprep.subr.bf16.mxu0 0
    %1956 = vmatpush2.bf16.msra.mxu0 0
    %1957 = vmatprep.subr.bf16.mxu0 0
    %1958 = vmatpush2.bf16.msra.mxu0 0
    %1959 = vmatprep.subr.bf16.mxu0 0
    %1960 = vmatpush2.bf16.msra.mxu0 0
    %1961 = vmatprep.subr.bf16.mxu0 0
    %1962 = vmatpush2.bf16.msra.mxu0 0
    %1963 = vmatprep.mubr.bf16.mxu0 0
    %1964 = vmatmul.mubr.bf16.gmra.mxu0 %v1874
    %v1965 = vpop.f32.mrf.mxu0
    %v1966 = vadd.f32 %v708, %v1965
    %v1967 = vpop.f32.mrf.mxu0
    %v1968 = vpop.f32.mrf.mxu0
    %v1969 = vadd.f32 %v708, %v1968
    %v1970 = vpop.f32.mrf.mxu0
    %1971 = vdwg.mxu0
    %v1972 = vmul.f32 %v1928, %v1966
    %v1973 = vmul.f32 %v1930, %v1969
    %v1974 = vadd.f32 %v853, %v1972
    %v1975 = vadd.f32 %v857, %v1973
    %v1976 = vtanh.pop %v1974
    %v1977 = vtanh.pop %v1975
    %v1978 = vsub.f32 %v1703, %v1976
    %v1979 = vsub.f32 %v1704, %v1977
    %1982 = vrot.lane.b32.xlu0 %v1978, 32
    %v1983 = vpop.permute.xlu0 %1982
    %1984 = vrot.lane.b32.xlu0 %v1979, 32
    %v1985 = vpop.permute.xlu0 %1984
    %v1988 = vmul.f32 %v1928, %v1983
    %v1989 = vmul.f32 %v1930, %v1985
    %1992 = vrot.lane.b32.xlu0 %v1988, 96
    %v1993 = vpop.permute.xlu0 %1992
    %1994 = vrot.lane.b32.xlu0 %v1989, 96
    %v1995 = vpop.permute.xlu0 %1994
    %v1998 = vadd.f32 %v1976, %v1993
    %v1999 = vadd.f32 %v1977, %v1995
    %v2000 = vpack.c.bf16 %v1859, %v1858
    %2002 = vrot.lane.b32.xlu0 %v2000, 96
    %v2003 = vpop.permute.xlu0 %2002
    %v2005 = vsel %vm761, %v2003, 0
    %2007 = vmatprep.subr.bf16.mxu0 0
    %2008 = vmatpush1.bf16.msra.mxu0 0
    %2009 = vmatprep.subr.bf16.mxu0 0
    %2010 = vmatpush1.bf16.msra.mxu0 0
    %2011 = vmatprep.subr.bf16.mxu0 0
    %2012 = vmatpush1.bf16.msra.mxu0 0
    %2013 = vmatprep.subr.bf16.mxu0 0
    %2014 = vmatpush1.bf16.msra.mxu0 0
    %2015 = vmatprep.subr.bf16.mxu0 0
    %2016 = vmatpush1.bf16.msra.mxu0 0
    %2017 = vmatprep.subr.bf16.mxu0 0
    %2018 = vmatpush1.bf16.msra.mxu0 0
    %2019 = vmatprep.subr.bf16.mxu0 0
    %2020 = vmatpush1.bf16.msra.mxu0 %v1107
    %2021 = vmatprep.subr.bf16.mxu0 0
    %2022 = vmatpush1.bf16.msra.mxu0 %v1106
    %2023 = vmatprep.subr.bf16.mxu0 0
    %2024 = vmatpush2.bf16.msra.mxu0 0
    %2025 = vmatprep.subr.bf16.mxu0 0
    %2026 = vmatpush2.bf16.msra.mxu0 0
    %2027 = vmatprep.subr.bf16.mxu0 0
    %2028 = vmatpush2.bf16.msra.mxu0 0
    %2029 = vmatprep.subr.bf16.mxu0 0
    %2030 = vmatpush2.bf16.msra.mxu0 0
    %2031 = vmatprep.subr.bf16.mxu0 0
    %2032 = vmatpush2.bf16.msra.mxu0 0
    %2033 = vmatprep.subr.bf16.mxu0 0
    %2034 = vmatpush2.bf16.msra.mxu0 0
    %2035 = vmatprep.subr.bf16.mxu0 0
    %2036 = vmatpush2.bf16.msra.mxu0 0
    %2037 = vmatprep.subr.bf16.mxu0 0
    %2038 = vmatpush2.bf16.msra.mxu0 0
    %2039 = vmatprep.mubr.bf16.mxu0 0
    %2040 = vmatmul.mubr.bf16.gmra.mxu0 %v2005
    %v2041 = vpop.f32.mrf.mxu0
    %v2042 = vadd.f32 0.0, %v2041
    %v2043 = vpop.f32.mrf.mxu0
    %v2044 = vpop.f32.mrf.mxu0
    %v2045 = vadd.f32 0.0, %v2044
    %v2046 = vpop.f32.mrf.mxu0
    %2047 = vdwg.mxu0
    %2050 = vrot.lane.b32.xlu0 %v2042, 64
    %v2051 = vpop.permute.xlu0 %2050
    %2052 = vrot.lane.b32.xlu0 %v2045, 64
    %v2053 = vpop.permute.xlu0 %2052
    %v2056 = vadd.f32 %v939, %v2051
    %v2057 = vadd.f32 %v940, %v2053
    %v2058 = vxor.u32 %v2056, 2147483648
    %v2059 = vxor.u32 %v2057, 2147483648
    %v2060 = vmul.f32 %v2058, 1.442695
    %v2061 = vpow.pop %v2060
    %v2062 = vmul.f32 %v2059, 1.442695
    %v2063 = vpow.pop %v2062
    %v2064 = vadd.f32 %v2061, 1.0
    %v2065 = vadd.f32 %v2063, 1.0
    %v2066 = vrcp.pop %v2064
    %v2067 = vmul.f32 1.0, %v2066
    %v2068 = vrcp.pop %v2065
    %v2069 = vmul.f32 1.0, %v2068
    %2070 = vmatprep.subr.bf16.mxu0 0
    %2071 = vmatpush1.bf16.msra.mxu0 0
    %2072 = vmatprep.subr.bf16.mxu0 0
    %2073 = vmatpush1.bf16.msra.mxu0 0
    %2074 = vmatprep.subr.bf16.mxu0 0
    %2075 = vmatpush1.bf16.msra.mxu0 0
    %2076 = vmatprep.subr.bf16.mxu0 0
    %2077 = vmatpush1.bf16.msra.mxu0 0
    %2078 = vmatprep.subr.bf16.mxu0 0
    %2079 = vmatpush1.bf16.msra.mxu0 0
    %2080 = vmatprep.subr.bf16.mxu0 0
    %2081 = vmatpush1.bf16.msra.mxu0 0
    %2082 = vmatprep.subr.bf16.mxu0 0
    %2083 = vmatpush1.bf16.msra.mxu0 %v1182
    %2084 = vmatprep.subr.bf16.mxu0 0
    %2085 = vmatpush1.bf16.msra.mxu0 %v1181
    %2086 = vmatprep.subr.bf16.mxu0 0
    %2087 = vmatpush2.bf16.msra.mxu0 0
    %2088 = vmatprep.subr.bf16.mxu0 0
    %2089 = vmatpush2.bf16.msra.mxu0 0
    %2090 = vmatprep.subr.bf16.mxu0 0
    %2091 = vmatpush2.bf16.msra.mxu0 0
    %2092 = vmatprep.subr.bf16.mxu0 0
    %2093 = vmatpush2.bf16.msra.mxu0 0
    %2094 = vmatprep.subr.bf16.mxu0 0
    %2095 = vmatpush2.bf16.msra.mxu0 0
    %2096 = vmatprep.subr.bf16.mxu0 0
    %2097 = vmatpush2.bf16.msra.mxu0 0
    %2098 = vmatprep.subr.bf16.mxu0 0
    %2099 = vmatpush2.bf16.msra.mxu0 0
    %2100 = vmatprep.subr.bf16.mxu0 0
    %2101 = vmatpush2.bf16.msra.mxu0 0
    %2102 = vmatprep.mubr.bf16.mxu0 0
    %2103 = vmatmul.mubr.bf16.gmra.mxu0 %v2005
    %v2104 = vpop.f32.mrf.mxu0
    %v2105 = vadd.f32 %v715, %v2104
    %v2106 = vpop.f32.mrf.mxu0
    %v2107 = vpop.f32.mrf.mxu0
    %v2108 = vadd.f32 %v715, %v2107
    %v2109 = vpop.f32.mrf.mxu0
    %2110 = vdwg.mxu0
    %2113 = vrot.lane.b32.xlu0 %v2105, 64
    %v2114 = vpop.permute.xlu0 %2113
    %2115 = vrot.lane.b32.xlu0 %v2108, 64
    %v2116 = vpop.permute.xlu0 %2115
    %v2119 = vmul.f32 %v2067, %v2114
    %v2120 = vmul.f32 %v2069, %v2116
    %2123 = vrot.lane.b32.xlu0 %v2119, 96
    %v2124 = vpop.permute.xlu0 %2123
    %2125 = vrot.lane.b32.xlu0 %v2120, 96
    %v2126 = vpop.permute.xlu0 %2125
    %v2129 = vadd.f32 %v863, %v2124
    %v2130 = vadd.f32 %v867, %v2126
    %v2131 = vtanh.pop %v2129
    %v2132 = vtanh.pop %v2130
    %v2133 = vsub.f32 %v1858, %v2131
    %v2134 = vsub.f32 %v1859, %v2132
    %2137 = vrot.lane.b32.xlu0 %v2133, 64
    %v2138 = vpop.permute.xlu0 %2137
    %2139 = vrot.lane.b32.xlu0 %v2134, 64
    %v2140 = vpop.permute.xlu0 %2139
    %v2143 = vmul.f32 %v2067, %v2138
    %v2144 = vmul.f32 %v2069, %v2140
    %2147 = vrot.lane.b32.xlu0 %v2143, 64
    %v2148 = vpop.permute.xlu0 %2147
    %2149 = vrot.lane.b32.xlu0 %v2144, 64
    %v2150 = vpop.permute.xlu0 %2149
    %v2153 = vadd.f32 %v2131, %v2148
    %v2154 = vadd.f32 %v2132, %v2150
    %2155 = vst.msk [vmem:[#allocation2 + $0x30] sm:$0xff] %vm761, %v1998
    %2156 = vst.msk [vmem:[#allocation2 + $0x38] sm:$0xff] %vm761, %v1999
    %2159 = vrot.lane.b32.xlu0 %v2153, 96
    %v2160 = vpop.permute.xlu0 %2159
    %2161 = vrot.lane.b32.xlu0 %v2154, 96
    %v2162 = vpop.permute.xlu0 %2161
    %2165 = vst.msk [vmem:[#allocation3 + $0x40] sm:$0xff] %vm761, %v2160
    %2166 = vst.msk [vmem:[#allocation3 + $0x48] sm:$0xff] %vm761, %v2162
    %v2167 = vpack.c.bf16 %v1999, %v1998
    %v2169 = vsel %vm761, %v2167, 0
    %2171 = vmatprep.subr.bf16.mxu0 0
    %2172 = vmatpush1.bf16.msra.mxu0 0
    %2173 = vmatprep.subr.bf16.mxu0 0
    %2174 = vmatpush1.bf16.msra.mxu0 0
    %2175 = vmatprep.subr.bf16.mxu0 0
    %2176 = vmatpush1.bf16.msra.mxu0 0
    %2177 = vmatprep.subr.bf16.mxu0 0
    %2178 = vmatpush1.bf16.msra.mxu0 0
    %2179 = vmatprep.subr.bf16.mxu0 0
    %2180 = vmatpush1.bf16.msra.mxu0 0
    %2181 = vmatprep.subr.bf16.mxu0 0
    %2182 = vmatpush1.bf16.msra.mxu0 0
    %2183 = vmatprep.subr.bf16.mxu0 0
    %2184 = vmatpush1.bf16.msra.mxu0 %v956
    %2185 = vmatprep.subr.bf16.mxu0 0
    %2186 = vmatpush1.bf16.msra.mxu0 %v955
    %2187 = vmatprep.subr.bf16.mxu0 0
    %2188 = vmatpush2.bf16.msra.mxu0 0
    %2189 = vmatprep.subr.bf16.mxu0 0
    %2190 = vmatpush2.bf16.msra.mxu0 0
    %2191 = vmatprep.subr.bf16.mxu0 0
    %2192 = vmatpush2.bf16.msra.mxu0 0
    %2193 = vmatprep.subr.bf16.mxu0 0
    %2194 = vmatpush2.bf16.msra.mxu0 0
    %2195 = vmatprep.subr.bf16.mxu0 0
    %2196 = vmatpush2.bf16.msra.mxu0 0
    %2197 = vmatprep.subr.bf16.mxu0 0
    %2198 = vmatpush2.bf16.msra.mxu0 0
    %2199 = vmatprep.subr.bf16.mxu0 0
    %2200 = vmatpush2.bf16.msra.mxu0 0
    %2201 = vmatprep.subr.bf16.mxu0 0
    %2202 = vmatpush2.bf16.msra.mxu0 0
    %2203 = vmatprep.mubr.bf16.mxu0 0
    %2204 = vmatmul.mubr.bf16.gmra.mxu0 %v2169
    %v2205 = vpop.f32.mrf.mxu0
    %v2206 = vadd.f32 0.0, %v2205
    %v2207 = vpop.f32.mrf.mxu0
    %v2208 = vpop.f32.mrf.mxu0
    %v2209 = vadd.f32 0.0, %v2208
    %v2210 = vpop.f32.mrf.mxu0
    %2211 = vdwg.mxu0
    %v2212 = vadd.f32 %v914, %v2206
    %v2213 = vadd.f32 %v915, %v2209
    %v2214 = vxor.u32 %v2212, 2147483648
    %v2215 = vxor.u32 %v2213, 2147483648
    %v2216 = vmul.f32 %v2214, 1.442695
    %v2217 = vpow.pop %v2216
    %v2218 = vmul.f32 %v2215, 1.442695
    %v2219 = vpow.pop %v2218
    %v2220 = vadd.f32 %v2217, 1.0
    %v2221 = vadd.f32 %v2219, 1.0
    %v2222 = vrcp.pop %v2220
    %v2223 = vmul.f32 1.0, %v2222
    %v2224 = vrcp.pop %v2221
    %v2225 = vmul.f32 1.0, %v2224
    %2226 = vmatprep.subr.bf16.mxu0 0
    %2227 = vmatpush1.bf16.msra.mxu0 0
    %2228 = vmatprep.subr.bf16.mxu0 0
    %2229 = vmatpush1.bf16.msra.mxu0 0
    %2230 = vmatprep.subr.bf16.mxu0 0
    %2231 = vmatpush1.bf16.msra.mxu0 0
    %2232 = vmatprep.subr.bf16.mxu0 0
    %2233 = vmatpush1.bf16.msra.mxu0 0
    %2234 = vmatprep.subr.bf16.mxu0 0
    %2235 = vmatpush1.bf16.msra.mxu0 0
    %2236 = vmatprep.subr.bf16.mxu0 0
    %2237 = vmatpush1.bf16.msra.mxu0 0
    %2238 = vmatprep.subr.bf16.mxu0 0
    %2239 = vmatpush1.bf16.msra.mxu0 %v1026
    %2240 = vmatprep.subr.bf16.mxu0 0
    %2241 = vmatpush1.bf16.msra.mxu0 %v1025
    %2242 = vmatprep.subr.bf16.mxu0 0
    %2243 = vmatpush2.bf16.msra.mxu0 0
    %2244 = vmatprep.subr.bf16.mxu0 0
    %2245 = vmatpush2.bf16.msra.mxu0 0
    %2246 = vmatprep.subr.bf16.mxu0 0
    %2247 = vmatpush2.bf16.msra.mxu0 0
    %2248 = vmatprep.subr.bf16.mxu0 0
    %2249 = vmatpush2.bf16.msra.mxu0 0
    %2250 = vmatprep.subr.bf16.mxu0 0
    %2251 = vmatpush2.bf16.msra.mxu0 0
    %2252 = vmatprep.subr.bf16.mxu0 0
    %2253 = vmatpush2.bf16.msra.mxu0 0
    %2254 = vmatprep.subr.bf16.mxu0 0
    %2255 = vmatpush2.bf16.msra.mxu0 0
    %2256 = vmatprep.subr.bf16.mxu0 0
    %2257 = vmatpush2.bf16.msra.mxu0 0
    %2258 = vmatprep.mubr.bf16.mxu0 0
    %2259 = vmatmul.mubr.bf16.gmra.mxu0 %v2169
    %v2260 = vpop.f32.mrf.mxu0
    %v2261 = vadd.f32 %v708, %v2260
    %v2262 = vpop.f32.mrf.mxu0
    %v2263 = vpop.f32.mrf.mxu0
    %v2264 = vadd.f32 %v708, %v2263
    %v2265 = vpop.f32.mrf.mxu0
    %2266 = vdwg.mxu0
    %v2267 = vmul.f32 %v2223, %v2261
    %v2268 = vmul.f32 %v2225, %v2264
    %v2269 = vadd.f32 %v863, %v2267
    %v2270 = vadd.f32 %v867, %v2268
    %v2271 = vtanh.pop %v2269
    %v2272 = vtanh.pop %v2270
    %v2273 = vsub.f32 %v1998, %v2271
    %v2274 = vsub.f32 %v1999, %v2272
    %2277 = vrot.lane.b32.xlu0 %v2273, 32
    %v2278 = vpop.permute.xlu0 %2277
    %2279 = vrot.lane.b32.xlu0 %v2274, 32
    %v2280 = vpop.permute.xlu0 %2279
    %v2283 = vmul.f32 %v2223, %v2278
    %v2284 = vmul.f32 %v2225, %v2280
    %2287 = vrot.lane.b32.xlu0 %v2283, 96
    %v2288 = vpop.permute.xlu0 %2287
    %2289 = vrot.lane.b32.xlu0 %v2284, 96
    %v2290 = vpop.permute.xlu0 %2289
    %v2293 = vadd.f32 %v2271, %v2288
    %v2294 = vadd.f32 %v2272, %v2290
    %v2295 = vpack.c.bf16 %v2154, %v2153
    %2297 = vrot.lane.b32.xlu0 %v2295, 96
    %v2298 = vpop.permute.xlu0 %2297
    %v2300 = vsel %vm761, %v2298, 0
    %2302 = vmatprep.subr.bf16.mxu0 0
    %2303 = vmatpush1.bf16.msra.mxu0 0
    %2304 = vmatprep.subr.bf16.mxu0 0
    %2305 = vmatpush1.bf16.msra.mxu0 0
    %2306 = vmatprep.subr.bf16.mxu0 0
    %2307 = vmatpush1.bf16.msra.mxu0 0
    %2308 = vmatprep.subr.bf16.mxu0 0
    %2309 = vmatpush1.bf16.msra.mxu0 0
    %2310 = vmatprep.subr.bf16.mxu0 0
    %2311 = vmatpush1.bf16.msra.mxu0 0
    %2312 = vmatprep.subr.bf16.mxu0 0
    %2313 = vmatpush1.bf16.msra.mxu0 0
    %2314 = vmatprep.subr.bf16.mxu0 0
    %2315 = vmatpush1.bf16.msra.mxu0 %v1107
    %2316 = vmatprep.subr.bf16.mxu0 0
    %2317 = vmatpush1.bf16.msra.mxu0 %v1106
    %2318 = vmatprep.subr.bf16.mxu0 0
    %2319 = vmatpush2.bf16.msra.mxu0 0
    %2320 = vmatprep.subr.bf16.mxu0 0
    %2321 = vmatpush2.bf16.msra.mxu0 0
    %2322 = vmatprep.subr.bf16.mxu0 0
    %2323 = vmatpush2.bf16.msra.mxu0 0
    %2324 = vmatprep.subr.bf16.mxu0 0
    %2325 = vmatpush2.bf16.msra.mxu0 0
    %2326 = vmatprep.subr.bf16.mxu0 0
    %2327 = vmatpush2.bf16.msra.mxu0 0
    %2328 = vmatprep.subr.bf16.mxu0 0
    %2329 = vmatpush2.bf16.msra.mxu0 0
    %2330 = vmatprep.subr.bf16.mxu0 0
    %2331 = vmatpush2.bf16.msra.mxu0 0
    %2332 = vmatprep.subr.bf16.mxu0 0
    %2333 = vmatpush2.bf16.msra.mxu0 0
    %2334 = vmatprep.mubr.bf16.mxu0 0
    %2335 = vmatmul.mubr.bf16.gmra.mxu0 %v2300
    %v2336 = vpop.f32.mrf.mxu0
    %v2337 = vadd.f32 0.0, %v2336
    %v2338 = vpop.f32.mrf.mxu0
    %v2339 = vpop.f32.mrf.mxu0
    %v2340 = vadd.f32 0.0, %v2339
    %v2341 = vpop.f32.mrf.mxu0
    %2342 = vdwg.mxu0
    %2345 = vrot.lane.b32.xlu0 %v2337, 64
    %v2346 = vpop.permute.xlu0 %2345
    %2347 = vrot.lane.b32.xlu0 %v2340, 64
    %v2348 = vpop.permute.xlu0 %2347
    %v2351 = vadd.f32 %v937, %v2346
    %v2352 = vadd.f32 %v938, %v2348
    %v2353 = vxor.u32 %v2351, 2147483648
    %v2354 = vxor.u32 %v2352, 2147483648
    %v2355 = vmul.f32 %v2353, 1.442695
    %v2356 = vpow.pop %v2355
    %v2357 = vmul.f32 %v2354, 1.442695
    %v2358 = vpow.pop %v2357
    %v2359 = vadd.f32 %v2356, 1.0
    %v2360 = vadd.f32 %v2358, 1.0
    %v2361 = vrcp.pop %v2359
    %v2362 = vmul.f32 1.0, %v2361
    %v2363 = vrcp.pop %v2360
    %v2364 = vmul.f32 1.0, %v2363
    %2365 = vmatprep.subr.bf16.mxu0 0
    %2366 = vmatpush1.bf16.msra.mxu0 0
    %2367 = vmatprep.subr.bf16.mxu0 0
    %2368 = vmatpush1.bf16.msra.mxu0 0
    %2369 = vmatprep.subr.bf16.mxu0 0
    %2370 = vmatpush1.bf16.msra.mxu0 0
    %2371 = vmatprep.subr.bf16.mxu0 0
    %2372 = vmatpush1.bf16.msra.mxu0 0
    %2373 = vmatprep.subr.bf16.mxu0 0
    %2374 = vmatpush1.bf16.msra.mxu0 0
    %2375 = vmatprep.subr.bf16.mxu0 0
    %2376 = vmatpush1.bf16.msra.mxu0 0
    %2377 = vmatprep.subr.bf16.mxu0 0
    %2378 = vmatpush1.bf16.msra.mxu0 %v1182
    %2379 = vmatprep.subr.bf16.mxu0 0
    %2380 = vmatpush1.bf16.msra.mxu0 %v1181
    %2381 = vmatprep.subr.bf16.mxu0 0
    %2382 = vmatpush2.bf16.msra.mxu0 0
    %2383 = vmatprep.subr.bf16.mxu0 0
    %2384 = vmatpush2.bf16.msra.mxu0 0
    %2385 = vmatprep.subr.bf16.mxu0 0
    %2386 = vmatpush2.bf16.msra.mxu0 0
    %2387 = vmatprep.subr.bf16.mxu0 0
    %2388 = vmatpush2.bf16.msra.mxu0 0
    %2389 = vmatprep.subr.bf16.mxu0 0
    %2390 = vmatpush2.bf16.msra.mxu0 0
    %2391 = vmatprep.subr.bf16.mxu0 0
    %2392 = vmatpush2.bf16.msra.mxu0 0
    %2393 = vmatprep.subr.bf16.mxu0 0
    %2394 = vmatpush2.bf16.msra.mxu0 0
    %2395 = vmatprep.subr.bf16.mxu0 0
    %2396 = vmatpush2.bf16.msra.mxu0 0
    %2397 = vmatprep.mubr.bf16.mxu0 0
    %2398 = vmatmul.mubr.bf16.gmra.mxu0 %v2300
    %v2399 = vpop.f32.mrf.mxu0
    %v2400 = vadd.f32 %v715, %v2399
    %v2401 = vpop.f32.mrf.mxu0
    %v2402 = vpop.f32.mrf.mxu0
    %v2403 = vadd.f32 %v715, %v2402
    %v2404 = vpop.f32.mrf.mxu0
    %2405 = vdwg.mxu0
    %2408 = vrot.lane.b32.xlu0 %v2400, 64
    %v2409 = vpop.permute.xlu0 %2408
    %2410 = vrot.lane.b32.xlu0 %v2403, 64
    %v2411 = vpop.permute.xlu0 %2410
    %v2414 = vmul.f32 %v2362, %v2409
    %v2415 = vmul.f32 %v2364, %v2411
    %2418 = vrot.lane.b32.xlu0 %v2414, 96
    %v2419 = vpop.permute.xlu0 %2418
    %2420 = vrot.lane.b32.xlu0 %v2415, 96
    %v2421 = vpop.permute.xlu0 %2420
    %v2424 = vadd.f32 %v853, %v2419
    %v2425 = vadd.f32 %v857, %v2421
    %v2426 = vtanh.pop %v2424
    %v2427 = vtanh.pop %v2425
    %v2428 = vsub.f32 %v2153, %v2426
    %v2429 = vsub.f32 %v2154, %v2427
    %2432 = vrot.lane.b32.xlu0 %v2428, 64
    %v2433 = vpop.permute.xlu0 %2432
    %2434 = vrot.lane.b32.xlu0 %v2429, 64
    %v2435 = vpop.permute.xlu0 %2434
    %v2438 = vmul.f32 %v2362, %v2433
    %v2439 = vmul.f32 %v2364, %v2435
    %2442 = vrot.lane.b32.xlu0 %v2438, 64
    %v2443 = vpop.permute.xlu0 %2442
    %2444 = vrot.lane.b32.xlu0 %v2439, 64
    %v2445 = vpop.permute.xlu0 %2444
    %v2448 = vadd.f32 %v2426, %v2443
    %v2449 = vadd.f32 %v2427, %v2445
    %2450 = vst.msk [vmem:[#allocation2 + $0x40] sm:$0xff] %vm761, %v2293
    %2451 = vst.msk [vmem:[#allocation2 + $0x48] sm:$0xff] %vm761, %v2294
    %2454 = vrot.lane.b32.xlu0 %v2448, 96
    %v2455 = vpop.permute.xlu0 %2454
    %2456 = vrot.lane.b32.xlu0 %v2449, 96
    %v2457 = vpop.permute.xlu0 %2456
    %2460 = vst.msk [vmem:[#allocation3 + $0x30] sm:$0xff] %vm761, %v2455
    %2461 = vst.msk [vmem:[#allocation3 + $0x38] sm:$0xff] %vm761, %v2457
    %v2462 = vpack.c.bf16 %v2294, %v2293
    %v2464 = vsel %vm761, %v2462, 0
    %2466 = vmatprep.subr.bf16.mxu0 0
    %2467 = vmatpush1.bf16.msra.mxu0 0
    %2468 = vmatprep.subr.bf16.mxu0 0
    %2469 = vmatpush1.bf16.msra.mxu0 0
    %2470 = vmatprep.subr.bf16.mxu0 0
    %2471 = vmatpush1.bf16.msra.mxu0 0
    %2472 = vmatprep.subr.bf16.mxu0 0
    %2473 = vmatpush1.bf16.msra.mxu0 0
    %2474 = vmatprep.subr.bf16.mxu0 0
    %2475 = vmatpush1.bf16.msra.mxu0 0
    %2476 = vmatprep.subr.bf16.mxu0 0
    %2477 = vmatpush1.bf16.msra.mxu0 0
    %2478 = vmatprep.subr.bf16.mxu0 0
    %2479 = vmatpush1.bf16.msra.mxu0 %v956
    %2480 = vmatprep.subr.bf16.mxu0 0
    %2481 = vmatpush1.bf16.msra.mxu0 %v955
    %2482 = vmatprep.subr.bf16.mxu0 0
    %2483 = vmatpush2.bf16.msra.mxu0 0
    %2484 = vmatprep.subr.bf16.mxu0 0
    %2485 = vmatpush2.bf16.msra.mxu0 0
    %2486 = vmatprep.subr.bf16.mxu0 0
    %2487 = vmatpush2.bf16.msra.mxu0 0
    %2488 = vmatprep.subr.bf16.mxu0 0
    %2489 = vmatpush2.bf16.msra.mxu0 0
    %2490 = vmatprep.subr.bf16.mxu0 0
    %2491 = vmatpush2.bf16.msra.mxu0 0
    %2492 = vmatprep.subr.bf16.mxu0 0
    %2493 = vmatpush2.bf16.msra.mxu0 0
    %2494 = vmatprep.subr.bf16.mxu0 0
    %2495 = vmatpush2.bf16.msra.mxu0 0
    %2496 = vmatprep.subr.bf16.mxu0 0
    %2497 = vmatpush2.bf16.msra.mxu0 0
    %2498 = vmatprep.mubr.bf16.mxu0 0
    %2499 = vmatmul.mubr.bf16.gmra.mxu0 %v2464
    %v2500 = vpop.f32.mrf.mxu0
    %v2501 = vadd.f32 0.0, %v2500
    %v2502 = vpop.f32.mrf.mxu0
    %v2503 = vpop.f32.mrf.mxu0
    %v2504 = vadd.f32 0.0, %v2503
    %v2505 = vpop.f32.mrf.mxu0
    %2506 = vdwg.mxu0
    %v2507 = vadd.f32 %v916, %v2501
    %v2508 = vadd.f32 %v917, %v2504
    %v2509 = vxor.u32 %v2507, 2147483648
    %v2510 = vxor.u32 %v2508, 2147483648
    %v2511 = vmul.f32 %v2509, 1.442695
    %v2512 = vpow.pop %v2511
    %v2513 = vmul.f32 %v2510, 1.442695
    %v2514 = vpow.pop %v2513
    %v2515 = vadd.f32 %v2512, 1.0
    %v2516 = vadd.f32 %v2514, 1.0
    %v2517 = vrcp.pop %v2515
    %v2518 = vmul.f32 1.0, %v2517
    %v2519 = vrcp.pop %v2516
    %v2520 = vmul.f32 1.0, %v2519
    %2521 = vmatprep.subr.bf16.mxu0 0
    %2522 = vmatpush1.bf16.msra.mxu0 0
    %2523 = vmatprep.subr.bf16.mxu0 0
    %2524 = vmatpush1.bf16.msra.mxu0 0
    %2525 = vmatprep.subr.bf16.mxu0 0
    %2526 = vmatpush1.bf16.msra.mxu0 0
    %2527 = vmatprep.subr.bf16.mxu0 0
    %2528 = vmatpush1.bf16.msra.mxu0 0
    %2529 = vmatprep.subr.bf16.mxu0 0
    %2530 = vmatpush1.bf16.msra.mxu0 0
    %2531 = vmatprep.subr.bf16.mxu0 0
    %2532 = vmatpush1.bf16.msra.mxu0 0
    %2533 = vmatprep.subr.bf16.mxu0 0
    %2534 = vmatpush1.bf16.msra.mxu0 %v1026
    %2535 = vmatprep.subr.bf16.mxu0 0
    %2536 = vmatpush1.bf16.msra.mxu0 %v1025
    %2537 = vmatprep.subr.bf16.mxu0 0
    %2538 = vmatpush2.bf16.msra.mxu0 0
    %2539 = vmatprep.subr.bf16.mxu0 0
    %2540 = vmatpush2.bf16.msra.mxu0 0
    %2541 = vmatprep.subr.bf16.mxu0 0
    %2542 = vmatpush2.bf16.msra.mxu0 0
    %2543 = vmatprep.subr.bf16.mxu0 0
    %2544 = vmatpush2.bf16.msra.mxu0 0
    %2545 = vmatprep.subr.bf16.mxu0 0
    %2546 = vmatpush2.bf16.msra.mxu0 0
    %2547 = vmatprep.subr.bf16.mxu0 0
    %2548 = vmatpush2.bf16.msra.mxu0 0
    %2549 = vmatprep.subr.bf16.mxu0 0
    %2550 = vmatpush2.bf16.msra.mxu0 0
    %2551 = vmatprep.subr.bf16.mxu0 0
    %2552 = vmatpush2.bf16.msra.mxu0 0
    %2553 = vmatprep.mubr.bf16.mxu0 0
    %2554 = vmatmul.mubr.bf16.gmra.mxu0 %v2464
    %v2555 = vpop.f32.mrf.mxu0
    %v2556 = vadd.f32 %v708, %v2555
    %v2557 = vpop.f32.mrf.mxu0
    %v2558 = vpop.f32.mrf.mxu0
    %v2559 = vadd.f32 %v708, %v2558
    %v2560 = vpop.f32.mrf.mxu0
    %2561 = vdwg.mxu0
    %v2562 = vmul.f32 %v2518, %v2556
    %v2563 = vmul.f32 %v2520, %v2559
    %v2564 = vadd.f32 %v873, %v2562
    %v2565 = vadd.f32 %v877, %v2563
    %v2566 = vtanh.pop %v2564
    %v2567 = vtanh.pop %v2565
    %v2568 = vsub.f32 %v2293, %v2566
    %v2569 = vsub.f32 %v2294, %v2567
    %2572 = vrot.lane.b32.xlu0 %v2568, 32
    %v2573 = vpop.permute.xlu0 %2572
    %2574 = vrot.lane.b32.xlu0 %v2569, 32
    %v2575 = vpop.permute.xlu0 %2574
    %v2578 = vmul.f32 %v2518, %v2573
    %v2579 = vmul.f32 %v2520, %v2575
    %2582 = vrot.lane.b32.xlu0 %v2578, 96
    %v2583 = vpop.permute.xlu0 %2582
    %2584 = vrot.lane.b32.xlu0 %v2579, 96
    %v2585 = vpop.permute.xlu0 %2584
    %v2588 = vadd.f32 %v2566, %v2583
    %v2589 = vadd.f32 %v2567, %v2585
    %v2590 = vpack.c.bf16 %v2449, %v2448
    %2592 = vrot.lane.b32.xlu0 %v2590, 96
    %v2593 = vpop.permute.xlu0 %2592
    %v2595 = vsel %vm761, %v2593, 0
    %2597 = vmatprep.subr.bf16.mxu0 0
    %2598 = vmatpush1.bf16.msra.mxu0 0
    %2599 = vmatprep.subr.bf16.mxu0 0
    %2600 = vmatpush1.bf16.msra.mxu0 0
    %2601 = vmatprep.subr.bf16.mxu0 0
    %2602 = vmatpush1.bf16.msra.mxu0 0
    %2603 = vmatprep.subr.bf16.mxu0 0
    %2604 = vmatpush1.bf16.msra.mxu0 0
    %2605 = vmatprep.subr.bf16.mxu0 0
    %2606 = vmatpush1.bf16.msra.mxu0 0
    %2607 = vmatprep.subr.bf16.mxu0 0
    %2608 = vmatpush1.bf16.msra.mxu0 0
    %2609 = vmatprep.subr.bf16.mxu0 0
    %2610 = vmatpush1.bf16.msra.mxu0 %v1107
    %2611 = vmatprep.subr.bf16.mxu0 0
    %2612 = vmatpush1.bf16.msra.mxu0 %v1106
    %2613 = vmatprep.subr.bf16.mxu0 0
    %2614 = vmatpush2.bf16.msra.mxu0 0
    %2615 = vmatprep.subr.bf16.mxu0 0
    %2616 = vmatpush2.bf16.msra.mxu0 0
    %2617 = vmatprep.subr.bf16.mxu0 0
    %2618 = vmatpush2.bf16.msra.mxu0 0
    %2619 = vmatprep.subr.bf16.mxu0 0
    %2620 = vmatpush2.bf16.msra.mxu0 0
    %2621 = vmatprep.subr.bf16.mxu0 0
    %2622 = vmatpush2.bf16.msra.mxu0 0
    %2623 = vmatprep.subr.bf16.mxu0 0
    %2624 = vmatpush2.bf16.msra.mxu0 0
    %2625 = vmatprep.subr.bf16.mxu0 0
    %2626 = vmatpush2.bf16.msra.mxu0 0
    %2627 = vmatprep.subr.bf16.mxu0 0
    %2628 = vmatpush2.bf16.msra.mxu0 0
    %2629 = vmatprep.mubr.bf16.mxu0 0
    %2630 = vmatmul.mubr.bf16.gmra.mxu0 %v2595
    %v2631 = vpop.f32.mrf.mxu0
    %v2632 = vadd.f32 0.0, %v2631
    %v2633 = vpop.f32.mrf.mxu0
    %v2634 = vpop.f32.mrf.mxu0
    %v2635 = vadd.f32 0.0, %v2634
    %v2636 = vpop.f32.mrf.mxu0
    %2637 = vdwg.mxu0
    %2640 = vrot.lane.b32.xlu0 %v2632, 64
    %v2641 = vpop.permute.xlu0 %2640
    %2642 = vrot.lane.b32.xlu0 %v2635, 64
    %v2643 = vpop.permute.xlu0 %2642
    %v2646 = vadd.f32 %v935, %v2641
    %v2647 = vadd.f32 %v936, %v2643
    %v2648 = vxor.u32 %v2646, 2147483648
    %v2649 = vxor.u32 %v2647, 2147483648
    %v2650 = vmul.f32 %v2648, 1.442695
    %v2651 = vpow.pop %v2650
    %v2652 = vmul.f32 %v2649, 1.442695
    %v2653 = vpow.pop %v2652
    %v2654 = vadd.f32 %v2651, 1.0
    %v2655 = vadd.f32 %v2653, 1.0
    %v2656 = vrcp.pop %v2654
    %v2657 = vmul.f32 1.0, %v2656
    %v2658 = vrcp.pop %v2655
    %v2659 = vmul.f32 1.0, %v2658
    %2660 = vmatprep.subr.bf16.mxu0 0
    %2661 = vmatpush1.bf16.msra.mxu0 0
    %2662 = vmatprep.subr.bf16.mxu0 0
    %2663 = vmatpush1.bf16.msra.mxu0 0
    %2664 = vmatprep.subr.bf16.mxu0 0
    %2665 = vmatpush1.bf16.msra.mxu0 0
    %2666 = vmatprep.subr.bf16.mxu0 0
    %2667 = vmatpush1.bf16.msra.mxu0 0
    %2668 = vmatprep.subr.bf16.mxu0 0
    %2669 = vmatpush1.bf16.msra.mxu0 0
    %2670 = vmatprep.subr.bf16.mxu0 0
    %2671 = vmatpush1.bf16.msra.mxu0 0
    %2672 = vmatprep.subr.bf16.mxu0 0
    %2673 = vmatpush1.bf16.msra.mxu0 %v1182
    %2674 = vmatprep.subr.bf16.mxu0 0
    %2675 = vmatpush1.bf16.msra.mxu0 %v1181
    %2676 = vmatprep.subr.bf16.mxu0 0
    %2677 = vmatpush2.bf16.msra.mxu0 0
    %2678 = vmatprep.subr.bf16.mxu0 0
    %2679 = vmatpush2.bf16.msra.mxu0 0
    %2680 = vmatprep.subr.bf16.mxu0 0
    %2681 = vmatpush2.bf16.msra.mxu0 0
    %2682 = vmatprep.subr.bf16.mxu0 0
    %2683 = vmatpush2.bf16.msra.mxu0 0
    %2684 = vmatprep.subr.bf16.mxu0 0
    %2685 = vmatpush2.bf16.msra.mxu0 0
    %2686 = vmatprep.subr.bf16.mxu0 0
    %2687 = vmatpush2.bf16.msra.mxu0 0
    %2688 = vmatprep.subr.bf16.mxu0 0
    %2689 = vmatpush2.bf16.msra.mxu0 0
    %2690 = vmatprep.subr.bf16.mxu0 0
    %2691 = vmatpush2.bf16.msra.mxu0 0
    %2692 = vmatprep.mubr.bf16.mxu0 0
    %2693 = vmatmul.mubr.bf16.gmra.mxu0 %v2595
    %v2694 = vpop.f32.mrf.mxu0
    %v2695 = vadd.f32 %v715, %v2694
    %v2696 = vpop.f32.mrf.mxu0
    %v2697 = vpop.f32.mrf.mxu0
    %v2698 = vadd.f32 %v715, %v2697
    %v2699 = vpop.f32.mrf.mxu0
    %2700 = vdwg.mxu0
    %2703 = vrot.lane.b32.xlu0 %v2695, 64
    %v2704 = vpop.permute.xlu0 %2703
    %2705 = vrot.lane.b32.xlu0 %v2698, 64
    %v2706 = vpop.permute.xlu0 %2705
    %v2709 = vmul.f32 %v2657, %v2704
    %v2710 = vmul.f32 %v2659, %v2706
    %2713 = vrot.lane.b32.xlu0 %v2709, 96
    %v2714 = vpop.permute.xlu0 %2713
    %2715 = vrot.lane.b32.xlu0 %v2710, 96
    %v2716 = vpop.permute.xlu0 %2715
    %v2719 = vadd.f32 %v843, %v2714
    %v2720 = vadd.f32 %v847, %v2716
    %v2721 = vtanh.pop %v2719
    %v2722 = vtanh.pop %v2720
    %v2723 = vsub.f32 %v2448, %v2721
    %v2724 = vsub.f32 %v2449, %v2722
    %2727 = vrot.lane.b32.xlu0 %v2723, 64
    %v2728 = vpop.permute.xlu0 %2727
    %2729 = vrot.lane.b32.xlu0 %v2724, 64
    %v2730 = vpop.permute.xlu0 %2729
    %v2733 = vmul.f32 %v2657, %v2728
    %v2734 = vmul.f32 %v2659, %v2730
    %2737 = vrot.lane.b32.xlu0 %v2733, 64
    %v2738 = vpop.permute.xlu0 %2737
    %2739 = vrot.lane.b32.xlu0 %v2734, 64
    %v2740 = vpop.permute.xlu0 %2739
    %v2743 = vadd.f32 %v2721, %v2738
    %v2744 = vadd.f32 %v2722, %v2740
    %2745 = vst.msk [vmem:[#allocation2 + $0x50] sm:$0xff] %vm761, %v2588
    %2746 = vst.msk [vmem:[#allocation2 + $0x58] sm:$0xff] %vm761, %v2589
    %2749 = vrot.lane.b32.xlu0 %v2743, 96
    %v2750 = vpop.permute.xlu0 %2749
    %2751 = vrot.lane.b32.xlu0 %v2744, 96
    %v2752 = vpop.permute.xlu0 %2751
    %2755 = vst.msk [vmem:[#allocation3 + $0x20] sm:$0xff] %vm761, %v2750
    %2756 = vst.msk [vmem:[#allocation3 + $0x28] sm:$0xff] %vm761, %v2752
    %v2757 = vpack.c.bf16 %v2589, %v2588
    %v2759 = vsel %vm761, %v2757, 0
    %2761 = vmatprep.subr.bf16.mxu0 0
    %2762 = vmatpush1.bf16.msra.mxu0 0
    %2763 = vmatprep.subr.bf16.mxu0 0
    %2764 = vmatpush1.bf16.msra.mxu0 0
    %2765 = vmatprep.subr.bf16.mxu0 0
    %2766 = vmatpush1.bf16.msra.mxu0 0
    %2767 = vmatprep.subr.bf16.mxu0 0
    %2768 = vmatpush1.bf16.msra.mxu0 0
    %2769 = vmatprep.subr.bf16.mxu0 0
    %2770 = vmatpush1.bf16.msra.mxu0 0
    %2771 = vmatprep.subr.bf16.mxu0 0
    %2772 = vmatpush1.bf16.msra.mxu0 0
    %2773 = vmatprep.subr.bf16.mxu0 0
    %2774 = vmatpush1.bf16.msra.mxu0 %v956
    %2775 = vmatprep.subr.bf16.mxu0 0
    %2776 = vmatpush1.bf16.msra.mxu0 %v955
    %2777 = vmatprep.subr.bf16.mxu0 0
    %2778 = vmatpush2.bf16.msra.mxu0 0
    %2779 = vmatprep.subr.bf16.mxu0 0
    %2780 = vmatpush2.bf16.msra.mxu0 0
    %2781 = vmatprep.subr.bf16.mxu0 0
    %2782 = vmatpush2.bf16.msra.mxu0 0
    %2783 = vmatprep.subr.bf16.mxu0 0
    %2784 = vmatpush2.bf16.msra.mxu0 0
    %2785 = vmatprep.subr.bf16.mxu0 0
    %2786 = vmatpush2.bf16.msra.mxu0 0
    %2787 = vmatprep.subr.bf16.mxu0 0
    %2788 = vmatpush2.bf16.msra.mxu0 0
    %2789 = vmatprep.subr.bf16.mxu0 0
    %2790 = vmatpush2.bf16.msra.mxu0 0
    %2791 = vmatprep.subr.bf16.mxu0 0
    %2792 = vmatpush2.bf16.msra.mxu0 0
    %2793 = vmatprep.mubr.bf16.mxu0 0
    %2794 = vmatmul.mubr.bf16.gmra.mxu0 %v2759
    %v2795 = vpop.f32.mrf.mxu0
    %v2796 = vadd.f32 0.0, %v2795
    %v2797 = vpop.f32.mrf.mxu0
    %v2798 = vpop.f32.mrf.mxu0
    %v2799 = vadd.f32 0.0, %v2798
    %v2800 = vpop.f32.mrf.mxu0
    %2801 = vdwg.mxu0
    %v2802 = vadd.f32 %v918, %v2796
    %v2803 = vadd.f32 %v919, %v2799
    %v2804 = vxor.u32 %v2802, 2147483648
    %v2805 = vxor.u32 %v2803, 2147483648
    %v2806 = vmul.f32 %v2804, 1.442695
    %v2807 = vpow.pop %v2806
    %v2808 = vmul.f32 %v2805, 1.442695
    %v2809 = vpow.pop %v2808
    %v2810 = vadd.f32 %v2807, 1.0
    %v2811 = vadd.f32 %v2809, 1.0
    %v2812 = vrcp.pop %v2810
    %v2813 = vmul.f32 1.0, %v2812
    %v2814 = vrcp.pop %v2811
    %v2815 = vmul.f32 1.0, %v2814
    %2816 = vmatprep.subr.bf16.mxu0 0
    %2817 = vmatpush1.bf16.msra.mxu0 0
    %2818 = vmatprep.subr.bf16.mxu0 0
    %2819 = vmatpush1.bf16.msra.mxu0 0
    %2820 = vmatprep.subr.bf16.mxu0 0
    %2821 = vmatpush1.bf16.msra.mxu0 0
    %2822 = vmatprep.subr.bf16.mxu0 0
    %2823 = vmatpush1.bf16.msra.mxu0 0
    %2824 = vmatprep.subr.bf16.mxu0 0
    %2825 = vmatpush1.bf16.msra.mxu0 0
    %2826 = vmatprep.subr.bf16.mxu0 0
    %2827 = vmatpush1.bf16.msra.mxu0 0
    %2828 = vmatprep.subr.bf16.mxu0 0
    %2829 = vmatpush1.bf16.msra.mxu0 %v1026
    %2830 = vmatprep.subr.bf16.mxu0 0
    %2831 = vmatpush1.bf16.msra.mxu0 %v1025
    %2832 = vmatprep.subr.bf16.mxu0 0
    %2833 = vmatpush2.bf16.msra.mxu0 0
    %2834 = vmatprep.subr.bf16.mxu0 0
    %2835 = vmatpush2.bf16.msra.mxu0 0
    %2836 = vmatprep.subr.bf16.mxu0 0
    %2837 = vmatpush2.bf16.msra.mxu0 0
    %2838 = vmatprep.subr.bf16.mxu0 0
    %2839 = vmatpush2.bf16.msra.mxu0 0
    %2840 = vmatprep.subr.bf16.mxu0 0
    %2841 = vmatpush2.bf16.msra.mxu0 0
    %2842 = vmatprep.subr.bf16.mxu0 0
    %2843 = vmatpush2.bf16.msra.mxu0 0
    %2844 = vmatprep.subr.bf16.mxu0 0
    %2845 = vmatpush2.bf16.msra.mxu0 0
    %2846 = vmatprep.subr.bf16.mxu0 0
    %2847 = vmatpush2.bf16.msra.mxu0 0
    %2848 = vmatprep.mubr.bf16.mxu0 0
    %2849 = vmatmul.mubr.bf16.gmra.mxu0 %v2759
    %v2850 = vpop.f32.mrf.mxu0
    %v2851 = vadd.f32 %v708, %v2850
    %v2852 = vpop.f32.mrf.mxu0
    %v2853 = vpop.f32.mrf.mxu0
    %v2854 = vadd.f32 %v708, %v2853
    %v2855 = vpop.f32.mrf.mxu0
    %2856 = vdwg.mxu0
    %v2857 = vmul.f32 %v2813, %v2851
    %v2858 = vmul.f32 %v2815, %v2854
    %v2859 = vadd.f32 %v883, %v2857
    %v2860 = vadd.f32 %v887, %v2858
    %v2861 = vtanh.pop %v2859
    %v2862 = vtanh.pop %v2860
    %v2863 = vsub.f32 %v2588, %v2861
    %v2864 = vsub.f32 %v2589, %v2862
    %2867 = vrot.lane.b32.xlu0 %v2863, 32
    %v2868 = vpop.permute.xlu0 %2867
    %2869 = vrot.lane.b32.xlu0 %v2864, 32
    %v2870 = vpop.permute.xlu0 %2869
    %v2873 = vmul.f32 %v2813, %v2868
    %v2874 = vmul.f32 %v2815, %v2870
    %2877 = vrot.lane.b32.xlu0 %v2873, 96
    %v2878 = vpop.permute.xlu0 %2877
    %2879 = vrot.lane.b32.xlu0 %v2874, 96
    %v2880 = vpop.permute.xlu0 %2879
    %v2883 = vadd.f32 %v2861, %v2878
    %v2884 = vadd.f32 %v2862, %v2880
    %v2885 = vpack.c.bf16 %v2744, %v2743
    %2887 = vrot.lane.b32.xlu0 %v2885, 96
    %v2888 = vpop.permute.xlu0 %2887
    %v2890 = vsel %vm761, %v2888, 0
    %2892 = vmatprep.subr.bf16.mxu0 0
    %2893 = vmatpush1.bf16.msra.mxu0 0
    %2894 = vmatprep.subr.bf16.mxu0 0
    %2895 = vmatpush1.bf16.msra.mxu0 0
    %2896 = vmatprep.subr.bf16.mxu0 0
    %2897 = vmatpush1.bf16.msra.mxu0 0
    %2898 = vmatprep.subr.bf16.mxu0 0
    %2899 = vmatpush1.bf16.msra.mxu0 0
    %2900 = vmatprep.subr.bf16.mxu0 0
    %2901 = vmatpush1.bf16.msra.mxu0 0
    %2902 = vmatprep.subr.bf16.mxu0 0
    %2903 = vmatpush1.bf16.msra.mxu0 0
    %2904 = vmatprep.subr.bf16.mxu0 0
    %2905 = vmatpush1.bf16.msra.mxu0 %v1107
    %2906 = vmatprep.subr.bf16.mxu0 0
    %2907 = vmatpush1.bf16.msra.mxu0 %v1106
    %2908 = vmatprep.subr.bf16.mxu0 0
    %2909 = vmatpush2.bf16.msra.mxu0 0
    %2910 = vmatprep.subr.bf16.mxu0 0
    %2911 = vmatpush2.bf16.msra.mxu0 0
    %2912 = vmatprep.subr.bf16.mxu0 0
    %2913 = vmatpush2.bf16.msra.mxu0 0
    %2914 = vmatprep.subr.bf16.mxu0 0
    %2915 = vmatpush2.bf16.msra.mxu0 0
    %2916 = vmatprep.subr.bf16.mxu0 0
    %2917 = vmatpush2.bf16.msra.mxu0 0
    %2918 = vmatprep.subr.bf16.mxu0 0
    %2919 = vmatpush2.bf16.msra.mxu0 0
    %2920 = vmatprep.subr.bf16.mxu0 0
    %2921 = vmatpush2.bf16.msra.mxu0 0
    %2922 = vmatprep.subr.bf16.mxu0 0
    %2923 = vmatpush2.bf16.msra.mxu0 0
    %2924 = vmatprep.mubr.bf16.mxu0 0
    %2925 = vmatmul.mubr.bf16.gmra.mxu0 %v2890
    %v2926 = vpop.f32.mrf.mxu0
    %v2927 = vadd.f32 0.0, %v2926
    %v2928 = vpop.f32.mrf.mxu0
    %v2929 = vpop.f32.mrf.mxu0
    %v2930 = vadd.f32 0.0, %v2929
    %v2931 = vpop.f32.mrf.mxu0
    %2932 = vdwg.mxu0
    %2935 = vrot.lane.b32.xlu0 %v2927, 64
    %v2936 = vpop.permute.xlu0 %2935
    %2937 = vrot.lane.b32.xlu0 %v2930, 64
    %v2938 = vpop.permute.xlu0 %2937
    %v2941 = vadd.f32 %v933, %v2936
    %v2942 = vadd.f32 %v934, %v2938
    %v2943 = vxor.u32 %v2941, 2147483648
    %v2944 = vxor.u32 %v2942, 2147483648
    %v2945 = vmul.f32 %v2943, 1.442695
    %v2946 = vpow.pop %v2945
    %v2947 = vmul.f32 %v2944, 1.442695
    %v2948 = vpow.pop %v2947
    %v2949 = vadd.f32 %v2946, 1.0
    %v2950 = vadd.f32 %v2948, 1.0
    %v2951 = vrcp.pop %v2949
    %v2952 = vmul.f32 1.0, %v2951
    %v2953 = vrcp.pop %v2950
    %v2954 = vmul.f32 1.0, %v2953
    %2955 = vmatprep.subr.bf16.mxu0 0
    %2956 = vmatpush1.bf16.msra.mxu0 0
    %2957 = vmatprep.subr.bf16.mxu0 0
    %2958 = vmatpush1.bf16.msra.mxu0 0
    %2959 = vmatprep.subr.bf16.mxu0 0
    %2960 = vmatpush1.bf16.msra.mxu0 0
    %2961 = vmatprep.subr.bf16.mxu0 0
    %2962 = vmatpush1.bf16.msra.mxu0 0
    %2963 = vmatprep.subr.bf16.mxu0 0
    %2964 = vmatpush1.bf16.msra.mxu0 0
    %2965 = vmatprep.subr.bf16.mxu0 0
    %2966 = vmatpush1.bf16.msra.mxu0 0
    %2967 = vmatprep.subr.bf16.mxu0 0
    %2968 = vmatpush1.bf16.msra.mxu0 %v1182
    %2969 = vmatprep.subr.bf16.mxu0 0
    %2970 = vmatpush1.bf16.msra.mxu0 %v1181
    %2971 = vmatprep.subr.bf16.mxu0 0
    %2972 = vmatpush2.bf16.msra.mxu0 0
    %2973 = vmatprep.subr.bf16.mxu0 0
    %2974 = vmatpush2.bf16.msra.mxu0 0
    %2975 = vmatprep.subr.bf16.mxu0 0
    %2976 = vmatpush2.bf16.msra.mxu0 0
    %2977 = vmatprep.subr.bf16.mxu0 0
    %2978 = vmatpush2.bf16.msra.mxu0 0
    %2979 = vmatprep.subr.bf16.mxu0 0
    %2980 = vmatpush2.bf16.msra.mxu0 0
    %2981 = vmatprep.subr.bf16.mxu0 0
    %2982 = vmatpush2.bf16.msra.mxu0 0
    %2983 = vmatprep.subr.bf16.mxu0 0
    %2984 = vmatpush2.bf16.msra.mxu0 0
    %2985 = vmatprep.subr.bf16.mxu0 0
    %2986 = vmatpush2.bf16.msra.mxu0 0
    %2987 = vmatprep.mubr.bf16.mxu0 0
    %2988 = vmatmul.mubr.bf16.gmra.mxu0 %v2890
    %v2989 = vpop.f32.mrf.mxu0
    %v2990 = vadd.f32 %v715, %v2989
    %v2991 = vpop.f32.mrf.mxu0
    %v2992 = vpop.f32.mrf.mxu0
    %v2993 = vadd.f32 %v715, %v2992
    %v2994 = vpop.f32.mrf.mxu0
    %2995 = vdwg.mxu0
    %2998 = vrot.lane.b32.xlu0 %v2990, 64
    %v2999 = vpop.permute.xlu0 %2998
    %3000 = vrot.lane.b32.xlu0 %v2993, 64
    %v3001 = vpop.permute.xlu0 %3000
    %v3004 = vmul.f32 %v2952, %v2999
    %v3005 = vmul.f32 %v2954, %v3001
    %3008 = vrot.lane.b32.xlu0 %v3004, 96
    %v3009 = vpop.permute.xlu0 %3008
    %3010 = vrot.lane.b32.xlu0 %v3005, 96
    %v3011 = vpop.permute.xlu0 %3010
    %v3014 = vadd.f32 %v833, %v3009
    %v3015 = vadd.f32 %v837, %v3011
    %v3016 = vtanh.pop %v3014
    %v3017 = vtanh.pop %v3015
    %v3018 = vsub.f32 %v2743, %v3016
    %v3019 = vsub.f32 %v2744, %v3017
    %3022 = vrot.lane.b32.xlu0 %v3018, 64
    %v3023 = vpop.permute.xlu0 %3022
    %3024 = vrot.lane.b32.xlu0 %v3019, 64
    %v3025 = vpop.permute.xlu0 %3024
    %v3028 = vmul.f32 %v2952, %v3023
    %v3029 = vmul.f32 %v2954, %v3025
    %3032 = vrot.lane.b32.xlu0 %v3028, 64
    %v3033 = vpop.permute.xlu0 %3032
    %3034 = vrot.lane.b32.xlu0 %v3029, 64
    %v3035 = vpop.permute.xlu0 %3034
    %v3038 = vadd.f32 %v3016, %v3033
    %v3039 = vadd.f32 %v3017, %v3035
    %3040 = vst.msk [vmem:[#allocation2 + $0x60] sm:$0xff] %vm761, %v2883
    %3041 = vst.msk [vmem:[#allocation2 + $0x68] sm:$0xff] %vm761, %v2884
    %3044 = vrot.lane.b32.xlu0 %v3038, 96
    %v3045 = vpop.permute.xlu0 %3044
    %3046 = vrot.lane.b32.xlu0 %v3039, 96
    %v3047 = vpop.permute.xlu0 %3046
    %3050 = vst.msk [vmem:[#allocation3 + $0x10] sm:$0xff] %vm761, %v3045
    %3051 = vst.msk [vmem:[#allocation3 + $0x18] sm:$0xff] %vm761, %v3047
    %v3052 = vpack.c.bf16 %v2884, %v2883
    %v3054 = vsel %vm761, %v3052, 0
    %3056 = vmatprep.subr.bf16.mxu0 0
    %3057 = vmatpush1.bf16.msra.mxu0 0
    %3058 = vmatprep.subr.bf16.mxu0 0
    %3059 = vmatpush1.bf16.msra.mxu0 0
    %3060 = vmatprep.subr.bf16.mxu0 0
    %3061 = vmatpush1.bf16.msra.mxu0 0
    %3062 = vmatprep.subr.bf16.mxu0 0
    %3063 = vmatpush1.bf16.msra.mxu0 0
    %3064 = vmatprep.subr.bf16.mxu0 0
    %3065 = vmatpush1.bf16.msra.mxu0 0
    %3066 = vmatprep.subr.bf16.mxu0 0
    %3067 = vmatpush1.bf16.msra.mxu0 0
    %3068 = vmatprep.subr.bf16.mxu0 0
    %3069 = vmatpush1.bf16.msra.mxu0 %v956
    %3070 = vmatprep.subr.bf16.mxu0 0
    %3071 = vmatpush1.bf16.msra.mxu0 %v955
    %3072 = vmatprep.subr.bf16.mxu0 0
    %3073 = vmatpush2.bf16.msra.mxu0 0
    %3074 = vmatprep.subr.bf16.mxu0 0
    %3075 = vmatpush2.bf16.msra.mxu0 0
    %3076 = vmatprep.subr.bf16.mxu0 0
    %3077 = vmatpush2.bf16.msra.mxu0 0
    %3078 = vmatprep.subr.bf16.mxu0 0
    %3079 = vmatpush2.bf16.msra.mxu0 0
    %3080 = vmatprep.subr.bf16.mxu0 0
    %3081 = vmatpush2.bf16.msra.mxu0 0
    %3082 = vmatprep.subr.bf16.mxu0 0
    %3083 = vmatpush2.bf16.msra.mxu0 0
    %3084 = vmatprep.subr.bf16.mxu0 0
    %3085 = vmatpush2.bf16.msra.mxu0 0
    %3086 = vmatprep.subr.bf16.mxu0 0
    %3087 = vmatpush2.bf16.msra.mxu0 0
    %3088 = vmatprep.mubr.bf16.mxu0 0
    %3089 = vmatmul.mubr.bf16.gmra.mxu0 %v3054
    %v3090 = vpop.f32.mrf.mxu0
    %v3091 = vadd.f32 0.0, %v3090
    %v3092 = vpop.f32.mrf.mxu0
    %v3093 = vpop.f32.mrf.mxu0
    %v3094 = vadd.f32 0.0, %v3093
    %v3095 = vpop.f32.mrf.mxu0
    %3096 = vdwg.mxu0
    %v3097 = vadd.f32 %v920, %v3091
    %v3098 = vadd.f32 %v921, %v3094
    %v3099 = vxor.u32 %v3097, 2147483648
    %v3100 = vxor.u32 %v3098, 2147483648
    %v3101 = vmul.f32 %v3099, 1.442695
    %v3102 = vpow.pop %v3101
    %v3103 = vmul.f32 %v3100, 1.442695
    %v3104 = vpow.pop %v3103
    %v3105 = vadd.f32 %v3102, 1.0
    %v3106 = vadd.f32 %v3104, 1.0
    %v3107 = vrcp.pop %v3105
    %v3108 = vmul.f32 1.0, %v3107
    %v3109 = vrcp.pop %v3106
    %v3110 = vmul.f32 1.0, %v3109
    %3111 = vmatprep.subr.bf16.mxu0 0
    %3112 = vmatpush1.bf16.msra.mxu0 0
    %3113 = vmatprep.subr.bf16.mxu0 0
    %3114 = vmatpush1.bf16.msra.mxu0 0
    %3115 = vmatprep.subr.bf16.mxu0 0
    %3116 = vmatpush1.bf16.msra.mxu0 0
    %3117 = vmatprep.subr.bf16.mxu0 0
    %3118 = vmatpush1.bf16.msra.mxu0 0
    %3119 = vmatprep.subr.bf16.mxu0 0
    %3120 = vmatpush1.bf16.msra.mxu0 0
    %3121 = vmatprep.subr.bf16.mxu0 0
    %3122 = vmatpush1.bf16.msra.mxu0 0
    %3123 = vmatprep.subr.bf16.mxu0 0
    %3124 = vmatpush1.bf16.msra.mxu0 %v1026
    %3125 = vmatprep.subr.bf16.mxu0 0
    %3126 = vmatpush1.bf16.msra.mxu0 %v1025
    %3127 = vmatprep.subr.bf16.mxu0 0
    %3128 = vmatpush2.bf16.msra.mxu0 0
    %3129 = vmatprep.subr.bf16.mxu0 0
    %3130 = vmatpush2.bf16.msra.mxu0 0
    %3131 = vmatprep.subr.bf16.mxu0 0
    %3132 = vmatpush2.bf16.msra.mxu0 0
    %3133 = vmatprep.subr.bf16.mxu0 0
    %3134 = vmatpush2.bf16.msra.mxu0 0
    %3135 = vmatprep.subr.bf16.mxu0 0
    %3136 = vmatpush2.bf16.msra.mxu0 0
    %3137 = vmatprep.subr.bf16.mxu0 0
    %3138 = vmatpush2.bf16.msra.mxu0 0
    %3139 = vmatprep.subr.bf16.mxu0 0
    %3140 = vmatpush2.bf16.msra.mxu0 0
    %3141 = vmatprep.subr.bf16.mxu0 0
    %3142 = vmatpush2.bf16.msra.mxu0 0
    %3143 = vmatprep.mubr.bf16.mxu0 0
    %3144 = vmatmul.mubr.bf16.gmra.mxu0 %v3054
    %v3145 = vpop.f32.mrf.mxu0
    %v3146 = vadd.f32 %v708, %v3145
    %v3147 = vpop.f32.mrf.mxu0
    %v3148 = vpop.f32.mrf.mxu0
    %v3149 = vadd.f32 %v708, %v3148
    %v3150 = vpop.f32.mrf.mxu0
    %3151 = vdwg.mxu0
    %v3152 = vmul.f32 %v3108, %v3146
    %v3153 = vmul.f32 %v3110, %v3149
    %v3154 = vadd.f32 %v893, %v3152
    %v3155 = vadd.f32 %v897, %v3153
    %v3156 = vtanh.pop %v3154
    %v3157 = vtanh.pop %v3155
    %v3158 = vsub.f32 %v2883, %v3156
    %v3159 = vsub.f32 %v2884, %v3157
    %3162 = vrot.lane.b32.xlu0 %v3158, 32
    %v3163 = vpop.permute.xlu0 %3162
    %3164 = vrot.lane.b32.xlu0 %v3159, 32
    %v3165 = vpop.permute.xlu0 %3164
    %v3168 = vmul.f32 %v3108, %v3163
    %v3169 = vmul.f32 %v3110, %v3165
    %3172 = vrot.lane.b32.xlu0 %v3168, 96
    %v3173 = vpop.permute.xlu0 %3172
    %3174 = vrot.lane.b32.xlu0 %v3169, 96
    %v3175 = vpop.permute.xlu0 %3174
    %v3178 = vadd.f32 %v3156, %v3173
    %v3179 = vadd.f32 %v3157, %v3175
    %v3180 = vpack.c.bf16 %v3039, %v3038
    %3182 = vrot.lane.b32.xlu0 %v3180, 96
    %v3183 = vpop.permute.xlu0 %3182
    %v3185 = vsel %vm761, %v3183, 0
    %3187 = vmatprep.subr.bf16.mxu0 0
    %3188 = vmatpush1.bf16.msra.mxu0 0
    %3189 = vmatprep.subr.bf16.mxu0 0
    %3190 = vmatpush1.bf16.msra.mxu0 0
    %3191 = vmatprep.subr.bf16.mxu0 0
    %3192 = vmatpush1.bf16.msra.mxu0 0
    %3193 = vmatprep.subr.bf16.mxu0 0
    %3194 = vmatpush1.bf16.msra.mxu0 0
    %3195 = vmatprep.subr.bf16.mxu0 0
    %3196 = vmatpush1.bf16.msra.mxu0 0
    %3197 = vmatprep.subr.bf16.mxu0 0
    %3198 = vmatpush1.bf16.msra.mxu0 0
    %3199 = vmatprep.subr.bf16.mxu0 0
    %3200 = vmatpush1.bf16.msra.mxu0 %v1107
    %3201 = vmatprep.subr.bf16.mxu0 0
    %3202 = vmatpush1.bf16.msra.mxu0 %v1106
    %3203 = vmatprep.subr.bf16.mxu0 0
    %3204 = vmatpush2.bf16.msra.mxu0 0
    %3205 = vmatprep.subr.bf16.mxu0 0
    %3206 = vmatpush2.bf16.msra.mxu0 0
    %3207 = vmatprep.subr.bf16.mxu0 0
    %3208 = vmatpush2.bf16.msra.mxu0 0
    %3209 = vmatprep.subr.bf16.mxu0 0
    %3210 = vmatpush2.bf16.msra.mxu0 0
    %3211 = vmatprep.subr.bf16.mxu0 0
    %3212 = vmatpush2.bf16.msra.mxu0 0
    %3213 = vmatprep.subr.bf16.mxu0 0
    %3214 = vmatpush2.bf16.msra.mxu0 0
    %3215 = vmatprep.subr.bf16.mxu0 0
    %3216 = vmatpush2.bf16.msra.mxu0 0
    %3217 = vmatprep.subr.bf16.mxu0 0
    %3218 = vmatpush2.bf16.msra.mxu0 0
    %3219 = vmatprep.mubr.bf16.mxu0 0
    %3220 = vmatmul.mubr.bf16.gmra.mxu0 %v3185
    %v3221 = vpop.f32.mrf.mxu0
    %v3222 = vadd.f32 0.0, %v3221
    %v3223 = vpop.f32.mrf.mxu0
    %v3224 = vpop.f32.mrf.mxu0
    %v3225 = vadd.f32 0.0, %v3224
    %v3226 = vpop.f32.mrf.mxu0
    %3227 = vdwg.mxu0
    %3230 = vrot.lane.b32.xlu0 %v3222, 64
    %v3231 = vpop.permute.xlu0 %3230
    %3232 = vrot.lane.b32.xlu0 %v3225, 64
    %v3233 = vpop.permute.xlu0 %3232
    %v3236 = vadd.f32 %v931, %v3231
    %v3237 = vadd.f32 %v932, %v3233
    %v3238 = vxor.u32 %v3236, 2147483648
    %v3239 = vxor.u32 %v3237, 2147483648
    %v3240 = vmul.f32 %v3238, 1.442695
    %v3241 = vpow.pop %v3240
    %v3242 = vmul.f32 %v3239, 1.442695
    %v3243 = vpow.pop %v3242
    %v3244 = vadd.f32 %v3241, 1.0
    %v3245 = vadd.f32 %v3243, 1.0
    %v3246 = vrcp.pop %v3244
    %v3247 = vmul.f32 1.0, %v3246
    %v3248 = vrcp.pop %v3245
    %v3249 = vmul.f32 1.0, %v3248
    %3250 = vmatprep.subr.bf16.mxu0 0
    %3251 = vmatpush1.bf16.msra.mxu0 0
    %3252 = vmatprep.subr.bf16.mxu0 0
    %3253 = vmatpush1.bf16.msra.mxu0 0
    %3254 = vmatprep.subr.bf16.mxu0 0
    %3255 = vmatpush1.bf16.msra.mxu0 0
    %3256 = vmatprep.subr.bf16.mxu0 0
    %3257 = vmatpush1.bf16.msra.mxu0 0
    %3258 = vmatprep.subr.bf16.mxu0 0
    %3259 = vmatpush1.bf16.msra.mxu0 0
    %3260 = vmatprep.subr.bf16.mxu0 0
    %3261 = vmatpush1.bf16.msra.mxu0 0
    %3262 = vmatprep.subr.bf16.mxu0 0
    %3263 = vmatpush1.bf16.msra.mxu0 %v1182
    %3264 = vmatprep.subr.bf16.mxu0 0
    %3265 = vmatpush1.bf16.msra.mxu0 %v1181
    %3266 = vmatprep.subr.bf16.mxu0 0
    %3267 = vmatpush2.bf16.msra.mxu0 0
    %3268 = vmatprep.subr.bf16.mxu0 0
    %3269 = vmatpush2.bf16.msra.mxu0 0
    %3270 = vmatprep.subr.bf16.mxu0 0
    %3271 = vmatpush2.bf16.msra.mxu0 0
    %3272 = vmatprep.subr.bf16.mxu0 0
    %3273 = vmatpush2.bf16.msra.mxu0 0
    %3274 = vmatprep.subr.bf16.mxu0 0
    %3275 = vmatpush2.bf16.msra.mxu0 0
    %3276 = vmatprep.subr.bf16.mxu0 0
    %3277 = vmatpush2.bf16.msra.mxu0 0
    %3278 = vmatprep.subr.bf16.mxu0 0
    %3279 = vmatpush2.bf16.msra.mxu0 0
    %3280 = vmatprep.subr.bf16.mxu0 0
    %3281 = vmatpush2.bf16.msra.mxu0 0
    %3282 = vmatprep.mubr.bf16.mxu0 0
    %3283 = vmatmul.mubr.bf16.gmra.mxu0 %v3185
    %v3284 = vpop.f32.mrf.mxu0
    %v3285 = vadd.f32 %v715, %v3284
    %v3286 = vpop.f32.mrf.mxu0
    %v3287 = vpop.f32.mrf.mxu0
    %v3288 = vadd.f32 %v715, %v3287
    %v3289 = vpop.f32.mrf.mxu0
    %3290 = vdwg.mxu0
    %3293 = vrot.lane.b32.xlu0 %v3285, 64
    %v3294 = vpop.permute.xlu0 %3293
    %3295 = vrot.lane.b32.xlu0 %v3288, 64
    %v3296 = vpop.permute.xlu0 %3295
    %v3299 = vmul.f32 %v3247, %v3294
    %v3300 = vmul.f32 %v3249, %v3296
    %3303 = vrot.lane.b32.xlu0 %v3299, 96
    %v3304 = vpop.permute.xlu0 %3303
    %3305 = vrot.lane.b32.xlu0 %v3300, 96
    %v3306 = vpop.permute.xlu0 %3305
    %v3309 = vadd.f32 %v823, %v3304
    %v3310 = vadd.f32 %v827, %v3306
    %v3311 = vtanh.pop %v3309
    %v3312 = vtanh.pop %v3310
    %v3313 = vsub.f32 %v3038, %v3311
    %v3314 = vsub.f32 %v3039, %v3312
    %3317 = vrot.lane.b32.xlu0 %v3313, 64
    %v3318 = vpop.permute.xlu0 %3317
    %3319 = vrot.lane.b32.xlu0 %v3314, 64
    %v3320 = vpop.permute.xlu0 %3319
    %v3323 = vmul.f32 %v3247, %v3318
    %v3324 = vmul.f32 %v3249, %v3320
    %3327 = vrot.lane.b32.xlu0 %v3323, 64
    %v3328 = vpop.permute.xlu0 %3327
    %3329 = vrot.lane.b32.xlu0 %v3324, 64
    %v3330 = vpop.permute.xlu0 %3329
    %v3333 = vadd.f32 %v3311, %v3328
    %v3334 = vadd.f32 %v3312, %v3330
    %3335 = vst.msk [vmem:[#allocation2 + $0x70] sm:$0xff] %vm761, %v3178
    %3336 = vst.msk [vmem:[#allocation2 + $0x78] sm:$0xff] %vm761, %v3179
    %3339 = vrot.lane.b32.xlu0 %v3333, 96
    %v3340 = vpop.permute.xlu0 %3339
    %3341 = vrot.lane.b32.xlu0 %v3334, 96
    %v3342 = vpop.permute.xlu0 %3341
    %3345 = vst.msk [vmem:[#allocation3] sm:$0xff] %vm761, %v3340
    %3346 = vst.msk [vmem:[#allocation3 + $0x8] sm:$0xff] %vm761, %v3342
    %v3347 = vld [vmem:[#allocation2] sm:$0xff]
    %v3348 = vld [vmem:[#allocation2 + $0x8] sm:$0xff]
    %v3349 = vld [vmem:[#allocation2 + $0x10] sm:$0xff]
    %v3350 = vld [vmem:[#allocation2 + $0x18] sm:$0xff]
    %v3351 = vld [vmem:[#allocation2 + $0x20] sm:$0xff]
    %v3352 = vld [vmem:[#allocation2 + $0x28] sm:$0xff]
    %v3353 = vld [vmem:[#allocation2 + $0x30] sm:$0xff]
    %v3354 = vld [vmem:[#allocation2 + $0x38] sm:$0xff]
    %v3355 = vld [vmem:[#allocation2 + $0x40] sm:$0xff]
    %v3356 = vld [vmem:[#allocation2 + $0x48] sm:$0xff]
    %v3357 = vld [vmem:[#allocation2 + $0x50] sm:$0xff]
    %v3358 = vld [vmem:[#allocation2 + $0x58] sm:$0xff]
    %v3359 = vld [vmem:[#allocation2 + $0x60] sm:$0xff]
    %v3360 = vld [vmem:[#allocation2 + $0x68] sm:$0xff]
    %v3361 = vld [vmem:[#allocation2 + $0x70] sm:$0xff]
    %v3362 = vld [vmem:[#allocation2 + $0x78] sm:$0xff]
    %v3363 = vld [vmem:[%s29] sm:$0xf]
    %v3364 = vld [vmem:[%s29 + $0x4] sm:$0xf]
    %v3365 = vld [vmem:[%s29 + $0x8] sm:$0xf]
    %v3366 = vld [vmem:[%s29 + $0xc] sm:$0xf]
    %v3367 = vpack.c.bf16 %v3348, %v3347
    %v3368 = vpack.c.bf16 %v3350, %v3349
    %v3369 = vpack.c.bf16 %v3352, %v3351
    %v3370 = vpack.c.bf16 %v3354, %v3353
    %v3371 = vpack.c.bf16 %v3356, %v3355
    %v3372 = vpack.c.bf16 %v3358, %v3357
    %v3373 = vpack.c.bf16 %v3360, %v3359
    %v3374 = vpack.c.bf16 %v3362, %v3361
    %v3375 = vld [vmem:[#allocation3] sm:$0xff]
    %v3376 = vld [vmem:[#allocation3 + $0x8] sm:$0xff]
    %v3377 = vld [vmem:[#allocation3 + $0x10] sm:$0xff]
    %v3378 = vld [vmem:[#allocation3 + $0x18] sm:$0xff]
    %v3379 = vld [vmem:[#allocation3 + $0x20] sm:$0xff]
    %v3380 = vld [vmem:[#allocation3 + $0x28] sm:$0xff]
    %v3381 = vld [vmem:[#allocation3 + $0x30] sm:$0xff]
    %v3382 = vld [vmem:[#allocation3 + $0x38] sm:$0xff]
    %v3383 = vld [vmem:[#allocation3 + $0x40] sm:$0xff]
    %v3384 = vld [vmem:[#allocation3 + $0x48] sm:$0xff]
    %v3385 = vld [vmem:[#allocation3 + $0x50] sm:$0xff]
    %v3386 = vld [vmem:[#allocation3 + $0x58] sm:$0xff]
    %v3387 = vld [vmem:[#allocation3 + $0x60] sm:$0xff]
    %v3388 = vld [vmem:[#allocation3 + $0x68] sm:$0xff]
    %v3389 = vld [vmem:[#allocation3 + $0x70] sm:$0xff]
    %v3390 = vld [vmem:[#allocation3 + $0x78] sm:$0xff]
    %v3391 = vld [vmem:[%s31] sm:$0xf]
    %v3392 = vld [vmem:[%s31 + $0x4] sm:$0xf]
    %v3393 = vld [vmem:[%s31 + $0x8] sm:$0xf]
    %v3394 = vld [vmem:[%s31 + $0xc] sm:$0xf]
    %v3395 = vpack.c.bf16 %v3376, %v3375
    %v3396 = vpack.c.bf16 %v3378, %v3377
    %v3397 = vpack.c.bf16 %v3380, %v3379
    %v3398 = vpack.c.bf16 %v3382, %v3381
    %v3399 = vpack.c.bf16 %v3384, %v3383
    %v3400 = vpack.c.bf16 %v3386, %v3385
    %v3401 = vpack.c.bf16 %v3388, %v3387
    %v3402 = vpack.c.bf16 %v3390, %v3389
    %v3407 = vunpack.c.l.b16 %v3391
    %v3408 = vunpack.c.l.b16 %v3392
    %v3409 = vunpack.c.l.b16 %v3393
    %v3410 = vunpack.c.l.b16 %v3394
    %v3411 = vpack.c.b16 %v3408, %v3407
    %v3412 = vpack.c.b16 %v3410, %v3409
    %v3416 = vsel %vm761, %v3395, 0
    %v3419 = vsel %vm761, %v3396, 0
    %v3422 = vsel %vm761, %v3397, 0
    %v3425 = vsel %vm761, %v3398, 0
    %v3428 = vsel %vm761, %v3399, 0
    %v3431 = vsel %vm761, %v3400, 0
    %v3434 = vsel %vm761, %v3401, 0
    %v3437 = vsel %vm761, %v3402, 0
    %3439 = vmatprep.subr.bf16.mxu0 0
    %3440 = vmatpush1.bf16.msra.mxu0 0
    %3441 = vmatprep.subr.bf16.mxu0 0
    %3442 = vmatpush1.bf16.msra.mxu0 0
    %3443 = vmatprep.subr.bf16.mxu0 0
    %3444 = vmatpush1.bf16.msra.mxu0 0
    %3445 = vmatprep.subr.bf16.mxu0 0
    %3446 = vmatpush1.bf16.msra.mxu0 0
    %3447 = vmatprep.subr.bf16.mxu0 0
    %3448 = vmatpush1.bf16.msra.mxu0 0
    %3449 = vmatprep.subr.bf16.mxu0 0
    %3450 = vmatpush1.bf16.msra.mxu0 0
    %3451 = vmatprep.subr.bf16.mxu0 0
    %3452 = vmatpush1.bf16.msra.mxu0 %v3412
    %3453 = vmatprep.subr.bf16.mxu0 0
    %3454 = vmatpush1.bf16.msra.mxu0 %v3411
    %3455 = vmatprep.subr.bf16.mxu0 0
    %3456 = vmatpush2.bf16.msra.mxu0 0
    %3457 = vmatprep.subr.bf16.mxu0 0
    %3458 = vmatpush2.bf16.msra.mxu0 0
    %3459 = vmatprep.subr.bf16.mxu0 0
    %3460 = vmatpush2.bf16.msra.mxu0 0
    %3461 = vmatprep.subr.bf16.mxu0 0
    %3462 = vmatpush2.bf16.msra.mxu0 0
    %3463 = vmatprep.subr.bf16.mxu0 0
    %3464 = vmatpush2.bf16.msra.mxu0 0
    %3465 = vmatprep.subr.bf16.mxu0 0
    %3466 = vmatpush2.bf16.msra.mxu0 0
    %3467 = vmatprep.subr.bf16.mxu0 0
    %3468 = vmatpush2.bf16.msra.mxu0 0
    %3469 = vmatprep.subr.bf16.mxu0 0
    %3470 = vmatpush2.bf16.msra.mxu0 0
    %3471 = vmatprep.mubr.bf16.mxu0 0
    %3472 = vmatmul.mubr.bf16.gmra.mxu0 %v3416
    %v3473 = vpop.f32.mrf.mxu0
    %v3474 = vadd.f32 0.0, %v3473
    %v3475 = vpop.f32.mrf.mxu0
    %v3476 = vpop.f32.mrf.mxu0
    %v3477 = vadd.f32 0.0, %v3476
    %v3478 = vpop.f32.mrf.mxu0
    %3479 = vmatprep.mubr.bf16.mxu0 0
    %3480 = vmatmul.mubr.bf16.gmra.mxu0 %v3419
    %v3481 = vpop.f32.mrf.mxu0
    %v3482 = vadd.f32 0.0, %v3481
    %v3483 = vpop.f32.mrf.mxu0
    %v3484 = vpop.f32.mrf.mxu0
    %v3485 = vadd.f32 0.0, %v3484
    %v3486 = vpop.f32.mrf.mxu0
    %3487 = vmatprep.mubr.bf16.mxu0 0
    %3488 = vmatmul.mubr.bf16.gmra.mxu0 %v3422
    %v3489 = vpop.f32.mrf.mxu0
    %v3490 = vadd.f32 0.0, %v3489
    %v3491 = vpop.f32.mrf.mxu0
    %v3492 = vpop.f32.mrf.mxu0
    %v3493 = vadd.f32 0.0, %v3492
    %v3494 = vpop.f32.mrf.mxu0
    %3495 = vmatprep.mubr.bf16.mxu0 0
    %3496 = vmatmul.mubr.bf16.gmra.mxu0 %v3425
    %v3497 = vpop.f32.mrf.mxu0
    %v3498 = vadd.f32 0.0, %v3497
    %v3499 = vpop.f32.mrf.mxu0
    %v3500 = vpop.f32.mrf.mxu0
    %v3501 = vadd.f32 0.0, %v3500
    %v3502 = vpop.f32.mrf.mxu0
    %3503 = vmatprep.mubr.bf16.mxu0 0
    %3504 = vmatmul.mubr.bf16.gmra.mxu0 %v3428
    %v3505 = vpop.f32.mrf.mxu0
    %v3506 = vadd.f32 0.0, %v3505
    %v3507 = vpop.f32.mrf.mxu0
    %v3508 = vpop.f32.mrf.mxu0
    %v3509 = vadd.f32 0.0, %v3508
    %v3510 = vpop.f32.mrf.mxu0
    %3511 = vmatprep.mubr.bf16.mxu0 0
    %3512 = vmatmul.mubr.bf16.gmra.mxu0 %v3431
    %v3513 = vpop.f32.mrf.mxu0
    %v3514 = vadd.f32 0.0, %v3513
    %v3515 = vpop.f32.mrf.mxu0
    %v3516 = vpop.f32.mrf.mxu0
    %v3517 = vadd.f32 0.0, %v3516
    %v3518 = vpop.f32.mrf.mxu0
    %3519 = vmatprep.mubr.bf16.mxu0 0
    %3520 = vmatmul.mubr.bf16.gmra.mxu0 %v3434
    %v3521 = vpop.f32.mrf.mxu0
    %v3522 = vadd.f32 0.0, %v3521
    %v3523 = vpop.f32.mrf.mxu0
    %v3524 = vpop.f32.mrf.mxu0
    %v3525 = vadd.f32 0.0, %v3524
    %v3526 = vpop.f32.mrf.mxu0
    %3527 = vmatprep.mubr.bf16.mxu0 0
    %3528 = vmatmul.mubr.bf16.gmra.mxu0 %v3437
    %v3529 = vpop.f32.mrf.mxu0
    %v3530 = vadd.f32 0.0, %v3529
    %v3531 = vpop.f32.mrf.mxu0
    %v3532 = vpop.f32.mrf.mxu0
    %v3533 = vadd.f32 0.0, %v3532
    %v3534 = vpop.f32.mrf.mxu0
    %3535 = vdwg.mxu0
    %v3540 = vunpack.c.l.b16 %v3363
    %v3541 = vunpack.c.l.b16 %v3364
    %v3542 = vunpack.c.l.b16 %v3365
    %v3543 = vunpack.c.l.b16 %v3366
    %v3544 = vpack.c.b16 %v3541, %v3540
    %v3545 = vpack.c.b16 %v3543, %v3542
    %v3549 = vsel %vm761, %v3367, 0
    %v3552 = vsel %vm761, %v3368, 0
    %v3555 = vsel %vm761, %v3369, 0
    %v3558 = vsel %vm761, %v3370, 0
    %v3561 = vsel %vm761, %v3371, 0
    %v3564 = vsel %vm761, %v3372, 0
    %v3567 = vsel %vm761, %v3373, 0
    %v3570 = vsel %vm761, %v3374, 0
    %3572 = vmatprep.subr.bf16.mxu0 0
    %3573 = vmatpush1.bf16.msra.mxu0 0
    %3574 = vmatprep.subr.bf16.mxu0 0
    %3575 = vmatpush1.bf16.msra.mxu0 0
    %3576 = vmatprep.subr.bf16.mxu0 0
    %3577 = vmatpush1.bf16.msra.mxu0 0
    %3578 = vmatprep.subr.bf16.mxu0 0
    %3579 = vmatpush1.bf16.msra.mxu0 0
    %3580 = vmatprep.subr.bf16.mxu0 0
    %3581 = vmatpush1.bf16.msra.mxu0 0
    %3582 = vmatprep.subr.bf16.mxu0 0
    %3583 = vmatpush1.bf16.msra.mxu0 0
    %3584 = vmatprep.subr.bf16.mxu0 0
    %3585 = vmatpush1.bf16.msra.mxu0 %v3545
    %3586 = vmatprep.subr.bf16.mxu0 0
    %3587 = vmatpush1.bf16.msra.mxu0 %v3544
    %3588 = vmatprep.subr.bf16.mxu0 0
    %3589 = vmatpush2.bf16.msra.mxu0 0
    %3590 = vmatprep.subr.bf16.mxu0 0
    %3591 = vmatpush2.bf16.msra.mxu0 0
    %3592 = vmatprep.subr.bf16.mxu0 0
    %3593 = vmatpush2.bf16.msra.mxu0 0
    %3594 = vmatprep.subr.bf16.mxu0 0
    %3595 = vmatpush2.bf16.msra.mxu0 0
    %3596 = vmatprep.subr.bf16.mxu0 0
    %3597 = vmatpush2.bf16.msra.mxu0 0
    %3598 = vmatprep.subr.bf16.mxu0 0
    %3599 = vmatpush2.bf16.msra.mxu0 0
    %3600 = vmatprep.subr.bf16.mxu0 0
    %3601 = vmatpush2.bf16.msra.mxu0 0
    %3602 = vmatprep.subr.bf16.mxu0 0
    %3603 = vmatpush2.bf16.msra.mxu0 0
    %3604 = vmatprep.mubr.bf16.mxu0 0
    %3605 = vmatmul.mubr.bf16.gmra.mxu0 %v3549
    %v3606 = vpop.f32.mrf.mxu0
    %v3607 = vadd.f32 %v3474, %v3606
    %v3608 = vpop.f32.mrf.mxu0
    %v3609 = vpop.f32.mrf.mxu0
    %v3610 = vadd.f32 %v3477, %v3609
    %v3611 = vpop.f32.mrf.mxu0
    %3612 = vmatprep.mubr.bf16.mxu0 0
    %3613 = vmatmul.mubr.bf16.gmra.mxu0 %v3552
    %v3614 = vpop.f32.mrf.mxu0
    %v3615 = vadd.f32 %v3482, %v3614
    %v3616 = vpop.f32.mrf.mxu0
    %v3617 = vpop.f32.mrf.mxu0
    %v3618 = vadd.f32 %v3485, %v3617
    %v3619 = vpop.f32.mrf.mxu0
    %3620 = vmatprep.mubr.bf16.mxu0 0
    %3621 = vmatmul.mubr.bf16.gmra.mxu0 %v3555
    %v3622 = vpop.f32.mrf.mxu0
    %v3623 = vadd.f32 %v3490, %v3622
    %v3624 = vpop.f32.mrf.mxu0
    %v3625 = vpop.f32.mrf.mxu0
    %v3626 = vadd.f32 %v3493, %v3625
    %v3627 = vpop.f32.mrf.mxu0
    %3628 = vmatprep.mubr.bf16.mxu0 0
    %3629 = vmatmul.mubr.bf16.gmra.mxu0 %v3558
    %v3630 = vpop.f32.mrf.mxu0
    %v3631 = vadd.f32 %v3498, %v3630
    %v3632 = vpop.f32.mrf.mxu0
    %v3633 = vpop.f32.mrf.mxu0
    %v3634 = vadd.f32 %v3501, %v3633
    %v3635 = vpop.f32.mrf.mxu0
    %3636 = vmatprep.mubr.bf16.mxu0 0
    %3637 = vmatmul.mubr.bf16.gmra.mxu0 %v3561
    %v3638 = vpop.f32.mrf.mxu0
    %v3639 = vadd.f32 %v3506, %v3638
    %v3640 = vpop.f32.mrf.mxu0
    %v3641 = vpop.f32.mrf.mxu0
    %v3642 = vadd.f32 %v3509, %v3641
    %v3643 = vpop.f32.mrf.mxu0
    %3644 = vmatprep.mubr.bf16.mxu0 0
    %3645 = vmatmul.mubr.bf16.gmra.mxu0 %v3564
    %v3646 = vpop.f32.mrf.mxu0
    %v3647 = vadd.f32 %v3514, %v3646
    %v3648 = vpop.f32.mrf.mxu0
    %v3649 = vpop.f32.mrf.mxu0
    %v3650 = vadd.f32 %v3517, %v3649
    %v3651 = vpop.f32.mrf.mxu0
    %3652 = vmatprep.mubr.bf16.mxu0 0
    %3653 = vmatmul.mubr.bf16.gmra.mxu0 %v3567
    %v3654 = vpop.f32.mrf.mxu0
    %v3655 = vadd.f32 %v3522, %v3654
    %v3656 = vpop.f32.mrf.mxu0
    %v3657 = vpop.f32.mrf.mxu0
    %v3658 = vadd.f32 %v3525, %v3657
    %v3659 = vpop.f32.mrf.mxu0
    %3660 = vmatprep.mubr.bf16.mxu0 0
    %3661 = vmatmul.mubr.bf16.gmra.mxu0 %v3570
    %v3662 = vpop.f32.mrf.mxu0
    %v3663 = vadd.f32 %v3530, %v3662
    %v3664 = vpop.f32.mrf.mxu0
    %v3665 = vpop.f32.mrf.mxu0
    %v3666 = vadd.f32 %v3533, %v3665
    %v3667 = vpop.f32.mrf.mxu0
    %3668 = vdwg.mxu0
    %v3669 = vld [vmem:[%s33] sm:$0x1]
    %v3671 = vlaneseq
    %v3672 = vshrl.u32 %v3671, 7
    %v3673 = vsub.s32 0, %v3672
    %v3674 = vrot.slane %v3669, %v3673
    %v3676 = vadd.f32 %v3607, %v3674
    %v3677 = vadd.f32 %v3610, %v3674
    %v3678 = vadd.f32 %v3615, %v3674
    %v3679 = vadd.f32 %v3618, %v3674
    %v3680 = vadd.f32 %v3623, %v3674
    %v3681 = vadd.f32 %v3626, %v3674
    %v3682 = vadd.f32 %v3631, %v3674
    %v3683 = vadd.f32 %v3634, %v3674
    %v3684 = vadd.f32 %v3639, %v3674
    %v3685 = vadd.f32 %v3642, %v3674
    %v3686 = vadd.f32 %v3647, %v3674
    %v3687 = vadd.f32 %v3650, %v3674
    %v3688 = vadd.f32 %v3655, %v3674
    %v3689 = vadd.f32 %v3658, %v3674
    %v3690 = vadd.f32 %v3663, %v3674
    %v3691 = vadd.f32 %v3666, %v3674
    %v3692 = vmax.f32 %v3676, 0.0
    %v3693 = vmax.f32 %v3677, 0.0
    %v3694 = vmax.f32 %v3678, 0.0
    %v3695 = vmax.f32 %v3679, 0.0
    %v3696 = vmax.f32 %v3680, 0.0
    %v3697 = vmax.f32 %v3681, 0.0
    %v3698 = vmax.f32 %v3682, 0.0
    %v3699 = vmax.f32 %v3683, 0.0
    %v3700 = vmax.f32 %v3684, 0.0
    %v3701 = vmax.f32 %v3685, 0.0
    %v3702 = vmax.f32 %v3686, 0.0
    %v3703 = vmax.f32 %v3687, 0.0
    %v3704 = vmax.f32 %v3688, 0.0
    %v3705 = vmax.f32 %v3689, 0.0
    %v3706 = vmax.f32 %v3690, 0.0
    %v3707 = vmax.f32 %v3691, 0.0
    %v3708 = vld [vmem:[%s39] sm:$0xf]
    %v3709 = vld [vmem:[%s39 + $0x4] sm:$0xf]
    %v3710 = vld [vmem:[%s39 + $0x8] sm:$0xf]
    %v3711 = vld [vmem:[%s39 + $0xc] sm:$0xf]
    %v3712 = vld [vmem:[%s41] sm:$0xf]
    %v3713 = vld [vmem:[%s41 + $0x4] sm:$0xf]
    %v3714 = vld [vmem:[%s41 + $0x8] sm:$0xf]
    %v3715 = vld [vmem:[%s41 + $0xc] sm:$0xf]
    %v3716 = vld [vmem:[%s47] sm:$0xf]
    %v3717 = vld [vmem:[%s47 + $0x4] sm:$0xf]
    %v3718 = vld [vmem:[%s47 + $0x8] sm:$0xf]
    %v3719 = vld [vmem:[%s47 + $0xc] sm:$0xf]
    %v3720 = vld [vmem:[%s49] sm:$0xf]
    %v3721 = vld [vmem:[%s49 + $0x4] sm:$0xf]
    %v3722 = vld [vmem:[%s49 + $0x8] sm:$0xf]
    %v3723 = vld [vmem:[%s49 + $0xc] sm:$0xf]
    %v3724 = vld [vmem:[#allocation12] sm:$0x1]
    %v3726 = vlaneseq
    %v3727 = vshrl.u32 %v3726, 7
    %v3728 = vsub.s32 0, %v3727
    %v3729 = vrot.slane %v3724, %v3728
    %v3731 = vld [vmem:[#allocation15] sm:$0x1]
    %v3733 = vlaneseq
    %v3734 = vshrl.u32 %v3733, 7
    %v3735 = vsub.s32 0, %v3734
    %v3736 = vrot.slane %v3731, %v3735
    %v3738 = vld [vmem:[%s35] sm:$0xff]
    %v3739 = vld [vmem:[%s35 + $0x8] sm:$0xff]
    %v3740 = vld [vmem:[%s35 + $0x10] sm:$0xff]
    %v3741 = vld [vmem:[%s35 + $0x18] sm:$0xff]
    %v3742 = vpack.c.bf16 %v3693, %v3692
    %v3743 = vpack.c.bf16 %v3695, %v3694
    %v3744 = vpack.c.bf16 %v3697, %v3696
    %v3745 = vpack.c.bf16 %v3699, %v3698
    %v3746 = vpack.c.bf16 %v3701, %v3700
    %v3747 = vpack.c.bf16 %v3703, %v3702
    %v3748 = vpack.c.bf16 %v3705, %v3704
    %v3749 = vpack.c.bf16 %v3707, %v3706
    %v3750 = vld [vmem:[#allocation9] sm:$0x3]
    %v3752 = vlaneseq
    %v3753 = vshrl.u32 %v3752, 7
    %v3754 = vsub.s32 0, %v3753
    %v3755 = vrot.slane %v3750, %v3754
    %v3756 = vlaneseq
    %v3757 = vshrl.u32 %v3756, 7
    %v3758 = vsub.s32 1, %v3757
    %v3759 = vrot.slane %v3750, %v3758
    %v3766 = vunpack.c.l.b16 %v3738
    %v3767 = vunpack.c.h.b16 %v3738
    %v3768 = vunpack.c.l.b16 %v3739
    %v3769 = vunpack.c.h.b16 %v3739
    %v3770 = vunpack.c.l.b16 %v3740
    %v3771 = vunpack.c.h.b16 %v3740
    %v3772 = vunpack.c.l.b16 %v3741
    %v3773 = vunpack.c.h.b16 %v3741
    %v3774 = vpack.c.b16 %v3768, %v3766
    %v3775 = vpack.c.b16 %v3769, %v3767
    %v3776 = vpack.c.b16 %v3772, %v3770
    %v3777 = vpack.c.b16 %v3773, %v3771
    %v3783 = vsel %vm761, %v3742, 0
    %v3786 = vsel %vm761, %v3743, 0
    %v3789 = vsel %vm761, %v3744, 0
    %v3792 = vsel %vm761, %v3745, 0
    %v3795 = vsel %vm761, %v3746, 0
    %v3798 = vsel %vm761, %v3747, 0
    %v3801 = vsel %vm761, %v3748, 0
    %v3804 = vsel %vm761, %v3749, 0
    %3806 = vmatprep.subr.bf16.mxu0 0
    %3807 = vmatpush1.bf16.msra.mxu0 0
    %3808 = vmatprep.subr.bf16.mxu0 0
    %3809 = vmatpush1.bf16.msra.mxu0 0
    %3810 = vmatprep.subr.bf16.mxu0 0
    %3811 = vmatpush1.bf16.msra.mxu0 0
    %3812 = vmatprep.subr.bf16.mxu0 0
    %3813 = vmatpush1.bf16.msra.mxu0 0
    %3814 = vmatprep.subr.bf16.mxu0 0
    %3815 = vmatpush1.bf16.msra.mxu0 0
    %3816 = vmatprep.subr.bf16.mxu0 0
    %3817 = vmatpush1.bf16.msra.mxu0 0
    %3818 = vmatprep.subr.bf16.mxu0 %v3777
    %3819 = vmatpush1.bf16.msra.mxu0 %v3776
    %3820 = vmatprep.subr.bf16.mxu0 %v3775
    %3821 = vmatpush1.bf16.msra.mxu0 %v3774
    %3822 = vmatprep.subr.bf16.mxu0 0
    %3823 = vmatpush2.bf16.msra.mxu0 0
    %3824 = vmatprep.subr.bf16.mxu0 0
    %3825 = vmatpush2.bf16.msra.mxu0 0
    %3826 = vmatprep.subr.bf16.mxu0 0
    %3827 = vmatpush2.bf16.msra.mxu0 0
    %3828 = vmatprep.subr.bf16.mxu0 0
    %3829 = vmatpush2.bf16.msra.mxu0 0
    %3830 = vmatprep.subr.bf16.mxu0 0
    %3831 = vmatpush2.bf16.msra.mxu0 0
    %3832 = vmatprep.subr.bf16.mxu0 0
    %3833 = vmatpush2.bf16.msra.mxu0 0
    %3834 = vmatprep.subr.bf16.mxu0 0
    %3835 = vmatpush2.bf16.msra.mxu0 0
    %3836 = vmatprep.subr.bf16.mxu0 0
    %3837 = vmatpush2.bf16.msra.mxu0 0
    %3838 = vmatprep.mubr.bf16.mxu0 0
    %3839 = vmatmul.mubr.bf16.gmra.mxu0 %v3783
    %v3840 = vpop.f32.mrf.mxu0
    %v3841 = vadd.f32 %v3755, %v3840
    %v3842 = vpop.f32.mrf.mxu0
    %v3843 = vadd.f32 %v3759, %v3842
    %v3844 = vpop.f32.mrf.mxu0
    %v3845 = vadd.f32 %v3755, %v3844
    %v3846 = vpop.f32.mrf.mxu0
    %v3847 = vadd.f32 %v3759, %v3846
    %3848 = vmatprep.mubr.bf16.mxu0 0
    %3849 = vmatmul.mubr.bf16.gmra.mxu0 %v3786
    %v3850 = vpop.f32.mrf.mxu0
    %v3851 = vadd.f32 %v3755, %v3850
    %v3852 = vpop.f32.mrf.mxu0
    %v3853 = vadd.f32 %v3759, %v3852
    %v3854 = vpop.f32.mrf.mxu0
    %v3855 = vadd.f32 %v3755, %v3854
    %v3856 = vpop.f32.mrf.mxu0
    %v3857 = vadd.f32 %v3759, %v3856
    %3858 = vmatprep.mubr.bf16.mxu0 0
    %3859 = vmatmul.mubr.bf16.gmra.mxu0 %v3789
    %v3860 = vpop.f32.mrf.mxu0
    %v3861 = vadd.f32 %v3755, %v3860
    %v3862 = vpop.f32.mrf.mxu0
    %v3863 = vadd.f32 %v3759, %v3862
    %v3864 = vpop.f32.mrf.mxu0
    %v3865 = vadd.f32 %v3755, %v3864
    %v3866 = vpop.f32.mrf.mxu0
    %v3867 = vadd.f32 %v3759, %v3866
    %3868 = vmatprep.mubr.bf16.mxu0 0
    %3869 = vmatmul.mubr.bf16.gmra.mxu0 %v3792
    %v3870 = vpop.f32.mrf.mxu0
    %v3871 = vadd.f32 %v3755, %v3870
    %v3872 = vpop.f32.mrf.mxu0
    %v3873 = vadd.f32 %v3759, %v3872
    %v3874 = vpop.f32.mrf.mxu0
    %v3875 = vadd.f32 %v3755, %v3874
    %v3876 = vpop.f32.mrf.mxu0
    %v3877 = vadd.f32 %v3759, %v3876
    %3878 = vmatprep.mubr.bf16.mxu0 0
    %3879 = vmatmul.mubr.bf16.gmra.mxu0 %v3795
    %v3880 = vpop.f32.mrf.mxu0
    %v3881 = vadd.f32 %v3755, %v3880
    %v3882 = vpop.f32.mrf.mxu0
    %v3883 = vadd.f32 %v3759, %v3882
    %v3884 = vpop.f32.mrf.mxu0
    %v3885 = vadd.f32 %v3755, %v3884
    %v3886 = vpop.f32.mrf.mxu0
    %v3887 = vadd.f32 %v3759, %v3886
    %3888 = vmatprep.mubr.bf16.mxu0 0
    %3889 = vmatmul.mubr.bf16.gmra.mxu0 %v3798
    %v3890 = vpop.f32.mrf.mxu0
    %v3891 = vadd.f32 %v3755, %v3890
    %v3892 = vpop.f32.mrf.mxu0
    %v3893 = vadd.f32 %v3759, %v3892
    %v3894 = vpop.f32.mrf.mxu0
    %v3895 = vadd.f32 %v3755, %v3894
    %v3896 = vpop.f32.mrf.mxu0
    %v3897 = vadd.f32 %v3759, %v3896
    %3898 = vmatprep.mubr.bf16.mxu0 0
    %3899 = vmatmul.mubr.bf16.gmra.mxu0 %v3801
    %v3900 = vpop.f32.mrf.mxu0
    %v3901 = vadd.f32 %v3755, %v3900
    %v3902 = vpop.f32.mrf.mxu0
    %v3903 = vadd.f32 %v3759, %v3902
    %v3904 = vpop.f32.mrf.mxu0
    %v3905 = vadd.f32 %v3755, %v3904
    %v3906 = vpop.f32.mrf.mxu0
    %v3907 = vadd.f32 %v3759, %v3906
    %3908 = vmatprep.mubr.bf16.mxu0 0
    %3909 = vmatmul.mubr.bf16.gmra.mxu0 %v3804
    %v3910 = vpop.f32.mrf.mxu0
    %v3911 = vadd.f32 %v3755, %v3910
    %v3912 = vpop.f32.mrf.mxu0
    %v3913 = vadd.f32 %v3759, %v3912
    %v3914 = vpop.f32.mrf.mxu0
    %v3915 = vadd.f32 %v3755, %v3914
    %v3916 = vpop.f32.mrf.mxu0
    %v3917 = vadd.f32 %v3759, %v3916
    %3918 = vdwg.mxu0
    %v3919 = vld [vmem:[#allocation10] sm:$0x1]
    %v3921 = vlaneseq
    %v3922 = vshrl.u32 %v3921, 7
    %v3923 = vsub.s32 0, %v3922
    %v3924 = vrot.slane %v3919, %v3923
    %v3926 = vadd.f32 %v3841, %v3924
    %v3927 = vadd.f32 %v3845, %v3924
    %v3928 = vadd.f32 %v3851, %v3924
    %v3929 = vadd.f32 %v3855, %v3924
    %v3930 = vadd.f32 %v3861, %v3924
    %v3931 = vadd.f32 %v3865, %v3924
    %v3932 = vadd.f32 %v3871, %v3924
    %v3933 = vadd.f32 %v3875, %v3924
    %v3934 = vadd.f32 %v3881, %v3924
    %v3935 = vadd.f32 %v3885, %v3924
    %v3936 = vadd.f32 %v3891, %v3924
    %v3937 = vadd.f32 %v3895, %v3924
    %v3938 = vadd.f32 %v3901, %v3924
    %v3939 = vadd.f32 %v3905, %v3924
    %v3940 = vadd.f32 %v3911, %v3924
    %v3941 = vadd.f32 %v3915, %v3924
    %v3942 = vld [vmem:[#allocation13] sm:$0x1]
    %v3944 = vlaneseq
    %v3945 = vshrl.u32 %v3944, 7
    %v3946 = vsub.s32 0, %v3945
    %v3947 = vrot.slane %v3942, %v3946
    %3948 = vrot.lane.b32.xlu0 %v3947, 64
    %v3949 = vpop.permute.xlu0 %3948
    %v3951 = vadd.f32 %v3841, %v3949
    %v3952 = vadd.f32 %v3845, %v3949
    %v3953 = vadd.f32 %v3851, %v3949
    %v3954 = vadd.f32 %v3855, %v3949
    %v3955 = vadd.f32 %v3861, %v3949
    %v3956 = vadd.f32 %v3865, %v3949
    %v3957 = vadd.f32 %v3871, %v3949
    %v3958 = vadd.f32 %v3875, %v3949
    %v3959 = vadd.f32 %v3881, %v3949
    %v3960 = vadd.f32 %v3885, %v3949
    %v3961 = vadd.f32 %v3891, %v3949
    %v3962 = vadd.f32 %v3895, %v3949
    %v3963 = vadd.f32 %v3901, %v3949
    %v3964 = vadd.f32 %v3905, %v3949
    %v3965 = vadd.f32 %v3911, %v3949
    %v3966 = vadd.f32 %v3915, %v3949
    %v3971 = vunpack.c.l.b16 %v3708
    %v3972 = vunpack.c.l.b16 %v3709
    %v3973 = vunpack.c.l.b16 %v3710
    %v3974 = vunpack.c.l.b16 %v3711
    %v3975 = vpack.c.b16 %v3972, %v3971
    %v3976 = vpack.c.b16 %v3974, %v3973
    %3979 = vmatprep.subr.bf16.mxu0 0
    %3980 = vmatpush1.bf16.msra.mxu0 0
    %3981 = vmatprep.subr.bf16.mxu0 0
    %3982 = vmatpush1.bf16.msra.mxu0 0
    %3983 = vmatprep.subr.bf16.mxu0 0
    %3984 = vmatpush1.bf16.msra.mxu0 0
    %3985 = vmatprep.subr.bf16.mxu0 0
    %3986 = vmatpush1.bf16.msra.mxu0 0
    %3987 = vmatprep.subr.bf16.mxu0 0
    %3988 = vmatpush1.bf16.msra.mxu0 0
    %3989 = vmatprep.subr.bf16.mxu0 0
    %3990 = vmatpush1.bf16.msra.mxu0 0
    %3991 = vmatprep.subr.bf16.mxu0 0
    %3992 = vmatpush1.bf16.msra.mxu0 %v3976
    %3993 = vmatprep.subr.bf16.mxu0 0
    %3994 = vmatpush1.bf16.msra.mxu0 %v3975
    %3995 = vmatprep.subr.bf16.mxu0 0
    %3996 = vmatpush2.bf16.msra.mxu0 0
    %3997 = vmatprep.subr.bf16.mxu0 0
    %3998 = vmatpush2.bf16.msra.mxu0 0
    %3999 = vmatprep.subr.bf16.mxu0 0
    %4000 = vmatpush2.bf16.msra.mxu0 0
    %4001 = vmatprep.subr.bf16.mxu0 0
    %4002 = vmatpush2.bf16.msra.mxu0 0
    %4003 = vmatprep.subr.bf16.mxu0 0
    %4004 = vmatpush2.bf16.msra.mxu0 0
    %4005 = vmatprep.subr.bf16.mxu0 0
    %4006 = vmatpush2.bf16.msra.mxu0 0
    %4007 = vmatprep.subr.bf16.mxu0 0
    %4008 = vmatpush2.bf16.msra.mxu0 0
    %4009 = vmatprep.subr.bf16.mxu0 0
    %4010 = vmatpush2.bf16.msra.mxu0 0
    %4011 = vmatprep.mubr.bf16.mxu0 0
    %4012 = vmatmul.mubr.bf16.gmra.mxu0 %v960
    %v4013 = vpop.f32.mrf.mxu0
    %v4014 = vadd.f32 0.0, %v4013
    %v4015 = vpop.f32.mrf.mxu0
    %v4016 = vpop.f32.mrf.mxu0
    %v4017 = vadd.f32 0.0, %v4016
    %v4018 = vpop.f32.mrf.mxu0
    %4019 = vdwg.mxu0
    %v4020 = vadd.f32 %v3926, %v4014
    %v4021 = vadd.f32 %v3927, %v4017
    %v4022 = vxor.u32 %v4020, 2147483648
    %v4023 = vxor.u32 %v4021, 2147483648
    %v4024 = vmul.f32 %v4022, 1.442695
    %v4025 = vpow.pop %v4024
    %v4026 = vmul.f32 %v4023, 1.442695
    %v4027 = vpow.pop %v4026
    %v4028 = vadd.f32 %v4025, 1.0
    %v4029 = vadd.f32 %v4027, 1.0
    %v4030 = vrcp.pop %v4028
    %v4031 = vmul.f32 1.0, %v4030
    %v4032 = vrcp.pop %v4029
    %v4033 = vmul.f32 1.0, %v4032
    %v4038 = vunpack.c.l.b16 %v3712
    %v4039 = vunpack.c.l.b16 %v3713
    %v4040 = vunpack.c.l.b16 %v3714
    %v4041 = vunpack.c.l.b16 %v3715
    %v4042 = vpack.c.b16 %v4039, %v4038
    %v4043 = vpack.c.b16 %v4041, %v4040
    %4046 = vmatprep.subr.bf16.mxu0 0
    %4047 = vmatpush1.bf16.msra.mxu0 0
    %4048 = vmatprep.subr.bf16.mxu0 0
    %4049 = vmatpush1.bf16.msra.mxu0 0
    %4050 = vmatprep.subr.bf16.mxu0 0
    %4051 = vmatpush1.bf16.msra.mxu0 0
    %4052 = vmatprep.subr.bf16.mxu0 0
    %4053 = vmatpush1.bf16.msra.mxu0 0
    %4054 = vmatprep.subr.bf16.mxu0 0
    %4055 = vmatpush1.bf16.msra.mxu0 0
    %4056 = vmatprep.subr.bf16.mxu0 0
    %4057 = vmatpush1.bf16.msra.mxu0 0
    %4058 = vmatprep.subr.bf16.mxu0 0
    %4059 = vmatpush1.bf16.msra.mxu0 %v4043
    %4060 = vmatprep.subr.bf16.mxu0 0
    %4061 = vmatpush1.bf16.msra.mxu0 %v4042
    %4062 = vmatprep.subr.bf16.mxu0 0
    %4063 = vmatpush2.bf16.msra.mxu0 0
    %4064 = vmatprep.subr.bf16.mxu0 0
    %4065 = vmatpush2.bf16.msra.mxu0 0
    %4066 = vmatprep.subr.bf16.mxu0 0
    %4067 = vmatpush2.bf16.msra.mxu0 0
    %4068 = vmatprep.subr.bf16.mxu0 0
    %4069 = vmatpush2.bf16.msra.mxu0 0
    %4070 = vmatprep.subr.bf16.mxu0 0
    %4071 = vmatpush2.bf16.msra.mxu0 0
    %4072 = vmatprep.subr.bf16.mxu0 0
    %4073 = vmatpush2.bf16.msra.mxu0 0
    %4074 = vmatprep.subr.bf16.mxu0 0
    %4075 = vmatpush2.bf16.msra.mxu0 0
    %4076 = vmatprep.subr.bf16.mxu0 0
    %4077 = vmatpush2.bf16.msra.mxu0 0
    %4078 = vmatprep.mubr.bf16.mxu0 0
    %4079 = vmatmul.mubr.bf16.gmra.mxu0 %v960
    %v4080 = vpop.f32.mrf.mxu0
    %v4081 = vadd.f32 %v3729, %v4080
    %v4082 = vpop.f32.mrf.mxu0
    %v4083 = vpop.f32.mrf.mxu0
    %v4084 = vadd.f32 %v3729, %v4083
    %v4085 = vpop.f32.mrf.mxu0
    %4086 = vdwg.mxu0
    %v4087 = vmul.f32 %v4031, %v4081
    %v4088 = vmul.f32 %v4033, %v4084
    %v4089 = vadd.f32 %v3843, %v4087
    %v4090 = vadd.f32 %v3847, %v4088
    %v4091 = vtanh.pop %v4089
    %v4092 = vtanh.pop %v4090
    %v4093 = vsub.f32 0.0, %v4091
    %v4094 = vsub.f32 0.0, %v4092
    %4097 = vrot.lane.b32.xlu0 %v4093, 32
    %v4098 = vpop.permute.xlu0 %4097
    %4099 = vrot.lane.b32.xlu0 %v4094, 32
    %v4100 = vpop.permute.xlu0 %4099
    %v4103 = vmul.f32 %v4031, %v4098
    %v4104 = vmul.f32 %v4033, %v4100
    %4107 = vrot.lane.b32.xlu0 %v4103, 96
    %v4108 = vpop.permute.xlu0 %4107
    %4109 = vrot.lane.b32.xlu0 %v4104, 96
    %v4110 = vpop.permute.xlu0 %4109
    %v4113 = vadd.f32 %v4091, %v4108
    %v4114 = vadd.f32 %v4092, %v4110
    %v4119 = vunpack.c.l.b16 %v3716
    %v4120 = vunpack.c.l.b16 %v3717
    %v4121 = vunpack.c.l.b16 %v3718
    %v4122 = vunpack.c.l.b16 %v3719
    %v4123 = vpack.c.b16 %v4120, %v4119
    %v4124 = vpack.c.b16 %v4122, %v4121
    %4127 = vmatprep.subr.bf16.mxu0 0
    %4128 = vmatpush1.bf16.msra.mxu0 0
    %4129 = vmatprep.subr.bf16.mxu0 0
    %4130 = vmatpush1.bf16.msra.mxu0 0
    %4131 = vmatprep.subr.bf16.mxu0 0
    %4132 = vmatpush1.bf16.msra.mxu0 0
    %4133 = vmatprep.subr.bf16.mxu0 0
    %4134 = vmatpush1.bf16.msra.mxu0 0
    %4135 = vmatprep.subr.bf16.mxu0 0
    %4136 = vmatpush1.bf16.msra.mxu0 0
    %4137 = vmatprep.subr.bf16.mxu0 0
    %4138 = vmatpush1.bf16.msra.mxu0 0
    %4139 = vmatprep.subr.bf16.mxu0 0
    %4140 = vmatpush1.bf16.msra.mxu0 %v4124
    %4141 = vmatprep.subr.bf16.mxu0 0
    %4142 = vmatpush1.bf16.msra.mxu0 %v4123
    %4143 = vmatprep.subr.bf16.mxu0 0
    %4144 = vmatpush2.bf16.msra.mxu0 0
    %4145 = vmatprep.subr.bf16.mxu0 0
    %4146 = vmatpush2.bf16.msra.mxu0 0
    %4147 = vmatprep.subr.bf16.mxu0 0
    %4148 = vmatpush2.bf16.msra.mxu0 0
    %4149 = vmatprep.subr.bf16.mxu0 0
    %4150 = vmatpush2.bf16.msra.mxu0 0
    %4151 = vmatprep.subr.bf16.mxu0 0
    %4152 = vmatpush2.bf16.msra.mxu0 0
    %4153 = vmatprep.subr.bf16.mxu0 0
    %4154 = vmatpush2.bf16.msra.mxu0 0
    %4155 = vmatprep.subr.bf16.mxu0 0
    %4156 = vmatpush2.bf16.msra.mxu0 0
    %4157 = vmatprep.subr.bf16.mxu0 0
    %4158 = vmatpush2.bf16.msra.mxu0 0
    %4159 = vmatprep.mubr.bf16.mxu0 0
    %4160 = vmatmul.mubr.bf16.gmra.mxu0 %v960
    %v4161 = vpop.f32.mrf.mxu0
    %v4162 = vadd.f32 0.0, %v4161
    %v4163 = vpop.f32.mrf.mxu0
    %v4164 = vpop.f32.mrf.mxu0
    %v4165 = vadd.f32 0.0, %v4164
    %v4166 = vpop.f32.mrf.mxu0
    %4167 = vdwg.mxu0
    %4170 = vrot.lane.b32.xlu0 %v4162, 64
    %v4171 = vpop.permute.xlu0 %4170
    %4172 = vrot.lane.b32.xlu0 %v4165, 64
    %v4173 = vpop.permute.xlu0 %4172
    %v4176 = vadd.f32 %v3965, %v4171
    %v4177 = vadd.f32 %v3966, %v4173
    %v4178 = vxor.u32 %v4176, 2147483648
    %v4179 = vxor.u32 %v4177, 2147483648
    %v4180 = vmul.f32 %v4178, 1.442695
    %v4181 = vpow.pop %v4180
    %v4182 = vmul.f32 %v4179, 1.442695
    %v4183 = vpow.pop %v4182
    %v4184 = vadd.f32 %v4181, 1.0
    %v4185 = vadd.f32 %v4183, 1.0
    %v4186 = vrcp.pop %v4184
    %v4187 = vmul.f32 1.0, %v4186
    %v4188 = vrcp.pop %v4185
    %v4189 = vmul.f32 1.0, %v4188
    %v4194 = vunpack.c.l.b16 %v3720
    %v4195 = vunpack.c.l.b16 %v3721
    %v4196 = vunpack.c.l.b16 %v3722
    %v4197 = vunpack.c.l.b16 %v3723
    %v4198 = vpack.c.b16 %v4195, %v4194
    %v4199 = vpack.c.b16 %v4197, %v4196
    %4202 = vmatprep.subr.bf16.mxu0 0
    %4203 = vmatpush1.bf16.msra.mxu0 0
    %4204 = vmatprep.subr.bf16.mxu0 0
    %4205 = vmatpush1.bf16.msra.mxu0 0
    %4206 = vmatprep.subr.bf16.mxu0 0
    %4207 = vmatpush1.bf16.msra.mxu0 0
    %4208 = vmatprep.subr.bf16.mxu0 0
    %4209 = vmatpush1.bf16.msra.mxu0 0
    %4210 = vmatprep.subr.bf16.mxu0 0
    %4211 = vmatpush1.bf16.msra.mxu0 0
    %4212 = vmatprep.subr.bf16.mxu0 0
    %4213 = vmatpush1.bf16.msra.mxu0 0
    %4214 = vmatprep.subr.bf16.mxu0 0
    %4215 = vmatpush1.bf16.msra.mxu0 %v4199
    %4216 = vmatprep.subr.bf16.mxu0 0
    %4217 = vmatpush1.bf16.msra.mxu0 %v4198
    %4218 = vmatprep.subr.bf16.mxu0 0
    %4219 = vmatpush2.bf16.msra.mxu0 0
    %4220 = vmatprep.subr.bf16.mxu0 0
    %4221 = vmatpush2.bf16.msra.mxu0 0
    %4222 = vmatprep.subr.bf16.mxu0 0
    %4223 = vmatpush2.bf16.msra.mxu0 0
    %4224 = vmatprep.subr.bf16.mxu0 0
    %4225 = vmatpush2.bf16.msra.mxu0 0
    %4226 = vmatprep.subr.bf16.mxu0 0
    %4227 = vmatpush2.bf16.msra.mxu0 0
    %4228 = vmatprep.subr.bf16.mxu0 0
    %4229 = vmatpush2.bf16.msra.mxu0 0
    %4230 = vmatprep.subr.bf16.mxu0 0
    %4231 = vmatpush2.bf16.msra.mxu0 0
    %4232 = vmatprep.subr.bf16.mxu0 0
    %4233 = vmatpush2.bf16.msra.mxu0 0
    %4234 = vmatprep.mubr.bf16.mxu0 0
    %4235 = vmatmul.mubr.bf16.gmra.mxu0 %v960
    %v4236 = vpop.f32.mrf.mxu0
    %v4237 = vadd.f32 %v3736, %v4236
    %v4238 = vpop.f32.mrf.mxu0
    %v4239 = vpop.f32.mrf.mxu0
    %v4240 = vadd.f32 %v3736, %v4239
    %v4241 = vpop.f32.mrf.mxu0
    %4242 = vdwg.mxu0
    %4245 = vrot.lane.b32.xlu0 %v4237, 64
    %v4246 = vpop.permute.xlu0 %4245
    %4247 = vrot.lane.b32.xlu0 %v4240, 64
    %v4248 = vpop.permute.xlu0 %4247
    %v4251 = vmul.f32 %v4187, %v4246
    %v4252 = vmul.f32 %v4189, %v4248
    %4255 = vrot.lane.b32.xlu0 %v4251, 96
    %v4256 = vpop.permute.xlu0 %4255
    %4257 = vrot.lane.b32.xlu0 %v4252, 96
    %v4258 = vpop.permute.xlu0 %4257
    %v4261 = vadd.f32 %v3913, %v4256
    %v4262 = vadd.f32 %v3917, %v4258
    %v4263 = vtanh.pop %v4261
    %v4264 = vtanh.pop %v4262
    %v4265 = vsub.f32 0.0, %v4263
    %v4266 = vsub.f32 0.0, %v4264
    %4269 = vrot.lane.b32.xlu0 %v4265, 64
    %v4270 = vpop.permute.xlu0 %4269
    %4271 = vrot.lane.b32.xlu0 %v4266, 64
    %v4272 = vpop.permute.xlu0 %4271
    %v4275 = vmul.f32 %v4187, %v4270
    %v4276 = vmul.f32 %v4189, %v4272
    %4279 = vrot.lane.b32.xlu0 %v4275, 64
    %v4280 = vpop.permute.xlu0 %4279
    %4281 = vrot.lane.b32.xlu0 %v4276, 64
    %v4282 = vpop.permute.xlu0 %4281
    %v4285 = vadd.f32 %v4263, %v4280
    %v4286 = vadd.f32 %v4264, %v4282
    %4287 = vst.msk [vmem:[#allocation2] sm:$0xff] %vm761, %v4113
    %4288 = vst.msk [vmem:[#allocation2 + $0x8] sm:$0xff] %vm761, %v4114
    %4291 = vrot.lane.b32.xlu0 %v4285, 96
    %v4292 = vpop.permute.xlu0 %4291
    %4293 = vrot.lane.b32.xlu0 %v4286, 96
    %v4294 = vpop.permute.xlu0 %4293
    %4297 = vst.msk [vmem:[#allocation3 + $0x70] sm:$0xff] %vm761, %v4292
    %4298 = vst.msk [vmem:[#allocation3 + $0x78] sm:$0xff] %vm761, %v4294
    %v4299 = vpack.c.bf16 %v4114, %v4113
    %v4301 = vsel %vm761, %v4299, 0
    %4303 = vmatprep.subr.bf16.mxu0 0
    %4304 = vmatpush1.bf16.msra.mxu0 0
    %4305 = vmatprep.subr.bf16.mxu0 0
    %4306 = vmatpush1.bf16.msra.mxu0 0
    %4307 = vmatprep.subr.bf16.mxu0 0
    %4308 = vmatpush1.bf16.msra.mxu0 0
    %4309 = vmatprep.subr.bf16.mxu0 0
    %4310 = vmatpush1.bf16.msra.mxu0 0
    %4311 = vmatprep.subr.bf16.mxu0 0
    %4312 = vmatpush1.bf16.msra.mxu0 0
    %4313 = vmatprep.subr.bf16.mxu0 0
    %4314 = vmatpush1.bf16.msra.mxu0 0
    %4315 = vmatprep.subr.bf16.mxu0 0
    %4316 = vmatpush1.bf16.msra.mxu0 %v3976
    %4317 = vmatprep.subr.bf16.mxu0 0
    %4318 = vmatpush1.bf16.msra.mxu0 %v3975
    %4319 = vmatprep.subr.bf16.mxu0 0
    %4320 = vmatpush2.bf16.msra.mxu0 0
    %4321 = vmatprep.subr.bf16.mxu0 0
    %4322 = vmatpush2.bf16.msra.mxu0 0
    %4323 = vmatprep.subr.bf16.mxu0 0
    %4324 = vmatpush2.bf16.msra.mxu0 0
    %4325 = vmatprep.subr.bf16.mxu0 0
    %4326 = vmatpush2.bf16.msra.mxu0 0
    %4327 = vmatprep.subr.bf16.mxu0 0
    %4328 = vmatpush2.bf16.msra.mxu0 0
    %4329 = vmatprep.subr.bf16.mxu0 0
    %4330 = vmatpush2.bf16.msra.mxu0 0
    %4331 = vmatprep.subr.bf16.mxu0 0
    %4332 = vmatpush2.bf16.msra.mxu0 0
    %4333 = vmatprep.subr.bf16.mxu0 0
    %4334 = vmatpush2.bf16.msra.mxu0 0
    %4335 = vmatprep.mubr.bf16.mxu0 0
    %4336 = vmatmul.mubr.bf16.gmra.mxu0 %v4301
    %v4337 = vpop.f32.mrf.mxu0
    %v4338 = vadd.f32 0.0, %v4337
    %v4339 = vpop.f32.mrf.mxu0
    %v4340 = vpop.f32.mrf.mxu0
    %v4341 = vadd.f32 0.0, %v4340
    %v4342 = vpop.f32.mrf.mxu0
    %4343 = vdwg.mxu0
    %v4344 = vadd.f32 %v3928, %v4338
    %v4345 = vadd.f32 %v3929, %v4341
    %v4346 = vxor.u32 %v4344, 2147483648
    %v4347 = vxor.u32 %v4345, 2147483648
    %v4348 = vmul.f32 %v4346, 1.442695
    %v4349 = vpow.pop %v4348
    %v4350 = vmul.f32 %v4347, 1.442695
    %v4351 = vpow.pop %v4350
    %v4352 = vadd.f32 %v4349, 1.0
    %v4353 = vadd.f32 %v4351, 1.0
    %v4354 = vrcp.pop %v4352
    %v4355 = vmul.f32 1.0, %v4354
    %v4356 = vrcp.pop %v4353
    %v4357 = vmul.f32 1.0, %v4356
    %4358 = vmatprep.subr.bf16.mxu0 0
    %4359 = vmatpush1.bf16.msra.mxu0 0
    %4360 = vmatprep.subr.bf16.mxu0 0
    %4361 = vmatpush1.bf16.msra.mxu0 0
    %4362 = vmatprep.subr.bf16.mxu0 0
    %4363 = vmatpush1.bf16.msra.mxu0 0
    %4364 = vmatprep.subr.bf16.mxu0 0
    %4365 = vmatpush1.bf16.msra.mxu0 0
    %4366 = vmatprep.subr.bf16.mxu0 0
    %4367 = vmatpush1.bf16.msra.mxu0 0
    %4368 = vmatprep.subr.bf16.mxu0 0
    %4369 = vmatpush1.bf16.msra.mxu0 0
    %4370 = vmatprep.subr.bf16.mxu0 0
    %4371 = vmatpush1.bf16.msra.mxu0 %v4043
    %4372 = vmatprep.subr.bf16.mxu0 0
    %4373 = vmatpush1.bf16.msra.mxu0 %v4042
    %4374 = vmatprep.subr.bf16.mxu0 0
    %4375 = vmatpush2.bf16.msra.mxu0 0
    %4376 = vmatprep.subr.bf16.mxu0 0
    %4377 = vmatpush2.bf16.msra.mxu0 0
    %4378 = vmatprep.subr.bf16.mxu0 0
    %4379 = vmatpush2.bf16.msra.mxu0 0
    %4380 = vmatprep.subr.bf16.mxu0 0
    %4381 = vmatpush2.bf16.msra.mxu0 0
    %4382 = vmatprep.subr.bf16.mxu0 0
    %4383 = vmatpush2.bf16.msra.mxu0 0
    %4384 = vmatprep.subr.bf16.mxu0 0
    %4385 = vmatpush2.bf16.msra.mxu0 0
    %4386 = vmatprep.subr.bf16.mxu0 0
    %4387 = vmatpush2.bf16.msra.mxu0 0
    %4388 = vmatprep.subr.bf16.mxu0 0
    %4389 = vmatpush2.bf16.msra.mxu0 0
    %4390 = vmatprep.mubr.bf16.mxu0 0
    %4391 = vmatmul.mubr.bf16.gmra.mxu0 %v4301
    %v4392 = vpop.f32.mrf.mxu0
    %v4393 = vadd.f32 %v3729, %v4392
    %v4394 = vpop.f32.mrf.mxu0
    %v4395 = vpop.f32.mrf.mxu0
    %v4396 = vadd.f32 %v3729, %v4395
    %v4397 = vpop.f32.mrf.mxu0
    %4398 = vdwg.mxu0
    %v4399 = vmul.f32 %v4355, %v4393
    %v4400 = vmul.f32 %v4357, %v4396
    %v4401 = vadd.f32 %v3853, %v4399
    %v4402 = vadd.f32 %v3857, %v4400
    %v4403 = vtanh.pop %v4401
    %v4404 = vtanh.pop %v4402
    %v4405 = vsub.f32 %v4113, %v4403
    %v4406 = vsub.f32 %v4114, %v4404
    %4409 = vrot.lane.b32.xlu0 %v4405, 32
    %v4410 = vpop.permute.xlu0 %4409
    %4411 = vrot.lane.b32.xlu0 %v4406, 32
    %v4412 = vpop.permute.xlu0 %4411
    %v4415 = vmul.f32 %v4355, %v4410
    %v4416 = vmul.f32 %v4357, %v4412
    %4419 = vrot.lane.b32.xlu0 %v4415, 96
    %v4420 = vpop.permute.xlu0 %4419
    %4421 = vrot.lane.b32.xlu0 %v4416, 96
    %v4422 = vpop.permute.xlu0 %4421
    %v4425 = vadd.f32 %v4403, %v4420
    %v4426 = vadd.f32 %v4404, %v4422
    %v4427 = vpack.c.bf16 %v4286, %v4285
    %4429 = vrot.lane.b32.xlu0 %v4427, 96
    %v4430 = vpop.permute.xlu0 %4429
    %v4432 = vsel %vm761, %v4430, 0
    %4434 = vmatprep.subr.bf16.mxu0 0
    %4435 = vmatpush1.bf16.msra.mxu0 0
    %4436 = vmatprep.subr.bf16.mxu0 0
    %4437 = vmatpush1.bf16.msra.mxu0 0
    %4438 = vmatprep.subr.bf16.mxu0 0
    %4439 = vmatpush1.bf16.msra.mxu0 0
    %4440 = vmatprep.subr.bf16.mxu0 0
    %4441 = vmatpush1.bf16.msra.mxu0 0
    %4442 = vmatprep.subr.bf16.mxu0 0
    %4443 = vmatpush1.bf16.msra.mxu0 0
    %4444 = vmatprep.subr.bf16.mxu0 0
    %4445 = vmatpush1.bf16.msra.mxu0 0
    %4446 = vmatprep.subr.bf16.mxu0 0
    %4447 = vmatpush1.bf16.msra.mxu0 %v4124
    %4448 = vmatprep.subr.bf16.mxu0 0
    %4449 = vmatpush1.bf16.msra.mxu0 %v4123
    %4450 = vmatprep.subr.bf16.mxu0 0
    %4451 = vmatpush2.bf16.msra.mxu0 0
    %4452 = vmatprep.subr.bf16.mxu0 0
    %4453 = vmatpush2.bf16.msra.mxu0 0
    %4454 = vmatprep.subr.bf16.mxu0 0
    %4455 = vmatpush2.bf16.msra.mxu0 0
    %4456 = vmatprep.subr.bf16.mxu0 0
    %4457 = vmatpush2.bf16.msra.mxu0 0
    %4458 = vmatprep.subr.bf16.mxu0 0
    %4459 = vmatpush2.bf16.msra.mxu0 0
    %4460 = vmatprep.subr.bf16.mxu0 0
    %4461 = vmatpush2.bf16.msra.mxu0 0
    %4462 = vmatprep.subr.bf16.mxu0 0
    %4463 = vmatpush2.bf16.msra.mxu0 0
    %4464 = vmatprep.subr.bf16.mxu0 0
    %4465 = vmatpush2.bf16.msra.mxu0 0
    %4466 = vmatprep.mubr.bf16.mxu0 0
    %4467 = vmatmul.mubr.bf16.gmra.mxu0 %v4432
    %v4468 = vpop.f32.mrf.mxu0
    %v4469 = vadd.f32 0.0, %v4468
    %v4470 = vpop.f32.mrf.mxu0
    %v4471 = vpop.f32.mrf.mxu0
    %v4472 = vadd.f32 0.0, %v4471
    %v4473 = vpop.f32.mrf.mxu0
    %4474 = vdwg.mxu0
    %4477 = vrot.lane.b32.xlu0 %v4469, 64
    %v4478 = vpop.permute.xlu0 %4477
    %4479 = vrot.lane.b32.xlu0 %v4472, 64
    %v4480 = vpop.permute.xlu0 %4479
    %v4483 = vadd.f32 %v3963, %v4478
    %v4484 = vadd.f32 %v3964, %v4480
    %v4485 = vxor.u32 %v4483, 2147483648
    %v4486 = vxor.u32 %v4484, 2147483648
    %v4487 = vmul.f32 %v4485, 1.442695
    %v4488 = vpow.pop %v4487
    %v4489 = vmul.f32 %v4486, 1.442695
    %v4490 = vpow.pop %v4489
    %v4491 = vadd.f32 %v4488, 1.0
    %v4492 = vadd.f32 %v4490, 1.0
    %v4493 = vrcp.pop %v4491
    %v4494 = vmul.f32 1.0, %v4493
    %v4495 = vrcp.pop %v4492
    %v4496 = vmul.f32 1.0, %v4495
    %4497 = vmatprep.subr.bf16.mxu0 0
    %4498 = vmatpush1.bf16.msra.mxu0 0
    %4499 = vmatprep.subr.bf16.mxu0 0
    %4500 = vmatpush1.bf16.msra.mxu0 0
    %4501 = vmatprep.subr.bf16.mxu0 0
    %4502 = vmatpush1.bf16.msra.mxu0 0
    %4503 = vmatprep.subr.bf16.mxu0 0
    %4504 = vmatpush1.bf16.msra.mxu0 0
    %4505 = vmatprep.subr.bf16.mxu0 0
    %4506 = vmatpush1.bf16.msra.mxu0 0
    %4507 = vmatprep.subr.bf16.mxu0 0
    %4508 = vmatpush1.bf16.msra.mxu0 0
    %4509 = vmatprep.subr.bf16.mxu0 0
    %4510 = vmatpush1.bf16.msra.mxu0 %v4199
    %4511 = vmatprep.subr.bf16.mxu0 0
    %4512 = vmatpush1.bf16.msra.mxu0 %v4198
    %4513 = vmatprep.subr.bf16.mxu0 0
    %4514 = vmatpush2.bf16.msra.mxu0 0
    %4515 = vmatprep.subr.bf16.mxu0 0
    %4516 = vmatpush2.bf16.msra.mxu0 0
    %4517 = vmatprep.subr.bf16.mxu0 0
    %4518 = vmatpush2.bf16.msra.mxu0 0
    %4519 = vmatprep.subr.bf16.mxu0 0
    %4520 = vmatpush2.bf16.msra.mxu0 0
    %4521 = vmatprep.subr.bf16.mxu0 0
    %4522 = vmatpush2.bf16.msra.mxu0 0
    %4523 = vmatprep.subr.bf16.mxu0 0
    %4524 = vmatpush2.bf16.msra.mxu0 0
    %4525 = vmatprep.subr.bf16.mxu0 0
    %4526 = vmatpush2.bf16.msra.mxu0 0
    %4527 = vmatprep.subr.bf16.mxu0 0
    %4528 = vmatpush2.bf16.msra.mxu0 0
    %4529 = vmatprep.mubr.bf16.mxu0 0
    %4530 = vmatmul.mubr.bf16.gmra.mxu0 %v4432
    %v4531 = vpop.f32.mrf.mxu0
    %v4532 = vadd.f32 %v3736, %v4531
    %v4533 = vpop.f32.mrf.mxu0
    %v4534 = vpop.f32.mrf.mxu0
    %v4535 = vadd.f32 %v3736, %v4534
    %v4536 = vpop.f32.mrf.mxu0
    %4537 = vdwg.mxu0
    %4540 = vrot.lane.b32.xlu0 %v4532, 64
    %v4541 = vpop.permute.xlu0 %4540
    %4542 = vrot.lane.b32.xlu0 %v4535, 64
    %v4543 = vpop.permute.xlu0 %4542
    %v4546 = vmul.f32 %v4494, %v4541
    %v4547 = vmul.f32 %v4496, %v4543
    %4550 = vrot.lane.b32.xlu0 %v4546, 96
    %v4551 = vpop.permute.xlu0 %4550
    %4552 = vrot.lane.b32.xlu0 %v4547, 96
    %v4553 = vpop.permute.xlu0 %4552
    %v4556 = vadd.f32 %v3903, %v4551
    %v4557 = vadd.f32 %v3907, %v4553
    %v4558 = vtanh.pop %v4556
    %v4559 = vtanh.pop %v4557
    %v4560 = vsub.f32 %v4285, %v4558
    %v4561 = vsub.f32 %v4286, %v4559
    %4564 = vrot.lane.b32.xlu0 %v4560, 64
    %v4565 = vpop.permute.xlu0 %4564
    %4566 = vrot.lane.b32.xlu0 %v4561, 64
    %v4567 = vpop.permute.xlu0 %4566
    %v4570 = vmul.f32 %v4494, %v4565
    %v4571 = vmul.f32 %v4496, %v4567
    %4574 = vrot.lane.b32.xlu0 %v4570, 64
    %v4575 = vpop.permute.xlu0 %4574
    %4576 = vrot.lane.b32.xlu0 %v4571, 64
    %v4577 = vpop.permute.xlu0 %4576
    %v4580 = vadd.f32 %v4558, %v4575
    %v4581 = vadd.f32 %v4559, %v4577
    %4582 = vst.msk [vmem:[#allocation2 + $0x10] sm:$0xff] %vm761, %v4425
    %4583 = vst.msk [vmem:[#allocation2 + $0x18] sm:$0xff] %vm761, %v4426
    %4586 = vrot.lane.b32.xlu0 %v4580, 96
    %v4587 = vpop.permute.xlu0 %4586
    %4588 = vrot.lane.b32.xlu0 %v4581, 96
    %v4589 = vpop.permute.xlu0 %4588
    %4592 = vst.msk [vmem:[#allocation3 + $0x60] sm:$0xff] %vm761, %v4587
    %4593 = vst.msk [vmem:[#allocation3 + $0x68] sm:$0xff] %vm761, %v4589
    %v4594 = vpack.c.bf16 %v4426, %v4425
    %v4596 = vsel %vm761, %v4594, 0
    %4598 = vmatprep.subr.bf16.mxu0 0
    %4599 = vmatpush1.bf16.msra.mxu0 0
    %4600 = vmatprep.subr.bf16.mxu0 0
    %4601 = vmatpush1.bf16.msra.mxu0 0
    %4602 = vmatprep.subr.bf16.mxu0 0
    %4603 = vmatpush1.bf16.msra.mxu0 0
    %4604 = vmatprep.subr.bf16.mxu0 0
    %4605 = vmatpush1.bf16.msra.mxu0 0
    %4606 = vmatprep.subr.bf16.mxu0 0
    %4607 = vmatpush1.bf16.msra.mxu0 0
    %4608 = vmatprep.subr.bf16.mxu0 0
    %4609 = vmatpush1.bf16.msra.mxu0 0
    %4610 = vmatprep.subr.bf16.mxu0 0
    %4611 = vmatpush1.bf16.msra.mxu0 %v3976
    %4612 = vmatprep.subr.bf16.mxu0 0
    %4613 = vmatpush1.bf16.msra.mxu0 %v3975
    %4614 = vmatprep.subr.bf16.mxu0 0
    %4615 = vmatpush2.bf16.msra.mxu0 0
    %4616 = vmatprep.subr.bf16.mxu0 0
    %4617 = vmatpush2.bf16.msra.mxu0 0
    %4618 = vmatprep.subr.bf16.mxu0 0
    %4619 = vmatpush2.bf16.msra.mxu0 0
    %4620 = vmatprep.subr.bf16.mxu0 0
    %4621 = vmatpush2.bf16.msra.mxu0 0
    %4622 = vmatprep.subr.bf16.mxu0 0
    %4623 = vmatpush2.bf16.msra.mxu0 0
    %4624 = vmatprep.subr.bf16.mxu0 0
    %4625 = vmatpush2.bf16.msra.mxu0 0
    %4626 = vmatprep.subr.bf16.mxu0 0
    %4627 = vmatpush2.bf16.msra.mxu0 0
    %4628 = vmatprep.subr.bf16.mxu0 0
    %4629 = vmatpush2.bf16.msra.mxu0 0
    %4630 = vmatprep.mubr.bf16.mxu0 0
    %4631 = vmatmul.mubr.bf16.gmra.mxu0 %v4596
    %v4632 = vpop.f32.mrf.mxu0
    %v4633 = vadd.f32 0.0, %v4632
    %v4634 = vpop.f32.mrf.mxu0
    %v4635 = vpop.f32.mrf.mxu0
    %v4636 = vadd.f32 0.0, %v4635
    %v4637 = vpop.f32.mrf.mxu0
    %4638 = vdwg.mxu0
    %v4639 = vadd.f32 %v3930, %v4633
    %v4640 = vadd.f32 %v3931, %v4636
    %v4641 = vxor.u32 %v4639, 2147483648
    %v4642 = vxor.u32 %v4640, 2147483648
    %v4643 = vmul.f32 %v4641, 1.442695
    %v4644 = vpow.pop %v4643
    %v4645 = vmul.f32 %v4642, 1.442695
    %v4646 = vpow.pop %v4645
    %v4647 = vadd.f32 %v4644, 1.0
    %v4648 = vadd.f32 %v4646, 1.0
    %v4649 = vrcp.pop %v4647
    %v4650 = vmul.f32 1.0, %v4649
    %v4651 = vrcp.pop %v4648
    %v4652 = vmul.f32 1.0, %v4651
    %4653 = vmatprep.subr.bf16.mxu0 0
    %4654 = vmatpush1.bf16.msra.mxu0 0
    %4655 = vmatprep.subr.bf16.mxu0 0
    %4656 = vmatpush1.bf16.msra.mxu0 0
    %4657 = vmatprep.subr.bf16.mxu0 0
    %4658 = vmatpush1.bf16.msra.mxu0 0
    %4659 = vmatprep.subr.bf16.mxu0 0
    %4660 = vmatpush1.bf16.msra.mxu0 0
    %4661 = vmatprep.subr.bf16.mxu0 0
    %4662 = vmatpush1.bf16.msra.mxu0 0
    %4663 = vmatprep.subr.bf16.mxu0 0
    %4664 = vmatpush1.bf16.msra.mxu0 0
    %4665 = vmatprep.subr.bf16.mxu0 0
    %4666 = vmatpush1.bf16.msra.mxu0 %v4043
    %4667 = vmatprep.subr.bf16.mxu0 0
    %4668 = vmatpush1.bf16.msra.mxu0 %v4042
    %4669 = vmatprep.subr.bf16.mxu0 0
    %4670 = vmatpush2.bf16.msra.mxu0 0
    %4671 = vmatprep.subr.bf16.mxu0 0
    %4672 = vmatpush2.bf16.msra.mxu0 0
    %4673 = vmatprep.subr.bf16.mxu0 0
    %4674 = vmatpush2.bf16.msra.mxu0 0
    %4675 = vmatprep.subr.bf16.mxu0 0
    %4676 = vmatpush2.bf16.msra.mxu0 0
    %4677 = vmatprep.subr.bf16.mxu0 0
    %4678 = vmatpush2.bf16.msra.mxu0 0
    %4679 = vmatprep.subr.bf16.mxu0 0
    %4680 = vmatpush2.bf16.msra.mxu0 0
    %4681 = vmatprep.subr.bf16.mxu0 0
    %4682 = vmatpush2.bf16.msra.mxu0 0
    %4683 = vmatprep.subr.bf16.mxu0 0
    %4684 = vmatpush2.bf16.msra.mxu0 0
    %4685 = vmatprep.mubr.bf16.mxu0 0
    %4686 = vmatmul.mubr.bf16.gmra.mxu0 %v4596
    %v4687 = vpop.f32.mrf.mxu0
    %v4688 = vadd.f32 %v3729, %v4687
    %v4689 = vpop.f32.mrf.mxu0
    %v4690 = vpop.f32.mrf.mxu0
    %v4691 = vadd.f32 %v3729, %v4690
    %v4692 = vpop.f32.mrf.mxu0
    %4693 = vdwg.mxu0
    %v4694 = vmul.f32 %v4650, %v4688
    %v4695 = vmul.f32 %v4652, %v4691
    %v4696 = vadd.f32 %v3863, %v4694
    %v4697 = vadd.f32 %v3867, %v4695
    %v4698 = vtanh.pop %v4696
    %v4699 = vtanh.pop %v4697
    %v4700 = vsub.f32 %v4425, %v4698
    %v4701 = vsub.f32 %v4426, %v4699
    %4704 = vrot.lane.b32.xlu0 %v4700, 32
    %v4705 = vpop.permute.xlu0 %4704
    %4706 = vrot.lane.b32.xlu0 %v4701, 32
    %v4707 = vpop.permute.xlu0 %4706
    %v4710 = vmul.f32 %v4650, %v4705
    %v4711 = vmul.f32 %v4652, %v4707
    %4714 = vrot.lane.b32.xlu0 %v4710, 96
    %v4715 = vpop.permute.xlu0 %4714
    %4716 = vrot.lane.b32.xlu0 %v4711, 96
    %v4717 = vpop.permute.xlu0 %4716
    %v4720 = vadd.f32 %v4698, %v4715
    %v4721 = vadd.f32 %v4699, %v4717
    %v4722 = vpack.c.bf16 %v4581, %v4580
    %4724 = vrot.lane.b32.xlu0 %v4722, 96
    %v4725 = vpop.permute.xlu0 %4724
    %v4727 = vsel %vm761, %v4725, 0
    %4729 = vmatprep.subr.bf16.mxu0 0
    %4730 = vmatpush1.bf16.msra.mxu0 0
    %4731 = vmatprep.subr.bf16.mxu0 0
    %4732 = vmatpush1.bf16.msra.mxu0 0
    %4733 = vmatprep.subr.bf16.mxu0 0
    %4734 = vmatpush1.bf16.msra.mxu0 0
    %4735 = vmatprep.subr.bf16.mxu0 0
    %4736 = vmatpush1.bf16.msra.mxu0 0
    %4737 = vmatprep.subr.bf16.mxu0 0
    %4738 = vmatpush1.bf16.msra.mxu0 0
    %4739 = vmatprep.subr.bf16.mxu0 0
    %4740 = vmatpush1.bf16.msra.mxu0 0
    %4741 = vmatprep.subr.bf16.mxu0 0
    %4742 = vmatpush1.bf16.msra.mxu0 %v4124
    %4743 = vmatprep.subr.bf16.mxu0 0
    %4744 = vmatpush1.bf16.msra.mxu0 %v4123
    %4745 = vmatprep.subr.bf16.mxu0 0
    %4746 = vmatpush2.bf16.msra.mxu0 0
    %4747 = vmatprep.subr.bf16.mxu0 0
    %4748 = vmatpush2.bf16.msra.mxu0 0
    %4749 = vmatprep.subr.bf16.mxu0 0
    %4750 = vmatpush2.bf16.msra.mxu0 0
    %4751 = vmatprep.subr.bf16.mxu0 0
    %4752 = vmatpush2.bf16.msra.mxu0 0
    %4753 = vmatprep.subr.bf16.mxu0 0
    %4754 = vmatpush2.bf16.msra.mxu0 0
    %4755 = vmatprep.subr.bf16.mxu0 0
    %4756 = vmatpush2.bf16.msra.mxu0 0
    %4757 = vmatprep.subr.bf16.mxu0 0
    %4758 = vmatpush2.bf16.msra.mxu0 0
    %4759 = vmatprep.subr.bf16.mxu0 0
    %4760 = vmatpush2.bf16.msra.mxu0 0
    %4761 = vmatprep.mubr.bf16.mxu0 0
    %4762 = vmatmul.mubr.bf16.gmra.mxu0 %v4727
    %v4763 = vpop.f32.mrf.mxu0
    %v4764 = vadd.f32 0.0, %v4763
    %v4765 = vpop.f32.mrf.mxu0
    %v4766 = vpop.f32.mrf.mxu0
    %v4767 = vadd.f32 0.0, %v4766
    %v4768 = vpop.f32.mrf.mxu0
    %4769 = vdwg.mxu0
    %4772 = vrot.lane.b32.xlu0 %v4764, 64
    %v4773 = vpop.permute.xlu0 %4772
    %4774 = vrot.lane.b32.xlu0 %v4767, 64
    %v4775 = vpop.permute.xlu0 %4774
    %v4778 = vadd.f32 %v3961, %v4773
    %v4779 = vadd.f32 %v3962, %v4775
    %v4780 = vxor.u32 %v4778, 2147483648
    %v4781 = vxor.u32 %v4779, 2147483648
    %v4782 = vmul.f32 %v4780, 1.442695
    %v4783 = vpow.pop %v4782
    %v4784 = vmul.f32 %v4781, 1.442695
    %v4785 = vpow.pop %v4784
    %v4786 = vadd.f32 %v4783, 1.0
    %v4787 = vadd.f32 %v4785, 1.0
    %v4788 = vrcp.pop %v4786
    %v4789 = vmul.f32 1.0, %v4788
    %v4790 = vrcp.pop %v4787
    %v4791 = vmul.f32 1.0, %v4790
    %4792 = vmatprep.subr.bf16.mxu0 0
    %4793 = vmatpush1.bf16.msra.mxu0 0
    %4794 = vmatprep.subr.bf16.mxu0 0
    %4795 = vmatpush1.bf16.msra.mxu0 0
    %4796 = vmatprep.subr.bf16.mxu0 0
    %4797 = vmatpush1.bf16.msra.mxu0 0
    %4798 = vmatprep.subr.bf16.mxu0 0
    %4799 = vmatpush1.bf16.msra.mxu0 0
    %4800 = vmatprep.subr.bf16.mxu0 0
    %4801 = vmatpush1.bf16.msra.mxu0 0
    %4802 = vmatprep.subr.bf16.mxu0 0
    %4803 = vmatpush1.bf16.msra.mxu0 0
    %4804 = vmatprep.subr.bf16.mxu0 0
    %4805 = vmatpush1.bf16.msra.mxu0 %v4199
    %4806 = vmatprep.subr.bf16.mxu0 0
    %4807 = vmatpush1.bf16.msra.mxu0 %v4198
    %4808 = vmatprep.subr.bf16.mxu0 0
    %4809 = vmatpush2.bf16.msra.mxu0 0
    %4810 = vmatprep.subr.bf16.mxu0 0
    %4811 = vmatpush2.bf16.msra.mxu0 0
    %4812 = vmatprep.subr.bf16.mxu0 0
    %4813 = vmatpush2.bf16.msra.mxu0 0
    %4814 = vmatprep.subr.bf16.mxu0 0
    %4815 = vmatpush2.bf16.msra.mxu0 0
    %4816 = vmatprep.subr.bf16.mxu0 0
    %4817 = vmatpush2.bf16.msra.mxu0 0
    %4818 = vmatprep.subr.bf16.mxu0 0
    %4819 = vmatpush2.bf16.msra.mxu0 0
    %4820 = vmatprep.subr.bf16.mxu0 0
    %4821 = vmatpush2.bf16.msra.mxu0 0
    %4822 = vmatprep.subr.bf16.mxu0 0
    %4823 = vmatpush2.bf16.msra.mxu0 0
    %4824 = vmatprep.mubr.bf16.mxu0 0
    %4825 = vmatmul.mubr.bf16.gmra.mxu0 %v4727
    %v4826 = vpop.f32.mrf.mxu0
    %v4827 = vadd.f32 %v3736, %v4826
    %v4828 = vpop.f32.mrf.mxu0
    %v4829 = vpop.f32.mrf.mxu0
    %v4830 = vadd.f32 %v3736, %v4829
    %v4831 = vpop.f32.mrf.mxu0
    %4832 = vdwg.mxu0
    %4835 = vrot.lane.b32.xlu0 %v4827, 64
    %v4836 = vpop.permute.xlu0 %4835
    %4837 = vrot.lane.b32.xlu0 %v4830, 64
    %v4838 = vpop.permute.xlu0 %4837
    %v4841 = vmul.f32 %v4789, %v4836
    %v4842 = vmul.f32 %v4791, %v4838
    %4845 = vrot.lane.b32.xlu0 %v4841, 96
    %v4846 = vpop.permute.xlu0 %4845
    %4847 = vrot.lane.b32.xlu0 %v4842, 96
    %v4848 = vpop.permute.xlu0 %4847
    %v4851 = vadd.f32 %v3893, %v4846
    %v4852 = vadd.f32 %v3897, %v4848
    %v4853 = vtanh.pop %v4851
    %v4854 = vtanh.pop %v4852
    %v4855 = vsub.f32 %v4580, %v4853
    %v4856 = vsub.f32 %v4581, %v4854
    %4859 = vrot.lane.b32.xlu0 %v4855, 64
    %v4860 = vpop.permute.xlu0 %4859
    %4861 = vrot.lane.b32.xlu0 %v4856, 64
    %v4862 = vpop.permute.xlu0 %4861
    %v4865 = vmul.f32 %v4789, %v4860
    %v4866 = vmul.f32 %v4791, %v4862
    %4869 = vrot.lane.b32.xlu0 %v4865, 64
    %v4870 = vpop.permute.xlu0 %4869
    %4871 = vrot.lane.b32.xlu0 %v4866, 64
    %v4872 = vpop.permute.xlu0 %4871
    %v4875 = vadd.f32 %v4853, %v4870
    %v4876 = vadd.f32 %v4854, %v4872
    %4877 = vst.msk [vmem:[#allocation2 + $0x20] sm:$0xff] %vm761, %v4720
    %4878 = vst.msk [vmem:[#allocation2 + $0x28] sm:$0xff] %vm761, %v4721
    %4881 = vrot.lane.b32.xlu0 %v4875, 96
    %v4882 = vpop.permute.xlu0 %4881
    %4883 = vrot.lane.b32.xlu0 %v4876, 96
    %v4884 = vpop.permute.xlu0 %4883
    %4887 = vst.msk [vmem:[#allocation3 + $0x50] sm:$0xff] %vm761, %v4882
    %4888 = vst.msk [vmem:[#allocation3 + $0x58] sm:$0xff] %vm761, %v4884
    %v4889 = vpack.c.bf16 %v4721, %v4720
    %v4891 = vsel %vm761, %v4889, 0
    %4893 = vmatprep.subr.bf16.mxu0 0
    %4894 = vmatpush1.bf16.msra.mxu0 0
    %4895 = vmatprep.subr.bf16.mxu0 0
    %4896 = vmatpush1.bf16.msra.mxu0 0
    %4897 = vmatprep.subr.bf16.mxu0 0
    %4898 = vmatpush1.bf16.msra.mxu0 0
    %4899 = vmatprep.subr.bf16.mxu0 0
    %4900 = vmatpush1.bf16.msra.mxu0 0
    %4901 = vmatprep.subr.bf16.mxu0 0
    %4902 = vmatpush1.bf16.msra.mxu0 0
    %4903 = vmatprep.subr.bf16.mxu0 0
    %4904 = vmatpush1.bf16.msra.mxu0 0
    %4905 = vmatprep.subr.bf16.mxu0 0
    %4906 = vmatpush1.bf16.msra.mxu0 %v3976
    %4907 = vmatprep.subr.bf16.mxu0 0
    %4908 = vmatpush1.bf16.msra.mxu0 %v3975
    %4909 = vmatprep.subr.bf16.mxu0 0
    %4910 = vmatpush2.bf16.msra.mxu0 0
    %4911 = vmatprep.subr.bf16.mxu0 0
    %4912 = vmatpush2.bf16.msra.mxu0 0
    %4913 = vmatprep.subr.bf16.mxu0 0
    %4914 = vmatpush2.bf16.msra.mxu0 0
    %4915 = vmatprep.subr.bf16.mxu0 0
    %4916 = vmatpush2.bf16.msra.mxu0 0
    %4917 = vmatprep.subr.bf16.mxu0 0
    %4918 = vmatpush2.bf16.msra.mxu0 0
    %4919 = vmatprep.subr.bf16.mxu0 0
    %4920 = vmatpush2.bf16.msra.mxu0 0
    %4921 = vmatprep.subr.bf16.mxu0 0
    %4922 = vmatpush2.bf16.msra.mxu0 0
    %4923 = vmatprep.subr.bf16.mxu0 0
    %4924 = vmatpush2.bf16.msra.mxu0 0
    %4925 = vmatprep.mubr.bf16.mxu0 0
    %4926 = vmatmul.mubr.bf16.gmra.mxu0 %v4891
    %v4927 = vpop.f32.mrf.mxu0
    %v4928 = vadd.f32 0.0, %v4927
    %v4929 = vpop.f32.mrf.mxu0
    %v4930 = vpop.f32.mrf.mxu0
    %v4931 = vadd.f32 0.0, %v4930
    %v4932 = vpop.f32.mrf.mxu0
    %4933 = vdwg.mxu0
    %v4934 = vadd.f32 %v3932, %v4928
    %v4935 = vadd.f32 %v3933, %v4931
    %v4936 = vxor.u32 %v4934, 2147483648
    %v4937 = vxor.u32 %v4935, 2147483648
    %v4938 = vmul.f32 %v4936, 1.442695
    %v4939 = vpow.pop %v4938
    %v4940 = vmul.f32 %v4937, 1.442695
    %v4941 = vpow.pop %v4940
    %v4942 = vadd.f32 %v4939, 1.0
    %v4943 = vadd.f32 %v4941, 1.0
    %v4944 = vrcp.pop %v4942
    %v4945 = vmul.f32 1.0, %v4944
    %v4946 = vrcp.pop %v4943
    %v4947 = vmul.f32 1.0, %v4946
    %4948 = vmatprep.subr.bf16.mxu0 0
    %4949 = vmatpush1.bf16.msra.mxu0 0
    %4950 = vmatprep.subr.bf16.mxu0 0
    %4951 = vmatpush1.bf16.msra.mxu0 0
    %4952 = vmatprep.subr.bf16.mxu0 0
    %4953 = vmatpush1.bf16.msra.mxu0 0
    %4954 = vmatprep.subr.bf16.mxu0 0
    %4955 = vmatpush1.bf16.msra.mxu0 0
    %4956 = vmatprep.subr.bf16.mxu0 0
    %4957 = vmatpush1.bf16.msra.mxu0 0
    %4958 = vmatprep.subr.bf16.mxu0 0
    %4959 = vmatpush1.bf16.msra.mxu0 0
    %4960 = vmatprep.subr.bf16.mxu0 0
    %4961 = vmatpush1.bf16.msra.mxu0 %v4043
    %4962 = vmatprep.subr.bf16.mxu0 0
    %4963 = vmatpush1.bf16.msra.mxu0 %v4042
    %4964 = vmatprep.subr.bf16.mxu0 0
    %4965 = vmatpush2.bf16.msra.mxu0 0
    %4966 = vmatprep.subr.bf16.mxu0 0
    %4967 = vmatpush2.bf16.msra.mxu0 0
    %4968 = vmatprep.subr.bf16.mxu0 0
    %4969 = vmatpush2.bf16.msra.mxu0 0
    %4970 = vmatprep.subr.bf16.mxu0 0
    %4971 = vmatpush2.bf16.msra.mxu0 0
    %4972 = vmatprep.subr.bf16.mxu0 0
    %4973 = vmatpush2.bf16.msra.mxu0 0
    %4974 = vmatprep.subr.bf16.mxu0 0
    %4975 = vmatpush2.bf16.msra.mxu0 0
    %4976 = vmatprep.subr.bf16.mxu0 0
    %4977 = vmatpush2.bf16.msra.mxu0 0
    %4978 = vmatprep.subr.bf16.mxu0 0
    %4979 = vmatpush2.bf16.msra.mxu0 0
    %4980 = vmatprep.mubr.bf16.mxu0 0
    %4981 = vmatmul.mubr.bf16.gmra.mxu0 %v4891
    %v4982 = vpop.f32.mrf.mxu0
    %v4983 = vadd.f32 %v3729, %v4982
    %v4984 = vpop.f32.mrf.mxu0
    %v4985 = vpop.f32.mrf.mxu0
    %v4986 = vadd.f32 %v3729, %v4985
    %v4987 = vpop.f32.mrf.mxu0
    %4988 = vdwg.mxu0
    %v4989 = vmul.f32 %v4945, %v4983
    %v4990 = vmul.f32 %v4947, %v4986
    %v4991 = vadd.f32 %v3873, %v4989
    %v4992 = vadd.f32 %v3877, %v4990
    %v4993 = vtanh.pop %v4991
    %v4994 = vtanh.pop %v4992
    %v4995 = vsub.f32 %v4720, %v4993
    %v4996 = vsub.f32 %v4721, %v4994
    %4999 = vrot.lane.b32.xlu0 %v4995, 32
    %v5000 = vpop.permute.xlu0 %4999
    %5001 = vrot.lane.b32.xlu0 %v4996, 32
    %v5002 = vpop.permute.xlu0 %5001
    %v5005 = vmul.f32 %v4945, %v5000
    %v5006 = vmul.f32 %v4947, %v5002
    %5009 = vrot.lane.b32.xlu0 %v5005, 96
    %v5010 = vpop.permute.xlu0 %5009
    %5011 = vrot.lane.b32.xlu0 %v5006, 96
    %v5012 = vpop.permute.xlu0 %5011
    %v5015 = vadd.f32 %v4993, %v5010
    %v5016 = vadd.f32 %v4994, %v5012
    %v5017 = vpack.c.bf16 %v4876, %v4875
    %5019 = vrot.lane.b32.xlu0 %v5017, 96
    %v5020 = vpop.permute.xlu0 %5019
    %v5022 = vsel %vm761, %v5020, 0
    %5024 = vmatprep.subr.bf16.mxu0 0
    %5025 = vmatpush1.bf16.msra.mxu0 0
    %5026 = vmatprep.subr.bf16.mxu0 0
    %5027 = vmatpush1.bf16.msra.mxu0 0
    %5028 = vmatprep.subr.bf16.mxu0 0
    %5029 = vmatpush1.bf16.msra.mxu0 0
    %5030 = vmatprep.subr.bf16.mxu0 0
    %5031 = vmatpush1.bf16.msra.mxu0 0
    %5032 = vmatprep.subr.bf16.mxu0 0
    %5033 = vmatpush1.bf16.msra.mxu0 0
    %5034 = vmatprep.subr.bf16.mxu0 0
    %5035 = vmatpush1.bf16.msra.mxu0 0
    %5036 = vmatprep.subr.bf16.mxu0 0
    %5037 = vmatpush1.bf16.msra.mxu0 %v4124
    %5038 = vmatprep.subr.bf16.mxu0 0
    %5039 = vmatpush1.bf16.msra.mxu0 %v4123
    %5040 = vmatprep.subr.bf16.mxu0 0
    %5041 = vmatpush2.bf16.msra.mxu0 0
    %5042 = vmatprep.subr.bf16.mxu0 0
    %5043 = vmatpush2.bf16.msra.mxu0 0
    %5044 = vmatprep.subr.bf16.mxu0 0
    %5045 = vmatpush2.bf16.msra.mxu0 0
    %5046 = vmatprep.subr.bf16.mxu0 0
    %5047 = vmatpush2.bf16.msra.mxu0 0
    %5048 = vmatprep.subr.bf16.mxu0 0
    %5049 = vmatpush2.bf16.msra.mxu0 0
    %5050 = vmatprep.subr.bf16.mxu0 0
    %5051 = vmatpush2.bf16.msra.mxu0 0
    %5052 = vmatprep.subr.bf16.mxu0 0
    %5053 = vmatpush2.bf16.msra.mxu0 0
    %5054 = vmatprep.subr.bf16.mxu0 0
    %5055 = vmatpush2.bf16.msra.mxu0 0
    %5056 = vmatprep.mubr.bf16.mxu0 0
    %5057 = vmatmul.mubr.bf16.gmra.mxu0 %v5022
    %v5058 = vpop.f32.mrf.mxu0
    %v5059 = vadd.f32 0.0, %v5058
    %v5060 = vpop.f32.mrf.mxu0
    %v5061 = vpop.f32.mrf.mxu0
    %v5062 = vadd.f32 0.0, %v5061
    %v5063 = vpop.f32.mrf.mxu0
    %5064 = vdwg.mxu0
    %5067 = vrot.lane.b32.xlu0 %v5059, 64
    %v5068 = vpop.permute.xlu0 %5067
    %5069 = vrot.lane.b32.xlu0 %v5062, 64
    %v5070 = vpop.permute.xlu0 %5069
    %v5073 = vadd.f32 %v3959, %v5068
    %v5074 = vadd.f32 %v3960, %v5070
    %v5075 = vxor.u32 %v5073, 2147483648
    %v5076 = vxor.u32 %v5074, 2147483648
    %v5077 = vmul.f32 %v5075, 1.442695
    %v5078 = vpow.pop %v5077
    %v5079 = vmul.f32 %v5076, 1.442695
    %v5080 = vpow.pop %v5079
    %v5081 = vadd.f32 %v5078, 1.0
    %v5082 = vadd.f32 %v5080, 1.0
    %v5083 = vrcp.pop %v5081
    %v5084 = vmul.f32 1.0, %v5083
    %v5085 = vrcp.pop %v5082
    %v5086 = vmul.f32 1.0, %v5085
    %5087 = vmatprep.subr.bf16.mxu0 0
    %5088 = vmatpush1.bf16.msra.mxu0 0
    %5089 = vmatprep.subr.bf16.mxu0 0
    %5090 = vmatpush1.bf16.msra.mxu0 0
    %5091 = vmatprep.subr.bf16.mxu0 0
    %5092 = vmatpush1.bf16.msra.mxu0 0
    %5093 = vmatprep.subr.bf16.mxu0 0
    %5094 = vmatpush1.bf16.msra.mxu0 0
    %5095 = vmatprep.subr.bf16.mxu0 0
    %5096 = vmatpush1.bf16.msra.mxu0 0
    %5097 = vmatprep.subr.bf16.mxu0 0
    %5098 = vmatpush1.bf16.msra.mxu0 0
    %5099 = vmatprep.subr.bf16.mxu0 0
    %5100 = vmatpush1.bf16.msra.mxu0 %v4199
    %5101 = vmatprep.subr.bf16.mxu0 0
    %5102 = vmatpush1.bf16.msra.mxu0 %v4198
    %5103 = vmatprep.subr.bf16.mxu0 0
    %5104 = vmatpush2.bf16.msra.mxu0 0
    %5105 = vmatprep.subr.bf16.mxu0 0
    %5106 = vmatpush2.bf16.msra.mxu0 0
    %5107 = vmatprep.subr.bf16.mxu0 0
    %5108 = vmatpush2.bf16.msra.mxu0 0
    %5109 = vmatprep.subr.bf16.mxu0 0
    %5110 = vmatpush2.bf16.msra.mxu0 0
    %5111 = vmatprep.subr.bf16.mxu0 0
    %5112 = vmatpush2.bf16.msra.mxu0 0
    %5113 = vmatprep.subr.bf16.mxu0 0
    %5114 = vmatpush2.bf16.msra.mxu0 0
    %5115 = vmatprep.subr.bf16.mxu0 0
    %5116 = vmatpush2.bf16.msra.mxu0 0
    %5117 = vmatprep.subr.bf16.mxu0 0
    %5118 = vmatpush2.bf16.msra.mxu0 0
    %5119 = vmatprep.mubr.bf16.mxu0 0
    %5120 = vmatmul.mubr.bf16.gmra.mxu0 %v5022
    %v5121 = vpop.f32.mrf.mxu0
    %v5122 = vadd.f32 %v3736, %v5121
    %v5123 = vpop.f32.mrf.mxu0
    %v5124 = vpop.f32.mrf.mxu0
    %v5125 = vadd.f32 %v3736, %v5124
    %v5126 = vpop.f32.mrf.mxu0
    %5127 = vdwg.mxu0
    %5130 = vrot.lane.b32.xlu0 %v5122, 64
    %v5131 = vpop.permute.xlu0 %5130
    %5132 = vrot.lane.b32.xlu0 %v5125, 64
    %v5133 = vpop.permute.xlu0 %5132
    %v5136 = vmul.f32 %v5084, %v5131
    %v5137 = vmul.f32 %v5086, %v5133
    %5140 = vrot.lane.b32.xlu0 %v5136, 96
    %v5141 = vpop.permute.xlu0 %5140
    %5142 = vrot.lane.b32.xlu0 %v5137, 96
    %v5143 = vpop.permute.xlu0 %5142
    %v5146 = vadd.f32 %v3883, %v5141
    %v5147 = vadd.f32 %v3887, %v5143
    %v5148 = vtanh.pop %v5146
    %v5149 = vtanh.pop %v5147
    %v5150 = vsub.f32 %v4875, %v5148
    %v5151 = vsub.f32 %v4876, %v5149
    %5154 = vrot.lane.b32.xlu0 %v5150, 64
    %v5155 = vpop.permute.xlu0 %5154
    %5156 = vrot.lane.b32.xlu0 %v5151, 64
    %v5157 = vpop.permute.xlu0 %5156
    %v5160 = vmul.f32 %v5084, %v5155
    %v5161 = vmul.f32 %v5086, %v5157
    %5164 = vrot.lane.b32.xlu0 %v5160, 64
    %v5165 = vpop.permute.xlu0 %5164
    %5166 = vrot.lane.b32.xlu0 %v5161, 64
    %v5167 = vpop.permute.xlu0 %5166
    %v5170 = vadd.f32 %v5148, %v5165
    %v5171 = vadd.f32 %v5149, %v5167
    %5172 = vst.msk [vmem:[#allocation2 + $0x30] sm:$0xff] %vm761, %v5015
    %5173 = vst.msk [vmem:[#allocation2 + $0x38] sm:$0xff] %vm761, %v5016
    %5176 = vrot.lane.b32.xlu0 %v5170, 96
    %v5177 = vpop.permute.xlu0 %5176
    %5178 = vrot.lane.b32.xlu0 %v5171, 96
    %v5179 = vpop.permute.xlu0 %5178
    %5182 = vst.msk [vmem:[#allocation3 + $0x40] sm:$0xff] %vm761, %v5177
    %5183 = vst.msk [vmem:[#allocation3 + $0x48] sm:$0xff] %vm761, %v5179
    %v5184 = vpack.c.bf16 %v5016, %v5015
    %v5186 = vsel %vm761, %v5184, 0
    %5188 = vmatprep.subr.bf16.mxu0 0
    %5189 = vmatpush1.bf16.msra.mxu0 0
    %5190 = vmatprep.subr.bf16.mxu0 0
    %5191 = vmatpush1.bf16.msra.mxu0 0
    %5192 = vmatprep.subr.bf16.mxu0 0
    %5193 = vmatpush1.bf16.msra.mxu0 0
    %5194 = vmatprep.subr.bf16.mxu0 0
    %5195 = vmatpush1.bf16.msra.mxu0 0
    %5196 = vmatprep.subr.bf16.mxu0 0
    %5197 = vmatpush1.bf16.msra.mxu0 0
    %5198 = vmatprep.subr.bf16.mxu0 0
    %5199 = vmatpush1.bf16.msra.mxu0 0
    %5200 = vmatprep.subr.bf16.mxu0 0
    %5201 = vmatpush1.bf16.msra.mxu0 %v3976
    %5202 = vmatprep.subr.bf16.mxu0 0
    %5203 = vmatpush1.bf16.msra.mxu0 %v3975
    %5204 = vmatprep.subr.bf16.mxu0 0
    %5205 = vmatpush2.bf16.msra.mxu0 0
    %5206 = vmatprep.subr.bf16.mxu0 0
    %5207 = vmatpush2.bf16.msra.mxu0 0
    %5208 = vmatprep.subr.bf16.mxu0 0
    %5209 = vmatpush2.bf16.msra.mxu0 0
    %5210 = vmatprep.subr.bf16.mxu0 0
    %5211 = vmatpush2.bf16.msra.mxu0 0
    %5212 = vmatprep.subr.bf16.mxu0 0
    %5213 = vmatpush2.bf16.msra.mxu0 0
    %5214 = vmatprep.subr.bf16.mxu0 0
    %5215 = vmatpush2.bf16.msra.mxu0 0
    %5216 = vmatprep.subr.bf16.mxu0 0
    %5217 = vmatpush2.bf16.msra.mxu0 0
    %5218 = vmatprep.subr.bf16.mxu0 0
    %5219 = vmatpush2.bf16.msra.mxu0 0
    %5220 = vmatprep.mubr.bf16.mxu0 0
    %5221 = vmatmul.mubr.bf16.gmra.mxu0 %v5186
    %v5222 = vpop.f32.mrf.mxu0
    %v5223 = vadd.f32 0.0, %v5222
    %v5224 = vpop.f32.mrf.mxu0
    %v5225 = vpop.f32.mrf.mxu0
    %v5226 = vadd.f32 0.0, %v5225
    %v5227 = vpop.f32.mrf.mxu0
    %5228 = vdwg.mxu0
    %v5229 = vadd.f32 %v3934, %v5223
    %v5230 = vadd.f32 %v3935, %v5226
    %v5231 = vxor.u32 %v5229, 2147483648
    %v5232 = vxor.u32 %v5230, 2147483648
    %v5233 = vmul.f32 %v5231, 1.442695
    %v5234 = vpow.pop %v5233
    %v5235 = vmul.f32 %v5232, 1.442695
    %v5236 = vpow.pop %v5235
    %v5237 = vadd.f32 %v5234, 1.0
    %v5238 = vadd.f32 %v5236, 1.0
    %v5239 = vrcp.pop %v5237
    %v5240 = vmul.f32 1.0, %v5239
    %v5241 = vrcp.pop %v5238
    %v5242 = vmul.f32 1.0, %v5241
    %5243 = vmatprep.subr.bf16.mxu0 0
    %5244 = vmatpush1.bf16.msra.mxu0 0
    %5245 = vmatprep.subr.bf16.mxu0 0
    %5246 = vmatpush1.bf16.msra.mxu0 0
    %5247 = vmatprep.subr.bf16.mxu0 0
    %5248 = vmatpush1.bf16.msra.mxu0 0
    %5249 = vmatprep.subr.bf16.mxu0 0
    %5250 = vmatpush1.bf16.msra.mxu0 0
    %5251 = vmatprep.subr.bf16.mxu0 0
    %5252 = vmatpush1.bf16.msra.mxu0 0
    %5253 = vmatprep.subr.bf16.mxu0 0
    %5254 = vmatpush1.bf16.msra.mxu0 0
    %5255 = vmatprep.subr.bf16.mxu0 0
    %5256 = vmatpush1.bf16.msra.mxu0 %v4043
    %5257 = vmatprep.subr.bf16.mxu0 0
    %5258 = vmatpush1.bf16.msra.mxu0 %v4042
    %5259 = vmatprep.subr.bf16.mxu0 0
    %5260 = vmatpush2.bf16.msra.mxu0 0
    %5261 = vmatprep.subr.bf16.mxu0 0
    %5262 = vmatpush2.bf16.msra.mxu0 0
    %5263 = vmatprep.subr.bf16.mxu0 0
    %5264 = vmatpush2.bf16.msra.mxu0 0
    %5265 = vmatprep.subr.bf16.mxu0 0
    %5266 = vmatpush2.bf16.msra.mxu0 0
    %5267 = vmatprep.subr.bf16.mxu0 0
    %5268 = vmatpush2.bf16.msra.mxu0 0
    %5269 = vmatprep.subr.bf16.mxu0 0
    %5270 = vmatpush2.bf16.msra.mxu0 0
    %5271 = vmatprep.subr.bf16.mxu0 0
    %5272 = vmatpush2.bf16.msra.mxu0 0
    %5273 = vmatprep.subr.bf16.mxu0 0
    %5274 = vmatpush2.bf16.msra.mxu0 0
    %5275 = vmatprep.mubr.bf16.mxu0 0
    %5276 = vmatmul.mubr.bf16.gmra.mxu0 %v5186
    %v5277 = vpop.f32.mrf.mxu0
    %v5278 = vadd.f32 %v3729, %v5277
    %v5279 = vpop.f32.mrf.mxu0
    %v5280 = vpop.f32.mrf.mxu0
    %v5281 = vadd.f32 %v3729, %v5280
    %v5282 = vpop.f32.mrf.mxu0
    %5283 = vdwg.mxu0
    %v5284 = vmul.f32 %v5240, %v5278
    %v5285 = vmul.f32 %v5242, %v5281
    %v5286 = vadd.f32 %v3883, %v5284
    %v5287 = vadd.f32 %v3887, %v5285
    %v5288 = vtanh.pop %v5286
    %v5289 = vtanh.pop %v5287
    %v5290 = vsub.f32 %v5015, %v5288
    %v5291 = vsub.f32 %v5016, %v5289
    %5294 = vrot.lane.b32.xlu0 %v5290, 32
    %v5295 = vpop.permute.xlu0 %5294
    %5296 = vrot.lane.b32.xlu0 %v5291, 32
    %v5297 = vpop.permute.xlu0 %5296
    %v5300 = vmul.f32 %v5240, %v5295
    %v5301 = vmul.f32 %v5242, %v5297
    %5304 = vrot.lane.b32.xlu0 %v5300, 96
    %v5305 = vpop.permute.xlu0 %5304
    %5306 = vrot.lane.b32.xlu0 %v5301, 96
    %v5307 = vpop.permute.xlu0 %5306
    %v5310 = vadd.f32 %v5288, %v5305
    %v5311 = vadd.f32 %v5289, %v5307
    %v5312 = vpack.c.bf16 %v5171, %v5170
    %5314 = vrot.lane.b32.xlu0 %v5312, 96
    %v5315 = vpop.permute.xlu0 %5314
    %v5317 = vsel %vm761, %v5315, 0
    %5319 = vmatprep.subr.bf16.mxu0 0
    %5320 = vmatpush1.bf16.msra.mxu0 0
    %5321 = vmatprep.subr.bf16.mxu0 0
    %5322 = vmatpush1.bf16.msra.mxu0 0
    %5323 = vmatprep.subr.bf16.mxu0 0
    %5324 = vmatpush1.bf16.msra.mxu0 0
    %5325 = vmatprep.subr.bf16.mxu0 0
    %5326 = vmatpush1.bf16.msra.mxu0 0
    %5327 = vmatprep.subr.bf16.mxu0 0
    %5328 = vmatpush1.bf16.msra.mxu0 0
    %5329 = vmatprep.subr.bf16.mxu0 0
    %5330 = vmatpush1.bf16.msra.mxu0 0
    %5331 = vmatprep.subr.bf16.mxu0 0
    %5332 = vmatpush1.bf16.msra.mxu0 %v4124
    %5333 = vmatprep.subr.bf16.mxu0 0
    %5334 = vmatpush1.bf16.msra.mxu0 %v4123
    %5335 = vmatprep.subr.bf16.mxu0 0
    %5336 = vmatpush2.bf16.msra.mxu0 0
    %5337 = vmatprep.subr.bf16.mxu0 0
    %5338 = vmatpush2.bf16.msra.mxu0 0
    %5339 = vmatprep.subr.bf16.mxu0 0
    %5340 = vmatpush2.bf16.msra.mxu0 0
    %5341 = vmatprep.subr.bf16.mxu0 0
    %5342 = vmatpush2.bf16.msra.mxu0 0
    %5343 = vmatprep.subr.bf16.mxu0 0
    %5344 = vmatpush2.bf16.msra.mxu0 0
    %5345 = vmatprep.subr.bf16.mxu0 0
    %5346 = vmatpush2.bf16.msra.mxu0 0
    %5347 = vmatprep.subr.bf16.mxu0 0
    %5348 = vmatpush2.bf16.msra.mxu0 0
    %5349 = vmatprep.subr.bf16.mxu0 0
    %5350 = vmatpush2.bf16.msra.mxu0 0
    %5351 = vmatprep.mubr.bf16.mxu0 0
    %5352 = vmatmul.mubr.bf16.gmra.mxu0 %v5317
    %v5353 = vpop.f32.mrf.mxu0
    %v5354 = vadd.f32 0.0, %v5353
    %v5355 = vpop.f32.mrf.mxu0
    %v5356 = vpop.f32.mrf.mxu0
    %v5357 = vadd.f32 0.0, %v5356
    %v5358 = vpop.f32.mrf.mxu0
    %5359 = vdwg.mxu0
    %5362 = vrot.lane.b32.xlu0 %v5354, 64
    %v5363 = vpop.permute.xlu0 %5362
    %5364 = vrot.lane.b32.xlu0 %v5357, 64
    %v5365 = vpop.permute.xlu0 %5364
    %v5368 = vadd.f32 %v3957, %v5363
    %v5369 = vadd.f32 %v3958, %v5365
    %v5370 = vxor.u32 %v5368, 2147483648
    %v5371 = vxor.u32 %v5369, 2147483648
    %v5372 = vmul.f32 %v5370, 1.442695
    %v5373 = vpow.pop %v5372
    %v5374 = vmul.f32 %v5371, 1.442695
    %v5375 = vpow.pop %v5374
    %v5376 = vadd.f32 %v5373, 1.0
    %v5377 = vadd.f32 %v5375, 1.0
    %v5378 = vrcp.pop %v5376
    %v5379 = vmul.f32 1.0, %v5378
    %v5380 = vrcp.pop %v5377
    %v5381 = vmul.f32 1.0, %v5380
    %5382 = vmatprep.subr.bf16.mxu0 0
    %5383 = vmatpush1.bf16.msra.mxu0 0
    %5384 = vmatprep.subr.bf16.mxu0 0
    %5385 = vmatpush1.bf16.msra.mxu0 0
    %5386 = vmatprep.subr.bf16.mxu0 0
    %5387 = vmatpush1.bf16.msra.mxu0 0
    %5388 = vmatprep.subr.bf16.mxu0 0
    %5389 = vmatpush1.bf16.msra.mxu0 0
    %5390 = vmatprep.subr.bf16.mxu0 0
    %5391 = vmatpush1.bf16.msra.mxu0 0
    %5392 = vmatprep.subr.bf16.mxu0 0
    %5393 = vmatpush1.bf16.msra.mxu0 0
    %5394 = vmatprep.subr.bf16.mxu0 0
    %5395 = vmatpush1.bf16.msra.mxu0 %v4199
    %5396 = vmatprep.subr.bf16.mxu0 0
    %5397 = vmatpush1.bf16.msra.mxu0 %v4198
    %5398 = vmatprep.subr.bf16.mxu0 0
    %5399 = vmatpush2.bf16.msra.mxu0 0
    %5400 = vmatprep.subr.bf16.mxu0 0
    %5401 = vmatpush2.bf16.msra.mxu0 0
    %5402 = vmatprep.subr.bf16.mxu0 0
    %5403 = vmatpush2.bf16.msra.mxu0 0
    %5404 = vmatprep.subr.bf16.mxu0 0
    %5405 = vmatpush2.bf16.msra.mxu0 0
    %5406 = vmatprep.subr.bf16.mxu0 0
    %5407 = vmatpush2.bf16.msra.mxu0 0
    %5408 = vmatprep.subr.bf16.mxu0 0
    %5409 = vmatpush2.bf16.msra.mxu0 0
    %5410 = vmatprep.subr.bf16.mxu0 0
    %5411 = vmatpush2.bf16.msra.mxu0 0
    %5412 = vmatprep.subr.bf16.mxu0 0
    %5413 = vmatpush2.bf16.msra.mxu0 0
    %5414 = vmatprep.mubr.bf16.mxu0 0
    %5415 = vmatmul.mubr.bf16.gmra.mxu0 %v5317
    %v5416 = vpop.f32.mrf.mxu0
    %v5417 = vadd.f32 %v3736, %v5416
    %v5418 = vpop.f32.mrf.mxu0
    %v5419 = vpop.f32.mrf.mxu0
    %v5420 = vadd.f32 %v3736, %v5419
    %v5421 = vpop.f32.mrf.mxu0
    %5422 = vdwg.mxu0
    %5425 = vrot.lane.b32.xlu0 %v5417, 64
    %v5426 = vpop.permute.xlu0 %5425
    %5427 = vrot.lane.b32.xlu0 %v5420, 64
    %v5428 = vpop.permute.xlu0 %5427
    %v5431 = vmul.f32 %v5379, %v5426
    %v5432 = vmul.f32 %v5381, %v5428
    %5435 = vrot.lane.b32.xlu0 %v5431, 96
    %v5436 = vpop.permute.xlu0 %5435
    %5437 = vrot.lane.b32.xlu0 %v5432, 96
    %v5438 = vpop.permute.xlu0 %5437
    %v5441 = vadd.f32 %v3873, %v5436
    %v5442 = vadd.f32 %v3877, %v5438
    %v5443 = vtanh.pop %v5441
    %v5444 = vtanh.pop %v5442
    %v5445 = vsub.f32 %v5170, %v5443
    %v5446 = vsub.f32 %v5171, %v5444
    %5449 = vrot.lane.b32.xlu0 %v5445, 64
    %v5450 = vpop.permute.xlu0 %5449
    %5451 = vrot.lane.b32.xlu0 %v5446, 64
    %v5452 = vpop.permute.xlu0 %5451
    %v5455 = vmul.f32 %v5379, %v5450
    %v5456 = vmul.f32 %v5381, %v5452
    %5459 = vrot.lane.b32.xlu0 %v5455, 64
    %v5460 = vpop.permute.xlu0 %5459
    %5461 = vrot.lane.b32.xlu0 %v5456, 64
    %v5462 = vpop.permute.xlu0 %5461
    %v5465 = vadd.f32 %v5443, %v5460
    %v5466 = vadd.f32 %v5444, %v5462
    %5467 = vst.msk [vmem:[#allocation2 + $0x40] sm:$0xff] %vm761, %v5310
    %5468 = vst.msk [vmem:[#allocation2 + $0x48] sm:$0xff] %vm761, %v5311
    %5471 = vrot.lane.b32.xlu0 %v5465, 96
    %v5472 = vpop.permute.xlu0 %5471
    %5473 = vrot.lane.b32.xlu0 %v5466, 96
    %v5474 = vpop.permute.xlu0 %5473
    %5477 = vst.msk [vmem:[#allocation3 + $0x30] sm:$0xff] %vm761, %v5472
    %5478 = vst.msk [vmem:[#allocation3 + $0x38] sm:$0xff] %vm761, %v5474
    %v5479 = vpack.c.bf16 %v5311, %v5310
    %v5481 = vsel %vm761, %v5479, 0
    %5483 = vmatprep.subr.bf16.mxu0 0
    %5484 = vmatpush1.bf16.msra.mxu0 0
    %5485 = vmatprep.subr.bf16.mxu0 0
    %5486 = vmatpush1.bf16.msra.mxu0 0
    %5487 = vmatprep.subr.bf16.mxu0 0
    %5488 = vmatpush1.bf16.msra.mxu0 0
    %5489 = vmatprep.subr.bf16.mxu0 0
    %5490 = vmatpush1.bf16.msra.mxu0 0
    %5491 = vmatprep.subr.bf16.mxu0 0
    %5492 = vmatpush1.bf16.msra.mxu0 0
    %5493 = vmatprep.subr.bf16.mxu0 0
    %5494 = vmatpush1.bf16.msra.mxu0 0
    %5495 = vmatprep.subr.bf16.mxu0 0
    %5496 = vmatpush1.bf16.msra.mxu0 %v3976
    %5497 = vmatprep.subr.bf16.mxu0 0
    %5498 = vmatpush1.bf16.msra.mxu0 %v3975
    %5499 = vmatprep.subr.bf16.mxu0 0
    %5500 = vmatpush2.bf16.msra.mxu0 0
    %5501 = vmatprep.subr.bf16.mxu0 0
    %5502 = vmatpush2.bf16.msra.mxu0 0
    %5503 = vmatprep.subr.bf16.mxu0 0
    %5504 = vmatpush2.bf16.msra.mxu0 0
    %5505 = vmatprep.subr.bf16.mxu0 0
    %5506 = vmatpush2.bf16.msra.mxu0 0
    %5507 = vmatprep.subr.bf16.mxu0 0
    %5508 = vmatpush2.bf16.msra.mxu0 0
    %5509 = vmatprep.subr.bf16.mxu0 0
    %5510 = vmatpush2.bf16.msra.mxu0 0
    %5511 = vmatprep.subr.bf16.mxu0 0
    %5512 = vmatpush2.bf16.msra.mxu0 0
    %5513 = vmatprep.subr.bf16.mxu0 0
    %5514 = vmatpush2.bf16.msra.mxu0 0
    %5515 = vmatprep.mubr.bf16.mxu0 0
    %5516 = vmatmul.mubr.bf16.gmra.mxu0 %v5481
    %v5517 = vpop.f32.mrf.mxu0
    %v5518 = vadd.f32 0.0, %v5517
    %v5519 = vpop.f32.mrf.mxu0
    %v5520 = vpop.f32.mrf.mxu0
    %v5521 = vadd.f32 0.0, %v5520
    %v5522 = vpop.f32.mrf.mxu0
    %5523 = vdwg.mxu0
    %v5524 = vadd.f32 %v3936, %v5518
    %v5525 = vadd.f32 %v3937, %v5521
    %v5526 = vxor.u32 %v5524, 2147483648
    %v5527 = vxor.u32 %v5525, 2147483648
    %v5528 = vmul.f32 %v5526, 1.442695
    %v5529 = vpow.pop %v5528
    %v5530 = vmul.f32 %v5527, 1.442695
    %v5531 = vpow.pop %v5530
    %v5532 = vadd.f32 %v5529, 1.0
    %v5533 = vadd.f32 %v5531, 1.0
    %v5534 = vrcp.pop %v5532
    %v5535 = vmul.f32 1.0, %v5534
    %v5536 = vrcp.pop %v5533
    %v5537 = vmul.f32 1.0, %v5536
    %5538 = vmatprep.subr.bf16.mxu0 0
    %5539 = vmatpush1.bf16.msra.mxu0 0
    %5540 = vmatprep.subr.bf16.mxu0 0
    %5541 = vmatpush1.bf16.msra.mxu0 0
    %5542 = vmatprep.subr.bf16.mxu0 0
    %5543 = vmatpush1.bf16.msra.mxu0 0
    %5544 = vmatprep.subr.bf16.mxu0 0
    %5545 = vmatpush1.bf16.msra.mxu0 0
    %5546 = vmatprep.subr.bf16.mxu0 0
    %5547 = vmatpush1.bf16.msra.mxu0 0
    %5548 = vmatprep.subr.bf16.mxu0 0
    %5549 = vmatpush1.bf16.msra.mxu0 0
    %5550 = vmatprep.subr.bf16.mxu0 0
    %5551 = vmatpush1.bf16.msra.mxu0 %v4043
    %5552 = vmatprep.subr.bf16.mxu0 0
    %5553 = vmatpush1.bf16.msra.mxu0 %v4042
    %5554 = vmatprep.subr.bf16.mxu0 0
    %5555 = vmatpush2.bf16.msra.mxu0 0
    %5556 = vmatprep.subr.bf16.mxu0 0
    %5557 = vmatpush2.bf16.msra.mxu0 0
    %5558 = vmatprep.subr.bf16.mxu0 0
    %5559 = vmatpush2.bf16.msra.mxu0 0
    %5560 = vmatprep.subr.bf16.mxu0 0
    %5561 = vmatpush2.bf16.msra.mxu0 0
    %5562 = vmatprep.subr.bf16.mxu0 0
    %5563 = vmatpush2.bf16.msra.mxu0 0
    %5564 = vmatprep.subr.bf16.mxu0 0
    %5565 = vmatpush2.bf16.msra.mxu0 0
    %5566 = vmatprep.subr.bf16.mxu0 0
    %5567 = vmatpush2.bf16.msra.mxu0 0
    %5568 = vmatprep.subr.bf16.mxu0 0
    %5569 = vmatpush2.bf16.msra.mxu0 0
    %5570 = vmatprep.mubr.bf16.mxu0 0
    %5571 = vmatmul.mubr.bf16.gmra.mxu0 %v5481
    %v5572 = vpop.f32.mrf.mxu0
    %v5573 = vadd.f32 %v3729, %v5572
    %v5574 = vpop.f32.mrf.mxu0
    %v5575 = vpop.f32.mrf.mxu0
    %v5576 = vadd.f32 %v3729, %v5575
    %v5577 = vpop.f32.mrf.mxu0
    %5578 = vdwg.mxu0
    %v5579 = vmul.f32 %v5535, %v5573
    %v5580 = vmul.f32 %v5537, %v5576
    %v5581 = vadd.f32 %v3893, %v5579
    %v5582 = vadd.f32 %v3897, %v5580
    %v5583 = vtanh.pop %v5581
    %v5584 = vtanh.pop %v5582
    %v5585 = vsub.f32 %v5310, %v5583
    %v5586 = vsub.f32 %v5311, %v5584
    %5589 = vrot.lane.b32.xlu0 %v5585, 32
    %v5590 = vpop.permute.xlu0 %5589
    %5591 = vrot.lane.b32.xlu0 %v5586, 32
    %v5592 = vpop.permute.xlu0 %5591
    %v5595 = vmul.f32 %v5535, %v5590
    %v5596 = vmul.f32 %v5537, %v5592
    %5599 = vrot.lane.b32.xlu0 %v5595, 96
    %v5600 = vpop.permute.xlu0 %5599
    %5601 = vrot.lane.b32.xlu0 %v5596, 96
    %v5602 = vpop.permute.xlu0 %5601
    %v5605 = vadd.f32 %v5583, %v5600
    %v5606 = vadd.f32 %v5584, %v5602
    %v5607 = vpack.c.bf16 %v5466, %v5465
    %5609 = vrot.lane.b32.xlu0 %v5607, 96
    %v5610 = vpop.permute.xlu0 %5609
    %v5612 = vsel %vm761, %v5610, 0
    %5614 = vmatprep.subr.bf16.mxu0 0
    %5615 = vmatpush1.bf16.msra.mxu0 0
    %5616 = vmatprep.subr.bf16.mxu0 0
    %5617 = vmatpush1.bf16.msra.mxu0 0
    %5618 = vmatprep.subr.bf16.mxu0 0
    %5619 = vmatpush1.bf16.msra.mxu0 0
    %5620 = vmatprep.subr.bf16.mxu0 0
    %5621 = vmatpush1.bf16.msra.mxu0 0
    %5622 = vmatprep.subr.bf16.mxu0 0
    %5623 = vmatpush1.bf16.msra.mxu0 0
    %5624 = vmatprep.subr.bf16.mxu0 0
    %5625 = vmatpush1.bf16.msra.mxu0 0
    %5626 = vmatprep.subr.bf16.mxu0 0
    %5627 = vmatpush1.bf16.msra.mxu0 %v4124
    %5628 = vmatprep.subr.bf16.mxu0 0
    %5629 = vmatpush1.bf16.msra.mxu0 %v4123
    %5630 = vmatprep.subr.bf16.mxu0 0
    %5631 = vmatpush2.bf16.msra.mxu0 0
    %5632 = vmatprep.subr.bf16.mxu0 0
    %5633 = vmatpush2.bf16.msra.mxu0 0
    %5634 = vmatprep.subr.bf16.mxu0 0
    %5635 = vmatpush2.bf16.msra.mxu0 0
    %5636 = vmatprep.subr.bf16.mxu0 0
    %5637 = vmatpush2.bf16.msra.mxu0 0
    %5638 = vmatprep.subr.bf16.mxu0 0
    %5639 = vmatpush2.bf16.msra.mxu0 0
    %5640 = vmatprep.subr.bf16.mxu0 0
    %5641 = vmatpush2.bf16.msra.mxu0 0
    %5642 = vmatprep.subr.bf16.mxu0 0
    %5643 = vmatpush2.bf16.msra.mxu0 0
    %5644 = vmatprep.subr.bf16.mxu0 0
    %5645 = vmatpush2.bf16.msra.mxu0 0
    %5646 = vmatprep.mubr.bf16.mxu0 0
    %5647 = vmatmul.mubr.bf16.gmra.mxu0 %v5612
    %v5648 = vpop.f32.mrf.mxu0
    %v5649 = vadd.f32 0.0, %v5648
    %v5650 = vpop.f32.mrf.mxu0
    %v5651 = vpop.f32.mrf.mxu0
    %v5652 = vadd.f32 0.0, %v5651
    %v5653 = vpop.f32.mrf.mxu0
    %5654 = vdwg.mxu0
    %5657 = vrot.lane.b32.xlu0 %v5649, 64
    %v5658 = vpop.permute.xlu0 %5657
    %5659 = vrot.lane.b32.xlu0 %v5652, 64
    %v5660 = vpop.permute.xlu0 %5659
    %v5663 = vadd.f32 %v3955, %v5658
    %v5664 = vadd.f32 %v3956, %v5660
    %v5665 = vxor.u32 %v5663, 2147483648
    %v5666 = vxor.u32 %v5664, 2147483648
    %v5667 = vmul.f32 %v5665, 1.442695
    %v5668 = vpow.pop %v5667
    %v5669 = vmul.f32 %v5666, 1.442695
    %v5670 = vpow.pop %v5669
    %v5671 = vadd.f32 %v5668, 1.0
    %v5672 = vadd.f32 %v5670, 1.0
    %v5673 = vrcp.pop %v5671
    %v5674 = vmul.f32 1.0, %v5673
    %v5675 = vrcp.pop %v5672
    %v5676 = vmul.f32 1.0, %v5675
    %5677 = vmatprep.subr.bf16.mxu0 0
    %5678 = vmatpush1.bf16.msra.mxu0 0
    %5679 = vmatprep.subr.bf16.mxu0 0
    %5680 = vmatpush1.bf16.msra.mxu0 0
    %5681 = vmatprep.subr.bf16.mxu0 0
    %5682 = vmatpush1.bf16.msra.mxu0 0
    %5683 = vmatprep.subr.bf16.mxu0 0
    %5684 = vmatpush1.bf16.msra.mxu0 0
    %5685 = vmatprep.subr.bf16.mxu0 0
    %5686 = vmatpush1.bf16.msra.mxu0 0
    %5687 = vmatprep.subr.bf16.mxu0 0
    %5688 = vmatpush1.bf16.msra.mxu0 0
    %5689 = vmatprep.subr.bf16.mxu0 0
    %5690 = vmatpush1.bf16.msra.mxu0 %v4199
    %5691 = vmatprep.subr.bf16.mxu0 0
    %5692 = vmatpush1.bf16.msra.mxu0 %v4198
    %5693 = vmatprep.subr.bf16.mxu0 0
    %5694 = vmatpush2.bf16.msra.mxu0 0
    %5695 = vmatprep.subr.bf16.mxu0 0
    %5696 = vmatpush2.bf16.msra.mxu0 0
    %5697 = vmatprep.subr.bf16.mxu0 0
    %5698 = vmatpush2.bf16.msra.mxu0 0
    %5699 = vmatprep.subr.bf16.mxu0 0
    %5700 = vmatpush2.bf16.msra.mxu0 0
    %5701 = vmatprep.subr.bf16.mxu0 0
    %5702 = vmatpush2.bf16.msra.mxu0 0
    %5703 = vmatprep.subr.bf16.mxu0 0
    %5704 = vmatpush2.bf16.msra.mxu0 0
    %5705 = vmatprep.subr.bf16.mxu0 0
    %5706 = vmatpush2.bf16.msra.mxu0 0
    %5707 = vmatprep.subr.bf16.mxu0 0
    %5708 = vmatpush2.bf16.msra.mxu0 0
    %5709 = vmatprep.mubr.bf16.mxu0 0
    %5710 = vmatmul.mubr.bf16.gmra.mxu0 %v5612
    %v5711 = vpop.f32.mrf.mxu0
    %v5712 = vadd.f32 %v3736, %v5711
    %v5713 = vpop.f32.mrf.mxu0
    %v5714 = vpop.f32.mrf.mxu0
    %v5715 = vadd.f32 %v3736, %v5714
    %v5716 = vpop.f32.mrf.mxu0
    %5717 = vdwg.mxu0
    %5720 = vrot.lane.b32.xlu0 %v5712, 64
    %v5721 = vpop.permute.xlu0 %5720
    %5722 = vrot.lane.b32.xlu0 %v5715, 64
    %v5723 = vpop.permute.xlu0 %5722
    %v5726 = vmul.f32 %v5674, %v5721
    %v5727 = vmul.f32 %v5676, %v5723
    %5730 = vrot.lane.b32.xlu0 %v5726, 96
    %v5731 = vpop.permute.xlu0 %5730
    %5732 = vrot.lane.b32.xlu0 %v5727, 96
    %v5733 = vpop.permute.xlu0 %5732
    %v5736 = vadd.f32 %v3863, %v5731
    %v5737 = vadd.f32 %v3867, %v5733
    %v5738 = vtanh.pop %v5736
    %v5739 = vtanh.pop %v5737
    %v5740 = vsub.f32 %v5465, %v5738
    %v5741 = vsub.f32 %v5466, %v5739
    %5744 = vrot.lane.b32.xlu0 %v5740, 64
    %v5745 = vpop.permute.xlu0 %5744
    %5746 = vrot.lane.b32.xlu0 %v5741, 64
    %v5747 = vpop.permute.xlu0 %5746
    %v5750 = vmul.f32 %v5674, %v5745
    %v5751 = vmul.f32 %v5676, %v5747
    %5754 = vrot.lane.b32.xlu0 %v5750, 64
    %v5755 = vpop.permute.xlu0 %5754
    %5756 = vrot.lane.b32.xlu0 %v5751, 64
    %v5757 = vpop.permute.xlu0 %5756
    %v5760 = vadd.f32 %v5738, %v5755
    %v5761 = vadd.f32 %v5739, %v5757
    %5762 = vst.msk [vmem:[#allocation2 + $0x50] sm:$0xff] %vm761, %v5605
    %5763 = vst.msk [vmem:[#allocation2 + $0x58] sm:$0xff] %vm761, %v5606
    %5766 = vrot.lane.b32.xlu0 %v5760, 96
    %v5767 = vpop.permute.xlu0 %5766
    %5768 = vrot.lane.b32.xlu0 %v5761, 96
    %v5769 = vpop.permute.xlu0 %5768
    %5772 = vst.msk [vmem:[#allocation3 + $0x20] sm:$0xff] %vm761, %v5767
    %5773 = vst.msk [vmem:[#allocation3 + $0x28] sm:$0xff] %vm761, %v5769
    %v5774 = vpack.c.bf16 %v5606, %v5605
    %v5776 = vsel %vm761, %v5774, 0
    %5778 = vmatprep.subr.bf16.mxu0 0
    %5779 = vmatpush1.bf16.msra.mxu0 0
    %5780 = vmatprep.subr.bf16.mxu0 0
    %5781 = vmatpush1.bf16.msra.mxu0 0
    %5782 = vmatprep.subr.bf16.mxu0 0
    %5783 = vmatpush1.bf16.msra.mxu0 0
    %5784 = vmatprep.subr.bf16.mxu0 0
    %5785 = vmatpush1.bf16.msra.mxu0 0
    %5786 = vmatprep.subr.bf16.mxu0 0
    %5787 = vmatpush1.bf16.msra.mxu0 0
    %5788 = vmatprep.subr.bf16.mxu0 0
    %5789 = vmatpush1.bf16.msra.mxu0 0
    %5790 = vmatprep.subr.bf16.mxu0 0
    %5791 = vmatpush1.bf16.msra.mxu0 %v3976
    %5792 = vmatprep.subr.bf16.mxu0 0
    %5793 = vmatpush1.bf16.msra.mxu0 %v3975
    %5794 = vmatprep.subr.bf16.mxu0 0
    %5795 = vmatpush2.bf16.msra.mxu0 0
    %5796 = vmatprep.subr.bf16.mxu0 0
    %5797 = vmatpush2.bf16.msra.mxu0 0
    %5798 = vmatprep.subr.bf16.mxu0 0
    %5799 = vmatpush2.bf16.msra.mxu0 0
    %5800 = vmatprep.subr.bf16.mxu0 0
    %5801 = vmatpush2.bf16.msra.mxu0 0
    %5802 = vmatprep.subr.bf16.mxu0 0
    %5803 = vmatpush2.bf16.msra.mxu0 0
    %5804 = vmatprep.subr.bf16.mxu0 0
    %5805 = vmatpush2.bf16.msra.mxu0 0
    %5806 = vmatprep.subr.bf16.mxu0 0
    %5807 = vmatpush2.bf16.msra.mxu0 0
    %5808 = vmatprep.subr.bf16.mxu0 0
    %5809 = vmatpush2.bf16.msra.mxu0 0
    %5810 = vmatprep.mubr.bf16.mxu0 0
    %5811 = vmatmul.mubr.bf16.gmra.mxu0 %v5776
    %v5812 = vpop.f32.mrf.mxu0
    %v5813 = vadd.f32 0.0, %v5812
    %v5814 = vpop.f32.mrf.mxu0
    %v5815 = vpop.f32.mrf.mxu0
    %v5816 = vadd.f32 0.0, %v5815
    %v5817 = vpop.f32.mrf.mxu0
    %5818 = vdwg.mxu0
    %v5819 = vadd.f32 %v3938, %v5813
    %v5820 = vadd.f32 %v3939, %v5816
    %v5821 = vxor.u32 %v5819, 2147483648
    %v5822 = vxor.u32 %v5820, 2147483648
    %v5823 = vmul.f32 %v5821, 1.442695
    %v5824 = vpow.pop %v5823
    %v5825 = vmul.f32 %v5822, 1.442695
    %v5826 = vpow.pop %v5825
    %v5827 = vadd.f32 %v5824, 1.0
    %v5828 = vadd.f32 %v5826, 1.0
    %v5829 = vrcp.pop %v5827
    %v5830 = vmul.f32 1.0, %v5829
    %v5831 = vrcp.pop %v5828
    %v5832 = vmul.f32 1.0, %v5831
    %5833 = vmatprep.subr.bf16.mxu0 0
    %5834 = vmatpush1.bf16.msra.mxu0 0
    %5835 = vmatprep.subr.bf16.mxu0 0
    %5836 = vmatpush1.bf16.msra.mxu0 0
    %5837 = vmatprep.subr.bf16.mxu0 0
    %5838 = vmatpush1.bf16.msra.mxu0 0
    %5839 = vmatprep.subr.bf16.mxu0 0
    %5840 = vmatpush1.bf16.msra.mxu0 0
    %5841 = vmatprep.subr.bf16.mxu0 0
    %5842 = vmatpush1.bf16.msra.mxu0 0
    %5843 = vmatprep.subr.bf16.mxu0 0
    %5844 = vmatpush1.bf16.msra.mxu0 0
    %5845 = vmatprep.subr.bf16.mxu0 0
    %5846 = vmatpush1.bf16.msra.mxu0 %v4043
    %5847 = vmatprep.subr.bf16.mxu0 0
    %5848 = vmatpush1.bf16.msra.mxu0 %v4042
    %5849 = vmatprep.subr.bf16.mxu0 0
    %5850 = vmatpush2.bf16.msra.mxu0 0
    %5851 = vmatprep.subr.bf16.mxu0 0
    %5852 = vmatpush2.bf16.msra.mxu0 0
    %5853 = vmatprep.subr.bf16.mxu0 0
    %5854 = vmatpush2.bf16.msra.mxu0 0
    %5855 = vmatprep.subr.bf16.mxu0 0
    %5856 = vmatpush2.bf16.msra.mxu0 0
    %5857 = vmatprep.subr.bf16.mxu0 0
    %5858 = vmatpush2.bf16.msra.mxu0 0
    %5859 = vmatprep.subr.bf16.mxu0 0
    %5860 = vmatpush2.bf16.msra.mxu0 0
    %5861 = vmatprep.subr.bf16.mxu0 0
    %5862 = vmatpush2.bf16.msra.mxu0 0
    %5863 = vmatprep.subr.bf16.mxu0 0
    %5864 = vmatpush2.bf16.msra.mxu0 0
    %5865 = vmatprep.mubr.bf16.mxu0 0
    %5866 = vmatmul.mubr.bf16.gmra.mxu0 %v5776
    %v5867 = vpop.f32.mrf.mxu0
    %v5868 = vadd.f32 %v3729, %v5867
    %v5869 = vpop.f32.mrf.mxu0
    %v5870 = vpop.f32.mrf.mxu0
    %v5871 = vadd.f32 %v3729, %v5870
    %v5872 = vpop.f32.mrf.mxu0
    %5873 = vdwg.mxu0
    %v5874 = vmul.f32 %v5830, %v5868
    %v5875 = vmul.f32 %v5832, %v5871
    %v5876 = vadd.f32 %v3903, %v5874
    %v5877 = vadd.f32 %v3907, %v5875
    %v5878 = vtanh.pop %v5876
    %v5879 = vtanh.pop %v5877
    %v5880 = vsub.f32 %v5605, %v5878
    %v5881 = vsub.f32 %v5606, %v5879
    %5884 = vrot.lane.b32.xlu0 %v5880, 32
    %v5885 = vpop.permute.xlu0 %5884
    %5886 = vrot.lane.b32.xlu0 %v5881, 32
    %v5887 = vpop.permute.xlu0 %5886
    %v5890 = vmul.f32 %v5830, %v5885
    %v5891 = vmul.f32 %v5832, %v5887
    %5894 = vrot.lane.b32.xlu0 %v5890, 96
    %v5895 = vpop.permute.xlu0 %5894
    %5896 = vrot.lane.b32.xlu0 %v5891, 96
    %v5897 = vpop.permute.xlu0 %5896
    %v5900 = vadd.f32 %v5878, %v5895
    %v5901 = vadd.f32 %v5879, %v5897
    %v5902 = vpack.c.bf16 %v5761, %v5760
    %5904 = vrot.lane.b32.xlu0 %v5902, 96
    %v5905 = vpop.permute.xlu0 %5904
    %v5907 = vsel %vm761, %v5905, 0
    %5909 = vmatprep.subr.bf16.mxu0 0
    %5910 = vmatpush1.bf16.msra.mxu0 0
    %5911 = vmatprep.subr.bf16.mxu0 0
    %5912 = vmatpush1.bf16.msra.mxu0 0
    %5913 = vmatprep.subr.bf16.mxu0 0
    %5914 = vmatpush1.bf16.msra.mxu0 0
    %5915 = vmatprep.subr.bf16.mxu0 0
    %5916 = vmatpush1.bf16.msra.mxu0 0
    %5917 = vmatprep.subr.bf16.mxu0 0
    %5918 = vmatpush1.bf16.msra.mxu0 0
    %5919 = vmatprep.subr.bf16.mxu0 0
    %5920 = vmatpush1.bf16.msra.mxu0 0
    %5921 = vmatprep.subr.bf16.mxu0 0
    %5922 = vmatpush1.bf16.msra.mxu0 %v4124
    %5923 = vmatprep.subr.bf16.mxu0 0
    %5924 = vmatpush1.bf16.msra.mxu0 %v4123
    %5925 = vmatprep.subr.bf16.mxu0 0
    %5926 = vmatpush2.bf16.msra.mxu0 0
    %5927 = vmatprep.subr.bf16.mxu0 0
    %5928 = vmatpush2.bf16.msra.mxu0 0
    %5929 = vmatprep.subr.bf16.mxu0 0
    %5930 = vmatpush2.bf16.msra.mxu0 0
    %5931 = vmatprep.subr.bf16.mxu0 0
    %5932 = vmatpush2.bf16.msra.mxu0 0
    %5933 = vmatprep.subr.bf16.mxu0 0
    %5934 = vmatpush2.bf16.msra.mxu0 0
    %5935 = vmatprep.subr.bf16.mxu0 0
    %5936 = vmatpush2.bf16.msra.mxu0 0
    %5937 = vmatprep.subr.bf16.mxu0 0
    %5938 = vmatpush2.bf16.msra.mxu0 0
    %5939 = vmatprep.subr.bf16.mxu0 0
    %5940 = vmatpush2.bf16.msra.mxu0 0
    %5941 = vmatprep.mubr.bf16.mxu0 0
    %5942 = vmatmul.mubr.bf16.gmra.mxu0 %v5907
    %v5943 = vpop.f32.mrf.mxu0
    %v5944 = vadd.f32 0.0, %v5943
    %v5945 = vpop.f32.mrf.mxu0
    %v5946 = vpop.f32.mrf.mxu0
    %v5947 = vadd.f32 0.0, %v5946
    %v5948 = vpop.f32.mrf.mxu0
    %5949 = vdwg.mxu0
    %5952 = vrot.lane.b32.xlu0 %v5944, 64
    %v5953 = vpop.permute.xlu0 %5952
    %5954 = vrot.lane.b32.xlu0 %v5947, 64
    %v5955 = vpop.permute.xlu0 %5954
    %v5958 = vadd.f32 %v3953, %v5953
    %v5959 = vadd.f32 %v3954, %v5955
    %v5960 = vxor.u32 %v5958, 2147483648
    %v5961 = vxor.u32 %v5959, 2147483648
    %v5962 = vmul.f32 %v5960, 1.442695
    %v5963 = vpow.pop %v5962
    %v5964 = vmul.f32 %v5961, 1.442695
    %v5965 = vpow.pop %v5964
    %v5966 = vadd.f32 %v5963, 1.0
    %v5967 = vadd.f32 %v5965, 1.0
    %v5968 = vrcp.pop %v5966
    %v5969 = vmul.f32 1.0, %v5968
    %v5970 = vrcp.pop %v5967
    %v5971 = vmul.f32 1.0, %v5970
    %5972 = vmatprep.subr.bf16.mxu0 0
    %5973 = vmatpush1.bf16.msra.mxu0 0
    %5974 = vmatprep.subr.bf16.mxu0 0
    %5975 = vmatpush1.bf16.msra.mxu0 0
    %5976 = vmatprep.subr.bf16.mxu0 0
    %5977 = vmatpush1.bf16.msra.mxu0 0
    %5978 = vmatprep.subr.bf16.mxu0 0
    %5979 = vmatpush1.bf16.msra.mxu0 0
    %5980 = vmatprep.subr.bf16.mxu0 0
    %5981 = vmatpush1.bf16.msra.mxu0 0
    %5982 = vmatprep.subr.bf16.mxu0 0
    %5983 = vmatpush1.bf16.msra.mxu0 0
    %5984 = vmatprep.subr.bf16.mxu0 0
    %5985 = vmatpush1.bf16.msra.mxu0 %v4199
    %5986 = vmatprep.subr.bf16.mxu0 0
    %5987 = vmatpush1.bf16.msra.mxu0 %v4198
    %5988 = vmatprep.subr.bf16.mxu0 0
    %5989 = vmatpush2.bf16.msra.mxu0 0
    %5990 = vmatprep.subr.bf16.mxu0 0
    %5991 = vmatpush2.bf16.msra.mxu0 0
    %5992 = vmatprep.subr.bf16.mxu0 0
    %5993 = vmatpush2.bf16.msra.mxu0 0
    %5994 = vmatprep.subr.bf16.mxu0 0
    %5995 = vmatpush2.bf16.msra.mxu0 0
    %5996 = vmatprep.subr.bf16.mxu0 0
    %5997 = vmatpush2.bf16.msra.mxu0 0
    %5998 = vmatprep.subr.bf16.mxu0 0
    %5999 = vmatpush2.bf16.msra.mxu0 0
    %6000 = vmatprep.subr.bf16.mxu0 0
    %6001 = vmatpush2.bf16.msra.mxu0 0
    %6002 = vmatprep.subr.bf16.mxu0 0
    %6003 = vmatpush2.bf16.msra.mxu0 0
    %6004 = vmatprep.mubr.bf16.mxu0 0
    %6005 = vmatmul.mubr.bf16.gmra.mxu0 %v5907
    %v6006 = vpop.f32.mrf.mxu0
    %v6007 = vadd.f32 %v3736, %v6006
    %v6008 = vpop.f32.mrf.mxu0
    %v6009 = vpop.f32.mrf.mxu0
    %v6010 = vadd.f32 %v3736, %v6009
    %v6011 = vpop.f32.mrf.mxu0
    %6012 = vdwg.mxu0
    %6015 = vrot.lane.b32.xlu0 %v6007, 64
    %v6016 = vpop.permute.xlu0 %6015
    %6017 = vrot.lane.b32.xlu0 %v6010, 64
    %v6018 = vpop.permute.xlu0 %6017
    %v6021 = vmul.f32 %v5969, %v6016
    %v6022 = vmul.f32 %v5971, %v6018
    %6025 = vrot.lane.b32.xlu0 %v6021, 96
    %v6026 = vpop.permute.xlu0 %6025
    %6027 = vrot.lane.b32.xlu0 %v6022, 96
    %v6028 = vpop.permute.xlu0 %6027
    %v6031 = vadd.f32 %v3853, %v6026
    %v6032 = vadd.f32 %v3857, %v6028
    %v6033 = vtanh.pop %v6031
    %v6034 = vtanh.pop %v6032
    %v6035 = vsub.f32 %v5760, %v6033
    %v6036 = vsub.f32 %v5761, %v6034
    %6039 = vrot.lane.b32.xlu0 %v6035, 64
    %v6040 = vpop.permute.xlu0 %6039
    %6041 = vrot.lane.b32.xlu0 %v6036, 64
    %v6042 = vpop.permute.xlu0 %6041
    %v6045 = vmul.f32 %v5969, %v6040
    %v6046 = vmul.f32 %v5971, %v6042
    %6049 = vrot.lane.b32.xlu0 %v6045, 64
    %v6050 = vpop.permute.xlu0 %6049
    %6051 = vrot.lane.b32.xlu0 %v6046, 64
    %v6052 = vpop.permute.xlu0 %6051
    %v6055 = vadd.f32 %v6033, %v6050
    %v6056 = vadd.f32 %v6034, %v6052
    %6057 = vst.msk [vmem:[#allocation2 + $0x60] sm:$0xff] %vm761, %v5900
    %6058 = vst.msk [vmem:[#allocation2 + $0x68] sm:$0xff] %vm761, %v5901
    %6061 = vrot.lane.b32.xlu0 %v6055, 96
    %v6062 = vpop.permute.xlu0 %6061
    %6063 = vrot.lane.b32.xlu0 %v6056, 96
    %v6064 = vpop.permute.xlu0 %6063
    %6067 = vst.msk [vmem:[#allocation3 + $0x10] sm:$0xff] %vm761, %v6062
    %6068 = vst.msk [vmem:[#allocation3 + $0x18] sm:$0xff] %vm761, %v6064
    %v6069 = vpack.c.bf16 %v5901, %v5900
    %v6071 = vsel %vm761, %v6069, 0
    %6073 = vmatprep.subr.bf16.mxu0 0
    %6074 = vmatpush1.bf16.msra.mxu0 0
    %6075 = vmatprep.subr.bf16.mxu0 0
    %6076 = vmatpush1.bf16.msra.mxu0 0
    %6077 = vmatprep.subr.bf16.mxu0 0
    %6078 = vmatpush1.bf16.msra.mxu0 0
    %6079 = vmatprep.subr.bf16.mxu0 0
    %6080 = vmatpush1.bf16.msra.mxu0 0
    %6081 = vmatprep.subr.bf16.mxu0 0
    %6082 = vmatpush1.bf16.msra.mxu0 0
    %6083 = vmatprep.subr.bf16.mxu0 0
    %6084 = vmatpush1.bf16.msra.mxu0 0
    %6085 = vmatprep.subr.bf16.mxu0 0
    %6086 = vmatpush1.bf16.msra.mxu0 %v3976
    %6087 = vmatprep.subr.bf16.mxu0 0
    %6088 = vmatpush1.bf16.msra.mxu0 %v3975
    %6089 = vmatprep.subr.bf16.mxu0 0
    %6090 = vmatpush2.bf16.msra.mxu0 0
    %6091 = vmatprep.subr.bf16.mxu0 0
    %6092 = vmatpush2.bf16.msra.mxu0 0
    %6093 = vmatprep.subr.bf16.mxu0 0
    %6094 = vmatpush2.bf16.msra.mxu0 0
    %6095 = vmatprep.subr.bf16.mxu0 0
    %6096 = vmatpush2.bf16.msra.mxu0 0
    %6097 = vmatprep.subr.bf16.mxu0 0
    %6098 = vmatpush2.bf16.msra.mxu0 0
    %6099 = vmatprep.subr.bf16.mxu0 0
    %6100 = vmatpush2.bf16.msra.mxu0 0
    %6101 = vmatprep.subr.bf16.mxu0 0
    %6102 = vmatpush2.bf16.msra.mxu0 0
    %6103 = vmatprep.subr.bf16.mxu0 0
    %6104 = vmatpush2.bf16.msra.mxu0 0
    %6105 = vmatprep.mubr.bf16.mxu0 0
    %6106 = vmatmul.mubr.bf16.gmra.mxu0 %v6071
    %v6107 = vpop.f32.mrf.mxu0
    %v6108 = vadd.f32 0.0, %v6107
    %v6109 = vpop.f32.mrf.mxu0
    %v6110 = vpop.f32.mrf.mxu0
    %v6111 = vadd.f32 0.0, %v6110
    %v6112 = vpop.f32.mrf.mxu0
    %6113 = vdwg.mxu0
    %v6114 = vadd.f32 %v3940, %v6108
    %v6115 = vadd.f32 %v3941, %v6111
    %v6116 = vxor.u32 %v6114, 2147483648
    %v6117 = vxor.u32 %v6115, 2147483648
    %v6118 = vmul.f32 %v6116, 1.442695
    %v6119 = vpow.pop %v6118
    %v6120 = vmul.f32 %v6117, 1.442695
    %v6121 = vpow.pop %v6120
    %v6122 = vadd.f32 %v6119, 1.0
    %v6123 = vadd.f32 %v6121, 1.0
    %v6124 = vrcp.pop %v6122
    %v6125 = vmul.f32 1.0, %v6124
    %v6126 = vrcp.pop %v6123
    %v6127 = vmul.f32 1.0, %v6126
    %6128 = vmatprep.subr.bf16.mxu0 0
    %6129 = vmatpush1.bf16.msra.mxu0 0
    %6130 = vmatprep.subr.bf16.mxu0 0
    %6131 = vmatpush1.bf16.msra.mxu0 0
    %6132 = vmatprep.subr.bf16.mxu0 0
    %6133 = vmatpush1.bf16.msra.mxu0 0
    %6134 = vmatprep.subr.bf16.mxu0 0
    %6135 = vmatpush1.bf16.msra.mxu0 0
    %6136 = vmatprep.subr.bf16.mxu0 0
    %6137 = vmatpush1.bf16.msra.mxu0 0
    %6138 = vmatprep.subr.bf16.mxu0 0
    %6139 = vmatpush1.bf16.msra.mxu0 0
    %6140 = vmatprep.subr.bf16.mxu0 0
    %6141 = vmatpush1.bf16.msra.mxu0 %v4043
    %6142 = vmatprep.subr.bf16.mxu0 0
    %6143 = vmatpush1.bf16.msra.mxu0 %v4042
    %6144 = vmatprep.subr.bf16.mxu0 0
    %6145 = vmatpush2.bf16.msra.mxu0 0
    %6146 = vmatprep.subr.bf16.mxu0 0
    %6147 = vmatpush2.bf16.msra.mxu0 0
    %6148 = vmatprep.subr.bf16.mxu0 0
    %6149 = vmatpush2.bf16.msra.mxu0 0
    %6150 = vmatprep.subr.bf16.mxu0 0
    %6151 = vmatpush2.bf16.msra.mxu0 0
    %6152 = vmatprep.subr.bf16.mxu0 0
    %6153 = vmatpush2.bf16.msra.mxu0 0
    %6154 = vmatprep.subr.bf16.mxu0 0
    %6155 = vmatpush2.bf16.msra.mxu0 0
    %6156 = vmatprep.subr.bf16.mxu0 0
    %6157 = vmatpush2.bf16.msra.mxu0 0
    %6158 = vmatprep.subr.bf16.mxu0 0
    %6159 = vmatpush2.bf16.msra.mxu0 0
    %6160 = vmatprep.mubr.bf16.mxu0 0
    %6161 = vmatmul.mubr.bf16.gmra.mxu0 %v6071
    %v6162 = vpop.f32.mrf.mxu0
    %v6163 = vadd.f32 %v3729, %v6162
    %v6164 = vpop.f32.mrf.mxu0
    %v6165 = vpop.f32.mrf.mxu0
    %v6166 = vadd.f32 %v3729, %v6165
    %v6167 = vpop.f32.mrf.mxu0
    %6168 = vdwg.mxu0
    %v6169 = vmul.f32 %v6125, %v6163
    %v6170 = vmul.f32 %v6127, %v6166
    %v6171 = vadd.f32 %v3913, %v6169
    %v6172 = vadd.f32 %v3917, %v6170
    %v6173 = vtanh.pop %v6171
    %v6174 = vtanh.pop %v6172
    %v6175 = vsub.f32 %v5900, %v6173
    %v6176 = vsub.f32 %v5901, %v6174
    %6179 = vrot.lane.b32.xlu0 %v6175, 32
    %v6180 = vpop.permute.xlu0 %6179
    %6181 = vrot.lane.b32.xlu0 %v6176, 32
    %v6182 = vpop.permute.xlu0 %6181
    %v6185 = vmul.f32 %v6125, %v6180
    %v6186 = vmul.f32 %v6127, %v6182
    %6189 = vrot.lane.b32.xlu0 %v6185, 96
    %v6190 = vpop.permute.xlu0 %6189
    %6191 = vrot.lane.b32.xlu0 %v6186, 96
    %v6192 = vpop.permute.xlu0 %6191
    %v6195 = vadd.f32 %v6173, %v6190
    %v6196 = vadd.f32 %v6174, %v6192
    %v6197 = vpack.c.bf16 %v6056, %v6055
    %6199 = vrot.lane.b32.xlu0 %v6197, 96
    %v6200 = vpop.permute.xlu0 %6199
    %v6202 = vsel %vm761, %v6200, 0
    %6204 = vmatprep.subr.bf16.mxu0 0
    %6205 = vmatpush1.bf16.msra.mxu0 0
    %6206 = vmatprep.subr.bf16.mxu0 0
    %6207 = vmatpush1.bf16.msra.mxu0 0
    %6208 = vmatprep.subr.bf16.mxu0 0
    %6209 = vmatpush1.bf16.msra.mxu0 0
    %6210 = vmatprep.subr.bf16.mxu0 0
    %6211 = vmatpush1.bf16.msra.mxu0 0
    %6212 = vmatprep.subr.bf16.mxu0 0
    %6213 = vmatpush1.bf16.msra.mxu0 0
    %6214 = vmatprep.subr.bf16.mxu0 0
    %6215 = vmatpush1.bf16.msra.mxu0 0
    %6216 = vmatprep.subr.bf16.mxu0 0
    %6217 = vmatpush1.bf16.msra.mxu0 %v4124
    %6218 = vmatprep.subr.bf16.mxu0 0
    %6219 = vmatpush1.bf16.msra.mxu0 %v4123
    %6220 = vmatprep.subr.bf16.mxu0 0
    %6221 = vmatpush2.bf16.msra.mxu0 0
    %6222 = vmatprep.subr.bf16.mxu0 0
    %6223 = vmatpush2.bf16.msra.mxu0 0
    %6224 = vmatprep.subr.bf16.mxu0 0
    %6225 = vmatpush2.bf16.msra.mxu0 0
    %6226 = vmatprep.subr.bf16.mxu0 0
    %6227 = vmatpush2.bf16.msra.mxu0 0
    %6228 = vmatprep.subr.bf16.mxu0 0
    %6229 = vmatpush2.bf16.msra.mxu0 0
    %6230 = vmatprep.subr.bf16.mxu0 0
    %6231 = vmatpush2.bf16.msra.mxu0 0
    %6232 = vmatprep.subr.bf16.mxu0 0
    %6233 = vmatpush2.bf16.msra.mxu0 0
    %6234 = vmatprep.subr.bf16.mxu0 0
    %6235 = vmatpush2.bf16.msra.mxu0 0
    %6236 = vmatprep.mubr.bf16.mxu0 0
    %6237 = vmatmul.mubr.bf16.gmra.mxu0 %v6202
    %v6238 = vpop.f32.mrf.mxu0
    %v6239 = vadd.f32 0.0, %v6238
    %v6240 = vpop.f32.mrf.mxu0
    %v6241 = vpop.f32.mrf.mxu0
    %v6242 = vadd.f32 0.0, %v6241
    %v6243 = vpop.f32.mrf.mxu0
    %6244 = vdwg.mxu0
    %6247 = vrot.lane.b32.xlu0 %v6239, 64
    %v6248 = vpop.permute.xlu0 %6247
    %6249 = vrot.lane.b32.xlu0 %v6242, 64
    %v6250 = vpop.permute.xlu0 %6249
    %v6253 = vadd.f32 %v3951, %v6248
    %v6254 = vadd.f32 %v3952, %v6250
    %v6255 = vxor.u32 %v6253, 2147483648
    %v6256 = vxor.u32 %v6254, 2147483648
    %v6257 = vmul.f32 %v6255, 1.442695
    %v6258 = vpow.pop %v6257
    %v6259 = vmul.f32 %v6256, 1.442695
    %v6260 = vpow.pop %v6259
    %v6261 = vadd.f32 %v6258, 1.0
    %v6262 = vadd.f32 %v6260, 1.0
    %v6263 = vrcp.pop %v6261
    %v6264 = vmul.f32 1.0, %v6263
    %v6265 = vrcp.pop %v6262
    %v6266 = vmul.f32 1.0, %v6265
    %6267 = vmatprep.subr.bf16.mxu0 0
    %6268 = vmatpush1.bf16.msra.mxu0 0
    %6269 = vmatprep.subr.bf16.mxu0 0
    %6270 = vmatpush1.bf16.msra.mxu0 0
    %6271 = vmatprep.subr.bf16.mxu0 0
    %6272 = vmatpush1.bf16.msra.mxu0 0
    %6273 = vmatprep.subr.bf16.mxu0 0
    %6274 = vmatpush1.bf16.msra.mxu0 0
    %6275 = vmatprep.subr.bf16.mxu0 0
    %6276 = vmatpush1.bf16.msra.mxu0 0
    %6277 = vmatprep.subr.bf16.mxu0 0
    %6278 = vmatpush1.bf16.msra.mxu0 0
    %6279 = vmatprep.subr.bf16.mxu0 0
    %6280 = vmatpush1.bf16.msra.mxu0 %v4199
    %6281 = vmatprep.subr.bf16.mxu0 0
    %6282 = vmatpush1.bf16.msra.mxu0 %v4198
    %6283 = vmatprep.subr.bf16.mxu0 0
    %6284 = vmatpush2.bf16.msra.mxu0 0
    %6285 = vmatprep.subr.bf16.mxu0 0
    %6286 = vmatpush2.bf16.msra.mxu0 0
    %6287 = vmatprep.subr.bf16.mxu0 0
    %6288 = vmatpush2.bf16.msra.mxu0 0
    %6289 = vmatprep.subr.bf16.mxu0 0
    %6290 = vmatpush2.bf16.msra.mxu0 0
    %6291 = vmatprep.subr.bf16.mxu0 0
    %6292 = vmatpush2.bf16.msra.mxu0 0
    %6293 = vmatprep.subr.bf16.mxu0 0
    %6294 = vmatpush2.bf16.msra.mxu0 0
    %6295 = vmatprep.subr.bf16.mxu0 0
    %6296 = vmatpush2.bf16.msra.mxu0 0
    %6297 = vmatprep.subr.bf16.mxu0 0
    %6298 = vmatpush2.bf16.msra.mxu0 0
    %6299 = vmatprep.mubr.bf16.mxu0 0
    %6300 = vmatmul.mubr.bf16.gmra.mxu0 %v6202
    %v6301 = vpop.f32.mrf.mxu0
    %v6302 = vadd.f32 %v3736, %v6301
    %v6303 = vpop.f32.mrf.mxu0
    %v6304 = vpop.f32.mrf.mxu0
    %v6305 = vadd.f32 %v3736, %v6304
    %v6306 = vpop.f32.mrf.mxu0
    %6307 = vdwg.mxu0
    %6310 = vrot.lane.b32.xlu0 %v6302, 64
    %v6311 = vpop.permute.xlu0 %6310
    %6312 = vrot.lane.b32.xlu0 %v6305, 64
    %v6313 = vpop.permute.xlu0 %6312
    %v6316 = vmul.f32 %v6264, %v6311
    %v6317 = vmul.f32 %v6266, %v6313
    %6320 = vrot.lane.b32.xlu0 %v6316, 96
    %v6321 = vpop.permute.xlu0 %6320
    %6322 = vrot.lane.b32.xlu0 %v6317, 96
    %v6323 = vpop.permute.xlu0 %6322
    %v6326 = vadd.f32 %v3843, %v6321
    %v6327 = vadd.f32 %v3847, %v6323
    %v6328 = vtanh.pop %v6326
    %v6329 = vtanh.pop %v6327
    %v6330 = vsub.f32 %v6055, %v6328
    %v6331 = vsub.f32 %v6056, %v6329
    %6334 = vrot.lane.b32.xlu0 %v6330, 64
    %v6335 = vpop.permute.xlu0 %6334
    %6336 = vrot.lane.b32.xlu0 %v6331, 64
    %v6337 = vpop.permute.xlu0 %6336
    %v6340 = vmul.f32 %v6264, %v6335
    %v6341 = vmul.f32 %v6266, %v6337
    %6344 = vrot.lane.b32.xlu0 %v6340, 64
    %v6345 = vpop.permute.xlu0 %6344
    %6346 = vrot.lane.b32.xlu0 %v6341, 64
    %v6347 = vpop.permute.xlu0 %6346
    %v6350 = vadd.f32 %v6328, %v6345
    %v6351 = vadd.f32 %v6329, %v6347
    %6352 = vst.msk [vmem:[#allocation2 + $0x70] sm:$0xff] %vm761, %v6195
    %6353 = vst.msk [vmem:[#allocation2 + $0x78] sm:$0xff] %vm761, %v6196
    %6356 = vrot.lane.b32.xlu0 %v6350, 96
    %v6357 = vpop.permute.xlu0 %6356
    %6358 = vrot.lane.b32.xlu0 %v6351, 96
    %v6359 = vpop.permute.xlu0 %6358
    %6362 = vst.msk [vmem:[#allocation3] sm:$0xff] %vm761, %v6357
    %6363 = vst.msk [vmem:[#allocation3 + $0x8] sm:$0xff] %vm761, %v6359
    %v6364 = vld [vmem:[#allocation2] sm:$0xff]
    %v6365 = vld [vmem:[#allocation2 + $0x8] sm:$0xff]
    %v6366 = vld [vmem:[#allocation2 + $0x10] sm:$0xff]
    %v6367 = vld [vmem:[#allocation2 + $0x18] sm:$0xff]
    %v6368 = vld [vmem:[#allocation2 + $0x20] sm:$0xff]
    %v6369 = vld [vmem:[#allocation2 + $0x28] sm:$0xff]
    %v6370 = vld [vmem:[#allocation2 + $0x30] sm:$0xff]
    %v6371 = vld [vmem:[#allocation2 + $0x38] sm:$0xff]
    %v6372 = vld [vmem:[#allocation2 + $0x40] sm:$0xff]
    %v6373 = vld [vmem:[#allocation2 + $0x48] sm:$0xff]
    %v6374 = vld [vmem:[#allocation2 + $0x50] sm:$0xff]
    %v6375 = vld [vmem:[#allocation2 + $0x58] sm:$0xff]
    %v6376 = vld [vmem:[#allocation2 + $0x60] sm:$0xff]
    %v6377 = vld [vmem:[#allocation2 + $0x68] sm:$0xff]
    %v6378 = vld [vmem:[#allocation2 + $0x70] sm:$0xff]
    %v6379 = vld [vmem:[#allocation2 + $0x78] sm:$0xff]
    %v6380 = vld [vmem:[%s55] sm:$0xf]
    %v6381 = vld [vmem:[%s55 + $0x4] sm:$0xf]
    %v6382 = vld [vmem:[%s55 + $0x8] sm:$0xf]
    %v6383 = vld [vmem:[%s55 + $0xc] sm:$0xf]
    %v6384 = vpack.c.bf16 %v6365, %v6364
    %v6385 = vpack.c.bf16 %v6367, %v6366
    %v6386 = vpack.c.bf16 %v6369, %v6368
    %v6387 = vpack.c.bf16 %v6371, %v6370
    %v6388 = vpack.c.bf16 %v6373, %v6372
    %v6389 = vpack.c.bf16 %v6375, %v6374
    %v6390 = vpack.c.bf16 %v6377, %v6376
    %v6391 = vpack.c.bf16 %v6379, %v6378
    %v6392 = vld [vmem:[#allocation3] sm:$0xff]
    %v6393 = vld [vmem:[#allocation3 + $0x8] sm:$0xff]
    %v6394 = vld [vmem:[#allocation3 + $0x10] sm:$0xff]
    %v6395 = vld [vmem:[#allocation3 + $0x18] sm:$0xff]
    %v6396 = vld [vmem:[#allocation3 + $0x20] sm:$0xff]
    %v6397 = vld [vmem:[#allocation3 + $0x28] sm:$0xff]
    %v6398 = vld [vmem:[#allocation3 + $0x30] sm:$0xff]
    %v6399 = vld [vmem:[#allocation3 + $0x38] sm:$0xff]
    %v6400 = vld [vmem:[#allocation3 + $0x40] sm:$0xff]
    %v6401 = vld [vmem:[#allocation3 + $0x48] sm:$0xff]
    %v6402 = vld [vmem:[#allocation3 + $0x50] sm:$0xff]
    %v6403 = vld [vmem:[#allocation3 + $0x58] sm:$0xff]
    %v6404 = vld [vmem:[#allocation3 + $0x60] sm:$0xff]
    %v6405 = vld [vmem:[#allocation3 + $0x68] sm:$0xff]
    %v6406 = vld [vmem:[#allocation3 + $0x70] sm:$0xff]
    %v6407 = vld [vmem:[#allocation3 + $0x78] sm:$0xff]
    %v6408 = vld [vmem:[%s57] sm:$0xf]
    %v6409 = vld [vmem:[%s57 + $0x4] sm:$0xf]
    %v6410 = vld [vmem:[%s57 + $0x8] sm:$0xf]
    %v6411 = vld [vmem:[%s57 + $0xc] sm:$0xf]
    %v6412 = vpack.c.bf16 %v6393, %v6392
    %v6413 = vpack.c.bf16 %v6395, %v6394
    %v6414 = vpack.c.bf16 %v6397, %v6396
    %v6415 = vpack.c.bf16 %v6399, %v6398
    %v6416 = vpack.c.bf16 %v6401, %v6400
    %v6417 = vpack.c.bf16 %v6403, %v6402
    %v6418 = vpack.c.bf16 %v6405, %v6404
    %v6419 = vpack.c.bf16 %v6407, %v6406
    %v6424 = vunpack.c.l.b16 %v6408
    %v6425 = vunpack.c.l.b16 %v6409
    %v6426 = vunpack.c.l.b16 %v6410
    %v6427 = vunpack.c.l.b16 %v6411
    %v6428 = vpack.c.b16 %v6425, %v6424
    %v6429 = vpack.c.b16 %v6427, %v6426
    %v6433 = vsel %vm761, %v6412, 0
    %v6436 = vsel %vm761, %v6413, 0
    %v6439 = vsel %vm761, %v6414, 0
    %v6442 = vsel %vm761, %v6415, 0
    %v6445 = vsel %vm761, %v6416, 0
    %v6448 = vsel %vm761, %v6417, 0
    %v6451 = vsel %vm761, %v6418, 0
    %v6454 = vsel %vm761, %v6419, 0
    %6456 = vmatprep.subr.bf16.mxu0 0
    %6457 = vmatpush1.bf16.msra.mxu0 0
    %6458 = vmatprep.subr.bf16.mxu0 0
    %6459 = vmatpush1.bf16.msra.mxu0 0
    %6460 = vmatprep.subr.bf16.mxu0 0
    %6461 = vmatpush1.bf16.msra.mxu0 0
    %6462 = vmatprep.subr.bf16.mxu0 0
    %6463 = vmatpush1.bf16.msra.mxu0 0
    %6464 = vmatprep.subr.bf16.mxu0 0
    %6465 = vmatpush1.bf16.msra.mxu0 0
    %6466 = vmatprep.subr.bf16.mxu0 0
    %6467 = vmatpush1.bf16.msra.mxu0 0
    %6468 = vmatprep.subr.bf16.mxu0 0
    %6469 = vmatpush1.bf16.msra.mxu0 %v6429
    %6470 = vmatprep.subr.bf16.mxu0 0
    %6471 = vmatpush1.bf16.msra.mxu0 %v6428
    %6472 = vmatprep.subr.bf16.mxu0 0
    %6473 = vmatpush2.bf16.msra.mxu0 0
    %6474 = vmatprep.subr.bf16.mxu0 0
    %6475 = vmatpush2.bf16.msra.mxu0 0
    %6476 = vmatprep.subr.bf16.mxu0 0
    %6477 = vmatpush2.bf16.msra.mxu0 0
    %6478 = vmatprep.subr.bf16.mxu0 0
    %6479 = vmatpush2.bf16.msra.mxu0 0
    %6480 = vmatprep.subr.bf16.mxu0 0
    %6481 = vmatpush2.bf16.msra.mxu0 0
    %6482 = vmatprep.subr.bf16.mxu0 0
    %6483 = vmatpush2.bf16.msra.mxu0 0
    %6484 = vmatprep.subr.bf16.mxu0 0
    %6485 = vmatpush2.bf16.msra.mxu0 0
    %6486 = vmatprep.subr.bf16.mxu0 0
    %6487 = vmatpush2.bf16.msra.mxu0 0
    %6488 = vmatprep.mubr.bf16.mxu0 0
    %6489 = vmatmul.mubr.bf16.gmra.mxu0 %v6433
    %v6490 = vpop.f32.mrf.mxu0
    %v6491 = vadd.f32 0.0, %v6490
    %v6492 = vpop.f32.mrf.mxu0
    %v6493 = vpop.f32.mrf.mxu0
    %v6494 = vadd.f32 0.0, %v6493
    %v6495 = vpop.f32.mrf.mxu0
    %6496 = vmatprep.mubr.bf16.mxu0 0
    %6497 = vmatmul.mubr.bf16.gmra.mxu0 %v6436
    %v6498 = vpop.f32.mrf.mxu0
    %v6499 = vadd.f32 0.0, %v6498
    %v6500 = vpop.f32.mrf.mxu0
    %v6501 = vpop.f32.mrf.mxu0
    %v6502 = vadd.f32 0.0, %v6501
    %v6503 = vpop.f32.mrf.mxu0
    %6504 = vmatprep.mubr.bf16.mxu0 0
    %6505 = vmatmul.mubr.bf16.gmra.mxu0 %v6439
    %v6506 = vpop.f32.mrf.mxu0
    %v6507 = vadd.f32 0.0, %v6506
    %v6508 = vpop.f32.mrf.mxu0
    %v6509 = vpop.f32.mrf.mxu0
    %v6510 = vadd.f32 0.0, %v6509
    %v6511 = vpop.f32.mrf.mxu0
    %6512 = vmatprep.mubr.bf16.mxu0 0
    %6513 = vmatmul.mubr.bf16.gmra.mxu0 %v6442
    %v6514 = vpop.f32.mrf.mxu0
    %v6515 = vadd.f32 0.0, %v6514
    %v6516 = vpop.f32.mrf.mxu0
    %v6517 = vpop.f32.mrf.mxu0
    %v6518 = vadd.f32 0.0, %v6517
    %v6519 = vpop.f32.mrf.mxu0
    %6520 = vmatprep.mubr.bf16.mxu0 0
    %6521 = vmatmul.mubr.bf16.gmra.mxu0 %v6445
    %v6522 = vpop.f32.mrf.mxu0
    %v6523 = vadd.f32 0.0, %v6522
    %v6524 = vpop.f32.mrf.mxu0
    %v6525 = vpop.f32.mrf.mxu0
    %v6526 = vadd.f32 0.0, %v6525
    %v6527 = vpop.f32.mrf.mxu0
    %6528 = vmatprep.mubr.bf16.mxu0 0
    %6529 = vmatmul.mubr.bf16.gmra.mxu0 %v6448
    %v6530 = vpop.f32.mrf.mxu0
    %v6531 = vadd.f32 0.0, %v6530
    %v6532 = vpop.f32.mrf.mxu0
    %v6533 = vpop.f32.mrf.mxu0
    %v6534 = vadd.f32 0.0, %v6533
    %v6535 = vpop.f32.mrf.mxu0
    %6536 = vmatprep.mubr.bf16.mxu0 0
    %6537 = vmatmul.mubr.bf16.gmra.mxu0 %v6451
    %v6538 = vpop.f32.mrf.mxu0
    %v6539 = vadd.f32 0.0, %v6538
    %v6540 = vpop.f32.mrf.mxu0
    %v6541 = vpop.f32.mrf.mxu0
    %v6542 = vadd.f32 0.0, %v6541
    %v6543 = vpop.f32.mrf.mxu0
    %6544 = vmatprep.mubr.bf16.mxu0 0
    %6545 = vmatmul.mubr.bf16.gmra.mxu0 %v6454
    %v6546 = vpop.f32.mrf.mxu0
    %v6547 = vadd.f32 0.0, %v6546
    %v6548 = vpop.f32.mrf.mxu0
    %v6549 = vpop.f32.mrf.mxu0
    %v6550 = vadd.f32 0.0, %v6549
    %v6551 = vpop.f32.mrf.mxu0
    %6552 = vdwg.mxu0
    %v6557 = vunpack.c.l.b16 %v6380
    %v6558 = vunpack.c.l.b16 %v6381
    %v6559 = vunpack.c.l.b16 %v6382
    %v6560 = vunpack.c.l.b16 %v6383
    %v6561 = vpack.c.b16 %v6558, %v6557
    %v6562 = vpack.c.b16 %v6560, %v6559
    %v6566 = vsel %vm761, %v6384, 0
    %v6569 = vsel %vm761, %v6385, 0
    %v6572 = vsel %vm761, %v6386, 0
    %v6575 = vsel %vm761, %v6387, 0
    %v6578 = vsel %vm761, %v6388, 0
    %v6581 = vsel %vm761, %v6389, 0
    %v6584 = vsel %vm761, %v6390, 0
    %v6587 = vsel %vm761, %v6391, 0
    %6589 = vmatprep.subr.bf16.mxu0 0
    %6590 = vmatpush1.bf16.msra.mxu0 0
    %6591 = vmatprep.subr.bf16.mxu0 0
    %6592 = vmatpush1.bf16.msra.mxu0 0
    %6593 = vmatprep.subr.bf16.mxu0 0
    %6594 = vmatpush1.bf16.msra.mxu0 0
    %6595 = vmatprep.subr.bf16.mxu0 0
    %6596 = vmatpush1.bf16.msra.mxu0 0
    %6597 = vmatprep.subr.bf16.mxu0 0
    %6598 = vmatpush1.bf16.msra.mxu0 0
    %6599 = vmatprep.subr.bf16.mxu0 0
    %6600 = vmatpush1.bf16.msra.mxu0 0
    %6601 = vmatprep.subr.bf16.mxu0 0
    %6602 = vmatpush1.bf16.msra.mxu0 %v6562
    %6603 = vmatprep.subr.bf16.mxu0 0
    %6604 = vmatpush1.bf16.msra.mxu0 %v6561
    %6605 = vmatprep.subr.bf16.mxu0 0
    %6606 = vmatpush2.bf16.msra.mxu0 0
    %6607 = vmatprep.subr.bf16.mxu0 0
    %6608 = vmatpush2.bf16.msra.mxu0 0
    %6609 = vmatprep.subr.bf16.mxu0 0
    %6610 = vmatpush2.bf16.msra.mxu0 0
    %6611 = vmatprep.subr.bf16.mxu0 0
    %6612 = vmatpush2.bf16.msra.mxu0 0
    %6613 = vmatprep.subr.bf16.mxu0 0
    %6614 = vmatpush2.bf16.msra.mxu0 0
    %6615 = vmatprep.subr.bf16.mxu0 0
    %6616 = vmatpush2.bf16.msra.mxu0 0
    %6617 = vmatprep.subr.bf16.mxu0 0
    %6618 = vmatpush2.bf16.msra.mxu0 0
    %6619 = vmatprep.subr.bf16.mxu0 0
    %6620 = vmatpush2.bf16.msra.mxu0 0
    %6621 = vmatprep.mubr.bf16.mxu0 0
    %6622 = vmatmul.mubr.bf16.gmra.mxu0 %v6566
    %v6623 = vpop.f32.mrf.mxu0
    %v6624 = vadd.f32 %v6491, %v6623
    %v6625 = vpop.f32.mrf.mxu0
    %v6626 = vpop.f32.mrf.mxu0
    %v6627 = vadd.f32 %v6494, %v6626
    %v6628 = vpop.f32.mrf.mxu0
    %6629 = vmatprep.mubr.bf16.mxu0 0
    %6630 = vmatmul.mubr.bf16.gmra.mxu0 %v6569
    %v6631 = vpop.f32.mrf.mxu0
    %v6632 = vadd.f32 %v6499, %v6631
    %v6633 = vpop.f32.mrf.mxu0
    %v6634 = vpop.f32.mrf.mxu0
    %v6635 = vadd.f32 %v6502, %v6634
    %v6636 = vpop.f32.mrf.mxu0
    %6637 = vmatprep.mubr.bf16.mxu0 0
    %6638 = vmatmul.mubr.bf16.gmra.mxu0 %v6572
    %v6639 = vpop.f32.mrf.mxu0
    %v6640 = vadd.f32 %v6507, %v6639
    %v6641 = vpop.f32.mrf.mxu0
    %v6642 = vpop.f32.mrf.mxu0
    %v6643 = vadd.f32 %v6510, %v6642
    %v6644 = vpop.f32.mrf.mxu0
    %6645 = vmatprep.mubr.bf16.mxu0 0
    %6646 = vmatmul.mubr.bf16.gmra.mxu0 %v6575
    %v6647 = vpop.f32.mrf.mxu0
    %v6648 = vadd.f32 %v6515, %v6647
    %v6649 = vpop.f32.mrf.mxu0
    %v6650 = vpop.f32.mrf.mxu0
    %v6651 = vadd.f32 %v6518, %v6650
    %v6652 = vpop.f32.mrf.mxu0
    %6653 = vmatprep.mubr.bf16.mxu0 0
    %6654 = vmatmul.mubr.bf16.gmra.mxu0 %v6578
    %v6655 = vpop.f32.mrf.mxu0
    %v6656 = vadd.f32 %v6523, %v6655
    %v6657 = vpop.f32.mrf.mxu0
    %v6658 = vpop.f32.mrf.mxu0
    %v6659 = vadd.f32 %v6526, %v6658
    %v6660 = vpop.f32.mrf.mxu0
    %6661 = vmatprep.mubr.bf16.mxu0 0
    %6662 = vmatmul.mubr.bf16.gmra.mxu0 %v6581
    %v6663 = vpop.f32.mrf.mxu0
    %v6664 = vadd.f32 %v6531, %v6663
    %v6665 = vpop.f32.mrf.mxu0
    %v6666 = vpop.f32.mrf.mxu0
    %v6667 = vadd.f32 %v6534, %v6666
    %v6668 = vpop.f32.mrf.mxu0
    %6669 = vmatprep.mubr.bf16.mxu0 0
    %6670 = vmatmul.mubr.bf16.gmra.mxu0 %v6584
    %v6671 = vpop.f32.mrf.mxu0
    %v6672 = vadd.f32 %v6539, %v6671
    %v6673 = vpop.f32.mrf.mxu0
    %v6674 = vpop.f32.mrf.mxu0
    %v6675 = vadd.f32 %v6542, %v6674
    %v6676 = vpop.f32.mrf.mxu0
    %6677 = vmatprep.mubr.bf16.mxu0 0
    %6678 = vmatmul.mubr.bf16.gmra.mxu0 %v6587
    %v6679 = vpop.f32.mrf.mxu0
    %v6680 = vadd.f32 %v6547, %v6679
    %v6681 = vpop.f32.mrf.mxu0
    %v6682 = vpop.f32.mrf.mxu0
    %v6683 = vadd.f32 %v6550, %v6682
    %v6684 = vpop.f32.mrf.mxu0
    %6685 = vdwg.mxu0
    %v6686 = vld [vmem:[#allocation16] sm:$0x1]
    %v6688 = vlaneseq
    %v6689 = vshrl.u32 %v6688, 7
    %v6690 = vsub.s32 0, %v6689
    %v6691 = vrot.slane %v6686, %v6690
    %v6693 = vadd.f32 %v6624, %v6691
    %v6694 = vadd.f32 %v6627, %v6691
    %v6695 = vadd.f32 %v6632, %v6691
    %v6696 = vadd.f32 %v6635, %v6691
    %v6697 = vadd.f32 %v6640, %v6691
    %v6698 = vadd.f32 %v6643, %v6691
    %v6699 = vadd.f32 %v6648, %v6691
    %v6700 = vadd.f32 %v6651, %v6691
    %v6701 = vadd.f32 %v6656, %v6691
    %v6702 = vadd.f32 %v6659, %v6691
    %v6703 = vadd.f32 %v6664, %v6691
    %v6704 = vadd.f32 %v6667, %v6691
    %v6705 = vadd.f32 %v6672, %v6691
    %v6706 = vadd.f32 %v6675, %v6691
    %v6707 = vadd.f32 %v6680, %v6691
    %v6708 = vadd.f32 %v6683, %v6691
    %v6709 = vmax.f32 %v6693, 0.0
    %v6710 = vmax.f32 %v6694, 0.0
    %v6711 = vmax.f32 %v6695, 0.0
    %v6712 = vmax.f32 %v6696, 0.0
    %v6713 = vmax.f32 %v6697, 0.0
    %v6714 = vmax.f32 %v6698, 0.0
    %v6715 = vmax.f32 %v6699, 0.0
    %v6716 = vmax.f32 %v6700, 0.0
    %v6717 = vmax.f32 %v6701, 0.0
    %v6718 = vmax.f32 %v6702, 0.0
    %v6719 = vmax.f32 %v6703, 0.0
    %v6720 = vmax.f32 %v6704, 0.0
    %v6721 = vmax.f32 %v6705, 0.0
    %v6722 = vmax.f32 %v6706, 0.0
    %v6723 = vmax.f32 %v6707, 0.0
    %v6724 = vmax.f32 %v6708, 0.0
    %v6725 = vmax.f32 %v6709, %v6711
    %v6726 = vmax.f32 %v6710, %v6712
    %v6727 = vmax.f32 %v6725, %v6713
    %v6728 = vmax.f32 %v6726, %v6714
    %v6729 = vmax.f32 %v6727, %v6715
    %v6730 = vmax.f32 %v6728, %v6716
    %v6731 = vmax.f32 %v6729, %v6717
    %v6732 = vmax.f32 %v6730, %v6718
    %v6733 = vmax.f32 %v6731, %v6719
    %v6734 = vmax.f32 %v6732, %v6720
    %v6735 = vmax.f32 %v6733, %v6721
    %v6736 = vmax.f32 %v6734, %v6722
    %v6737 = vmax.f32 %v6735, %v6723
    %v6738 = vmax.f32 %v6736, %v6724
    %v6739 = vld [vmem:[#allocation18] sm:$0xf]
    %v6740 = vld [vmem:[#allocation18 + $0x4] sm:$0xf]
    %v6741 = vld [vmem:[#allocation18 + $0x8] sm:$0xf]
    %v6742 = vld [vmem:[#allocation18 + $0xc] sm:$0xf]
    %v6743 = vpack.c.bf16 %v6737, %v6737
    %v6744 = vld [vmem:[#allocation19] sm:$0xf]
    %v6745 = vld [vmem:[#allocation19 + $0x4] sm:$0xf]
    %v6746 = vld [vmem:[#allocation19 + $0x8] sm:$0xf]
    %v6747 = vld [vmem:[#allocation19 + $0xc] sm:$0xf]
    %v6748 = vpack.c.bf16 %v6738, %v6738
    %v6753 = vunpack.c.l.b16 %v6744
    %v6754 = vunpack.c.l.b16 %v6745
    %v6755 = vunpack.c.l.b16 %v6746
    %v6756 = vunpack.c.l.b16 %v6747
    %v6757 = vpack.c.b16 %v6754, %v6753
    %v6758 = vpack.c.b16 %v6756, %v6755
    %v6762 = vsel %vm761, %v6748, 0
    %6764 = vmatprep.subr.bf16.mxu0 0
    %6765 = vmatpush1.bf16.msra.mxu0 0
    %6766 = vmatprep.subr.bf16.mxu0 0
    %6767 = vmatpush1.bf16.msra.mxu0 0
    %6768 = vmatprep.subr.bf16.mxu0 0
    %6769 = vmatpush1.bf16.msra.mxu0 0
    %6770 = vmatprep.subr.bf16.mxu0 0
    %6771 = vmatpush1.bf16.msra.mxu0 0
    %6772 = vmatprep.subr.bf16.mxu0 0
    %6773 = vmatpush1.bf16.msra.mxu0 0
    %6774 = vmatprep.subr.bf16.mxu0 0
    %6775 = vmatpush1.bf16.msra.mxu0 0
    %6776 = vmatprep.subr.bf16.mxu0 0
    %6777 = vmatpush1.bf16.msra.mxu0 %v6758
    %6778 = vmatprep.subr.bf16.mxu0 0
    %6779 = vmatpush1.bf16.msra.mxu0 %v6757
    %6780 = vmatprep.subr.bf16.mxu0 0
    %6781 = vmatpush2.bf16.msra.mxu0 0
    %6782 = vmatprep.subr.bf16.mxu0 0
    %6783 = vmatpush2.bf16.msra.mxu0 0
    %6784 = vmatprep.subr.bf16.mxu0 0
    %6785 = vmatpush2.bf16.msra.mxu0 0
    %6786 = vmatprep.subr.bf16.mxu0 0
    %6787 = vmatpush2.bf16.msra.mxu0 0
    %6788 = vmatprep.subr.bf16.mxu0 0
    %6789 = vmatpush2.bf16.msra.mxu0 0
    %6790 = vmatprep.subr.bf16.mxu0 0
    %6791 = vmatpush2.bf16.msra.mxu0 0
    %6792 = vmatprep.subr.bf16.mxu0 0
    %6793 = vmatpush2.bf16.msra.mxu0 0
    %6794 = vmatprep.subr.bf16.mxu0 0
    %6795 = vmatpush2.bf16.msra.mxu0 0
    %6796 = vmatprep.mubr.bf16.mxu0 0
    %6797 = vmatmul.mubr.bf16.gmra.mxu0 %v6762
    %v6798 = vpop.f32.mrf.mxu0
    %v6799 = vadd.f32 0.0, %v6798
    %v6800 = vpop.f32.mrf.mxu0
    %v6801 = vpop.f32.mrf.mxu0
    %v6802 = vpop.f32.mrf.mxu0
    %6803 = vdwg.mxu0
    %v6808 = vunpack.c.l.b16 %v6739
    %v6809 = vunpack.c.l.b16 %v6740
    %v6810 = vunpack.c.l.b16 %v6741
    %v6811 = vunpack.c.l.b16 %v6742
    %v6812 = vpack.c.b16 %v6809, %v6808
    %v6813 = vpack.c.b16 %v6811, %v6810
    %v6817 = vsel %vm761, %v6743, 0
    %6819 = vmatprep.subr.bf16.mxu0 0
    %6820 = vmatpush1.bf16.msra.mxu0 0
    %6821 = vmatprep.subr.bf16.mxu0 0
    %6822 = vmatpush1.bf16.msra.mxu0 0
    %6823 = vmatprep.subr.bf16.mxu0 0
    %6824 = vmatpush1.bf16.msra.mxu0 0
    %6825 = vmatprep.subr.bf16.mxu0 0
    %6826 = vmatpush1.bf16.msra.mxu0 0
    %6827 = vmatprep.subr.bf16.mxu0 0
    %6828 = vmatpush1.bf16.msra.mxu0 0
    %6829 = vmatprep.subr.bf16.mxu0 0
    %6830 = vmatpush1.bf16.msra.mxu0 0
    %6831 = vmatprep.subr.bf16.mxu0 0
    %6832 = vmatpush1.bf16.msra.mxu0 %v6813
    %6833 = vmatprep.subr.bf16.mxu0 0
    %6834 = vmatpush1.bf16.msra.mxu0 %v6812
    %6835 = vmatprep.subr.bf16.mxu0 0
    %6836 = vmatpush2.bf16.msra.mxu0 0
    %6837 = vmatprep.subr.bf16.mxu0 0
    %6838 = vmatpush2.bf16.msra.mxu0 0
    %6839 = vmatprep.subr.bf16.mxu0 0
    %6840 = vmatpush2.bf16.msra.mxu0 0
    %6841 = vmatprep.subr.bf16.mxu0 0
    %6842 = vmatpush2.bf16.msra.mxu0 0
    %6843 = vmatprep.subr.bf16.mxu0 0
    %6844 = vmatpush2.bf16.msra.mxu0 0
    %6845 = vmatprep.subr.bf16.mxu0 0
    %6846 = vmatpush2.bf16.msra.mxu0 0
    %6847 = vmatprep.subr.bf16.mxu0 0
    %6848 = vmatpush2.bf16.msra.mxu0 0
    %6849 = vmatprep.subr.bf16.mxu0 0
    %6850 = vmatpush2.bf16.msra.mxu0 0
    %6851 = vmatprep.mubr.bf16.mxu0 0
    %6852 = vmatmul.mubr.bf16.gmra.mxu0 %v6817
    %v6853 = vpop.f32.mrf.mxu0
    %v6854 = vadd.f32 %v6799, %v6853
    %v6855 = vpop.f32.mrf.mxu0
    %v6856 = vpop.f32.mrf.mxu0
    %v6857 = vpop.f32.mrf.mxu0
    %6858 = vdwg.mxu0
    %v6859 = vld [vmem:[#allocation21] sm:$0x1]
    %v6861 = vlaneseq
    %v6862 = vshrl.u32 %v6861, 7
    %v6863 = vsub.s32 0, %v6862
    %v6864 = vrot.slane %v6859, %v6863
    %v6866 = vadd.f32 %v6854, %v6864
    %v6867 = vmax.f32 %v6866, 0.0
    %v6868 = vld [vmem:[%s67] sm:$0xf]
    %v6869 = vld [vmem:[%s67 + $0x4] sm:$0xf]
    %v6870 = vld [vmem:[%s67 + $0x8] sm:$0xf]
    %v6871 = vld [vmem:[%s67 + $0xc] sm:$0xf]
    %v6872 = vpack.c.bf16 %v6867, %v6867
    %v6873 = vld [vmem:[#allocation4] sm:$0x1]
    %v6875 = vlaneseq
    %v6876 = vshrl.u32 %v6875, 7
    %v6877 = vsub.s32 0, %v6876
    %v6878 = vrot.slane %v6873, %v6877
    %v6884 = vunpack.c.l.b16 %v6868
    %v6885 = vunpack.c.l.b16 %v6869
    %v6886 = vunpack.c.l.b16 %v6870
    %v6887 = vunpack.c.l.b16 %v6871
    %v6888 = vpack.c.b16 %v6885, %v6884
    %v6889 = vpack.c.b16 %v6887, %v6886
    %v6893 = vsel %vm761, %v6872, 0
    %6895 = vmatprep.subr.bf16.mxu0 0
    %6896 = vmatpush1.bf16.msra.mxu0 0
    %6897 = vmatprep.subr.bf16.mxu0 0
    %6898 = vmatpush1.bf16.msra.mxu0 0
    %6899 = vmatprep.subr.bf16.mxu0 0
    %6900 = vmatpush1.bf16.msra.mxu0 0
    %6901 = vmatprep.subr.bf16.mxu0 0
    %6902 = vmatpush1.bf16.msra.mxu0 0
    %6903 = vmatprep.subr.bf16.mxu0 0
    %6904 = vmatpush1.bf16.msra.mxu0 0
    %6905 = vmatprep.subr.bf16.mxu0 0
    %6906 = vmatpush1.bf16.msra.mxu0 0
    %6907 = vmatprep.subr.bf16.mxu0 0
    %6908 = vmatpush1.bf16.msra.mxu0 %v6889
    %6909 = vmatprep.subr.bf16.mxu0 0
    %6910 = vmatpush1.bf16.msra.mxu0 %v6888
    %6911 = vmatprep.subr.bf16.mxu0 0
    %6912 = vmatpush2.bf16.msra.mxu0 0
    %6913 = vmatprep.subr.bf16.mxu0 0
    %6914 = vmatpush2.bf16.msra.mxu0 0
    %6915 = vmatprep.subr.bf16.mxu0 0
    %6916 = vmatpush2.bf16.msra.mxu0 0
    %6917 = vmatprep.subr.bf16.mxu0 0
    %6918 = vmatpush2.bf16.msra.mxu0 0
    %6919 = vmatprep.subr.bf16.mxu0 0
    %6920 = vmatpush2.bf16.msra.mxu0 0
    %6921 = vmatprep.subr.bf16.mxu0 0
    %6922 = vmatpush2.bf16.msra.mxu0 0
    %6923 = vmatprep.subr.bf16.mxu0 0
    %6924 = vmatpush2.bf16.msra.mxu0 0
    %6925 = vmatprep.subr.bf16.mxu0 0
    %6926 = vmatpush2.bf16.msra.mxu0 0
    %6927 = vmatprep.mubr.bf16.mxu0 0
    %6928 = vmatmul.mubr.bf16.gmra.mxu0 %v6893
    %v6929 = vpop.f32.mrf.mxu0
    %v6930 = vadd.f32 %v6878, %v6929
    %v6931 = vpop.f32.mrf.mxu0
    %v6932 = vpop.f32.mrf.mxu0
    %v6933 = vpop.f32.mrf.mxu0
    %6934 = vdwg.mxu0
    %vm6935 = vcmask 7168
    %6936 = vst.msk [vmem:[%s71] sm:$0xff] %vm6935, %v6930
    // Predicated region
    $region186: #{pipr_forward.1} parent=1 // pred_check
      _
    $region187: #{pipr_forward.1} parent=1 // pred_check_branch
      %6938 = sbr.rel (0) target = $region189
    $region188: #{pipr_forward.1} parent=1 // pred_region
      _
    $region189: #{pipr_forward.1} parent=1 // pred_fallthru
      _
    // Predicated region
    $region190: #{pipr_forward.1} parent=1 // pred_check
      _
    $region191: #{pipr_forward.1} parent=1 // pred_check_branch
      %6940 = sbr.rel (0) target = $region193
    $region192: #{pipr_forward.1} parent=1 // pred_region
      _
    $region193: #{pipr_forward.1} parent=1 // pred_fallthru
      _
    %6941 = vsyncpa [#allocation6], 1
    %6942 = vsyncpa [#allocation8], 1
    %6943 = vsyncpa [#allocation11], 1
    %6944 = vsyncpa [#allocation14], 1
    %6945 = vsyncpa [#allocation17], 1
    %6946 = vsyncpa [#allocation20], 1

</llo_original>
